<compile_context>
chip_gen: v5e
topology: v5e:2x2
jax: 0.10.0
libtpu: 0.0.40
codegen_flags: <defaults>
</compile_context>

<pallas_src>
import functools
import inspect

import jax
import jax.numpy as jnp
import numpy as np
from jax.experimental import pallas as pl
from jax.experimental.pallas import tpu as pltpu

EPS = 1e-5           # nn.LayerNorm default eps
MIX_ROWS_MAX = 512   # cap on block_b*T so the block-diag mix matrix stays small


def mixer_block_kernel(x_ref, mbd_ref, wo_ref, cb_ref,
                       g_seq_ref, b_seq_ref, g_pat_ref, b_pat_ref,
                       wff1_ref, bff1_ref, wff2_ref, bff2_ref,
                       o_ref, x2_s, xn2_s, acc_s, *, elt_dtype):
    bblk, t, d = x_ref.shape
    bt = bblk * t
    md = mbd_ref.dtype                    # matmul operand dtype (bf16 or f32)
    ki = pl.program_id(1)                 # FFN inner-dim block index (reduction axis)

    @pl.when(ki == 0)
    def _prologue():
        # Everything below is 2D (BT, D); the reshape is free when
        # (block_b*T) % 8 == 0 and D % 128 == 0.
        x2d = x_ref[...].astype(jnp.float32).reshape(bt, d)

        # ---- seq_layernorm (f32; one-pass variance, clamped) ----
        mu = jnp.mean(x2d, axis=-1, keepdims=True)
        var = jnp.maximum(jnp.mean(x2d * x2d, axis=-1, keepdims=True) - mu * mu, 0.0)
        xn = (x2d - mu) * jax.lax.rsqrt(var + EPS) * g_seq_ref[...] + b_seq_ref[...]

        # ---- MixerHead token mix as ONE 2D MXU matmul ----
        # mbd = block_diag(M, ..., M): y[b*T+t] = sum_s M[t,s] * xn[b*T+s].
        y2d = jnp.dot(mbd_ref[...], xn.astype(md),
                      preferred_element_type=jnp.float32)

        # ---- out_proj (two duplicated head matmuls fused into one) + folded bias ----
        h2d = jnp.dot(y2d.astype(md), wo_ref[...],
                      preferred_element_type=jnp.float32)
        x2 = h2d + cb_ref[...] + x2d                       # residual 1
        x2_s[...] = x2

        # ---- patch_layernorm (two-pass: post-residual means can be large) ----
        mu2 = jnp.mean(x2, axis=-1, keepdims=True)
        c = x2 - mu2
        var2 = jnp.mean(c * c, axis=-1, keepdims=True)
        xn2 = c * jax.lax.rsqrt(var2 + EPS) * g_pat_ref[...] + b_pat_ref[...]
        xn2_s[...] = xn2.astype(xn2_s.dtype)
        acc_s[...] = jnp.zeros_like(acc_s)

    # ---- patch_ff (tiled over the 4*D inner dim): Linear -> GELU(erf) -> Linear ----
    # Bias add and x*Phi(x) run in elt_dtype (bf16 on v6e/v7x, f32 on v5e);
    # erf is evaluated in f32 so exact-erf semantics / lowering are preserved.
    hid = jnp.dot(xn2_s[...].astype(md), wff1_ref[...],
                  preferred_element_type=elt_dtype) + bff1_ref[...]
    phi = jax.lax.erf(hid.astype(jnp.float32) * 0.7071067811865476) * 0.5 + 0.5
    hid = hid * phi.astype(hid.dtype)
    acc_s[...] += jnp.dot(hid.astype(md), wff2_ref[...],
                          preferred_element_type=jnp.float32)

    @pl.when(ki == pl.num_programs(1) - 1)
    def _epilogue():
        o_ref[...] = ((acc_s[...] + bff2_ref[...] + x2_s[...])   # residual 2
                      .reshape(bblk, t, d).astype(o_ref.dtype))


def _chip_profile():
    """Per-generation sizing knobs (v5e / v6e / v7x)."""
    kind = ""
    try:
        kind = jax.devices()[0].device_kind.lower()
    except Exception:
        pass
    vmem_bytes = None
    try:
        vmem_bytes = int(pltpu.get_tpu_info().vmem_capacity_bytes)
    except Exception:
        pass
    if vmem_bytes is None:
        # 128 MiB on v4/v5/v6; assume the small (64 MiB, v7x-like) size if unknown.
        vmem_bytes = (128 << 20) if any(v in kind for v in ("v4", "v5", "v6")) else (64 << 20)
    is_v7 = "v7" in kind
    is_v6 = "v6" in kind
    return dict(
        vmem_bytes=vmem_bytes,
        bf16_vpu=is_v6 or is_v7,               # v5e/v5p have no bf16 VPU/EUP
        mxu_rows=256 if (is_v6 or is_v7) else 128,
        min_blocks=4 if is_v7 else 2,          # >=2 grid steps per TensorCore on v7x,
        prefer_even_blocks=is_v7,              # >=2 total elsewhere (pipeline overlap only)
    )


def _pick_inner_block(inner, d, md_size, vmem_bytes):
    """FFN inner-dim tile: keep double-buffered (wff1 + wff2) blocks under ~1/6
    of VMEM (matters for D >= 512-1024 on v7x's 64 MiB)."""
    budget = vmem_bytes // 6
    if 2 * (2 * inner * d * md_size) <= budget:
        return inner
    cands = [c for c in range(128, inner, 128) if inner % c == 0]
    fit = [c for c in cands if 2 * (2 * c * d * md_size) <= budget]
    if fit:
        return max(fit)
    return min(cands) if cands else inner


def _pick_block_b(batch, t, d, inner_blk, io_size, md_size,
                  *, budget_bytes, mxu_rows, min_blocks, prefer_even):
    """Largest batch block (divisor of batch) fitting the VMEM budget, preferring
    enough grid steps (pipeline overlap / megacore) and an MXU-aligned row count."""
    per_b = (2 * 2 * t * d * io_size          # in + out blocks, double-buffered
             + t * d * (4 + 4 + md_size)      # x2 / acc / xn2 scratch
             + 4 * t * (8 * d + 2 * inner_blk))   # generous f32 temporaries
    cap = max(1, int(budget_bytes) // int(per_b))
    cap = min(cap, max(1, MIX_ROWS_MAX // t))     # bound block-diag mix matrix
    divs = [b for b in range(1, batch + 1) if batch % b == 0 and b <= cap]
    if not divs:
        return 1

    def score(b):
        nblocks = batch // b
        return (nblocks >= min_blocks,
                (nblocks % 2 == 0) if prefer_even else True,
                (b * t) % mxu_rows == 0,
                b)
    return max(divs, key=score)


def _single_buffer_mode():
    """pl.Buffered(1) for grid-constant weight blocks, if this JAX supports it."""
    if not hasattr(pl, "Buffered"):
        return None
    try:
        if "pipeline_mode" not in inspect.signature(pl.BlockSpec).parameters:
            return None
    except (TypeError, ValueError):
        pass
    try:
        return pl.Buffered(1)
    except Exception:
        return None


def mixer_block(x, p, *, block_b=None, matmul_dtype=jnp.bfloat16, interpret=False):
    if x.ndim == 4:                                    # 'b p t f -> (b p) t f'
        x = x.reshape(-1, x.shape[-2], x.shape[-1])
    B, T, D = x.shape
    inner = p["wff1"].shape[0]
    md = jnp.dtype(matmul_dtype)
    md_size = md.itemsize
    prof = _chip_profile()

    # elementwise dtype for the wide (BT, 4D) hidden (bias add + GELU product)
    elt_dtype = jnp.bfloat16 if (prof["bf16_vpu"] and md == jnp.dtype(jnp.bfloat16)) \
        else jnp.float32

    # --- weight preprocessing (mirrors MixerHead.forward's in-place conv-weight
    #     mutation; the reference loop leaves i == n_heads-1, so both heads use
    #     convs[-1] and the proj_head output is discarded) ---
    w = p["conv_w"][-1][:, :, 0]                       # (T, T): [t_out, t_in]
    m = jnp.tril(jax.nn.softmax(jnp.tril(w), axis=0))
    # out_proj fusion: cat([y, y]) @ Wout.T == y @ (Wout[:, :D] + Wout[:, D:]).T
    wo_sum_t = (p["wout"][:, :D] + p["wout"][:, D:]).T                 # (D, D)
    # conv bias (constant along D) folded through out_proj into one (T, D) bias
    comb_bias = (p["conv_b"][-1][:, None] * jnp.sum(wo_sum_t, axis=0)[None, :]
                 + p["bout"][None, :]).astype(jnp.float32)             # (T, D)

    inner_blk = _pick_inner_block(inner, D, md_size, prof["vmem_bytes"])
    n_inner = inner // inner_blk

    budget = min(64 << 20, prof["vmem_bytes"] // 2)    # ~64 MiB v5e/v6e, ~32 MiB v7x
    if block_b is None:
        block_b = _pick_block_b(B, T, D, inner_blk, x.dtype.itemsize, md_size,
                                budget_bytes=budget, mxu_rows=prof["mxu_rows"],
                                min_blocks=prof["min_blocks"],
                                prefer_even=prof["prefer_even_blocks"])
    else:
        block_b = max(b for b in range(1, min(block_b, B) + 1) if B % b == 0)
    bt = block_b * T

    # Block-diagonal token-mix matrix -> one well-shaped 2D MXU matmul per step
    # (block_b*T is capped at MIX_ROWS_MAX so the zero blocks stay cheap).
    mbd = jnp.kron(jnp.eye(block_b, dtype=jnp.float32), m).astype(md)  # (BT, BT)
    cb_tiled = jnp.tile(comb_bias, (block_b, 1))                       # (BT, D)

    weights = [
        mbd,                                            # (BT, BT) block-diag mix
        wo_sum_t.astype(md),                            # (D, D)   fused out_proj
        cb_tiled,                                       # (BT, D)  conv+out_proj bias
        p["g_seq"].reshape(1, D).astype(jnp.float32),
        p["b_seq"].reshape(1, D).astype(jnp.float32),
        p["g_pat"].reshape(1, D).astype(jnp.float32),
        p["b_pat"].reshape(1, D).astype(jnp.float32),
        p["wff1"].T.astype(md),                         # (D, 4D)
        p["bff1"].reshape(1, inner).astype(elt_dtype),
        p["wff2"].T.astype(md),                         # (4D, D)
        p["bff2"].reshape(1, D).astype(jnp.float32),
    ]

    grid = (B // block_b, n_inner)                      # FFN reduction axis last
    const2 = lambda b, k: (0, 0)
    # (block_shape, index_map, grid-constant?) per weight, matching `weights` order.
    w_spec_info = [
        ((bt, bt), const2, True),
        ((D, D), const2, True),
        ((bt, D), const2, True),
        ((1, D), const2, True), ((1, D), const2, True),
        ((1, D), const2, True), ((1, D), const2, True),
        ((D, inner_blk), (lambda b, k: (0, k)), n_inner == 1),
        ((1, inner_blk), (lambda b, k: (0, k)), n_inner == 1),
        ((inner_blk, D), (lambda b, k: (k, 0)), n_inner == 1),
        ((1, D), const2, True),
    ]
    x_spec = pl.BlockSpec((block_b, T, D), lambda b, k: (b, 0, 0))
    out_spec = pl.BlockSpec((block_b, T, D), lambda b, k: (b, 0, 0))

    scratch = [pltpu.VMEM((bt, D), jnp.float32),        # x2 (residual 1)
               pltpu.VMEM((bt, D), md),                 # patch-LN output
               pltpu.VMEM((bt, D), jnp.float32)]        # FFN accumulator

    # Explicit, generation-aware VMEM limit (generous estimate, clamped).
    w_bytes = sum(int(np.prod(wt.shape)) * wt.dtype.itemsize for wt in weights)
    act_bytes = 2 * 2 * bt * D * x.dtype.itemsize
    scratch_bytes = bt * D * (4 + 4 + md_size)
    tmp_bytes = bt * (8 * D + 2 * inner_blk) * 4
    vmem_cap = min(96 << 20, prof["vmem_bytes"] * 3 // 4)   # 96 MiB (128 MiB parts) / 48 MiB (v7x)
    vmem_limit = int(min(max(act_bytes + 2 * w_bytes + scratch_bytes + tmp_bytes
                             + (4 << 20), 32 << 20), vmem_cap))

    kern = functools.partial(mixer_block_kernel, elt_dtype=elt_dtype)

    def run(single_buffer_mode):
        def w_spec(shape, imap, const_ok):
            if single_buffer_mode is not None and const_ok:
                return pl.BlockSpec(shape, imap, pipeline_mode=single_buffer_mode)
            return pl.BlockSpec(shape, imap)
        in_specs = [x_spec] + [w_spec(*info) for info in w_spec_info]
        return pl.pallas_call(
            kern,
            out_shape=jax.ShapeDtypeStruct((B, T, D), x.dtype),
            grid=grid,
            in_specs=in_specs,
            out_specs=out_spec,
            scratch_shapes=scratch,
            compiler_params=pltpu.CompilerParams(
                dimension_semantics=("parallel", "arbitrary"),
                vmem_limit_bytes=vmem_limit),
            interpret=interpret,
        )(x, *weights)

    buf1 = _single_buffer_mode()
    if buf1 is not None:
        try:
            return run(buf1)
        except Exception as e:
            # Only fall back when this build/lowering rejects pipeline_mode/Buffered;
            # re-raise real errors (e.g. VMEM OOM) instead of silently reverting.
            msg = f"{type(e).__name__}: {e}"
            if not any(s in msg for s in ("pipeline_mode", "pipeline mode",
                                          "Buffered", "buffered", "buffer_count")):
                raise
    return run(None)
    # TODO(synk): optionally accept/emit bf16 activations in HBM (halves DMA bytes;
    # helps most on v6e where f32 I/O leaves this kernel near memory-bound).


def init_params(key, dim, length, n_heads=2, expansion=4):
    inner = dim * expansion
    ks = jax.random.split(key, 8)

    def lin(k, out_d, in_d):
        bound = 1.0 / np.sqrt(in_d)
        kw, kb = jax.random.split(k)
        wt = jax.random.uniform(kw, (out_d, in_d), jnp.float32, -bound, bound)
        b = jax.random.uniform(kb, (out_d,), jnp.float32, -bound, bound)
        return wt, b

    conv_w, conv_b = [], []
    for h in range(n_heads):
        wt, b = lin(ks[h], length, length)
        conv_w.append(wt[:, :, None])                  # Conv1d weight shape (T, T, 1)
        conv_b.append(b)
    wout, bout = lin(ks[2], dim, dim * n_heads)
    wff1, bff1 = lin(ks[3], inner, dim)
    wff2, bff2 = lin(ks[4], dim, inner)
    # TODO(synk): proj_head Linears (dim -> 1024 per head) exist in __init__ but
    # their output is discarded in the reference forward (dead code); omitted.
    return dict(
        conv_w=jnp.stack(conv_w), conv_b=jnp.stack(conv_b),
        wout=wout, bout=bout, wff1=wff1, bff1=bff1, wff2=wff2, bff2=bff2,
        g_seq=jnp.ones((dim,), jnp.float32), b_seq=jnp.zeros((dim,), jnp.float32),
        g_pat=jnp.ones((dim,), jnp.float32), b_pat=jnp.zeros((dim,), jnp.float32),
    )


def ref_forward(x, p):
    """Pure-JAX reference mirroring the PyTorch forward semantics (f32)."""
    w = p["conv_w"][-1][:, :, 0]
    m = jnp.tril(jax.nn.softmax(jnp.tril(w), axis=0))

    def ln(v, g, b):
        mu = v.mean(-1, keepdims=True)
        var = ((v - mu) ** 2).mean(-1, keepdims=True)
        return (v - mu) / jnp.sqrt(var + EPS) * g + b

    xn = ln(x, p["g_seq"], p["b_seq"])
    y = jnp.einsum('ft,btd->bfd', m, xn) + p["conv_b"][-1][None, :, None]
    hcat = jnp.concatenate([y, y], axis=-1)
    h = hcat @ p["wout"].T + p["bout"]
    x2 = h + x
    xn2 = ln(x2, p["g_pat"], p["b_pat"])
    hid = jax.nn.gelu(xn2 @ p["wff1"].T + p["bff1"], approximate=False)
    ff = hid @ p["wff2"].T + p["bff2"]
    return ff + x2


if __name__ == "__main__":
    key = jax.random.PRNGKey(0)
    B, P, T, D = 4, 8, 16, 128            # 4D input exercises 'b p t f -> (b p) t f'
    kx, kp = jax.random.split(key)
    x = jax.random.normal(kx, (B, P, T, D), jnp.float32)
    params = init_params(kp, dim=D, length=T)

    ref = ref_forward(x.reshape(-1, T, D), params)

    # f32 matmul-operand path (tolerance allows for MXU f32 dots being decomposed
    # into bf16 passes at default precision, on both kernel and reference sides).
    out_f32 = jax.block_until_ready(mixer_block(x, params, matmul_dtype=jnp.float32))
    np.testing.assert_allclose(np.asarray(out_f32), np.asarray(ref),
                               atol=3e-2, rtol=3e-2)

    # Performance path: bf16 matmul operands (f32 accumulation), bf16 elementwise
    # on the wide FFN hidden where the chip has a bf16 VPU.
    out_bf16 = jax.block_until_ready(mixer_block(x, params))
    np.testing.assert_allclose(np.asarray(out_bf16), np.asarray(ref),
                               atol=1e-1, rtol=5e-2)

    print("KERNEL_OK")
</pallas_src>

<mosaic_0001>
module attributes {stable_mosaic.version = 11 : i64} {
  func.func @mixer_block_kernel(%arg0: i32, %arg1: i32, %arg2: memref<16x16x128xf32, #tpu.memory_space<vmem>>, %arg3: memref<256x256xf32, #tpu.memory_space<vmem>>, %arg4: memref<128x128xf32, #tpu.memory_space<vmem>>, %arg5: memref<256x128xf32, #tpu.memory_space<vmem>>, %arg6: memref<1x128xf32, #tpu.memory_space<vmem>>, %arg7: memref<1x128xf32, #tpu.memory_space<vmem>>, %arg8: memref<1x128xf32, #tpu.memory_space<vmem>>, %arg9: memref<1x128xf32, #tpu.memory_space<vmem>>, %arg10: memref<128x512xf32, #tpu.memory_space<vmem>>, %arg11: memref<1x512xf32, #tpu.memory_space<vmem>>, %arg12: memref<512x128xf32, #tpu.memory_space<vmem>>, %arg13: memref<1x128xf32, #tpu.memory_space<vmem>>, %arg14: memref<16x16x128xf32, #tpu.memory_space<vmem>>, %arg15: memref<256x128xf32, #tpu.memory_space<vmem>>, %arg16: memref<256x128xf32, #tpu.memory_space<vmem>>, %arg17: memref<256x128xf32, #tpu.memory_space<vmem>>) attributes {dimension_semantics = [#tpu.dimension_semantics<parallel>, #tpu.dimension_semantics<arbitrary>], iteration_bounds = array<i64: 2, 1>, scalar_prefetch = 0 : i64, scratch_operands = 3 : i64, tpu.core_type = #tpu.core_type<tc>, window_params = [{transform_indices = @transform_0, window_bounds = array<i64: 16, 16, 128>}, {pipeline_mode = #tpu.pipeline_mode<synchronous>, transform_indices = @transform_1, window_bounds = array<i64: 256, 256>}, {pipeline_mode = #tpu.pipeline_mode<synchronous>, transform_indices = @transform_2, window_bounds = array<i64: 128, 128>}, {pipeline_mode = #tpu.pipeline_mode<synchronous>, transform_indices = @transform_3, window_bounds = array<i64: 256, 128>}, {pipeline_mode = #tpu.pipeline_mode<synchronous>, transform_indices = @transform_4, window_bounds = array<i64: 1, 128>}, {pipeline_mode = #tpu.pipeline_mode<synchronous>, transform_indices = @transform_5, window_bounds = array<i64: 1, 128>}, {pipeline_mode = #tpu.pipeline_mode<synchronous>, transform_indices = @transform_6, window_bounds = array<i64: 1, 128>}, {pipeline_mode = #tpu.pipeline_mode<synchronous>, transform_indices = @transform_7, window_bounds = array<i64: 1, 128>}, {pipeline_mode = #tpu.pipeline_mode<synchronous>, transform_indices = @transform_8, window_bounds = array<i64: 128, 512>}, {pipeline_mode = #tpu.pipeline_mode<synchronous>, transform_indices = @transform_9, window_bounds = array<i64: 1, 512>}, {pipeline_mode = #tpu.pipeline_mode<synchronous>, transform_indices = @transform_10, window_bounds = array<i64: 512, 128>}, {pipeline_mode = #tpu.pipeline_mode<synchronous>, transform_indices = @transform_11, window_bounds = array<i64: 1, 128>}, {transform_indices = @transform_12, window_bounds = array<i64: 16, 16, 128>}]} {
    %c0_i32 = arith.constant 0 : i32
    %0 = arith.cmpi eq, %arg1, %c0_i32 : i32
    %1 = arith.extui %0 : i1 to i32
    %c0_i32_0 = arith.constant 0 : i32
    %2 = arith.cmpi ne, %1, %c0_i32_0 : i32
    scf.if %2 {
      %c0_18 = arith.constant 0 : index
      %c0_19 = arith.constant 0 : index
      %c0_20 = arith.constant 0 : index
      %25 = vector.load %arg2[%c0_18, %c0_19, %c0_20] : memref<16x16x128xf32, #tpu.memory_space<vmem>>, vector<16x16x128xf32>
      %26 = vector.shape_cast %25 : vector<16x16x128xf32> to vector<256x128xf32>
      %cst_21 = arith.constant dense<0.000000e+00> : vector<256xf32>
      %27 = vector.multi_reduction <add>, %26, %cst_21 [1] : vector<256x128xf32> to vector<256xf32>
      %28 = vector.shape_cast %27 : vector<256xf32> to vector<256x1xf32>
      %cst_22 = arith.constant 1.280000e+02 : f32
      %29 = vector.broadcast %cst_22 : f32 to vector<256x1xf32>
      %30 = arith.divf %28, %29 : vector<256x1xf32>
      %31 = arith.mulf %26, %26 : vector<256x128xf32>
      %cst_23 = arith.constant dense<0.000000e+00> : vector<256xf32>
      %32 = vector.multi_reduction <add>, %31, %cst_23 [1] : vector<256x128xf32> to vector<256xf32>
      %33 = vector.shape_cast %32 : vector<256xf32> to vector<256x1xf32>
      %cst_24 = arith.constant 1.280000e+02 : f32
      %34 = vector.broadcast %cst_24 : f32 to vector<256x1xf32>
      %35 = arith.divf %33, %34 : vector<256x1xf32>
      %36 = arith.mulf %30, %30 : vector<256x1xf32>
      %37 = arith.subf %35, %36 : vector<256x1xf32>
      %cst_25 = arith.constant 0.000000e+00 : f32
      %38 = vector.broadcast %cst_25 : f32 to vector<256x1xf32>
      %39 = arith.maximumf %37, %38 : vector<256x1xf32>
      %40 = vector.broadcast %30 : vector<256x1xf32> to vector<256x128xf32>
      %41 = arith.subf %26, %40 : vector<256x128xf32>
      %cst_26 = arith.constant 9.99999974E-6 : f32
      %42 = vector.broadcast %cst_26 : f32 to vector<256x1xf32>
      %43 = arith.addf %39, %42 : vector<256x1xf32>
      %44 = math.rsqrt %43 : vector<256x1xf32>
      %45 = vector.broadcast %44 : vector<256x1xf32> to vector<256x128xf32>
      %46 = arith.mulf %41, %45 : vector<256x128xf32>
      %c0_27 = arith.constant 0 : index
      %c0_28 = arith.constant 0 : index
      %47 = vector.load %arg6[%c0_27, %c0_28] : memref<1x128xf32, #tpu.memory_space<vmem>>, vector<1x128xf32>
      %48 = vector.broadcast %47 : vector<1x128xf32> to vector<256x128xf32>
      %49 = arith.mulf %46, %48 : vector<256x128xf32>
      %c0_29 = arith.constant 0 : index
      %c0_30 = arith.constant 0 : index
      %50 = vector.load %arg7[%c0_29, %c0_30] : memref<1x128xf32, #tpu.memory_space<vmem>>, vector<1x128xf32>
      %51 = vector.broadcast %50 : vector<1x128xf32> to vector<256x128xf32>
      %52 = arith.addf %49, %51 : vector<256x128xf32>
      %c0_31 = arith.constant 0 : index
      %c0_32 = arith.constant 0 : index
      %53 = vector.load %arg3[%c0_31, %c0_32] : memref<256x256xf32, #tpu.memory_space<vmem>>, vector<256x256xf32>
      %cst_33 = arith.constant dense<0.000000e+00> : vector<256x128xf32>
      %54 = tpu.matmul %53, %52, %cst_33 {dimension_numbers = #tpu.dot_dimension_numbers<[1], [0], [0], [1], [0, 0, 1, 1], [], []>} : vector<256x256xf32>, vector<256x128xf32>, vector<256x128xf32> -> vector<256x128xf32>
      %c0_34 = arith.constant 0 : index
      %c0_35 = arith.constant 0 : index
      %55 = vector.load %arg4[%c0_34, %c0_35] : memref<128x128xf32, #tpu.memory_space<vmem>>, vector<128x128xf32>
      %cst_36 = arith.constant dense<0.000000e+00> : vector<256x128xf32>
      %56 = tpu.matmul %54, %55, %cst_36 {dimension_numbers = #tpu.dot_dimension_numbers<[1], [0], [0], [1], [0, 0, 1, 1], [], []>} : vector<256x128xf32>, vector<128x128xf32>, vector<256x128xf32> -> vector<256x128xf32>
      %c0_37 = arith.constant 0 : index
      %c0_38 = arith.constant 0 : index
      %57 = vector.load %arg5[%c0_37, %c0_38] : memref<256x128xf32, #tpu.memory_space<vmem>>, vector<256x128xf32>
      %58 = arith.addf %56, %57 : vector<256x128xf32>
      %59 = arith.addf %58, %26 : vector<256x128xf32>
      %c0_39 = arith.constant 0 : index
      %c0_40 = arith.constant 0 : index
      %60 = vector.load %arg15[%c0_39, %c0_40] : memref<256x128xf32, #tpu.memory_space<vmem>>, vector<256x128xf32>
      tpu.vector_store %arg15[%c0_39, %c0_40], %59 {strides = array<i32>} : memref<256x128xf32, #tpu.memory_space<vmem>>, vector<256x128xf32>,
      %cst_41 = arith.constant dense<0.000000e+00> : vector<256xf32>
      %61 = vector.multi_reduction <add>, %59, %cst_41 [1] : vector<256x128xf32> to vector<256xf32>
      %62 = vector.shape_cast %61 : vector<256xf32> to vector<256x1xf32>
      %cst_42 = arith.constant 1.280000e+02 : f32
      %63 = vector.broadcast %cst_42 : f32 to vector<256x1xf32>
      %64 = arith.divf %62, %63 : vector<256x1xf32>
      %65 = vector.broadcast %64 : vector<256x1xf32> to vector<256x128xf32>
      %66 = arith.subf %59, %65 : vector<256x128xf32>
      %67 = arith.mulf %66, %66 : vector<256x128xf32>
      %cst_43 = arith.constant dense<0.000000e+00> : vector<256xf32>
      %68 = vector.multi_reduction <add>, %67, %cst_43 [1] : vector<256x128xf32> to vector<256xf32>
      %69 = vector.shape_cast %68 : vector<256xf32> to vector<256x1xf32>
      %cst_44 = arith.constant 1.280000e+02 : f32
      %70 = vector.broadcast %cst_44 : f32 to vector<256x1xf32>
      %71 = arith.divf %69, %70 : vector<256x1xf32>
      %cst_45 = arith.constant 9.99999974E-6 : f32
      %72 = vector.broadcast %cst_45 : f32 to vector<256x1xf32>
      %73 = arith.addf %71, %72 : vector<256x1xf32>
      %74 = math.rsqrt %73 : vector<256x1xf32>
      %75 = vector.broadcast %74 : vector<256x1xf32> to vector<256x128xf32>
      %76 = arith.mulf %66, %75 : vector<256x128xf32>
      %c0_46 = arith.constant 0 : index
      %c0_47 = arith.constant 0 : index
      %77 = vector.load %arg8[%c0_46, %c0_47] : memref<1x128xf32, #tpu.memory_space<vmem>>, vector<1x128xf32>
      %78 = vector.broadcast %77 : vector<1x128xf32> to vector<256x128xf32>
      %79 = arith.mulf %76, %78 : vector<256x128xf32>
      %c0_48 = arith.constant 0 : index
      %c0_49 = arith.constant 0 : index
      %80 = vector.load %arg9[%c0_48, %c0_49] : memref<1x128xf32, #tpu.memory_space<vmem>>, vector<1x128xf32>
      %81 = vector.broadcast %80 : vector<1x128xf32> to vector<256x128xf32>
      %82 = arith.addf %79, %81 : vector<256x128xf32>
      %c0_50 = arith.constant 0 : index
      %c0_51 = arith.constant 0 : index
      %83 = vector.load %arg16[%c0_50, %c0_51] : memref<256x128xf32, #tpu.memory_space<vmem>>, vector<256x128xf32>
      tpu.vector_store %arg16[%c0_50, %c0_51], %82 {strides = array<i32>} : memref<256x128xf32, #tpu.memory_space<vmem>>, vector<256x128xf32>,
      %cst_52 = arith.constant 0.000000e+00 : f32
      %84 = vector.broadcast %cst_52 : f32 to vector<256x128xf32>
      %c0_53 = arith.constant 0 : index
      %c0_54 = arith.constant 0 : index
      %85 = vector.load %arg17[%c0_53, %c0_54] : memref<256x128xf32, #tpu.memory_space<vmem>>, vector<256x128xf32>
      tpu.vector_store %arg17[%c0_53, %c0_54], %84 {strides = array<i32>} : memref<256x128xf32, #tpu.memory_space<vmem>>, vector<256x128xf32>,
    } else {
    }
    %c0 = arith.constant 0 : index
    %c0_1 = arith.constant 0 : index
    %3 = vector.load %arg16[%c0, %c0_1] : memref<256x128xf32, #tpu.memory_space<vmem>>, vector<256x128xf32>
    %c0_2 = arith.constant 0 : index
    %c0_3 = arith.constant 0 : index
    %4 = vector.load %arg10[%c0_2, %c0_3] : memref<128x512xf32, #tpu.memory_space<vmem>>, vector<128x512xf32>
    %cst = arith.constant dense<0.000000e+00> : vector<256x512xf32>
    %5 = tpu.matmul %3, %4, %cst {dimension_numbers = #tpu.dot_dimension_numbers<[1], [0], [0], [1], [0, 0, 1, 1], [], []>} : vector<256x128xf32>, vector<128x512xf32>, vector<256x512xf32> -> vector<256x512xf32>
    %c0_4 = arith.constant 0 : index
    %c0_5 = arith.constant 0 : index
    %6 = vector.load %arg11[%c0_4, %c0_5] : memref<1x512xf32, #tpu.memory_space<vmem>>, vector<1x512xf32>
    %7 = vector.broadcast %6 : vector<1x512xf32> to vector<256x512xf32>
    %8 = arith.addf %5, %7 : vector<256x512xf32>
    %cst_6 = arith.constant 0.707106769 : f32
    %9 = vector.broadcast %cst_6 : f32 to vector<256x512xf32>
    %10 = arith.mulf %8, %9 : vector<256x512xf32>
    %11 = math.erf %10 : vector<256x512xf32>
    %cst_7 = arith.constant 5.000000e-01 : f32
    %12 = vector.broadcast %cst_7 : f32 to vector<256x512xf32>
    %13 = arith.mulf %11, %12 : vector<256x512xf32>
    %cst_8 = arith.constant 5.000000e-01 : f32
    %14 = vector.broadcast %cst_8 : f32 to vector<256x512xf32>
    %15 = arith.addf %13, %14 : vector<256x512xf32>
    %16 = arith.mulf %8, %15 : vector<256x512xf32>
    %c0_9 = arith.constant 0 : index
    %c0_10 = arith.constant 0 : index
    %17 = vector.load %arg17[%c0_9, %c0_10] : memref<256x128xf32, #tpu.memory_space<vmem>>, vector<256x128xf32>
    %c0_11 = arith.constant 0 : index
    %c0_12 = arith.constant 0 : index
    %18 = vector.load %arg12[%c0_11, %c0_12] : memref<512x128xf32, #tpu.memory_space<vmem>>, vector<512x128xf32>
    %cst_13 = arith.constant dense<0.000000e+00> : vector<256x128xf32>
    %19 = tpu.matmul %16, %18, %cst_13 {dimension_numbers = #tpu.dot_dimension_numbers<[1], [0], [0], [1], [0, 0, 1, 1], [], []>} : vector<256x512xf32>, vector<512x128xf32>, vector<256x128xf32> -> vector<256x128xf32>
    %20 = arith.addf %17, %19 : vector<256x128xf32>
    %c0_14 = arith.constant 0 : index
    %c0_15 = arith.constant 0 : index
    %21 = vector.load %arg17[%c0_14, %c0_15] : memref<256x128xf32, #tpu.memory_space<vmem>>, vector<256x128xf32>
    tpu.vector_store %arg17[%c0_14, %c0_15], %20 {strides = array<i32>} : memref<256x128xf32, #tpu.memory_space<vmem>>, vector<256x128xf32>,
    %c0_i32_16 = arith.constant 0 : i32
    %22 = arith.cmpi eq, %arg1, %c0_i32_16 : i32
    %23 = arith.extui %22 : i1 to i32
    %c0_i32_17 = arith.constant 0 : i32
    %24 = arith.cmpi ne, %23, %c0_i32_17 : i32
    scf.if %24 {
      %c0_18 = arith.constant 0 : index
      %c0_19 = arith.constant 0 : index
      %25 = vector.load %arg17[%c0_18, %c0_19] : memref<256x128xf32, #tpu.memory_space<vmem>>, vector<256x128xf32>
      %c0_20 = arith.constant 0 : index
      %c0_21 = arith.constant 0 : index
      %26 = vector.load %arg13[%c0_20, %c0_21] : memref<1x128xf32, #tpu.memory_space<vmem>>, vector<1x128xf32>
      %27 = vector.broadcast %26 : vector<1x128xf32> to vector<256x128xf32>
      %28 = arith.addf %25, %27 : vector<256x128xf32>
      %c0_22 = arith.constant 0 : index
      %c0_23 = arith.constant 0 : index
      %29 = vector.load %arg15[%c0_22, %c0_23] : memref<256x128xf32, #tpu.memory_space<vmem>>, vector<256x128xf32>
      %30 = arith.addf %28, %29 : vector<256x128xf32>
      %31 = vector.shape_cast %30 : vector<256x128xf32> to vector<16x16x128xf32>
      %c0_24 = arith.constant 0 : index
      %c0_25 = arith.constant 0 : index
      %c0_26 = arith.constant 0 : index
      %32 = vector.load %arg14[%c0_24, %c0_25, %c0_26] : memref<16x16x128xf32, #tpu.memory_space<vmem>>, vector<16x16x128xf32>
      tpu.vector_store %arg14[%c0_24, %c0_25, %c0_26], %31 {strides = array<i32>} : memref<16x16x128xf32, #tpu.memory_space<vmem>>, vector<16x16x128xf32>,
    } else {
    }
    return
  }
  func.func @transform_0(%arg0: i32, %arg1: i32) -> (i32, i32, i32) {
    %c0_i32 = arith.constant 0 : i32
    %c0_i32_0 = arith.constant 0 : i32
    %c0_i32_1 = arith.constant 0 : i32
    return %arg0, %c0_i32, %c0_i32_0 : i32, i32, i32
  }
  func.func @transform_1(%arg0: i32, %arg1: i32) -> (i32, i32) {
    %c0_i32 = arith.constant 0 : i32
    %c0_i32_0 = arith.constant 0 : i32
    %c0_i32_1 = arith.constant 0 : i32
    return %c0_i32, %c0_i32_0 : i32, i32
  }
  func.func @transform_2(%arg0: i32, %arg1: i32) -> (i32, i32) {
    %c0_i32 = arith.constant 0 : i32
    %c0_i32_0 = arith.constant 0 : i32
    %c0_i32_1 = arith.constant 0 : i32
    return %c0_i32, %c0_i32_0 : i32, i32
  }
  func.func @transform_3(%arg0: i32, %arg1: i32) -> (i32, i32) {
    %c0_i32 = arith.constant 0 : i32
    %c0_i32_0 = arith.constant 0 : i32
    %c0_i32_1 = arith.constant 0 : i32
    return %c0_i32, %c0_i32_0 : i32, i32
  }
  func.func @transform_4(%arg0: i32, %arg1: i32) -> (i32, i32) {
    %c0_i32 = arith.constant 0 : i32
    %c0_i32_0 = arith.constant 0 : i32
    %c0_i32_1 = arith.constant 0 : i32
    return %c0_i32, %c0_i32_0 : i32, i32
  }
  func.func @transform_5(%arg0: i32, %arg1: i32) -> (i32, i32) {
    %c0_i32 = arith.constant 0 : i32
    %c0_i32_0 = arith.constant 0 : i32
    %c0_i32_1 = arith.constant 0 : i32
    return %c0_i32, %c0_i32_0 : i32, i32
  }
  func.func @transform_6(%arg0: i32, %arg1: i32) -> (i32, i32) {
    %c0_i32 = arith.constant 0 : i32
    %c0_i32_0 = arith.constant 0 : i32
    %c0_i32_1 = arith.constant 0 : i32
    return %c0_i32, %c0_i32_0 : i32, i32
  }
  func.func @transform_7(%arg0: i32, %arg1: i32) -> (i32, i32) {
    %c0_i32 = arith.constant 0 : i32
    %c0_i32_0 = arith.constant 0 : i32
    %c0_i32_1 = arith.constant 0 : i32
    return %c0_i32, %c0_i32_0 : i32, i32
  }
  func.func @transform_8(%arg0: i32, %arg1: i32) -> (i32, i32) {
    %c0_i32 = arith.constant 0 : i32
    %c0_i32_0 = arith.constant 0 : i32
    return %c0_i32, %arg1 : i32, i32
  }
  func.func @transform_9(%arg0: i32, %arg1: i32) -> (i32, i32) {
    %c0_i32 = arith.constant 0 : i32
    %c0_i32_0 = arith.constant 0 : i32
    return %c0_i32, %arg1 : i32, i32
  }
  func.func @transform_10(%arg0: i32, %arg1: i32) -> (i32, i32) {
    %c0_i32 = arith.constant 0 : i32
    %c0_i32_0 = arith.constant 0 : i32
    return %arg1, %c0_i32 : i32, i32
  }
  func.func @transform_11(%arg0: i32, %arg1: i32) -> (i32, i32) {
    %c0_i32 = arith.constant 0 : i32
    %c0_i32_0 = arith.constant 0 : i32
    %c0_i32_1 = arith.constant 0 : i32
    return %c0_i32, %c0_i32_0 : i32, i32
  }
  func.func @transform_12(%arg0: i32, %arg1: i32) -> (i32, i32, i32) {
    %c0_i32 = arith.constant 0 : i32
    %c0_i32_0 = arith.constant 0 : i32
    %c0_i32_1 = arith.constant 0 : i32
    return %arg0, %c0_i32, %c0_i32_0 : i32, i32, i32
  }
}

</mosaic_0001>

<llo_original>
// kernel: tpu_custom_call.1
$region0: #{tpu_custom_call.1}
  #allocation0 [shape = 'u32[]', space=smem, size = 0x4, offset = 0x4, fixed_abs, tag = 'smem constant byte address 0x4 - core index']
  #allocation1 [shape = 'u32[72,128]{1,0:T(1,128)}', space=vmem, size = 0x9000, scoped, tag = 'internal scratch']
  #allocation2 [shape = 'f32[256,128]{1,0:T(8,128)}', space=vmem, size = 0x20000, scoped, tag = 'scratch operand']
  #allocation3 [shape = 'f32[256,128]{1,0:T(8,128)}', space=vmem, size = 0x20000, scoped, tag = 'scratch operand']
  #allocation4 [shape = 'f32[256,128]{1,0:T(8,128)}', space=vmem, size = 0x20000, scoped, tag = 'scratch operand']
  %s0 = inlined_call_operand.hbm [shape: f32[32,16,128], index: 0, kind: input, shape index: {}]
  %s1 = inlined_call_operand.hbm [shape: f32[256,256], index: 1, kind: input, shape index: {}]
  %s2 = inlined_call_operand.hbm [shape: f32[128,128], index: 2, kind: input, shape index: {}]
  %s3 = inlined_call_operand.hbm [shape: f32[256,128], index: 3, kind: input, shape index: {}]
  %s4 = inlined_call_operand.vmem [shape: f32[1,128], index: 4, kind: input, shape index: {}]
  %s5 = inlined_call_operand.vmem [shape: f32[1,128], index: 5, kind: input, shape index: {}]
  %s6 = inlined_call_operand.vmem [shape: f32[1,128], index: 6, kind: input, shape index: {}]
  %s7 = inlined_call_operand.hbm [shape: f32[1,128], index: 7, kind: input, shape index: {}]
  %s8 = inlined_call_operand.hbm [shape: f32[128,512], index: 8, kind: input, shape index: {}]
  %s9 = inlined_call_operand.vmem [shape: f32[1,512], index: 9, kind: input, shape index: {}]
  %s10 = inlined_call_operand.hbm [shape: f32[512,128], index: 10, kind: input, shape index: {}]
  %s11 = inlined_call_operand.vmem [shape: f32[1,128], index: 11, kind: input, shape index: {}]
  %s12 = inlined_call_operand.hbm [shape: f32[32,16,128], index: 12, kind: output, shape index: {}]
  %s13 = sld [smem:[#allocation0]]
  $region117: #{tpu_custom_call.1} parent=0
    _
  %s15 = ssub.s32 1, %s13
  %s16 = scalar_select 0, %s15, %s13
  $region1: #{tpu_custom_call.1} parent=0
    #allocation5 [shape = 'u8[262144]{0}', space=vmem, size = 0x40000, scoped, tag = 'input window, operand 0']
    #allocation6 [shape = 's32[2]{0}', space=sflag, size = 0x8, scoped, tag = 'scoped memory for tpu_custom_call.1']
    #allocation7 [shape = 's32[2]{0}', space=sflag, size = 0x8, scoped, tag = 'scoped memory for tpu_custom_call.1']
    #allocation8 [shape = 'u8[262144]{0}', space=vmem, size = 0x40000, scoped, tag = 'input window, operand 1, single buffered']
    #allocation9 [shape = 's32[1]{0}', space=sflag, size = 0x4, scoped, tag = 'scoped memory for tpu_custom_call.1']
    #allocation10 [shape = 'u8[65536]{0}', space=vmem, size = 0x10000, scoped, tag = 'input window, operand 2, single buffered']
    #allocation11 [shape = 'u8[131072]{0}', space=vmem, size = 0x20000, scoped, tag = 'input window, operand 3, single buffered']
    #allocation12 [shape = 's32[1]{0}', space=sflag, size = 0x4, scoped, tag = 'scoped memory for tpu_custom_call.1']
    #allocation13 [shape = 'u8[512]{0}', space=vmem, size = 0x400, scoped, tag = 'input window, operand 7, single buffered']
    #allocation14 [shape = 'u8[262144]{0}', space=vmem, size = 0x40000, scoped, tag = 'input window, operand 8, single buffered']
    #allocation15 [shape = 's32[1]{0}', space=sflag, size = 0x4, scoped, tag = 'scoped memory for tpu_custom_call.1']
    #allocation16 [shape = 'u8[262144]{0}', space=vmem, size = 0x40000, scoped, tag = 'input window, operand 10, single buffered']
    #allocation17 [shape = 'u8[262144]{0}', space=vmem, size = 0x40000, scoped, tag = 'output window, operand 0']
    %17 = vsyncpa [#allocation6], 0
    %s18 = scalar_lea.sflag [#allocation6], 1
    %19 = vsyncpa %s18, 0
    %20 = vsyncpa [#allocation9], 0
    %21 = vsyncpa [#allocation12], 0
    %22 = vsyncpa [#allocation15], 0
    %23 = vsyncpa [#allocation7], 0
    %s24 = scalar_lea.sflag [#allocation7], 1
    %25 = vsyncpa %s24, 0
    loop: start=0, step=1, limit=4
    $region2: #{tpu_custom_call.1} parent=1 // loop_pre_header
      _
    $region3: #{tpu_custom_call.1} parent=1 // loop_header
      %s27 = sphi 0, %s31
      %p28 = scmp.ge.s32.totalorder %s27, 4
      %s34 = sphi 0, %s46
      %s35 = sphi 0, %s42
      %s36 = sphi 0, %s34
      %s37 = sphi 0, %s35
      %s38 = sphi 0, %s36
      %s39 = sphi 0, %s37
      %s49 = sphi 0, %s51
      %s52 = sphi 0, %s49
      %s53 = sphi 0, %s52
      %s69 = sphi 0, %s53
      %s73 = sphi 0, %s73
      %s75 = sphi 0, %s73
      %s76 = sphi 0, %s75
      %s90 = sphi 0, %s76
      %s94 = sphi 0, %s94
      %s96 = sphi 0, %s94
      %s97 = sphi 0, %s96
      %s111 = sphi 0, %s97
      %s115 = sphi 0, %s115
      %s117 = sphi 0, %s115
      %s118 = sphi 0, %s117
      %s132 = sphi 0, %s118
      %s136 = sphi 0, %s136
      %s138 = sphi 0, %s136
      %s139 = sphi 0, %s138
      %s153 = sphi 0, %s139
      %s157 = sphi 0, %s157
      %s159 = sphi 0, %s157
      %s160 = sphi 0, %s159
      %s174 = sphi 0, %s160
      %s178 = sphi 0, %s178
      %s180 = sphi 0, %s178
      %s181 = sphi 0, %s180
      %s195 = sphi 0, %s181
      %s199 = sphi 0, %s199
      %s201 = sphi 0, %s199
      %s202 = sphi 0, %s201
      %s216 = sphi 0, %s202
      %s222 = sphi 0, %s224
      %s225 = sphi 0, %s222
      %s226 = sphi 0, %s225
      %s242 = sphi 0, %s226
      %s248 = sphi 0, %s250
      %s251 = sphi 0, %s248
      %s252 = sphi 0, %s251
      %s268 = sphi 0, %s252
      %s274 = sphi 0, %s276
      %s277 = sphi 0, %s274
      %s278 = sphi 0, %s277
      %s294 = sphi 0, %s278
      %s298 = sphi 0, %s298
      %s300 = sphi 0, %s298
      %s301 = sphi 0, %s300
      %s315 = sphi 0, %s301
      %s321 = sphi 0, %s323
      %s324 = sphi 0, %s321
      %s325 = sphi 0, %s324
      %s341 = sphi 0, %s325
    $region4: #{tpu_custom_call.1} parent=1 // loop_header_branch
      %30 = sbr.rel (%p28) target = $region8
    $region5: #{tpu_custom_call.1} parent=1 // loop_body
      %s32 = ssub.s32 %s27, 1
      %s33 = ssub.s32 %s27, 2
      %s40 = sadd.s32 1, %s35
      %p41 = scmp.ge.s32.totalorder %s40, 1
      %s42 = scalar_select %p41, 0, %s40
      %s43 = sadd.s32 1, %s34
      %s44 = scalar_select %p41, %s43, %s34
      %p45 = scmp.ge.s32.totalorder %s44, 2
      %s46 = scalar_select %p45, 0, %s44
      %s47 = ssub.s32 %s34, %s46
      %p48 = scmp.eq.s32.totalorder %s47, 0
      %s50 = sadd.s32 %s49, 1
      %s51 = scalar_select %p48, %s49, %s50
      %p54 = pneg %p48
      %p55 = scmp.eq.s32.totalorder %s27, 1
      %p56 = por %p54, %p55
      %p57 = scmp.ne.s32.totalorder %s49, %s52
      %p58 = scmp.eq.s32.totalorder %s27, 0
      %p59 = por %p57, %p58
      %p60 = scmp.ne.s32.totalorder %s49, %s52
      %p61 = scmp.eq.s32.totalorder %s32, 1
      %p62 = por %p60, %p61
      %p63 = scmp.ne.s32.totalorder %s52, %s53
      %p64 = scmp.eq.s32.totalorder %s32, 0
      %p65 = por %p63, %p64
      %p66 = scmp.ne.s32.totalorder %s52, %s53
      %p67 = scmp.eq.s32.totalorder %s33, 1
      %p68 = por %p66, %p67
      %p70 = scmp.ne.s32.totalorder %s53, %s69
      %p71 = scmp.eq.s32.totalorder %s33, 0
      %p72 = por %p70, %p71
      %s74 = sadd.s32 %s73, 1
      %p77 = scmp.eq.s32.totalorder %s27, 1
      %p78 = scmp.ne.s32.totalorder %s73, %s75
      %p79 = scmp.eq.s32.totalorder %s27, 0
      %p80 = por %p78, %p79
      %p81 = scmp.ne.s32.totalorder %s73, %s75
      %p82 = scmp.eq.s32.totalorder %s32, 1
      %p83 = por %p81, %p82
      %p84 = scmp.ne.s32.totalorder %s75, %s76
      %p85 = scmp.eq.s32.totalorder %s32, 0
      %p86 = por %p84, %p85
      %p87 = scmp.ne.s32.totalorder %s75, %s76
      %p88 = scmp.eq.s32.totalorder %s33, 1
      %p89 = por %p87, %p88
      %p91 = scmp.ne.s32.totalorder %s76, %s90
      %p92 = scmp.eq.s32.totalorder %s33, 0
      %p93 = por %p91, %p92
      %s95 = sadd.s32 %s94, 1
      %p98 = scmp.eq.s32.totalorder %s27, 1
      %p99 = scmp.ne.s32.totalorder %s94, %s96
      %p100 = scmp.eq.s32.totalorder %s27, 0
      %p101 = por %p99, %p100
      %p102 = scmp.ne.s32.totalorder %s94, %s96
      %p103 = scmp.eq.s32.totalorder %s32, 1
      %p104 = por %p102, %p103
      %p105 = scmp.ne.s32.totalorder %s96, %s97
      %p106 = scmp.eq.s32.totalorder %s32, 0
      %p107 = por %p105, %p106
      %p108 = scmp.ne.s32.totalorder %s96, %s97
      %p109 = scmp.eq.s32.totalorder %s33, 1
      %p110 = por %p108, %p109
      %p112 = scmp.ne.s32.totalorder %s97, %s111
      %p113 = scmp.eq.s32.totalorder %s33, 0
      %p114 = por %p112, %p113
      %s116 = sadd.s32 %s115, 1
      %p119 = scmp.eq.s32.totalorder %s27, 1
      %p120 = scmp.ne.s32.totalorder %s115, %s117
      %p121 = scmp.eq.s32.totalorder %s27, 0
      %p122 = por %p120, %p121
      %p123 = scmp.ne.s32.totalorder %s115, %s117
      %p124 = scmp.eq.s32.totalorder %s32, 1
      %p125 = por %p123, %p124
      %p126 = scmp.ne.s32.totalorder %s117, %s118
      %p127 = scmp.eq.s32.totalorder %s32, 0
      %p128 = por %p126, %p127
      %p129 = scmp.ne.s32.totalorder %s117, %s118
      %p130 = scmp.eq.s32.totalorder %s33, 1
      %p131 = por %p129, %p130
      %p133 = scmp.ne.s32.totalorder %s118, %s132
      %p134 = scmp.eq.s32.totalorder %s33, 0
      %p135 = por %p133, %p134
      %s137 = sadd.s32 %s136, 1
      %p140 = scmp.eq.s32.totalorder %s27, 1
      %p141 = scmp.ne.s32.totalorder %s136, %s138
      %p142 = scmp.eq.s32.totalorder %s27, 0
      %p143 = por %p141, %p142
      %p144 = scmp.ne.s32.totalorder %s136, %s138
      %p145 = scmp.eq.s32.totalorder %s32, 1
      %p146 = por %p144, %p145
      %p147 = scmp.ne.s32.totalorder %s138, %s139
      %p148 = scmp.eq.s32.totalorder %s32, 0
      %p149 = por %p147, %p148
      %p150 = scmp.ne.s32.totalorder %s138, %s139
      %p151 = scmp.eq.s32.totalorder %s33, 1
      %p152 = por %p150, %p151
      %p154 = scmp.ne.s32.totalorder %s139, %s153
      %p155 = scmp.eq.s32.totalorder %s33, 0
      %p156 = por %p154, %p155
      %s158 = sadd.s32 %s157, 1
      %p161 = scmp.eq.s32.totalorder %s27, 1
      %p162 = scmp.ne.s32.totalorder %s157, %s159
      %p163 = scmp.eq.s32.totalorder %s27, 0
      %p164 = por %p162, %p163
      %p165 = scmp.ne.s32.totalorder %s157, %s159
      %p166 = scmp.eq.s32.totalorder %s32, 1
      %p167 = por %p165, %p166
      %p168 = scmp.ne.s32.totalorder %s159, %s160
      %p169 = scmp.eq.s32.totalorder %s32, 0
      %p170 = por %p168, %p169
      %p171 = scmp.ne.s32.totalorder %s159, %s160
      %p172 = scmp.eq.s32.totalorder %s33, 1
      %p173 = por %p171, %p172
      %p175 = scmp.ne.s32.totalorder %s160, %s174
      %p176 = scmp.eq.s32.totalorder %s33, 0
      %p177 = por %p175, %p176
      %s179 = sadd.s32 %s178, 1
      %p182 = scmp.eq.s32.totalorder %s27, 1
      %p183 = scmp.ne.s32.totalorder %s178, %s180
      %p184 = scmp.eq.s32.totalorder %s27, 0
      %p185 = por %p183, %p184
      %p186 = scmp.ne.s32.totalorder %s178, %s180
      %p187 = scmp.eq.s32.totalorder %s32, 1
      %p188 = por %p186, %p187
      %p189 = scmp.ne.s32.totalorder %s180, %s181
      %p190 = scmp.eq.s32.totalorder %s32, 0
      %p191 = por %p189, %p190
      %p192 = scmp.ne.s32.totalorder %s180, %s181
      %p193 = scmp.eq.s32.totalorder %s33, 1
      %p194 = por %p192, %p193
      %p196 = scmp.ne.s32.totalorder %s181, %s195
      %p197 = scmp.eq.s32.totalorder %s33, 0
      %p198 = por %p196, %p197
      %s200 = sadd.s32 %s199, 1
      %p203 = scmp.eq.s32.totalorder %s27, 1
      %p204 = scmp.ne.s32.totalorder %s199, %s201
      %p205 = scmp.eq.s32.totalorder %s27, 0
      %p206 = por %p204, %p205
      %p207 = scmp.ne.s32.totalorder %s199, %s201
      %p208 = scmp.eq.s32.totalorder %s32, 1
      %p209 = por %p207, %p208
      %p210 = scmp.ne.s32.totalorder %s201, %s202
      %p211 = scmp.eq.s32.totalorder %s32, 0
      %p212 = por %p210, %p211
      %p213 = scmp.ne.s32.totalorder %s201, %s202
      %p214 = scmp.eq.s32.totalorder %s33, 1
      %p215 = por %p213, %p214
      %p217 = scmp.ne.s32.totalorder %s202, %s216
      %p218 = scmp.eq.s32.totalorder %s33, 0
      %p219 = por %p217, %p218
      %s220 = ssub.s32 %s35, %s42
      %p221 = scmp.eq.s32.totalorder %s220, 0
      %s223 = sadd.s32 %s222, 1
      %s224 = scalar_select %p221, %s222, %s223
      %p227 = pneg %p221
      %p228 = scmp.eq.s32.totalorder %s27, 1
      %p229 = por %p227, %p228
      %p230 = scmp.ne.s32.totalorder %s222, %s225
      %p231 = scmp.eq.s32.totalorder %s27, 0
      %p232 = por %p230, %p231
      %p233 = scmp.ne.s32.totalorder %s222, %s225
      %p234 = scmp.eq.s32.totalorder %s32, 1
      %p235 = por %p233, %p234
      %p236 = scmp.ne.s32.totalorder %s225, %s226
      %p237 = scmp.eq.s32.totalorder %s32, 0
      %p238 = por %p236, %p237
      %p239 = scmp.ne.s32.totalorder %s225, %s226
      %p240 = scmp.eq.s32.totalorder %s33, 1
      %p241 = por %p239, %p240
      %p243 = scmp.ne.s32.totalorder %s226, %s242
      %p244 = scmp.eq.s32.totalorder %s33, 0
      %p245 = por %p243, %p244
      %s246 = ssub.s32 %s35, %s42
      %p247 = scmp.eq.s32.totalorder %s246, 0
      %s249 = sadd.s32 %s248, 1
      %s250 = scalar_select %p247, %s248, %s249
      %p253 = pneg %p247
      %p254 = scmp.eq.s32.totalorder %s27, 1
      %p255 = por %p253, %p254
      %p256 = scmp.ne.s32.totalorder %s248, %s251
      %p257 = scmp.eq.s32.totalorder %s27, 0
      %p258 = por %p256, %p257
      %p259 = scmp.ne.s32.totalorder %s248, %s251
      %p260 = scmp.eq.s32.totalorder %s32, 1
      %p261 = por %p259, %p260
      %p262 = scmp.ne.s32.totalorder %s251, %s252
      %p263 = scmp.eq.s32.totalorder %s32, 0
      %p264 = por %p262, %p263
      %p265 = scmp.ne.s32.totalorder %s251, %s252
      %p266 = scmp.eq.s32.totalorder %s33, 1
      %p267 = por %p265, %p266
      %p269 = scmp.ne.s32.totalorder %s252, %s268
      %p270 = scmp.eq.s32.totalorder %s33, 0
      %p271 = por %p269, %p270
      %s272 = ssub.s32 %s35, %s42
      %p273 = scmp.eq.s32.totalorder %s272, 0
      %s275 = sadd.s32 %s274, 1
      %s276 = scalar_select %p273, %s274, %s275
      %p279 = pneg %p273
      %p280 = scmp.eq.s32.totalorder %s27, 1
      %p281 = por %p279, %p280
      %p282 = scmp.ne.s32.totalorder %s274, %s277
      %p283 = scmp.eq.s32.totalorder %s27, 0
      %p284 = por %p282, %p283
      %p285 = scmp.ne.s32.totalorder %s274, %s277
      %p286 = scmp.eq.s32.totalorder %s32, 1
      %p287 = por %p285, %p286
      %p288 = scmp.ne.s32.totalorder %s277, %s278
      %p289 = scmp.eq.s32.totalorder %s32, 0
      %p290 = por %p288, %p289
      %p291 = scmp.ne.s32.totalorder %s277, %s278
      %p292 = scmp.eq.s32.totalorder %s33, 1
      %p293 = por %p291, %p292
      %p295 = scmp.ne.s32.totalorder %s278, %s294
      %p296 = scmp.eq.s32.totalorder %s33, 0
      %p297 = por %p295, %p296
      %s299 = sadd.s32 %s298, 1
      %p302 = scmp.eq.s32.totalorder %s27, 1
      %p303 = scmp.ne.s32.totalorder %s298, %s300
      %p304 = scmp.eq.s32.totalorder %s27, 0
      %p305 = por %p303, %p304
      %p306 = scmp.ne.s32.totalorder %s298, %s300
      %p307 = scmp.eq.s32.totalorder %s32, 1
      %p308 = por %p306, %p307
      %p309 = scmp.ne.s32.totalorder %s300, %s301
      %p310 = scmp.eq.s32.totalorder %s32, 0
      %p311 = por %p309, %p310
      %p312 = scmp.ne.s32.totalorder %s300, %s301
      %p313 = scmp.eq.s32.totalorder %s33, 1
      %p314 = por %p312, %p313
      %p316 = scmp.ne.s32.totalorder %s301, %s315
      %p317 = scmp.eq.s32.totalorder %s33, 0
      %p318 = por %p316, %p317
      %s319 = ssub.s32 %s34, %s46
      %p320 = scmp.eq.s32.totalorder %s319, 0
      %s322 = sadd.s32 %s321, 1
      %s323 = scalar_select %p320, %s321, %s322
      %p326 = pneg %p320
      %p327 = scmp.eq.s32.totalorder %s27, 1
      %p328 = por %p326, %p327
      %p329 = scmp.ne.s32.totalorder %s321, %s324
      %p330 = scmp.eq.s32.totalorder %s27, 0
      %p331 = por %p329, %p330
      %p332 = scmp.ne.s32.totalorder %s321, %s324
      %p333 = scmp.eq.s32.totalorder %s32, 1
      %p334 = por %p332, %p333
      %p335 = scmp.ne.s32.totalorder %s324, %s325
      %p336 = scmp.eq.s32.totalorder %s32, 0
      %p337 = por %p335, %p336
      %p338 = scmp.ne.s32.totalorder %s324, %s325
      %p339 = scmp.eq.s32.totalorder %s33, 1
      %p340 = por %p338, %p339
      %p342 = scmp.ne.s32.totalorder %s325, %s341
      %p343 = scmp.eq.s32.totalorder %s33, 0
      %p344 = por %p342, %p343
      %p345 = scmp.le.s32.totalorder 1, %s27
      %p346 = scmp.lt.s32.totalorder %s27, 3
      %p347 = pnand %p345, %p346
      %p348 = pneg %p347
      // Predicated region
      $region9: #{tpu_custom_call.1} parent=5 // pred_check
        _
      $region10: #{tpu_custom_call.1} parent=5 // pred_check_branch
        %350 = sbr.rel (%p347) target = $region12
      $region11: #{tpu_custom_call.1} parent=5 // pred_region
        %s351 = ssub.s32 %s27, 1
        // Predicated region
        $region13: #{tpu_custom_call.1} parent=11 // pred_check
          %p352 = pneg %p86
        $region14: #{tpu_custom_call.1} parent=11 // pred_check_branch
          %354 = sbr.rel (%p352) target = $region16
        $region15: #{tpu_custom_call.1} parent=11 // pred_region
          %356 = vsyncadd [#allocation9], 0
          %s357 = sshll.u32 %s1, 4
          %s358 = int_to_ptr.hbm [resolvable:$true] %s357
          %s359 = sshll.u32 [#allocation8], 4
          %s360 = int_to_ptr.vmem [resolvable:$true] %s359
          %365 = dma.hbm_to_vmem [thread:$0]  %s358, 8192, %s360, [#allocation9], 256, 256, 16
        $region16: #{tpu_custom_call.1} parent=11 // pred_fallthru
          _
        // Predicated region
        $region17: #{tpu_custom_call.1} parent=11 // pred_check
          %p366 = pneg %p107
        $region18: #{tpu_custom_call.1} parent=11 // pred_check_branch
          %368 = sbr.rel (%p366) target = $region20
        $region19: #{tpu_custom_call.1} parent=11 // pred_region
          %370 = vsyncadd [#allocation9], 0
          %s371 = sshll.u32 %s2, 4
          %s372 = int_to_ptr.hbm [resolvable:$true] %s371
          %s373 = sshll.u32 [#allocation10], 4
          %s374 = int_to_ptr.vmem [resolvable:$true] %s373
          %379 = dma.hbm_to_vmem [thread:$0]  %s372, 2048, %s374, [#allocation9], 128, 128, 8
        $region20: #{tpu_custom_call.1} parent=11 // pred_fallthru
          _
        // Predicated region
        $region21: #{tpu_custom_call.1} parent=11 // pred_check
          %p380 = pneg %p128
        $region22: #{tpu_custom_call.1} parent=11 // pred_check_branch
          %382 = sbr.rel (%p380) target = $region24
        $region23: #{tpu_custom_call.1} parent=11 // pred_region
          %384 = vsyncadd [#allocation12], 0
          %s385 = sshll.u32 %s3, 4
          %s386 = int_to_ptr.hbm [resolvable:$true] %s385
          %s387 = sshll.u32 [#allocation11], 4
          %s388 = int_to_ptr.vmem [resolvable:$true] %s387
          %393 = dma.hbm_to_vmem [thread:$0]  %s386, 4096, %s388, [#allocation12], 128, 128, 8
        $region24: #{tpu_custom_call.1} parent=11 // pred_fallthru
          _
        // Predicated region
        $region25: #{tpu_custom_call.1} parent=11 // pred_check
          %p394 = pneg %p149
        $region26: #{tpu_custom_call.1} parent=11 // pred_check_branch
          %396 = sbr.rel (%p394) target = $region28
        $region27: #{tpu_custom_call.1} parent=11 // pred_region
          _
        $region28: #{tpu_custom_call.1} parent=11 // pred_fallthru
          _
        // Predicated region
        $region29: #{tpu_custom_call.1} parent=11 // pred_check
          %p397 = pneg %p170
        $region30: #{tpu_custom_call.1} parent=11 // pred_check_branch
          %399 = sbr.rel (%p397) target = $region32
        $region31: #{tpu_custom_call.1} parent=11 // pred_region
          _
        $region32: #{tpu_custom_call.1} parent=11 // pred_fallthru
          _
        // Predicated region
        $region33: #{tpu_custom_call.1} parent=11 // pred_check
          %p400 = pneg %p191
        $region34: #{tpu_custom_call.1} parent=11 // pred_check_branch
          %402 = sbr.rel (%p400) target = $region36
        $region35: #{tpu_custom_call.1} parent=11 // pred_region
          _
        $region36: #{tpu_custom_call.1} parent=11 // pred_fallthru
          _
        // Predicated region
        $region37: #{tpu_custom_call.1} parent=11 // pred_check
          %p403 = pneg %p212
        $region38: #{tpu_custom_call.1} parent=11 // pred_check_branch
          %405 = sbr.rel (%p403) target = $region40
        $region39: #{tpu_custom_call.1} parent=11 // pred_region
          %407 = vsyncadd [#allocation12], 0
          %s409 = sshll.u32 %s7, 4
          %s410 = int_to_ptr.hbm [resolvable:$true] %s409
          %s411 = sshll.u32 [#allocation13], 4
          %s412 = int_to_ptr.vmem [resolvable:$true] %s411
          %414 = dma.hbm_to_vmem [thread:$0]  %s410, 16, %s412, [#allocation12]
        $region40: #{tpu_custom_call.1} parent=11 // pred_fallthru
          _
        // Predicated region
        $region41: #{tpu_custom_call.1} parent=11 // pred_check
          %p415 = pneg %p238
        $region42: #{tpu_custom_call.1} parent=11 // pred_check_branch
          %417 = sbr.rel (%p415) target = $region44
        $region43: #{tpu_custom_call.1} parent=11 // pred_region
          %s418 = smul.u32 4, %s37
          %420 = vsyncadd [#allocation15], 0
          %s421 = smul.addr %s418, 8
          %s422 = scalar_lea.hbm %s8, %s421
          %s423 = sshll.u32 %s422, 4
          %s424 = int_to_ptr.hbm [resolvable:$true] %s423
          %s425 = sshll.u32 [#allocation14], 4
          %s426 = int_to_ptr.vmem [resolvable:$true] %s425
          %431 = dma.hbm_to_vmem [thread:$0]  %s424, 8192, %s426, [#allocation15], 512, 512, 32
        $region44: #{tpu_custom_call.1} parent=11 // pred_fallthru
          _
        // Predicated region
        $region45: #{tpu_custom_call.1} parent=11 // pred_check
          %p432 = pneg %p264
        $region46: #{tpu_custom_call.1} parent=11 // pred_check_branch
          %434 = sbr.rel (%p432) target = $region48
        $region47: #{tpu_custom_call.1} parent=11 // pred_region
          %s435 = smul.u32 4, %s37
          %p436 = scmp.lt.s32.totalorder %s435, 3
          %s437 = scalar_select %p436, %s435, 3
          %s438 = scalar_lea.vmem %s9, %s437
          %s439 = smul.u32 4, %s37
        $region48: #{tpu_custom_call.1} parent=11 // pred_fallthru
          _
        // Predicated region
        $region49: #{tpu_custom_call.1} parent=11 // pred_check
          %p440 = pneg %p290
        $region50: #{tpu_custom_call.1} parent=11 // pred_check_branch
          %442 = sbr.rel (%p440) target = $region52
        $region51: #{tpu_custom_call.1} parent=11 // pred_region
          %s443 = smul.u32 64, %s37
          %445 = vsyncadd [#allocation15], 0
          %s446 = smul.addr %s443, 8
          %s447 = scalar_lea.hbm %s10, %s446
          %s448 = sshll.u32 %s447, 4
          %s449 = int_to_ptr.hbm [resolvable:$true] %s448
          %s450 = sshll.u32 [#allocation16], 4
          %s451 = int_to_ptr.vmem [resolvable:$true] %s450
          %456 = dma.hbm_to_vmem [thread:$0]  %s449, 8192, %s451, [#allocation15], 128, 128, 8
        $region52: #{tpu_custom_call.1} parent=11 // pred_fallthru
          _
        // Predicated region
        $region53: #{tpu_custom_call.1} parent=11 // pred_check
          %p457 = pneg %p311
        $region54: #{tpu_custom_call.1} parent=11 // pred_check_branch
          %459 = sbr.rel (%p457) target = $region56
        $region55: #{tpu_custom_call.1} parent=11 // pred_region
          _
        $region56: #{tpu_custom_call.1} parent=11 // pred_fallthru
          _
      $region12: #{tpu_custom_call.1} parent=5 // pred_fallthru
        _
      %p460 = scmp.lt.s32.totalorder %s27, 2
      // Predicated region
      $region57: #{tpu_custom_call.1} parent=5 // pred_check
        %p461 = pneg %p460
      $region58: #{tpu_custom_call.1} parent=5 // pred_check_branch
        %463 = sbr.rel (%p461) target = $region60
      $region59: #{tpu_custom_call.1} parent=5 // pred_region
        // Predicated region
        $region61: #{tpu_custom_call.1} parent=59 // pred_check
          %p464 = pneg %p59
        $region62: #{tpu_custom_call.1} parent=59 // pred_check_branch
          %466 = sbr.rel (%p464) target = $region64
        $region63: #{tpu_custom_call.1} parent=59 // pred_region
          %s467 = sand.u32 %s49, 1
          %s468 = scalar_lea.sflag [#allocation6], %s467
          %s469 = sand.u32 %s49, 1
          %s470 = smul.addr %s469, 256
          %s471 = scalar_lea.vmem [#allocation5], %s470
          %s472 = smul.u32 16, %s34
          %474 = vsyncadd %s468, 0
          %s475 = smul.addr %s472, 2
          %s476 = smul.addr %s475, 8
          %s477 = scalar_lea.hbm %s0, %s476
          %s478 = sshll.u32 %s477, 4
          %s479 = int_to_ptr.hbm [resolvable:$true] %s478
          %s480 = sshll.u32 %s471, 4
          %s481 = int_to_ptr.vmem [resolvable:$true] %s480
          %486 = dma.hbm_to_vmem [thread:$0]  %s479, 4096, %s481, %s468, 128, 128, 8
        $region64: #{tpu_custom_call.1} parent=59 // pred_fallthru
          _
      $region60: #{tpu_custom_call.1} parent=5 // pred_fallthru
        _
      %p487 = scmp.le.s32.totalorder 1, %s27
      %p488 = scmp.lt.s32.totalorder %s27, 3
      %p489 = pnand %p487, %p488
      %p490 = pneg %p489
      // Predicated region
      $region65: #{tpu_custom_call.1} parent=5 // pred_check
        _
      $region66: #{tpu_custom_call.1} parent=5 // pred_check_branch
        %492 = sbr.rel (%p489) target = $region68
      $region67: #{tpu_custom_call.1} parent=5 // pred_region
        %s493 = ssub.s32 %s27, 1
        %s494 = sand.u32 %s52, 1
        %s495 = scalar_lea.sflag [#allocation6], %s494
        %s496 = sand.u32 %s52, 1
        %s497 = smul.addr %s496, 256
        %s498 = scalar_lea.vmem [#allocation5], %s497
        // Predicated region
        $region69: #{tpu_custom_call.1} parent=67 // pred_check
          %p499 = pneg %p65
        $region70: #{tpu_custom_call.1} parent=67 // pred_check_branch
          %501 = sbr.rel (%p499) target = $region72
        $region71: #{tpu_custom_call.1} parent=67 // pred_region
          %503 = dma.done %s495, 4096
        $region72: #{tpu_custom_call.1} parent=67 // pred_fallthru
          _
        // Predicated region
        $region73: #{tpu_custom_call.1} parent=67 // pred_check
          %p504 = pneg %p86
        $region74: #{tpu_custom_call.1} parent=67 // pred_check_branch
          %506 = sbr.rel (%p504) target = $region76
        $region75: #{tpu_custom_call.1} parent=67 // pred_region
          %508 = dma.done [#allocation9], 8192
        $region76: #{tpu_custom_call.1} parent=67 // pred_fallthru
          _
        // Predicated region
        $region77: #{tpu_custom_call.1} parent=67 // pred_check
          %p509 = pneg %p107
        $region78: #{tpu_custom_call.1} parent=67 // pred_check_branch
          %511 = sbr.rel (%p509) target = $region80
        $region79: #{tpu_custom_call.1} parent=67 // pred_region
          %513 = dma.done [#allocation9], 2048
        $region80: #{tpu_custom_call.1} parent=67 // pred_fallthru
          _
        // Predicated region
        $region81: #{tpu_custom_call.1} parent=67 // pred_check
          %p514 = pneg %p128
        $region82: #{tpu_custom_call.1} parent=67 // pred_check_branch
          %516 = sbr.rel (%p514) target = $region84
        $region83: #{tpu_custom_call.1} parent=67 // pred_region
          %518 = dma.done [#allocation12], 4096
        $region84: #{tpu_custom_call.1} parent=67 // pred_fallthru
          _
        // Predicated region
        $region85: #{tpu_custom_call.1} parent=67 // pred_check
          %p519 = pneg %p212
        $region86: #{tpu_custom_call.1} parent=67 // pred_check_branch
          %521 = sbr.rel (%p519) target = $region88
        $region87: #{tpu_custom_call.1} parent=67 // pred_region
          %523 = dma.done [#allocation12], 16
        $region88: #{tpu_custom_call.1} parent=67 // pred_fallthru
          _
        // Predicated region
        $region89: #{tpu_custom_call.1} parent=67 // pred_check
          %p524 = pneg %p238
        $region90: #{tpu_custom_call.1} parent=67 // pred_check_branch
          %526 = sbr.rel (%p524) target = $region92
        $region91: #{tpu_custom_call.1} parent=67 // pred_region
          %528 = dma.done [#allocation15], 8192
        $region92: #{tpu_custom_call.1} parent=67 // pred_fallthru
          _
        // Predicated region
        $region93: #{tpu_custom_call.1} parent=67 // pred_check
          %p529 = pneg %p290
        $region94: #{tpu_custom_call.1} parent=67 // pred_check_branch
          %531 = sbr.rel (%p529) target = $region96
        $region95: #{tpu_custom_call.1} parent=67 // pred_region
          %533 = dma.done [#allocation15], 8192
        $region96: #{tpu_custom_call.1} parent=67 // pred_fallthru
          _
        %s534 = sand.u32 %s52, 1
        %s535 = scalar_lea.sflag [#allocation6], %s534
        %s536 = sand.u32 %s52, 1
        %s537 = smul.addr %s536, 256
        %s538 = scalar_lea.vmem [#allocation5], %s537
        %p539 = pneg %p65
        %p540 = pneg %p62
        %p541 = pneg %p86
        %p542 = pneg %p83
        %p543 = pneg %p107
        %p544 = pneg %p104
        %p545 = pneg %p128
        %p546 = pneg %p125
        %p547 = pneg %p149
        %p548 = pneg %p146
        %p549 = pneg %p170
        %p550 = pneg %p167
        %p551 = pneg %p191
        %p552 = pneg %p188
        %p553 = pneg %p212
        %p554 = pneg %p209
        %p555 = pneg %p238
        %p556 = pneg %p235
        %s557 = smul.u32 4, %s37
        %p558 = scmp.lt.s32.totalorder %s557, 3
        %s559 = scalar_select %p558, %s557, 3
        %s560 = scalar_lea.vmem %s9, %s559
        %p561 = pneg %p264
        %p562 = pneg %p261
        %p563 = pneg %p290
        %p564 = pneg %p287
        %p565 = pneg %p311
        %p566 = pneg %p308
        %p567 = pneg %p337
        %p568 = pneg %p334
        %s569 = sand.u32 %s324, 1
        %s570 = scalar_lea.sflag [#allocation7], %s569
        %s571 = sand.u32 %s324, 1
        %s572 = smul.addr %s571, 256
        %s573 = scalar_lea.vmem [#allocation17], %s572
        %s574 = smul.u32 16, %s36
        %s575 = smul.u32 4, %s37
        %s576 = smul.u32 4, %s37
        %p577 = scmp.lt.s32.totalorder %s576, 3
        %s578 = scalar_select %p577, %s576, 3
        %s579 = scalar_lea.vmem %s9, %s578
        %s580 = smul.u32 4, %s37
        %s581 = smul.u32 64, %s37
        %s582 = smul.u32 16, %s36
        %p583 = scmp.eq.s32.totalorder %s37, 0
        // Predicated region
        $region97: #{tpu_custom_call.1} parent=67 // pred_check
          %p584 = pneg %p583
        $region98: #{tpu_custom_call.1} parent=67 // pred_check_branch
          %586 = sbr.rel (%p584) target = $region100
        $region99: #{tpu_custom_call.1} parent=67 // pred_region
          %v587 = vld [vmem:[%s498] sm:$0xff]
          %v588 = vld [vmem:[%s498 + $0x8] sm:$0xff]
          %v589 = vld [vmem:[%s498 + $0x10] sm:$0xff]
          %v590 = vld [vmem:[%s498 + $0x18] sm:$0xff]
          %v591 = vld [vmem:[%s498 + $0x20] sm:$0xff]
          %v592 = vld [vmem:[%s498 + $0x28] sm:$0xff]
          %v593 = vld [vmem:[%s498 + $0x30] sm:$0xff]
          %v594 = vld [vmem:[%s498 + $0x38] sm:$0xff]
          %v595 = vld [vmem:[%s498 + $0x40] sm:$0xff]
          %v596 = vld [vmem:[%s498 + $0x48] sm:$0xff]
          %v597 = vld [vmem:[%s498 + $0x50] sm:$0xff]
          %v598 = vld [vmem:[%s498 + $0x58] sm:$0xff]
          %v599 = vld [vmem:[%s498 + $0x60] sm:$0xff]
          %v600 = vld [vmem:[%s498 + $0x68] sm:$0xff]
          %v601 = vld [vmem:[%s498 + $0x70] sm:$0xff]
          %v602 = vld [vmem:[%s498 + $0x78] sm:$0xff]
          %v603 = vld [vmem:[%s498 + $0x80] sm:$0xff]
          %v604 = vld [vmem:[%s498 + $0x88] sm:$0xff]
          %v605 = vld [vmem:[%s498 + $0x90] sm:$0xff]
          %v606 = vld [vmem:[%s498 + $0x98] sm:$0xff]
          %v607 = vld [vmem:[%s498 + $0xa0] sm:$0xff]
          %v608 = vld [vmem:[%s498 + $0xa8] sm:$0xff]
          %v609 = vld [vmem:[%s498 + $0xb0] sm:$0xff]
          %v610 = vld [vmem:[%s498 + $0xb8] sm:$0xff]
          %v611 = vld [vmem:[%s498 + $0xc0] sm:$0xff]
          %v612 = vld [vmem:[%s498 + $0xc8] sm:$0xff]
          %v613 = vld [vmem:[%s498 + $0xd0] sm:$0xff]
          %v614 = vld [vmem:[%s498 + $0xd8] sm:$0xff]
          %v615 = vld [vmem:[%s498 + $0xe0] sm:$0xff]
          %v616 = vld [vmem:[%s498 + $0xe8] sm:$0xff]
          %v617 = vld [vmem:[%s498 + $0xf0] sm:$0xff]
          %v618 = vld [vmem:[%s498 + $0xf8] sm:$0xff]
          %619 = vadd.xlane.f32.xlu0 %v587
          %v620 = vpop.xlane.xlu0 %619
          %621 = vadd.xlane.f32.xlu0 %v588
          %v622 = vpop.xlane.xlu0 %621
          %623 = vadd.xlane.f32.xlu0 %v589
          %v624 = vpop.xlane.xlu0 %623
          %625 = vadd.xlane.f32.xlu0 %v590
          %v626 = vpop.xlane.xlu0 %625
          %627 = vadd.xlane.f32.xlu0 %v591
          %v628 = vpop.xlane.xlu0 %627
          %629 = vadd.xlane.f32.xlu0 %v592
          %v630 = vpop.xlane.xlu0 %629
          %631 = vadd.xlane.f32.xlu0 %v593
          %v632 = vpop.xlane.xlu0 %631
          %633 = vadd.xlane.f32.xlu0 %v594
          %v634 = vpop.xlane.xlu0 %633
          %635 = vadd.xlane.f32.xlu0 %v595
          %v636 = vpop.xlane.xlu0 %635
          %637 = vadd.xlane.f32.xlu0 %v596
          %v638 = vpop.xlane.xlu0 %637
          %639 = vadd.xlane.f32.xlu0 %v597
          %v640 = vpop.xlane.xlu0 %639
          %641 = vadd.xlane.f32.xlu0 %v598
          %v642 = vpop.xlane.xlu0 %641
          %643 = vadd.xlane.f32.xlu0 %v599
          %v644 = vpop.xlane.xlu0 %643
          %645 = vadd.xlane.f32.xlu0 %v600
          %v646 = vpop.xlane.xlu0 %645
          %647 = vadd.xlane.f32.xlu0 %v601
          %v648 = vpop.xlane.xlu0 %647
          %649 = vadd.xlane.f32.xlu0 %v602
          %v650 = vpop.xlane.xlu0 %649
          %651 = vadd.xlane.f32.xlu0 %v603
          %v652 = vpop.xlane.xlu0 %651
          %653 = vadd.xlane.f32.xlu0 %v604
          %v654 = vpop.xlane.xlu0 %653
          %655 = vadd.xlane.f32.xlu0 %v605
          %v656 = vpop.xlane.xlu0 %655
          %657 = vadd.xlane.f32.xlu0 %v606
          %v658 = vpop.xlane.xlu0 %657
          %659 = vadd.xlane.f32.xlu0 %v607
          %v660 = vpop.xlane.xlu0 %659
          %661 = vadd.xlane.f32.xlu0 %v608
          %v662 = vpop.xlane.xlu0 %661
          %663 = vadd.xlane.f32.xlu0 %v609
          %v664 = vpop.xlane.xlu0 %663
          %665 = vadd.xlane.f32.xlu0 %v610
          %v666 = vpop.xlane.xlu0 %665
          %667 = vadd.xlane.f32.xlu0 %v611
          %v668 = vpop.xlane.xlu0 %667
          %669 = vadd.xlane.f32.xlu0 %v612
          %v670 = vpop.xlane.xlu0 %669
          %671 = vadd.xlane.f32.xlu0 %v613
          %v672 = vpop.xlane.xlu0 %671
          %673 = vadd.xlane.f32.xlu0 %v614
          %v674 = vpop.xlane.xlu0 %673
          %675 = vadd.xlane.f32.xlu0 %v615
          %v676 = vpop.xlane.xlu0 %675
          %677 = vadd.xlane.f32.xlu0 %v616
          %v678 = vpop.xlane.xlu0 %677
          %679 = vadd.xlane.f32.xlu0 %v617
          %v680 = vpop.xlane.xlu0 %679
          %681 = vadd.xlane.f32.xlu0 %v618
          %v682 = vpop.xlane.xlu0 %681
          %v683 = vrcp.pop 128.0
          %v684 = vmul.f32 128.0, %v683
          %v685 = vsub.f32 1.0, %v684
          %v686 = vmul.f32 %v683, %v685
          %v687 = vadd.f32 %v683, %v686
          %vm688 = vweird.f32 %v683
          %v689 = vsel %vm688, %v683, %v687
          %v690 = vmul.f32 %v620, %v689
          %v691 = vmul.f32 %v622, %v689
          %v692 = vmul.f32 %v624, %v689
          %v693 = vmul.f32 %v626, %v689
          %v694 = vmul.f32 %v628, %v689
          %v695 = vmul.f32 %v630, %v689
          %v696 = vmul.f32 %v632, %v689
          %v697 = vmul.f32 %v634, %v689
          %v698 = vmul.f32 %v636, %v689
          %v699 = vmul.f32 %v638, %v689
          %v700 = vmul.f32 %v640, %v689
          %v701 = vmul.f32 %v642, %v689
          %v702 = vmul.f32 %v644, %v689
          %v703 = vmul.f32 %v646, %v689
          %v704 = vmul.f32 %v648, %v689
          %v705 = vmul.f32 %v650, %v689
          %v706 = vmul.f32 %v652, %v689
          %v707 = vmul.f32 %v654, %v689
          %v708 = vmul.f32 %v656, %v689
          %v709 = vmul.f32 %v658, %v689
          %v710 = vmul.f32 %v660, %v689
          %v711 = vmul.f32 %v662, %v689
          %v712 = vmul.f32 %v664, %v689
          %v713 = vmul.f32 %v666, %v689
          %v714 = vmul.f32 %v668, %v689
          %v715 = vmul.f32 %v670, %v689
          %v716 = vmul.f32 %v672, %v689
          %v717 = vmul.f32 %v674, %v689
          %v718 = vmul.f32 %v676, %v689
          %v719 = vmul.f32 %v678, %v689
          %v720 = vmul.f32 %v680, %v689
          %v721 = vmul.f32 %v682, %v689
          %v722 = vmul.f32 %v587, %v587
          %v723 = vmul.f32 %v588, %v588
          %v724 = vmul.f32 %v589, %v589
          %v725 = vmul.f32 %v590, %v590
          %v726 = vmul.f32 %v591, %v591
          %v727 = vmul.f32 %v592, %v592
          %v728 = vmul.f32 %v593, %v593
          %v729 = vmul.f32 %v594, %v594
          %v730 = vmul.f32 %v595, %v595
          %v731 = vmul.f32 %v596, %v596
          %v732 = vmul.f32 %v597, %v597
          %v733 = vmul.f32 %v598, %v598
          %v734 = vmul.f32 %v599, %v599
          %v735 = vmul.f32 %v600, %v600
          %v736 = vmul.f32 %v601, %v601
          %v737 = vmul.f32 %v602, %v602
          %v738 = vmul.f32 %v603, %v603
          %v739 = vmul.f32 %v604, %v604
          %v740 = vmul.f32 %v605, %v605
          %v741 = vmul.f32 %v606, %v606
          %v742 = vmul.f32 %v607, %v607
          %v743 = vmul.f32 %v608, %v608
          %v744 = vmul.f32 %v609, %v609
          %v745 = vmul.f32 %v610, %v610
          %v746 = vmul.f32 %v611, %v611
          %v747 = vmul.f32 %v612, %v612
          %v748 = vmul.f32 %v613, %v613
          %v749 = vmul.f32 %v614, %v614
          %v750 = vmul.f32 %v615, %v615
          %v751 = vmul.f32 %v616, %v616
          %v752 = vmul.f32 %v617, %v617
          %v753 = vmul.f32 %v618, %v618
          %754 = vadd.xlane.f32.xlu0 %v722
          %v755 = vpop.xlane.xlu0 %754
          %756 = vadd.xlane.f32.xlu0 %v723
          %v757 = vpop.xlane.xlu0 %756
          %758 = vadd.xlane.f32.xlu0 %v724
          %v759 = vpop.xlane.xlu0 %758
          %760 = vadd.xlane.f32.xlu0 %v725
          %v761 = vpop.xlane.xlu0 %760
          %762 = vadd.xlane.f32.xlu0 %v726
          %v763 = vpop.xlane.xlu0 %762
          %764 = vadd.xlane.f32.xlu0 %v727
          %v765 = vpop.xlane.xlu0 %764
          %766 = vadd.xlane.f32.xlu0 %v728
          %v767 = vpop.xlane.xlu0 %766
          %768 = vadd.xlane.f32.xlu0 %v729
          %v769 = vpop.xlane.xlu0 %768
          %770 = vadd.xlane.f32.xlu0 %v730
          %v771 = vpop.xlane.xlu0 %770
          %772 = vadd.xlane.f32.xlu0 %v731
          %v773 = vpop.xlane.xlu0 %772
          %774 = vadd.xlane.f32.xlu0 %v732
          %v775 = vpop.xlane.xlu0 %774
          %776 = vadd.xlane.f32.xlu0 %v733
          %v777 = vpop.xlane.xlu0 %776
          %778 = vadd.xlane.f32.xlu0 %v734
          %v779 = vpop.xlane.xlu0 %778
          %780 = vadd.xlane.f32.xlu0 %v735
          %v781 = vpop.xlane.xlu0 %780
          %782 = vadd.xlane.f32.xlu0 %v736
          %v783 = vpop.xlane.xlu0 %782
          %784 = vadd.xlane.f32.xlu0 %v737
          %v785 = vpop.xlane.xlu0 %784
          %786 = vadd.xlane.f32.xlu0 %v738
          %v787 = vpop.xlane.xlu0 %786
          %788 = vadd.xlane.f32.xlu0 %v739
          %v789 = vpop.xlane.xlu0 %788
          %790 = vadd.xlane.f32.xlu0 %v740
          %v791 = vpop.xlane.xlu0 %790
          %792 = vadd.xlane.f32.xlu0 %v741
          %v793 = vpop.xlane.xlu0 %792
          %794 = vadd.xlane.f32.xlu0 %v742
          %v795 = vpop.xlane.xlu0 %794
          %796 = vadd.xlane.f32.xlu0 %v743
          %v797 = vpop.xlane.xlu0 %796
          %798 = vadd.xlane.f32.xlu0 %v744
          %v799 = vpop.xlane.xlu0 %798
          %800 = vadd.xlane.f32.xlu0 %v745
          %v801 = vpop.xlane.xlu0 %800
          %802 = vadd.xlane.f32.xlu0 %v746
          %v803 = vpop.xlane.xlu0 %802
          %804 = vadd.xlane.f32.xlu0 %v747
          %v805 = vpop.xlane.xlu0 %804
          %806 = vadd.xlane.f32.xlu0 %v748
          %v807 = vpop.xlane.xlu0 %806
          %808 = vadd.xlane.f32.xlu0 %v749
          %v809 = vpop.xlane.xlu0 %808
          %810 = vadd.xlane.f32.xlu0 %v750
          %v811 = vpop.xlane.xlu0 %810
          %812 = vadd.xlane.f32.xlu0 %v751
          %v813 = vpop.xlane.xlu0 %812
          %814 = vadd.xlane.f32.xlu0 %v752
          %v815 = vpop.xlane.xlu0 %814
          %816 = vadd.xlane.f32.xlu0 %v753
          %v817 = vpop.xlane.xlu0 %816
          %v818 = vmul.f32 %v755, %v689
          %v819 = vmul.f32 %v757, %v689
          %v820 = vmul.f32 %v759, %v689
          %v821 = vmul.f32 %v761, %v689
          %v822 = vmul.f32 %v763, %v689
          %v823 = vmul.f32 %v765, %v689
          %v824 = vmul.f32 %v767, %v689
          %v825 = vmul.f32 %v769, %v689
          %v826 = vmul.f32 %v771, %v689
          %v827 = vmul.f32 %v773, %v689
          %v828 = vmul.f32 %v775, %v689
          %v829 = vmul.f32 %v777, %v689
          %v830 = vmul.f32 %v779, %v689
          %v831 = vmul.f32 %v781, %v689
          %v832 = vmul.f32 %v783, %v689
          %v833 = vmul.f32 %v785, %v689
          %v834 = vmul.f32 %v787, %v689
          %v835 = vmul.f32 %v789, %v689
          %v836 = vmul.f32 %v791, %v689
          %v837 = vmul.f32 %v793, %v689
          %v838 = vmul.f32 %v795, %v689
          %v839 = vmul.f32 %v797, %v689
          %v840 = vmul.f32 %v799, %v689
          %v841 = vmul.f32 %v801, %v689
          %v842 = vmul.f32 %v803, %v689
          %v843 = vmul.f32 %v805, %v689
          %v844 = vmul.f32 %v807, %v689
          %v845 = vmul.f32 %v809, %v689
          %v846 = vmul.f32 %v811, %v689
          %v847 = vmul.f32 %v813, %v689
          %v848 = vmul.f32 %v815, %v689
          %v849 = vmul.f32 %v817, %v689
          %v850 = vmul.f32 %v690, %v690
          %v851 = vmul.f32 %v691, %v691
          %v852 = vmul.f32 %v692, %v692
          %v853 = vmul.f32 %v693, %v693
          %v854 = vmul.f32 %v694, %v694
          %v855 = vmul.f32 %v695, %v695
          %v856 = vmul.f32 %v696, %v696
          %v857 = vmul.f32 %v697, %v697
          %v858 = vmul.f32 %v698, %v698
          %v859 = vmul.f32 %v699, %v699
          %v860 = vmul.f32 %v700, %v700
          %v861 = vmul.f32 %v701, %v701
          %v862 = vmul.f32 %v702, %v702
          %v863 = vmul.f32 %v703, %v703
          %v864 = vmul.f32 %v704, %v704
          %v865 = vmul.f32 %v705, %v705
          %v866 = vmul.f32 %v706, %v706
          %v867 = vmul.f32 %v707, %v707
          %v868 = vmul.f32 %v708, %v708
          %v869 = vmul.f32 %v709, %v709
          %v870 = vmul.f32 %v710, %v710
          %v871 = vmul.f32 %v711, %v711
          %v872 = vmul.f32 %v712, %v712
          %v873 = vmul.f32 %v713, %v713
          %v874 = vmul.f32 %v714, %v714
          %v875 = vmul.f32 %v715, %v715
          %v876 = vmul.f32 %v716, %v716
          %v877 = vmul.f32 %v717, %v717
          %v878 = vmul.f32 %v718, %v718
          %v879 = vmul.f32 %v719, %v719
          %v880 = vmul.f32 %v720, %v720
          %v881 = vmul.f32 %v721, %v721
          %v882 = vsub.f32 %v818, %v850
          %v883 = vsub.f32 %v819, %v851
          %v884 = vsub.f32 %v820, %v852
          %v885 = vsub.f32 %v821, %v853
          %v886 = vsub.f32 %v822, %v854
          %v887 = vsub.f32 %v823, %v855
          %v888 = vsub.f32 %v824, %v856
          %v889 = vsub.f32 %v825, %v857
          %v890 = vsub.f32 %v826, %v858
          %v891 = vsub.f32 %v827, %v859
          %v892 = vsub.f32 %v828, %v860
          %v893 = vsub.f32 %v829, %v861
          %v894 = vsub.f32 %v830, %v862
          %v895 = vsub.f32 %v831, %v863
          %v896 = vsub.f32 %v832, %v864
          %v897 = vsub.f32 %v833, %v865
          %v898 = vsub.f32 %v834, %v866
          %v899 = vsub.f32 %v835, %v867
          %v900 = vsub.f32 %v836, %v868
          %v901 = vsub.f32 %v837, %v869
          %v902 = vsub.f32 %v838, %v870
          %v903 = vsub.f32 %v839, %v871
          %v904 = vsub.f32 %v840, %v872
          %v905 = vsub.f32 %v841, %v873
          %v906 = vsub.f32 %v842, %v874
          %v907 = vsub.f32 %v843, %v875
          %v908 = vsub.f32 %v844, %v876
          %v909 = vsub.f32 %v845, %v877
          %v910 = vsub.f32 %v846, %v878
          %v911 = vsub.f32 %v847, %v879
          %v912 = vsub.f32 %v848, %v880
          %v913 = vsub.f32 %v849, %v881
          %v914 = vmax.f32 %v882, 0.0
          %v915 = vmax.f32 %v883, 0.0
          %v916 = vmax.f32 %v884, 0.0
          %v917 = vmax.f32 %v885, 0.0
          %v918 = vmax.f32 %v886, 0.0
          %v919 = vmax.f32 %v887, 0.0
          %v920 = vmax.f32 %v888, 0.0
          %v921 = vmax.f32 %v889, 0.0
          %v922 = vmax.f32 %v890, 0.0
          %v923 = vmax.f32 %v891, 0.0
          %v924 = vmax.f32 %v892, 0.0
          %v925 = vmax.f32 %v893, 0.0
          %v926 = vmax.f32 %v894, 0.0
          %v927 = vmax.f32 %v895, 0.0
          %v928 = vmax.f32 %v896, 0.0
          %v929 = vmax.f32 %v897, 0.0
          %v930 = vmax.f32 %v898, 0.0
          %v931 = vmax.f32 %v899, 0.0
          %v932 = vmax.f32 %v900, 0.0
          %v933 = vmax.f32 %v901, 0.0
          %v934 = vmax.f32 %v902, 0.0
          %v935 = vmax.f32 %v903, 0.0
          %v936 = vmax.f32 %v904, 0.0
          %v937 = vmax.f32 %v905, 0.0
          %v938 = vmax.f32 %v906, 0.0
          %v939 = vmax.f32 %v907, 0.0
          %v940 = vmax.f32 %v908, 0.0
          %v941 = vmax.f32 %v909, 0.0
          %v942 = vmax.f32 %v910, 0.0
          %v943 = vmax.f32 %v911, 0.0
          %v944 = vmax.f32 %v912, 0.0
          %v945 = vmax.f32 %v913, 0.0
          %v946 = vsub.f32 %v587, %v690
          %v947 = vsub.f32 %v588, %v691
          %v948 = vsub.f32 %v589, %v692
          %v949 = vsub.f32 %v590, %v693
          %v950 = vsub.f32 %v591, %v694
          %v951 = vsub.f32 %v592, %v695
          %v952 = vsub.f32 %v593, %v696
          %v953 = vsub.f32 %v594, %v697
          %v954 = vsub.f32 %v595, %v698
          %v955 = vsub.f32 %v596, %v699
          %v956 = vsub.f32 %v597, %v700
          %v957 = vsub.f32 %v598, %v701
          %v958 = vsub.f32 %v599, %v702
          %v959 = vsub.f32 %v600, %v703
          %v960 = vsub.f32 %v601, %v704
          %v961 = vsub.f32 %v602, %v705
          %v962 = vsub.f32 %v603, %v706
          %v963 = vsub.f32 %v604, %v707
          %v964 = vsub.f32 %v605, %v708
          %v965 = vsub.f32 %v606, %v709
          %v966 = vsub.f32 %v607, %v710
          %v967 = vsub.f32 %v608, %v711
          %v968 = vsub.f32 %v609, %v712
          %v969 = vsub.f32 %v610, %v713
          %v970 = vsub.f32 %v611, %v714
          %v971 = vsub.f32 %v612, %v715
          %v972 = vsub.f32 %v613, %v716
          %v973 = vsub.f32 %v614, %v717
          %v974 = vsub.f32 %v615, %v718
          %v975 = vsub.f32 %v616, %v719
          %v976 = vsub.f32 %v617, %v720
          %v977 = vsub.f32 %v618, %v721
          %v978 = vadd.f32 %v914, 1e-05
          %v979 = vadd.f32 %v915, 1e-05
          %v980 = vadd.f32 %v916, 1e-05
          %v981 = vadd.f32 %v917, 1e-05
          %v982 = vadd.f32 %v918, 1e-05
          %v983 = vadd.f32 %v919, 1e-05
          %v984 = vadd.f32 %v920, 1e-05
          %v985 = vadd.f32 %v921, 1e-05
          %v986 = vadd.f32 %v922, 1e-05
          %v987 = vadd.f32 %v923, 1e-05
          %v988 = vadd.f32 %v924, 1e-05
          %v989 = vadd.f32 %v925, 1e-05
          %v990 = vadd.f32 %v926, 1e-05
          %v991 = vadd.f32 %v927, 1e-05
          %v992 = vadd.f32 %v928, 1e-05
          %v993 = vadd.f32 %v929, 1e-05
          %v994 = vadd.f32 %v930, 1e-05
          %v995 = vadd.f32 %v931, 1e-05
          %v996 = vadd.f32 %v932, 1e-05
          %v997 = vadd.f32 %v933, 1e-05
          %v998 = vadd.f32 %v934, 1e-05
          %v999 = vadd.f32 %v935, 1e-05
          %v1000 = vadd.f32 %v936, 1e-05
          %v1001 = vadd.f32 %v937, 1e-05
          %v1002 = vadd.f32 %v938, 1e-05
          %v1003 = vadd.f32 %v939, 1e-05
          %v1004 = vadd.f32 %v940, 1e-05
          %v1005 = vadd.f32 %v941, 1e-05
          %v1006 = vadd.f32 %v942, 1e-05
          %v1007 = vadd.f32 %v943, 1e-05
          %v1008 = vadd.f32 %v944, 1e-05
          %v1009 = vadd.f32 %v945, 1e-05
          %v1010 = vrsqrt.pop %v978
          %v1011 = vmul.f32 %v1010, %v978
          %v1012 = vmul.f32 %v1011, %v1010
          %v1013 = vmul.f32 0.5, %v1012
          %v1014 = vsub.f32 1.5, %v1013
          %v1015 = vmul.f32 %v1010, %v1014
          %vm1016 = vweird.f32 %v978
          %vm1017 = vweird.f32 %v1010
          %vm1018 = vmor %vm1016, %vm1017
          %v1019 = vsel %vm1018, %v1010, %v1015
          %v1020 = vrsqrt.pop %v979
          %v1021 = vmul.f32 %v1020, %v979
          %v1022 = vmul.f32 %v1021, %v1020
          %v1023 = vmul.f32 0.5, %v1022
          %v1024 = vsub.f32 1.5, %v1023
          %v1025 = vmul.f32 %v1020, %v1024
          %vm1026 = vweird.f32 %v979
          %vm1027 = vweird.f32 %v1020
          %vm1028 = vmor %vm1026, %vm1027
          %v1029 = vsel %vm1028, %v1020, %v1025
          %v1030 = vrsqrt.pop %v980
          %v1031 = vmul.f32 %v1030, %v980
          %v1032 = vmul.f32 %v1031, %v1030
          %v1033 = vmul.f32 0.5, %v1032
          %v1034 = vsub.f32 1.5, %v1033
          %v1035 = vmul.f32 %v1030, %v1034
          %vm1036 = vweird.f32 %v980
          %vm1037 = vweird.f32 %v1030
          %vm1038 = vmor %vm1036, %vm1037
          %v1039 = vsel %vm1038, %v1030, %v1035
          %v1040 = vrsqrt.pop %v981
          %v1041 = vmul.f32 %v1040, %v981
          %v1042 = vmul.f32 %v1041, %v1040
          %v1043 = vmul.f32 0.5, %v1042
          %v1044 = vsub.f32 1.5, %v1043
          %v1045 = vmul.f32 %v1040, %v1044
          %vm1046 = vweird.f32 %v981
          %vm1047 = vweird.f32 %v1040
          %vm1048 = vmor %vm1046, %vm1047
          %v1049 = vsel %vm1048, %v1040, %v1045
          %v1050 = vrsqrt.pop %v982
          %v1051 = vmul.f32 %v1050, %v982
          %v1052 = vmul.f32 %v1051, %v1050
          %v1053 = vmul.f32 0.5, %v1052
          %v1054 = vsub.f32 1.5, %v1053
          %v1055 = vmul.f32 %v1050, %v1054
          %vm1056 = vweird.f32 %v982
          %vm1057 = vweird.f32 %v1050
          %vm1058 = vmor %vm1056, %vm1057
          %v1059 = vsel %vm1058, %v1050, %v1055
          %v1060 = vrsqrt.pop %v983
          %v1061 = vmul.f32 %v1060, %v983
          %v1062 = vmul.f32 %v1061, %v1060
          %v1063 = vmul.f32 0.5, %v1062
          %v1064 = vsub.f32 1.5, %v1063
          %v1065 = vmul.f32 %v1060, %v1064
          %vm1066 = vweird.f32 %v983
          %vm1067 = vweird.f32 %v1060
          %vm1068 = vmor %vm1066, %vm1067
          %v1069 = vsel %vm1068, %v1060, %v1065
          %v1070 = vrsqrt.pop %v984
          %v1071 = vmul.f32 %v1070, %v984
          %v1072 = vmul.f32 %v1071, %v1070
          %v1073 = vmul.f32 0.5, %v1072
          %v1074 = vsub.f32 1.5, %v1073
          %v1075 = vmul.f32 %v1070, %v1074
          %vm1076 = vweird.f32 %v984
          %vm1077 = vweird.f32 %v1070
          %vm1078 = vmor %vm1076, %vm1077
          %v1079 = vsel %vm1078, %v1070, %v1075
          %v1080 = vrsqrt.pop %v985
          %v1081 = vmul.f32 %v1080, %v985
          %v1082 = vmul.f32 %v1081, %v1080
          %v1083 = vmul.f32 0.5, %v1082
          %v1084 = vsub.f32 1.5, %v1083
          %v1085 = vmul.f32 %v1080, %v1084
          %vm1086 = vweird.f32 %v985
          %vm1087 = vweird.f32 %v1080
          %vm1088 = vmor %vm1086, %vm1087
          %v1089 = vsel %vm1088, %v1080, %v1085
          %v1090 = vrsqrt.pop %v986
          %v1091 = vmul.f32 %v1090, %v986
          %v1092 = vmul.f32 %v1091, %v1090
          %v1093 = vmul.f32 0.5, %v1092
          %v1094 = vsub.f32 1.5, %v1093
          %v1095 = vmul.f32 %v1090, %v1094
          %vm1096 = vweird.f32 %v986
          %vm1097 = vweird.f32 %v1090
          %vm1098 = vmor %vm1096, %vm1097
          %v1099 = vsel %vm1098, %v1090, %v1095
          %v1100 = vrsqrt.pop %v987
          %v1101 = vmul.f32 %v1100, %v987
          %v1102 = vmul.f32 %v1101, %v1100
          %v1103 = vmul.f32 0.5, %v1102
          %v1104 = vsub.f32 1.5, %v1103
          %v1105 = vmul.f32 %v1100, %v1104
          %vm1106 = vweird.f32 %v987
          %vm1107 = vweird.f32 %v1100
          %vm1108 = vmor %vm1106, %vm1107
          %v1109 = vsel %vm1108, %v1100, %v1105
          %v1110 = vrsqrt.pop %v988
          %v1111 = vmul.f32 %v1110, %v988
          %v1112 = vmul.f32 %v1111, %v1110
          %v1113 = vmul.f32 0.5, %v1112
          %v1114 = vsub.f32 1.5, %v1113
          %v1115 = vmul.f32 %v1110, %v1114
          %vm1116 = vweird.f32 %v988
          %vm1117 = vweird.f32 %v1110
          %vm1118 = vmor %vm1116, %vm1117
          %v1119 = vsel %vm1118, %v1110, %v1115
          %v1120 = vrsqrt.pop %v989
          %v1121 = vmul.f32 %v1120, %v989
          %v1122 = vmul.f32 %v1121, %v1120
          %v1123 = vmul.f32 0.5, %v1122
          %v1124 = vsub.f32 1.5, %v1123
          %v1125 = vmul.f32 %v1120, %v1124
          %vm1126 = vweird.f32 %v989
          %vm1127 = vweird.f32 %v1120
          %vm1128 = vmor %vm1126, %vm1127
          %v1129 = vsel %vm1128, %v1120, %v1125
          %v1130 = vrsqrt.pop %v990
          %v1131 = vmul.f32 %v1130, %v990
          %v1132 = vmul.f32 %v1131, %v1130
          %v1133 = vmul.f32 0.5, %v1132
          %v1134 = vsub.f32 1.5, %v1133
          %v1135 = vmul.f32 %v1130, %v1134
          %vm1136 = vweird.f32 %v990
          %vm1137 = vweird.f32 %v1130
          %vm1138 = vmor %vm1136, %vm1137
          %v1139 = vsel %vm1138, %v1130, %v1135
          %v1140 = vrsqrt.pop %v991
          %v1141 = vmul.f32 %v1140, %v991
          %v1142 = vmul.f32 %v1141, %v1140
          %v1143 = vmul.f32 0.5, %v1142
          %v1144 = vsub.f32 1.5, %v1143
          %v1145 = vmul.f32 %v1140, %v1144
          %vm1146 = vweird.f32 %v991
          %vm1147 = vweird.f32 %v1140
          %vm1148 = vmor %vm1146, %vm1147
          %v1149 = vsel %vm1148, %v1140, %v1145
          %v1150 = vrsqrt.pop %v992
          %v1151 = vmul.f32 %v1150, %v992
          %v1152 = vmul.f32 %v1151, %v1150
          %v1153 = vmul.f32 0.5, %v1152
          %v1154 = vsub.f32 1.5, %v1153
          %v1155 = vmul.f32 %v1150, %v1154
          %vm1156 = vweird.f32 %v992
          %vm1157 = vweird.f32 %v1150
          %vm1158 = vmor %vm1156, %vm1157
          %v1159 = vsel %vm1158, %v1150, %v1155
          %v1160 = vrsqrt.pop %v993
          %v1161 = vmul.f32 %v1160, %v993
          %v1162 = vmul.f32 %v1161, %v1160
          %v1163 = vmul.f32 0.5, %v1162
          %v1164 = vsub.f32 1.5, %v1163
          %v1165 = vmul.f32 %v1160, %v1164
          %vm1166 = vweird.f32 %v993
          %vm1167 = vweird.f32 %v1160
          %vm1168 = vmor %vm1166, %vm1167
          %v1169 = vsel %vm1168, %v1160, %v1165
          %v1170 = vrsqrt.pop %v994
          %v1171 = vmul.f32 %v1170, %v994
          %v1172 = vmul.f32 %v1171, %v1170
          %v1173 = vmul.f32 0.5, %v1172
          %v1174 = vsub.f32 1.5, %v1173
          %v1175 = vmul.f32 %v1170, %v1174
          %vm1176 = vweird.f32 %v994
          %vm1177 = vweird.f32 %v1170
          %vm1178 = vmor %vm1176, %vm1177
          %v1179 = vsel %vm1178, %v1170, %v1175
          %v1180 = vrsqrt.pop %v995
          %v1181 = vmul.f32 %v1180, %v995
          %v1182 = vmul.f32 %v1181, %v1180
          %v1183 = vmul.f32 0.5, %v1182
          %v1184 = vsub.f32 1.5, %v1183
          %v1185 = vmul.f32 %v1180, %v1184
          %vm1186 = vweird.f32 %v995
          %vm1187 = vweird.f32 %v1180
          %vm1188 = vmor %vm1186, %vm1187
          %v1189 = vsel %vm1188, %v1180, %v1185
          %v1190 = vrsqrt.pop %v996
          %v1191 = vmul.f32 %v1190, %v996
          %v1192 = vmul.f32 %v1191, %v1190
          %v1193 = vmul.f32 0.5, %v1192
          %v1194 = vsub.f32 1.5, %v1193
          %v1195 = vmul.f32 %v1190, %v1194
          %vm1196 = vweird.f32 %v996
          %vm1197 = vweird.f32 %v1190
          %vm1198 = vmor %vm1196, %vm1197
          %v1199 = vsel %vm1198, %v1190, %v1195
          %v1200 = vrsqrt.pop %v997
          %v1201 = vmul.f32 %v1200, %v997
          %v1202 = vmul.f32 %v1201, %v1200
          %v1203 = vmul.f32 0.5, %v1202
          %v1204 = vsub.f32 1.5, %v1203
          %v1205 = vmul.f32 %v1200, %v1204
          %vm1206 = vweird.f32 %v997
          %vm1207 = vweird.f32 %v1200
          %vm1208 = vmor %vm1206, %vm1207
          %v1209 = vsel %vm1208, %v1200, %v1205
          %v1210 = vrsqrt.pop %v998
          %v1211 = vmul.f32 %v1210, %v998
          %v1212 = vmul.f32 %v1211, %v1210
          %v1213 = vmul.f32 0.5, %v1212
          %v1214 = vsub.f32 1.5, %v1213
          %v1215 = vmul.f32 %v1210, %v1214
          %vm1216 = vweird.f32 %v998
          %vm1217 = vweird.f32 %v1210
          %vm1218 = vmor %vm1216, %vm1217
          %v1219 = vsel %vm1218, %v1210, %v1215
          %v1220 = vrsqrt.pop %v999
          %v1221 = vmul.f32 %v1220, %v999
          %v1222 = vmul.f32 %v1221, %v1220
          %v1223 = vmul.f32 0.5, %v1222
          %v1224 = vsub.f32 1.5, %v1223
          %v1225 = vmul.f32 %v1220, %v1224
          %vm1226 = vweird.f32 %v999
          %vm1227 = vweird.f32 %v1220
          %vm1228 = vmor %vm1226, %vm1227
          %v1229 = vsel %vm1228, %v1220, %v1225
          %v1230 = vrsqrt.pop %v1000
          %v1231 = vmul.f32 %v1230, %v1000
          %v1232 = vmul.f32 %v1231, %v1230
          %v1233 = vmul.f32 0.5, %v1232
          %v1234 = vsub.f32 1.5, %v1233
          %v1235 = vmul.f32 %v1230, %v1234
          %vm1236 = vweird.f32 %v1000
          %vm1237 = vweird.f32 %v1230
          %vm1238 = vmor %vm1236, %vm1237
          %v1239 = vsel %vm1238, %v1230, %v1235
          %v1240 = vrsqrt.pop %v1001
          %v1241 = vmul.f32 %v1240, %v1001
          %v1242 = vmul.f32 %v1241, %v1240
          %v1243 = vmul.f32 0.5, %v1242
          %v1244 = vsub.f32 1.5, %v1243
          %v1245 = vmul.f32 %v1240, %v1244
          %vm1246 = vweird.f32 %v1001
          %vm1247 = vweird.f32 %v1240
          %vm1248 = vmor %vm1246, %vm1247
          %v1249 = vsel %vm1248, %v1240, %v1245
          %v1250 = vrsqrt.pop %v1002
          %v1251 = vmul.f32 %v1250, %v1002
          %v1252 = vmul.f32 %v1251, %v1250
          %v1253 = vmul.f32 0.5, %v1252
          %v1254 = vsub.f32 1.5, %v1253
          %v1255 = vmul.f32 %v1250, %v1254
          %vm1256 = vweird.f32 %v1002
          %vm1257 = vweird.f32 %v1250
          %vm1258 = vmor %vm1256, %vm1257
          %v1259 = vsel %vm1258, %v1250, %v1255
          %v1260 = vrsqrt.pop %v1003
          %v1261 = vmul.f32 %v1260, %v1003
          %v1262 = vmul.f32 %v1261, %v1260
          %v1263 = vmul.f32 0.5, %v1262
          %v1264 = vsub.f32 1.5, %v1263
          %v1265 = vmul.f32 %v1260, %v1264
          %vm1266 = vweird.f32 %v1003
          %vm1267 = vweird.f32 %v1260
          %vm1268 = vmor %vm1266, %vm1267
          %v1269 = vsel %vm1268, %v1260, %v1265
          %v1270 = vrsqrt.pop %v1004
          %v1271 = vmul.f32 %v1270, %v1004
          %v1272 = vmul.f32 %v1271, %v1270
          %v1273 = vmul.f32 0.5, %v1272
          %v1274 = vsub.f32 1.5, %v1273
          %v1275 = vmul.f32 %v1270, %v1274
          %vm1276 = vweird.f32 %v1004
          %vm1277 = vweird.f32 %v1270
          %vm1278 = vmor %vm1276, %vm1277
          %v1279 = vsel %vm1278, %v1270, %v1275
          %v1280 = vrsqrt.pop %v1005
          %v1281 = vmul.f32 %v1280, %v1005
          %v1282 = vmul.f32 %v1281, %v1280
          %v1283 = vmul.f32 0.5, %v1282
          %v1284 = vsub.f32 1.5, %v1283
          %v1285 = vmul.f32 %v1280, %v1284
          %vm1286 = vweird.f32 %v1005
          %vm1287 = vweird.f32 %v1280
          %vm1288 = vmor %vm1286, %vm1287
          %v1289 = vsel %vm1288, %v1280, %v1285
          %v1290 = vrsqrt.pop %v1006
          %v1291 = vmul.f32 %v1290, %v1006
          %v1292 = vmul.f32 %v1291, %v1290
          %v1293 = vmul.f32 0.5, %v1292
          %v1294 = vsub.f32 1.5, %v1293
          %v1295 = vmul.f32 %v1290, %v1294
          %vm1296 = vweird.f32 %v1006
          %vm1297 = vweird.f32 %v1290
          %vm1298 = vmor %vm1296, %vm1297
          %v1299 = vsel %vm1298, %v1290, %v1295
          %v1300 = vrsqrt.pop %v1007
          %v1301 = vmul.f32 %v1300, %v1007
          %v1302 = vmul.f32 %v1301, %v1300
          %v1303 = vmul.f32 0.5, %v1302
          %v1304 = vsub.f32 1.5, %v1303
          %v1305 = vmul.f32 %v1300, %v1304
          %vm1306 = vweird.f32 %v1007
          %vm1307 = vweird.f32 %v1300
          %vm1308 = vmor %vm1306, %vm1307
          %v1309 = vsel %vm1308, %v1300, %v1305
          %v1310 = vrsqrt.pop %v1008
          %v1311 = vmul.f32 %v1310, %v1008
          %v1312 = vmul.f32 %v1311, %v1310
          %v1313 = vmul.f32 0.5, %v1312
          %v1314 = vsub.f32 1.5, %v1313
          %v1315 = vmul.f32 %v1310, %v1314
          %vm1316 = vweird.f32 %v1008
          %vm1317 = vweird.f32 %v1310
          %vm1318 = vmor %vm1316, %vm1317
          %v1319 = vsel %vm1318, %v1310, %v1315
          %v1320 = vrsqrt.pop %v1009
          %v1321 = vmul.f32 %v1320, %v1009
          %v1322 = vmul.f32 %v1321, %v1320
          %v1323 = vmul.f32 0.5, %v1322
          %v1324 = vsub.f32 1.5, %v1323
          %v1325 = vmul.f32 %v1320, %v1324
          %vm1326 = vweird.f32 %v1009
          %vm1327 = vweird.f32 %v1320
          %vm1328 = vmor %vm1326, %vm1327
          %v1329 = vsel %vm1328, %v1320, %v1325
          %v1330 = vmul.f32 %v946, %v1019
          %v1331 = vmul.f32 %v947, %v1029
          %v1332 = vmul.f32 %v948, %v1039
          %v1333 = vmul.f32 %v949, %v1049
          %v1334 = vmul.f32 %v950, %v1059
          %v1335 = vmul.f32 %v951, %v1069
          %v1336 = vmul.f32 %v952, %v1079
          %v1337 = vmul.f32 %v953, %v1089
          %v1338 = vmul.f32 %v954, %v1099
          %v1339 = vmul.f32 %v955, %v1109
          %v1340 = vmul.f32 %v956, %v1119
          %v1341 = vmul.f32 %v957, %v1129
          %v1342 = vmul.f32 %v958, %v1139
          %v1343 = vmul.f32 %v959, %v1149
          %v1344 = vmul.f32 %v960, %v1159
          %v1345 = vmul.f32 %v961, %v1169
          %v1346 = vmul.f32 %v962, %v1179
          %v1347 = vmul.f32 %v963, %v1189
          %v1348 = vmul.f32 %v964, %v1199
          %v1349 = vmul.f32 %v965, %v1209
          %v1350 = vmul.f32 %v966, %v1219
          %v1351 = vmul.f32 %v967, %v1229
          %v1352 = vmul.f32 %v968, %v1239
          %v1353 = vmul.f32 %v969, %v1249
          %v1354 = vmul.f32 %v970, %v1259
          %v1355 = vmul.f32 %v971, %v1269
          %v1356 = vmul.f32 %v972, %v1279
          %v1357 = vmul.f32 %v973, %v1289
          %v1358 = vmul.f32 %v974, %v1299
          %v1359 = vmul.f32 %v975, %v1309
          %v1360 = vmul.f32 %v976, %v1319
          %v1361 = vmul.f32 %v977, %v1329
          %v1362 = vld [vmem:[%s4] sm:$0x1]
          %v1364 = vperm.slane %v1362, 0
          %v1366 = vmul.f32 %v1330, %v1364
          %v1367 = vmul.f32 %v1331, %v1364
          %v1368 = vmul.f32 %v1332, %v1364
          %v1369 = vmul.f32 %v1333, %v1364
          %v1370 = vmul.f32 %v1334, %v1364
          %v1371 = vmul.f32 %v1335, %v1364
          %v1372 = vmul.f32 %v1336, %v1364
          %v1373 = vmul.f32 %v1337, %v1364
          %v1374 = vmul.f32 %v1338, %v1364
          %v1375 = vmul.f32 %v1339, %v1364
          %v1376 = vmul.f32 %v1340, %v1364
          %v1377 = vmul.f32 %v1341, %v1364
          %v1378 = vmul.f32 %v1342, %v1364
          %v1379 = vmul.f32 %v1343, %v1364
          %v1380 = vmul.f32 %v1344, %v1364
          %v1381 = vmul.f32 %v1345, %v1364
          %v1382 = vmul.f32 %v1346, %v1364
          %v1383 = vmul.f32 %v1347, %v1364
          %v1384 = vmul.f32 %v1348, %v1364
          %v1385 = vmul.f32 %v1349, %v1364
          %v1386 = vmul.f32 %v1350, %v1364
          %v1387 = vmul.f32 %v1351, %v1364
          %v1388 = vmul.f32 %v1352, %v1364
          %v1389 = vmul.f32 %v1353, %v1364
          %v1390 = vmul.f32 %v1354, %v1364
          %v1391 = vmul.f32 %v1355, %v1364
          %v1392 = vmul.f32 %v1356, %v1364
          %v1393 = vmul.f32 %v1357, %v1364
          %v1394 = vmul.f32 %v1358, %v1364
          %v1395 = vmul.f32 %v1359, %v1364
          %v1396 = vmul.f32 %v1360, %v1364
          %v1397 = vmul.f32 %v1361, %v1364
          %v1398 = vld [vmem:[%s5] sm:$0x1]
          %v1400 = vperm.slane %v1398, 0
          %v1402 = vadd.f32 %v1366, %v1400
          %v1403 = vadd.f32 %v1367, %v1400
          %v1404 = vadd.f32 %v1368, %v1400
          %v1405 = vadd.f32 %v1369, %v1400
          %v1406 = vadd.f32 %v1370, %v1400
          %v1407 = vadd.f32 %v1371, %v1400
          %v1408 = vadd.f32 %v1372, %v1400
          %v1409 = vadd.f32 %v1373, %v1400
          %v1410 = vadd.f32 %v1374, %v1400
          %v1411 = vadd.f32 %v1375, %v1400
          %v1412 = vadd.f32 %v1376, %v1400
          %v1413 = vadd.f32 %v1377, %v1400
          %v1414 = vadd.f32 %v1378, %v1400
          %v1415 = vadd.f32 %v1379, %v1400
          %v1416 = vadd.f32 %v1380, %v1400
          %v1417 = vadd.f32 %v1381, %v1400
          %v1418 = vadd.f32 %v1382, %v1400
          %v1419 = vadd.f32 %v1383, %v1400
          %v1420 = vadd.f32 %v1384, %v1400
          %v1421 = vadd.f32 %v1385, %v1400
          %v1422 = vadd.f32 %v1386, %v1400
          %v1423 = vadd.f32 %v1387, %v1400
          %v1424 = vadd.f32 %v1388, %v1400
          %v1425 = vadd.f32 %v1389, %v1400
          %v1426 = vadd.f32 %v1390, %v1400
          %v1427 = vadd.f32 %v1391, %v1400
          %v1428 = vadd.f32 %v1392, %v1400
          %v1429 = vadd.f32 %v1393, %v1400
          %v1430 = vadd.f32 %v1394, %v1400
          %v1431 = vadd.f32 %v1395, %v1400
          %v1432 = vadd.f32 %v1396, %v1400
          %v1433 = vadd.f32 %v1397, %v1400
          %v1434 = vld [vmem:[#allocation8] sm:$0xff]
          %v1435 = vld [vmem:[#allocation8 + $0x8] sm:$0xff]
          %v1436 = vld [vmem:[#allocation8 + $0x10] sm:$0xff]
          %v1437 = vld [vmem:[#allocation8 + $0x18] sm:$0xff]
          %v1438 = vld [vmem:[#allocation8 + $0x20] sm:$0xff]
          %v1439 = vld [vmem:[#allocation8 + $0x28] sm:$0xff]
          %v1440 = vld [vmem:[#allocation8 + $0x30] sm:$0xff]
          %v1441 = vld [vmem:[#allocation8 + $0x38] sm:$0xff]
          %v1442 = vld [vmem:[#allocation8 + $0x40] sm:$0xff]
          %v1443 = vld [vmem:[#allocation8 + $0x48] sm:$0xff]
          %v1444 = vld [vmem:[#allocation8 + $0x50] sm:$0xff]
          %v1445 = vld [vmem:[#allocation8 + $0x58] sm:$0xff]
          %v1446 = vld [vmem:[#allocation8 + $0x60] sm:$0xff]
          %v1447 = vld [vmem:[#allocation8 + $0x68] sm:$0xff]
          %v1448 = vld [vmem:[#allocation8 + $0x70] sm:$0xff]
          %v1449 = vld [vmem:[#allocation8 + $0x78] sm:$0xff]
          %v1450 = vld [vmem:[#allocation8 + $0x80] sm:$0xff]
          %v1451 = vld [vmem:[#allocation8 + $0x88] sm:$0xff]
          %v1452 = vld [vmem:[#allocation8 + $0x90] sm:$0xff]
          %v1453 = vld [vmem:[#allocation8 + $0x98] sm:$0xff]
          %v1454 = vld [vmem:[#allocation8 + $0xa0] sm:$0xff]
          %v1455 = vld [vmem:[#allocation8 + $0xa8] sm:$0xff]
          %v1456 = vld [vmem:[#allocation8 + $0xb0] sm:$0xff]
          %v1457 = vld [vmem:[#allocation8 + $0xb8] sm:$0xff]
          %v1458 = vld [vmem:[#allocation8 + $0xc0] sm:$0xff]
          %v1459 = vld [vmem:[#allocation8 + $0xc8] sm:$0xff]
          %v1460 = vld [vmem:[#allocation8 + $0xd0] sm:$0xff]
          %v1461 = vld [vmem:[#allocation8 + $0xd8] sm:$0xff]
          %v1462 = vld [vmem:[#allocation8 + $0xe0] sm:$0xff]
          %v1463 = vld [vmem:[#allocation8 + $0xe8] sm:$0xff]
          %v1464 = vld [vmem:[#allocation8 + $0xf0] sm:$0xff]
          %v1465 = vld [vmem:[#allocation8 + $0xf8] sm:$0xff]
          %v1466 = vld [vmem:[#allocation8 + $0x100] sm:$0xff]
          %v1467 = vld [vmem:[#allocation8 + $0x108] sm:$0xff]
          %v1468 = vld [vmem:[#allocation8 + $0x110] sm:$0xff]
          %v1469 = vld [vmem:[#allocation8 + $0x118] sm:$0xff]
          %v1470 = vld [vmem:[#allocation8 + $0x120] sm:$0xff]
          %v1471 = vld [vmem:[#allocation8 + $0x128] sm:$0xff]
          %v1472 = vld [vmem:[#allocation8 + $0x130] sm:$0xff]
          %v1473 = vld [vmem:[#allocation8 + $0x138] sm:$0xff]
          %v1474 = vld [vmem:[#allocation8 + $0x140] sm:$0xff]
          %v1475 = vld [vmem:[#allocation8 + $0x148] sm:$0xff]
          %v1476 = vld [vmem:[#allocation8 + $0x150] sm:$0xff]
          %v1477 = vld [vmem:[#allocation8 + $0x158] sm:$0xff]
          %v1478 = vld [vmem:[#allocation8 + $0x160] sm:$0xff]
          %v1479 = vld [vmem:[#allocation8 + $0x168] sm:$0xff]
          %v1480 = vld [vmem:[#allocation8 + $0x170] sm:$0xff]
          %v1481 = vld [vmem:[#allocation8 + $0x178] sm:$0xff]
          %v1482 = vld [vmem:[#allocation8 + $0x180] sm:$0xff]
          %v1483 = vld [vmem:[#allocation8 + $0x188] sm:$0xff]
          %v1484 = vld [vmem:[#allocation8 + $0x190] sm:$0xff]
          %v1485 = vld [vmem:[#allocation8 + $0x198] sm:$0xff]
          %v1486 = vld [vmem:[#allocation8 + $0x1a0] sm:$0xff]
          %v1487 = vld [vmem:[#allocation8 + $0x1a8] sm:$0xff]
          %v1488 = vld [vmem:[#allocation8 + $0x1b0] sm:$0xff]
          %v1489 = vld [vmem:[#allocation8 + $0x1b8] sm:$0xff]
          %v1490 = vld [vmem:[#allocation8 + $0x1c0] sm:$0xff]
          %v1491 = vld [vmem:[#allocation8 + $0x1c8] sm:$0xff]
          %v1492 = vld [vmem:[#allocation8 + $0x1d0] sm:$0xff]
          %v1493 = vld [vmem:[#allocation8 + $0x1d8] sm:$0xff]
          %v1494 = vld [vmem:[#allocation8 + $0x1e0] sm:$0xff]
          %v1495 = vld [vmem:[#allocation8 + $0x1e8] sm:$0xff]
          %v1496 = vld [vmem:[#allocation8 + $0x1f0] sm:$0xff]
          %v1497 = vld [vmem:[#allocation8 + $0x1f8] sm:$0xff]
          %1498 = vmatpush.msra.mxu0 %v1417
          %1499 = vmatpush.msra.mxu0 %v1416
          %1500 = vmatpush.msra.mxu0 %v1415
          %1501 = vmatpush.msra.mxu0 %v1414
          %1502 = vmatpush.msra.mxu0 %v1413
          %1503 = vmatpush.msra.mxu0 %v1412
          %1504 = vmatpush.msra.mxu0 %v1411
          %1505 = vmatpush.msra.mxu0 %v1410
          %1506 = vmatpush.msra.mxu0 %v1409
          %1507 = vmatpush.msra.mxu0 %v1408
          %1508 = vmatpush.msra.mxu0 %v1407
          %1509 = vmatpush.msra.mxu0 %v1406
          %1510 = vmatpush.msra.mxu0 %v1405
          %1511 = vmatpush.msra.mxu0 %v1404
          %1512 = vmatpush.msra.mxu0 %v1403
          %1513 = vmatpush.msra.mxu0 %v1402
          %1514 = vmatmul.f32.gmra.mxu0 %v1434
          %v1515 = vpop.f32.mrf.mxu0
          %v1516 = vadd.f32 0.0, %v1515
          %1517 = vmatmul.f32.gmra.mxu0 %v1436
          %v1518 = vpop.f32.mrf.mxu0
          %v1519 = vadd.f32 0.0, %v1518
          %1520 = vmatmul.f32.gmra.mxu0 %v1438
          %v1521 = vpop.f32.mrf.mxu0
          %v1522 = vadd.f32 0.0, %v1521
          %1523 = vmatmul.f32.gmra.mxu0 %v1440
          %v1524 = vpop.f32.mrf.mxu0
          %v1525 = vadd.f32 0.0, %v1524
          %1526 = vmatmul.f32.gmra.mxu0 %v1442
          %v1527 = vpop.f32.mrf.mxu0
          %v1528 = vadd.f32 0.0, %v1527
          %1529 = vmatmul.f32.gmra.mxu0 %v1444
          %v1530 = vpop.f32.mrf.mxu0
          %v1531 = vadd.f32 0.0, %v1530
          %1532 = vmatmul.f32.gmra.mxu0 %v1446
          %v1533 = vpop.f32.mrf.mxu0
          %v1534 = vadd.f32 0.0, %v1533
          %1535 = vmatmul.f32.gmra.mxu0 %v1448
          %v1536 = vpop.f32.mrf.mxu0
          %v1537 = vadd.f32 0.0, %v1536
          %1538 = vmatmul.f32.gmra.mxu0 %v1450
          %v1539 = vpop.f32.mrf.mxu0
          %v1540 = vadd.f32 0.0, %v1539
          %1541 = vmatmul.f32.gmra.mxu0 %v1452
          %v1542 = vpop.f32.mrf.mxu0
          %v1543 = vadd.f32 0.0, %v1542
          %1544 = vmatmul.f32.gmra.mxu0 %v1454
          %v1545 = vpop.f32.mrf.mxu0
          %v1546 = vadd.f32 0.0, %v1545
          %1547 = vmatmul.f32.gmra.mxu0 %v1456
          %v1548 = vpop.f32.mrf.mxu0
          %v1549 = vadd.f32 0.0, %v1548
          %1550 = vmatmul.f32.gmra.mxu0 %v1458
          %v1551 = vpop.f32.mrf.mxu0
          %v1552 = vadd.f32 0.0, %v1551
          %1553 = vmatmul.f32.gmra.mxu0 %v1460
          %v1554 = vpop.f32.mrf.mxu0
          %v1555 = vadd.f32 0.0, %v1554
          %1556 = vmatmul.f32.gmra.mxu0 %v1462
          %v1557 = vpop.f32.mrf.mxu0
          %v1558 = vadd.f32 0.0, %v1557
          %1559 = vmatmul.f32.gmra.mxu0 %v1464
          %v1560 = vpop.f32.mrf.mxu0
          %v1561 = vadd.f32 0.0, %v1560
          %1562 = vmatmul.f32.gmra.mxu0 %v1466
          %v1563 = vpop.f32.mrf.mxu0
          %v1564 = vadd.f32 0.0, %v1563
          %1565 = vmatmul.f32.gmra.mxu0 %v1468
          %v1566 = vpop.f32.mrf.mxu0
          %v1567 = vadd.f32 0.0, %v1566
          %1568 = vmatmul.f32.gmra.mxu0 %v1470
          %v1569 = vpop.f32.mrf.mxu0
          %v1570 = vadd.f32 0.0, %v1569
          %1571 = vmatmul.f32.gmra.mxu0 %v1472
          %v1572 = vpop.f32.mrf.mxu0
          %v1573 = vadd.f32 0.0, %v1572
          %1574 = vmatmul.f32.gmra.mxu0 %v1474
          %v1575 = vpop.f32.mrf.mxu0
          %v1576 = vadd.f32 0.0, %v1575
          %1577 = vmatmul.f32.gmra.mxu0 %v1476
          %v1578 = vpop.f32.mrf.mxu0
          %v1579 = vadd.f32 0.0, %v1578
          %1580 = vmatmul.f32.gmra.mxu0 %v1478
          %v1581 = vpop.f32.mrf.mxu0
          %v1582 = vadd.f32 0.0, %v1581
          %1583 = vmatmul.f32.gmra.mxu0 %v1480
          %v1584 = vpop.f32.mrf.mxu0
          %v1585 = vadd.f32 0.0, %v1584
          %1586 = vmatmul.f32.gmra.mxu0 %v1482
          %v1587 = vpop.f32.mrf.mxu0
          %v1588 = vadd.f32 0.0, %v1587
          %1589 = vmatmul.f32.gmra.mxu0 %v1484
          %v1590 = vpop.f32.mrf.mxu0
          %v1591 = vadd.f32 0.0, %v1590
          %1592 = vmatmul.f32.gmra.mxu0 %v1486
          %v1593 = vpop.f32.mrf.mxu0
          %v1594 = vadd.f32 0.0, %v1593
          %1595 = vmatmul.f32.gmra.mxu0 %v1488
          %v1596 = vpop.f32.mrf.mxu0
          %v1597 = vadd.f32 0.0, %v1596
          %1598 = vmatmul.f32.gmra.mxu0 %v1490
          %v1599 = vpop.f32.mrf.mxu0
          %v1600 = vadd.f32 0.0, %v1599
          %1601 = vmatmul.f32.gmra.mxu0 %v1492
          %v1602 = vpop.f32.mrf.mxu0
          %v1603 = vadd.f32 0.0, %v1602
          %1604 = vmatmul.f32.gmra.mxu0 %v1494
          %v1605 = vpop.f32.mrf.mxu0
          %v1606 = vadd.f32 0.0, %v1605
          %1607 = vmatmul.f32.gmra.mxu0 %v1496
          %v1608 = vpop.f32.mrf.mxu0
          %v1609 = vadd.f32 0.0, %v1608
          %1610 = vdwg.mxu0
          %1611 = vmatpush.msra.mxu0 %v1433
          %1612 = vmatpush.msra.mxu0 %v1432
          %1613 = vmatpush.msra.mxu0 %v1431
          %1614 = vmatpush.msra.mxu0 %v1430
          %1615 = vmatpush.msra.mxu0 %v1429
          %1616 = vmatpush.msra.mxu0 %v1428
          %1617 = vmatpush.msra.mxu0 %v1427
          %1618 = vmatpush.msra.mxu0 %v1426
          %1619 = vmatpush.msra.mxu0 %v1425
          %1620 = vmatpush.msra.mxu0 %v1424
          %1621 = vmatpush.msra.mxu0 %v1423
          %1622 = vmatpush.msra.mxu0 %v1422
          %1623 = vmatpush.msra.mxu0 %v1421
          %1624 = vmatpush.msra.mxu0 %v1420
          %1625 = vmatpush.msra.mxu0 %v1419
          %1626 = vmatpush.msra.mxu0 %v1418
          %1627 = vmatmul.f32.gmra.mxu0 %v1435
          %v1628 = vpop.f32.mrf.mxu0
          %v1629 = vadd.f32 %v1516, %v1628
          %1630 = vmatmul.f32.gmra.mxu0 %v1437
          %v1631 = vpop.f32.mrf.mxu0
          %v1632 = vadd.f32 %v1519, %v1631
          %1633 = vmatmul.f32.gmra.mxu0 %v1439
          %v1634 = vpop.f32.mrf.mxu0
          %v1635 = vadd.f32 %v1522, %v1634
          %1636 = vmatmul.f32.gmra.mxu0 %v1441
          %v1637 = vpop.f32.mrf.mxu0
          %v1638 = vadd.f32 %v1525, %v1637
          %1639 = vmatmul.f32.gmra.mxu0 %v1443
          %v1640 = vpop.f32.mrf.mxu0
          %v1641 = vadd.f32 %v1528, %v1640
          %1642 = vmatmul.f32.gmra.mxu0 %v1445
          %v1643 = vpop.f32.mrf.mxu0
          %v1644 = vadd.f32 %v1531, %v1643
          %1645 = vmatmul.f32.gmra.mxu0 %v1447
          %v1646 = vpop.f32.mrf.mxu0
          %v1647 = vadd.f32 %v1534, %v1646
          %1648 = vmatmul.f32.gmra.mxu0 %v1449
          %v1649 = vpop.f32.mrf.mxu0
          %v1650 = vadd.f32 %v1537, %v1649
          %1651 = vmatmul.f32.gmra.mxu0 %v1451
          %v1652 = vpop.f32.mrf.mxu0
          %v1653 = vadd.f32 %v1540, %v1652
          %1654 = vmatmul.f32.gmra.mxu0 %v1453
          %v1655 = vpop.f32.mrf.mxu0
          %v1656 = vadd.f32 %v1543, %v1655
          %1657 = vmatmul.f32.gmra.mxu0 %v1455
          %v1658 = vpop.f32.mrf.mxu0
          %v1659 = vadd.f32 %v1546, %v1658
          %1660 = vmatmul.f32.gmra.mxu0 %v1457
          %v1661 = vpop.f32.mrf.mxu0
          %v1662 = vadd.f32 %v1549, %v1661
          %1663 = vmatmul.f32.gmra.mxu0 %v1459
          %v1664 = vpop.f32.mrf.mxu0
          %v1665 = vadd.f32 %v1552, %v1664
          %1666 = vmatmul.f32.gmra.mxu0 %v1461
          %v1667 = vpop.f32.mrf.mxu0
          %v1668 = vadd.f32 %v1555, %v1667
          %1669 = vmatmul.f32.gmra.mxu0 %v1463
          %v1670 = vpop.f32.mrf.mxu0
          %v1671 = vadd.f32 %v1558, %v1670
          %1672 = vmatmul.f32.gmra.mxu0 %v1465
          %v1673 = vpop.f32.mrf.mxu0
          %v1674 = vadd.f32 %v1561, %v1673
          %1675 = vmatmul.f32.gmra.mxu0 %v1467
          %v1676 = vpop.f32.mrf.mxu0
          %v1677 = vadd.f32 %v1564, %v1676
          %1678 = vmatmul.f32.gmra.mxu0 %v1469
          %v1679 = vpop.f32.mrf.mxu0
          %v1680 = vadd.f32 %v1567, %v1679
          %1681 = vmatmul.f32.gmra.mxu0 %v1471
          %v1682 = vpop.f32.mrf.mxu0
          %v1683 = vadd.f32 %v1570, %v1682
          %1684 = vmatmul.f32.gmra.mxu0 %v1473
          %v1685 = vpop.f32.mrf.mxu0
          %v1686 = vadd.f32 %v1573, %v1685
          %1687 = vmatmul.f32.gmra.mxu0 %v1475
          %v1688 = vpop.f32.mrf.mxu0
          %v1689 = vadd.f32 %v1576, %v1688
          %1690 = vmatmul.f32.gmra.mxu0 %v1477
          %v1691 = vpop.f32.mrf.mxu0
          %v1692 = vadd.f32 %v1579, %v1691
          %1693 = vmatmul.f32.gmra.mxu0 %v1479
          %v1694 = vpop.f32.mrf.mxu0
          %v1695 = vadd.f32 %v1582, %v1694
          %1696 = vmatmul.f32.gmra.mxu0 %v1481
          %v1697 = vpop.f32.mrf.mxu0
          %v1698 = vadd.f32 %v1585, %v1697
          %1699 = vmatmul.f32.gmra.mxu0 %v1483
          %v1700 = vpop.f32.mrf.mxu0
          %v1701 = vadd.f32 %v1588, %v1700
          %1702 = vmatmul.f32.gmra.mxu0 %v1485
          %v1703 = vpop.f32.mrf.mxu0
          %v1704 = vadd.f32 %v1591, %v1703
          %1705 = vmatmul.f32.gmra.mxu0 %v1487
          %v1706 = vpop.f32.mrf.mxu0
          %v1707 = vadd.f32 %v1594, %v1706
          %1708 = vmatmul.f32.gmra.mxu0 %v1489
          %v1709 = vpop.f32.mrf.mxu0
          %v1710 = vadd.f32 %v1597, %v1709
          %1711 = vmatmul.f32.gmra.mxu0 %v1491
          %v1712 = vpop.f32.mrf.mxu0
          %v1713 = vadd.f32 %v1600, %v1712
          %1714 = vmatmul.f32.gmra.mxu0 %v1493
          %v1715 = vpop.f32.mrf.mxu0
          %v1716 = vadd.f32 %v1603, %v1715
          %1717 = vmatmul.f32.gmra.mxu0 %v1495
          %v1718 = vpop.f32.mrf.mxu0
          %v1719 = vadd.f32 %v1606, %v1718
          %1720 = vmatmul.f32.gmra.mxu0 %v1497
          %v1721 = vpop.f32.mrf.mxu0
          %v1722 = vadd.f32 %v1609, %v1721
          %1723 = vdwg.mxu0
          %v1724 = vld [vmem:[#allocation10] sm:$0xff]
          %v1725 = vld [vmem:[#allocation10 + $0x8] sm:$0xff]
          %v1726 = vld [vmem:[#allocation10 + $0x10] sm:$0xff]
          %v1727 = vld [vmem:[#allocation10 + $0x18] sm:$0xff]
          %v1728 = vld [vmem:[#allocation10 + $0x20] sm:$0xff]
          %v1729 = vld [vmem:[#allocation10 + $0x28] sm:$0xff]
          %v1730 = vld [vmem:[#allocation10 + $0x30] sm:$0xff]
          %v1731 = vld [vmem:[#allocation10 + $0x38] sm:$0xff]
          %v1732 = vld [vmem:[#allocation10 + $0x40] sm:$0xff]
          %v1733 = vld [vmem:[#allocation10 + $0x48] sm:$0xff]
          %v1734 = vld [vmem:[#allocation10 + $0x50] sm:$0xff]
          %v1735 = vld [vmem:[#allocation10 + $0x58] sm:$0xff]
          %v1736 = vld [vmem:[#allocation10 + $0x60] sm:$0xff]
          %v1737 = vld [vmem:[#allocation10 + $0x68] sm:$0xff]
          %v1738 = vld [vmem:[#allocation10 + $0x70] sm:$0xff]
          %v1739 = vld [vmem:[#allocation10 + $0x78] sm:$0xff]
          %v1740 = vld [vmem:[#allocation11] sm:$0xff]
          %v1741 = vld [vmem:[#allocation11 + $0x8] sm:$0xff]
          %v1742 = vld [vmem:[#allocation11 + $0x10] sm:$0xff]
          %v1743 = vld [vmem:[#allocation11 + $0x18] sm:$0xff]
          %v1744 = vld [vmem:[#allocation11 + $0x20] sm:$0xff]
          %v1745 = vld [vmem:[#allocation11 + $0x28] sm:$0xff]
          %v1746 = vld [vmem:[#allocation11 + $0x30] sm:$0xff]
          %v1747 = vld [vmem:[#allocation11 + $0x38] sm:$0xff]
          %v1748 = vld [vmem:[#allocation11 + $0x40] sm:$0xff]
          %v1749 = vld [vmem:[#allocation11 + $0x48] sm:$0xff]
          %v1750 = vld [vmem:[#allocation11 + $0x50] sm:$0xff]
          %v1751 = vld [vmem:[#allocation11 + $0x58] sm:$0xff]
          %v1752 = vld [vmem:[#allocation11 + $0x60] sm:$0xff]
          %v1753 = vld [vmem:[#allocation11 + $0x68] sm:$0xff]
          %v1754 = vld [vmem:[#allocation11 + $0x70] sm:$0xff]
          %v1755 = vld [vmem:[#allocation11 + $0x78] sm:$0xff]
          %v1756 = vld [vmem:[#allocation11 + $0x80] sm:$0xff]
          %v1757 = vld [vmem:[#allocation11 + $0x88] sm:$0xff]
          %v1758 = vld [vmem:[#allocation11 + $0x90] sm:$0xff]
          %v1759 = vld [vmem:[#allocation11 + $0x98] sm:$0xff]
          %v1760 = vld [vmem:[#allocation11 + $0xa0] sm:$0xff]
          %v1761 = vld [vmem:[#allocation11 + $0xa8] sm:$0xff]
          %v1762 = vld [vmem:[#allocation11 + $0xb0] sm:$0xff]
          %v1763 = vld [vmem:[#allocation11 + $0xb8] sm:$0xff]
          %v1764 = vld [vmem:[#allocation11 + $0xc0] sm:$0xff]
          %v1765 = vld [vmem:[#allocation11 + $0xc8] sm:$0xff]
          %v1766 = vld [vmem:[#allocation11 + $0xd0] sm:$0xff]
          %v1767 = vld [vmem:[#allocation11 + $0xd8] sm:$0xff]
          %v1768 = vld [vmem:[#allocation11 + $0xe0] sm:$0xff]
          %v1769 = vld [vmem:[#allocation11 + $0xe8] sm:$0xff]
          %v1770 = vld [vmem:[#allocation11 + $0xf0] sm:$0xff]
          %v1771 = vld [vmem:[#allocation11 + $0xf8] sm:$0xff]
          %1772 = vmatpush.msra.mxu0 %v1739
          %1773 = vmatpush.msra.mxu0 %v1738
          %1774 = vmatpush.msra.mxu0 %v1737
          %1775 = vmatpush.msra.mxu0 %v1736
          %1776 = vmatpush.msra.mxu0 %v1735
          %1777 = vmatpush.msra.mxu0 %v1734
          %1778 = vmatpush.msra.mxu0 %v1733
          %1779 = vmatpush.msra.mxu0 %v1732
          %1780 = vmatpush.msra.mxu0 %v1731
          %1781 = vmatpush.msra.mxu0 %v1730
          %1782 = vmatpush.msra.mxu0 %v1729
          %1783 = vmatpush.msra.mxu0 %v1728
          %1784 = vmatpush.msra.mxu0 %v1727
          %1785 = vmatpush.msra.mxu0 %v1726
          %1786 = vmatpush.msra.mxu0 %v1725
          %1787 = vmatpush.msra.mxu0 %v1724
          %1788 = vmatmul.f32.gmra.mxu0 %v1629
          %v1789 = vpop.f32.mrf.mxu0
          %v1790 = vadd.f32 %v1740, %v1789
          %1791 = vmatmul.f32.gmra.mxu0 %v1632
          %v1792 = vpop.f32.mrf.mxu0
          %v1793 = vadd.f32 %v1741, %v1792
          %1794 = vmatmul.f32.gmra.mxu0 %v1635
          %v1795 = vpop.f32.mrf.mxu0
          %v1796 = vadd.f32 %v1742, %v1795
          %1797 = vmatmul.f32.gmra.mxu0 %v1638
          %v1798 = vpop.f32.mrf.mxu0
          %v1799 = vadd.f32 %v1743, %v1798
          %1800 = vmatmul.f32.gmra.mxu0 %v1641
          %v1801 = vpop.f32.mrf.mxu0
          %v1802 = vadd.f32 %v1744, %v1801
          %1803 = vmatmul.f32.gmra.mxu0 %v1644
          %v1804 = vpop.f32.mrf.mxu0
          %v1805 = vadd.f32 %v1745, %v1804
          %1806 = vmatmul.f32.gmra.mxu0 %v1647
          %v1807 = vpop.f32.mrf.mxu0
          %v1808 = vadd.f32 %v1746, %v1807
          %1809 = vmatmul.f32.gmra.mxu0 %v1650
          %v1810 = vpop.f32.mrf.mxu0
          %v1811 = vadd.f32 %v1747, %v1810
          %1812 = vmatmul.f32.gmra.mxu0 %v1653
          %v1813 = vpop.f32.mrf.mxu0
          %v1814 = vadd.f32 %v1748, %v1813
          %1815 = vmatmul.f32.gmra.mxu0 %v1656
          %v1816 = vpop.f32.mrf.mxu0
          %v1817 = vadd.f32 %v1749, %v1816
          %1818 = vmatmul.f32.gmra.mxu0 %v1659
          %v1819 = vpop.f32.mrf.mxu0
          %v1820 = vadd.f32 %v1750, %v1819
          %1821 = vmatmul.f32.gmra.mxu0 %v1662
          %v1822 = vpop.f32.mrf.mxu0
          %v1823 = vadd.f32 %v1751, %v1822
          %1824 = vmatmul.f32.gmra.mxu0 %v1665
          %v1825 = vpop.f32.mrf.mxu0
          %v1826 = vadd.f32 %v1752, %v1825
          %1827 = vmatmul.f32.gmra.mxu0 %v1668
          %v1828 = vpop.f32.mrf.mxu0
          %v1829 = vadd.f32 %v1753, %v1828
          %1830 = vmatmul.f32.gmra.mxu0 %v1671
          %v1831 = vpop.f32.mrf.mxu0
          %v1832 = vadd.f32 %v1754, %v1831
          %1833 = vmatmul.f32.gmra.mxu0 %v1674
          %v1834 = vpop.f32.mrf.mxu0
          %v1835 = vadd.f32 %v1755, %v1834
          %1836 = vmatmul.f32.gmra.mxu0 %v1677
          %v1837 = vpop.f32.mrf.mxu0
          %v1838 = vadd.f32 %v1756, %v1837
          %1839 = vmatmul.f32.gmra.mxu0 %v1680
          %v1840 = vpop.f32.mrf.mxu0
          %v1841 = vadd.f32 %v1757, %v1840
          %1842 = vmatmul.f32.gmra.mxu0 %v1683
          %v1843 = vpop.f32.mrf.mxu0
          %v1844 = vadd.f32 %v1758, %v1843
          %1845 = vmatmul.f32.gmra.mxu0 %v1686
          %v1846 = vpop.f32.mrf.mxu0
          %v1847 = vadd.f32 %v1759, %v1846
          %1848 = vmatmul.f32.gmra.mxu0 %v1689
          %v1849 = vpop.f32.mrf.mxu0
          %v1850 = vadd.f32 %v1760, %v1849
          %1851 = vmatmul.f32.gmra.mxu0 %v1692
          %v1852 = vpop.f32.mrf.mxu0
          %v1853 = vadd.f32 %v1761, %v1852
          %1854 = vmatmul.f32.gmra.mxu0 %v1695
          %v1855 = vpop.f32.mrf.mxu0
          %v1856 = vadd.f32 %v1762, %v1855
          %1857 = vmatmul.f32.gmra.mxu0 %v1698
          %v1858 = vpop.f32.mrf.mxu0
          %v1859 = vadd.f32 %v1763, %v1858
          %1860 = vmatmul.f32.gmra.mxu0 %v1701
          %v1861 = vpop.f32.mrf.mxu0
          %v1862 = vadd.f32 %v1764, %v1861
          %1863 = vmatmul.f32.gmra.mxu0 %v1704
          %v1864 = vpop.f32.mrf.mxu0
          %v1865 = vadd.f32 %v1765, %v1864
          %1866 = vmatmul.f32.gmra.mxu0 %v1707
          %v1867 = vpop.f32.mrf.mxu0
          %v1868 = vadd.f32 %v1766, %v1867
          %1869 = vmatmul.f32.gmra.mxu0 %v1710
          %v1870 = vpop.f32.mrf.mxu0
          %v1871 = vadd.f32 %v1767, %v1870
          %1872 = vmatmul.f32.gmra.mxu0 %v1713
          %v1873 = vpop.f32.mrf.mxu0
          %v1874 = vadd.f32 %v1768, %v1873
          %1875 = vmatmul.f32.gmra.mxu0 %v1716
          %v1876 = vpop.f32.mrf.mxu0
          %v1877 = vadd.f32 %v1769, %v1876
          %1878 = vmatmul.f32.gmra.mxu0 %v1719
          %v1879 = vpop.f32.mrf.mxu0
          %v1880 = vadd.f32 %v1770, %v1879
          %1881 = vmatmul.f32.gmra.mxu0 %v1722
          %v1882 = vpop.f32.mrf.mxu0
          %v1883 = vadd.f32 %v1771, %v1882
          %1884 = vdwg.mxu0
          %v1885 = vadd.f32 %v1790, %v587
          %v1886 = vadd.f32 %v1793, %v588
          %v1887 = vadd.f32 %v1796, %v589
          %v1888 = vadd.f32 %v1799, %v590
          %v1889 = vadd.f32 %v1802, %v591
          %v1890 = vadd.f32 %v1805, %v592
          %v1891 = vadd.f32 %v1808, %v593
          %v1892 = vadd.f32 %v1811, %v594
          %v1893 = vadd.f32 %v1814, %v595
          %v1894 = vadd.f32 %v1817, %v596
          %v1895 = vadd.f32 %v1820, %v597
          %v1896 = vadd.f32 %v1823, %v598
          %v1897 = vadd.f32 %v1826, %v599
          %v1898 = vadd.f32 %v1829, %v600
          %v1899 = vadd.f32 %v1832, %v601
          %v1900 = vadd.f32 %v1835, %v602
          %v1901 = vadd.f32 %v1838, %v603
          %v1902 = vadd.f32 %v1841, %v604
          %v1903 = vadd.f32 %v1844, %v605
          %v1904 = vadd.f32 %v1847, %v606
          %v1905 = vadd.f32 %v1850, %v607
          %v1906 = vadd.f32 %v1853, %v608
          %v1907 = vadd.f32 %v1856, %v609
          %v1908 = vadd.f32 %v1859, %v610
          %v1909 = vadd.f32 %v1862, %v611
          %v1910 = vadd.f32 %v1865, %v612
          %v1911 = vadd.f32 %v1868, %v613
          %v1912 = vadd.f32 %v1871, %v614
          %v1913 = vadd.f32 %v1874, %v615
          %v1914 = vadd.f32 %v1877, %v616
          %v1915 = vadd.f32 %v1880, %v617
          %v1916 = vadd.f32 %v1883, %v618
          %1917 = vst [vmem:[#allocation2] sm:$0xff] %v1885
          %1918 = vst [vmem:[#allocation2 + $0x8] sm:$0xff] %v1886
          %1919 = vst [vmem:[#allocation2 + $0x10] sm:$0xff] %v1887
          %1920 = vst [vmem:[#allocation2 + $0x18] sm:$0xff] %v1888
          %1921 = vst [vmem:[#allocation2 + $0x20] sm:$0xff] %v1889
          %1922 = vst [vmem:[#allocation2 + $0x28] sm:$0xff] %v1890
          %1923 = vst [vmem:[#allocation2 + $0x30] sm:$0xff] %v1891
          %1924 = vst [vmem:[#allocation2 + $0x38] sm:$0xff] %v1892
          %1925 = vst [vmem:[#allocation2 + $0x40] sm:$0xff] %v1893
          %1926 = vst [vmem:[#allocation2 + $0x48] sm:$0xff] %v1894
          %1927 = vst [vmem:[#allocation2 + $0x50] sm:$0xff] %v1895
          %1928 = vst [vmem:[#allocation2 + $0x58] sm:$0xff] %v1896
          %1929 = vst [vmem:[#allocation2 + $0x60] sm:$0xff] %v1897
          %1930 = vst [vmem:[#allocation2 + $0x68] sm:$0xff] %v1898
          %1931 = vst [vmem:[#allocation2 + $0x70] sm:$0xff] %v1899
          %1932 = vst [vmem:[#allocation2 + $0x78] sm:$0xff] %v1900
          %1933 = vst [vmem:[#allocation2 + $0x80] sm:$0xff] %v1901
          %1934 = vst [vmem:[#allocation2 + $0x88] sm:$0xff] %v1902
          %1935 = vst [vmem:[#allocation2 + $0x90] sm:$0xff] %v1903
          %1936 = vst [vmem:[#allocation2 + $0x98] sm:$0xff] %v1904
          %1937 = vst [vmem:[#allocation2 + $0xa0] sm:$0xff] %v1905
          %1938 = vst [vmem:[#allocation2 + $0xa8] sm:$0xff] %v1906
          %1939 = vst [vmem:[#allocation2 + $0xb0] sm:$0xff] %v1907
          %1940 = vst [vmem:[#allocation2 + $0xb8] sm:$0xff] %v1908
          %1941 = vst [vmem:[#allocation2 + $0xc0] sm:$0xff] %v1909
          %1942 = vst [vmem:[#allocation2 + $0xc8] sm:$0xff] %v1910
          %1943 = vst [vmem:[#allocation2 + $0xd0] sm:$0xff] %v1911
          %1944 = vst [vmem:[#allocation2 + $0xd8] sm:$0xff] %v1912
          %1945 = vst [vmem:[#allocation2 + $0xe0] sm:$0xff] %v1913
          %1946 = vst [vmem:[#allocation2 + $0xe8] sm:$0xff] %v1914
          %1947 = vst [vmem:[#allocation2 + $0xf0] sm:$0xff] %v1915
          %1948 = vst [vmem:[#allocation2 + $0xf8] sm:$0xff] %v1916
          %1949 = vadd.xlane.f32.xlu0 %v1885
          %v1950 = vpop.xlane.xlu0 %1949
          %1951 = vadd.xlane.f32.xlu0 %v1886
          %v1952 = vpop.xlane.xlu0 %1951
          %1953 = vadd.xlane.f32.xlu0 %v1887
          %v1954 = vpop.xlane.xlu0 %1953
          %1955 = vadd.xlane.f32.xlu0 %v1888
          %v1956 = vpop.xlane.xlu0 %1955
          %1957 = vadd.xlane.f32.xlu0 %v1889
          %v1958 = vpop.xlane.xlu0 %1957
          %1959 = vadd.xlane.f32.xlu0 %v1890
          %v1960 = vpop.xlane.xlu0 %1959
          %1961 = vadd.xlane.f32.xlu0 %v1891
          %v1962 = vpop.xlane.xlu0 %1961
          %1963 = vadd.xlane.f32.xlu0 %v1892
          %v1964 = vpop.xlane.xlu0 %1963
          %1965 = vadd.xlane.f32.xlu0 %v1893
          %v1966 = vpop.xlane.xlu0 %1965
          %1967 = vadd.xlane.f32.xlu0 %v1894
          %v1968 = vpop.xlane.xlu0 %1967
          %1969 = vadd.xlane.f32.xlu0 %v1895
          %v1970 = vpop.xlane.xlu0 %1969
          %1971 = vadd.xlane.f32.xlu0 %v1896
          %v1972 = vpop.xlane.xlu0 %1971
          %1973 = vadd.xlane.f32.xlu0 %v1897
          %v1974 = vpop.xlane.xlu0 %1973
          %1975 = vadd.xlane.f32.xlu0 %v1898
          %v1976 = vpop.xlane.xlu0 %1975
          %1977 = vadd.xlane.f32.xlu0 %v1899
          %v1978 = vpop.xlane.xlu0 %1977
          %1979 = vadd.xlane.f32.xlu0 %v1900
          %v1980 = vpop.xlane.xlu0 %1979
          %1981 = vadd.xlane.f32.xlu0 %v1901
          %v1982 = vpop.xlane.xlu0 %1981
          %1983 = vadd.xlane.f32.xlu0 %v1902
          %v1984 = vpop.xlane.xlu0 %1983
          %1985 = vadd.xlane.f32.xlu0 %v1903
          %v1986 = vpop.xlane.xlu0 %1985
          %1987 = vadd.xlane.f32.xlu0 %v1904
          %v1988 = vpop.xlane.xlu0 %1987
          %1989 = vadd.xlane.f32.xlu0 %v1905
          %v1990 = vpop.xlane.xlu0 %1989
          %1991 = vadd.xlane.f32.xlu0 %v1906
          %v1992 = vpop.xlane.xlu0 %1991
          %1993 = vadd.xlane.f32.xlu0 %v1907
          %v1994 = vpop.xlane.xlu0 %1993
          %1995 = vadd.xlane.f32.xlu0 %v1908
          %v1996 = vpop.xlane.xlu0 %1995
          %1997 = vadd.xlane.f32.xlu0 %v1909
          %v1998 = vpop.xlane.xlu0 %1997
          %1999 = vadd.xlane.f32.xlu0 %v1910
          %v2000 = vpop.xlane.xlu0 %1999
          %2001 = vadd.xlane.f32.xlu0 %v1911
          %v2002 = vpop.xlane.xlu0 %2001
          %2003 = vadd.xlane.f32.xlu0 %v1912
          %v2004 = vpop.xlane.xlu0 %2003
          %2005 = vadd.xlane.f32.xlu0 %v1913
          %v2006 = vpop.xlane.xlu0 %2005
          %2007 = vadd.xlane.f32.xlu0 %v1914
          %v2008 = vpop.xlane.xlu0 %2007
          %2009 = vadd.xlane.f32.xlu0 %v1915
          %v2010 = vpop.xlane.xlu0 %2009
          %2011 = vadd.xlane.f32.xlu0 %v1916
          %v2012 = vpop.xlane.xlu0 %2011
          %v2013 = vmul.f32 %v1950, %v689
          %v2014 = vmul.f32 %v1952, %v689
          %v2015 = vmul.f32 %v1954, %v689
          %v2016 = vmul.f32 %v1956, %v689
          %v2017 = vmul.f32 %v1958, %v689
          %v2018 = vmul.f32 %v1960, %v689
          %v2019 = vmul.f32 %v1962, %v689
          %v2020 = vmul.f32 %v1964, %v689
          %v2021 = vmul.f32 %v1966, %v689
          %v2022 = vmul.f32 %v1968, %v689
          %v2023 = vmul.f32 %v1970, %v689
          %v2024 = vmul.f32 %v1972, %v689
          %v2025 = vmul.f32 %v1974, %v689
          %v2026 = vmul.f32 %v1976, %v689
          %v2027 = vmul.f32 %v1978, %v689
          %v2028 = vmul.f32 %v1980, %v689
          %v2029 = vmul.f32 %v1982, %v689
          %v2030 = vmul.f32 %v1984, %v689
          %v2031 = vmul.f32 %v1986, %v689
          %v2032 = vmul.f32 %v1988, %v689
          %v2033 = vmul.f32 %v1990, %v689
          %v2034 = vmul.f32 %v1992, %v689
          %v2035 = vmul.f32 %v1994, %v689
          %v2036 = vmul.f32 %v1996, %v689
          %v2037 = vmul.f32 %v1998, %v689
          %v2038 = vmul.f32 %v2000, %v689
          %v2039 = vmul.f32 %v2002, %v689
          %v2040 = vmul.f32 %v2004, %v689
          %v2041 = vmul.f32 %v2006, %v689
          %v2042 = vmul.f32 %v2008, %v689
          %v2043 = vmul.f32 %v2010, %v689
          %v2044 = vmul.f32 %v2012, %v689
          %v2045 = vsub.f32 %v1885, %v2013
          %v2046 = vsub.f32 %v1886, %v2014
          %v2047 = vsub.f32 %v1887, %v2015
          %v2048 = vsub.f32 %v1888, %v2016
          %v2049 = vsub.f32 %v1889, %v2017
          %v2050 = vsub.f32 %v1890, %v2018
          %v2051 = vsub.f32 %v1891, %v2019
          %v2052 = vsub.f32 %v1892, %v2020
          %v2053 = vsub.f32 %v1893, %v2021
          %v2054 = vsub.f32 %v1894, %v2022
          %v2055 = vsub.f32 %v1895, %v2023
          %v2056 = vsub.f32 %v1896, %v2024
          %v2057 = vsub.f32 %v1897, %v2025
          %v2058 = vsub.f32 %v1898, %v2026
          %v2059 = vsub.f32 %v1899, %v2027
          %v2060 = vsub.f32 %v1900, %v2028
          %v2061 = vsub.f32 %v1901, %v2029
          %v2062 = vsub.f32 %v1902, %v2030
          %v2063 = vsub.f32 %v1903, %v2031
          %v2064 = vsub.f32 %v1904, %v2032
          %v2065 = vsub.f32 %v1905, %v2033
          %v2066 = vsub.f32 %v1906, %v2034
          %v2067 = vsub.f32 %v1907, %v2035
          %v2068 = vsub.f32 %v1908, %v2036
          %v2069 = vsub.f32 %v1909, %v2037
          %v2070 = vsub.f32 %v1910, %v2038
          %v2071 = vsub.f32 %v1911, %v2039
          %v2072 = vsub.f32 %v1912, %v2040
          %v2073 = vsub.f32 %v1913, %v2041
          %v2074 = vsub.f32 %v1914, %v2042
          %v2075 = vsub.f32 %v1915, %v2043
          %v2076 = vsub.f32 %v1916, %v2044
          %v2077 = vmul.f32 %v2045, %v2045
          %v2078 = vmul.f32 %v2046, %v2046
          %v2079 = vmul.f32 %v2047, %v2047
          %v2080 = vmul.f32 %v2048, %v2048
          %v2081 = vmul.f32 %v2049, %v2049
          %v2082 = vmul.f32 %v2050, %v2050
          %v2083 = vmul.f32 %v2051, %v2051
          %v2084 = vmul.f32 %v2052, %v2052
          %v2085 = vmul.f32 %v2053, %v2053
          %v2086 = vmul.f32 %v2054, %v2054
          %v2087 = vmul.f32 %v2055, %v2055
          %v2088 = vmul.f32 %v2056, %v2056
          %v2089 = vmul.f32 %v2057, %v2057
          %v2090 = vmul.f32 %v2058, %v2058
          %v2091 = vmul.f32 %v2059, %v2059
          %v2092 = vmul.f32 %v2060, %v2060
          %v2093 = vmul.f32 %v2061, %v2061
          %v2094 = vmul.f32 %v2062, %v2062
          %v2095 = vmul.f32 %v2063, %v2063
          %v2096 = vmul.f32 %v2064, %v2064
          %v2097 = vmul.f32 %v2065, %v2065
          %v2098 = vmul.f32 %v2066, %v2066
          %v2099 = vmul.f32 %v2067, %v2067
          %v2100 = vmul.f32 %v2068, %v2068
          %v2101 = vmul.f32 %v2069, %v2069
          %v2102 = vmul.f32 %v2070, %v2070
          %v2103 = vmul.f32 %v2071, %v2071
          %v2104 = vmul.f32 %v2072, %v2072
          %v2105 = vmul.f32 %v2073, %v2073
          %v2106 = vmul.f32 %v2074, %v2074
          %v2107 = vmul.f32 %v2075, %v2075
          %v2108 = vmul.f32 %v2076, %v2076
          %2109 = vadd.xlane.f32.xlu0 %v2077
          %v2110 = vpop.xlane.xlu0 %2109
          %2111 = vadd.xlane.f32.xlu0 %v2078
          %v2112 = vpop.xlane.xlu0 %2111
          %2113 = vadd.xlane.f32.xlu0 %v2079
          %v2114 = vpop.xlane.xlu0 %2113
          %2115 = vadd.xlane.f32.xlu0 %v2080
          %v2116 = vpop.xlane.xlu0 %2115
          %2117 = vadd.xlane.f32.xlu0 %v2081
          %v2118 = vpop.xlane.xlu0 %2117
          %2119 = vadd.xlane.f32.xlu0 %v2082
          %v2120 = vpop.xlane.xlu0 %2119
          %2121 = vadd.xlane.f32.xlu0 %v2083
          %v2122 = vpop.xlane.xlu0 %2121
          %2123 = vadd.xlane.f32.xlu0 %v2084
          %v2124 = vpop.xlane.xlu0 %2123
          %2125 = vadd.xlane.f32.xlu0 %v2085
          %v2126 = vpop.xlane.xlu0 %2125
          %2127 = vadd.xlane.f32.xlu0 %v2086
          %v2128 = vpop.xlane.xlu0 %2127
          %2129 = vadd.xlane.f32.xlu0 %v2087
          %v2130 = vpop.xlane.xlu0 %2129
          %2131 = vadd.xlane.f32.xlu0 %v2088
          %v2132 = vpop.xlane.xlu0 %2131
          %2133 = vadd.xlane.f32.xlu0 %v2089
          %v2134 = vpop.xlane.xlu0 %2133
          %2135 = vadd.xlane.f32.xlu0 %v2090
          %v2136 = vpop.xlane.xlu0 %2135
          %2137 = vadd.xlane.f32.xlu0 %v2091
          %v2138 = vpop.xlane.xlu0 %2137
          %2139 = vadd.xlane.f32.xlu0 %v2092
          %v2140 = vpop.xlane.xlu0 %2139
          %2141 = vadd.xlane.f32.xlu0 %v2093
          %v2142 = vpop.xlane.xlu0 %2141
          %2143 = vadd.xlane.f32.xlu0 %v2094
          %v2144 = vpop.xlane.xlu0 %2143
          %2145 = vadd.xlane.f32.xlu0 %v2095
          %v2146 = vpop.xlane.xlu0 %2145
          %2147 = vadd.xlane.f32.xlu0 %v2096
          %v2148 = vpop.xlane.xlu0 %2147
          %2149 = vadd.xlane.f32.xlu0 %v2097
          %v2150 = vpop.xlane.xlu0 %2149
          %2151 = vadd.xlane.f32.xlu0 %v2098
          %v2152 = vpop.xlane.xlu0 %2151
          %2153 = vadd.xlane.f32.xlu0 %v2099
          %v2154 = vpop.xlane.xlu0 %2153
          %2155 = vadd.xlane.f32.xlu0 %v2100
          %v2156 = vpop.xlane.xlu0 %2155
          %2157 = vadd.xlane.f32.xlu0 %v2101
          %v2158 = vpop.xlane.xlu0 %2157
          %2159 = vadd.xlane.f32.xlu0 %v2102
          %v2160 = vpop.xlane.xlu0 %2159
          %2161 = vadd.xlane.f32.xlu0 %v2103
          %v2162 = vpop.xlane.xlu0 %2161
          %2163 = vadd.xlane.f32.xlu0 %v2104
          %v2164 = vpop.xlane.xlu0 %2163
          %2165 = vadd.xlane.f32.xlu0 %v2105
          %v2166 = vpop.xlane.xlu0 %2165
          %2167 = vadd.xlane.f32.xlu0 %v2106
          %v2168 = vpop.xlane.xlu0 %2167
          %2169 = vadd.xlane.f32.xlu0 %v2107
          %v2170 = vpop.xlane.xlu0 %2169
          %2171 = vadd.xlane.f32.xlu0 %v2108
          %v2172 = vpop.xlane.xlu0 %2171
          %v2173 = vmul.f32 %v2110, %v689
          %v2174 = vmul.f32 %v2112, %v689
          %v2175 = vmul.f32 %v2114, %v689
          %v2176 = vmul.f32 %v2116, %v689
          %v2177 = vmul.f32 %v2118, %v689
          %v2178 = vmul.f32 %v2120, %v689
          %v2179 = vmul.f32 %v2122, %v689
          %v2180 = vmul.f32 %v2124, %v689
          %v2181 = vmul.f32 %v2126, %v689
          %v2182 = vmul.f32 %v2128, %v689
          %v2183 = vmul.f32 %v2130, %v689
          %v2184 = vmul.f32 %v2132, %v689
          %v2185 = vmul.f32 %v2134, %v689
          %v2186 = vmul.f32 %v2136, %v689
          %v2187 = vmul.f32 %v2138, %v689
          %v2188 = vmul.f32 %v2140, %v689
          %v2189 = vmul.f32 %v2142, %v689
          %v2190 = vmul.f32 %v2144, %v689
          %v2191 = vmul.f32 %v2146, %v689
          %v2192 = vmul.f32 %v2148, %v689
          %v2193 = vmul.f32 %v2150, %v689
          %v2194 = vmul.f32 %v2152, %v689
          %v2195 = vmul.f32 %v2154, %v689
          %v2196 = vmul.f32 %v2156, %v689
          %v2197 = vmul.f32 %v2158, %v689
          %v2198 = vmul.f32 %v2160, %v689
          %v2199 = vmul.f32 %v2162, %v689
          %v2200 = vmul.f32 %v2164, %v689
          %v2201 = vmul.f32 %v2166, %v689
          %v2202 = vmul.f32 %v2168, %v689
          %v2203 = vmul.f32 %v2170, %v689
          %v2204 = vmul.f32 %v2172, %v689
          %v2205 = vadd.f32 %v2173, 1e-05
          %v2206 = vadd.f32 %v2174, 1e-05
          %v2207 = vadd.f32 %v2175, 1e-05
          %v2208 = vadd.f32 %v2176, 1e-05
          %v2209 = vadd.f32 %v2177, 1e-05
          %v2210 = vadd.f32 %v2178, 1e-05
          %v2211 = vadd.f32 %v2179, 1e-05
          %v2212 = vadd.f32 %v2180, 1e-05
          %v2213 = vadd.f32 %v2181, 1e-05
          %v2214 = vadd.f32 %v2182, 1e-05
          %v2215 = vadd.f32 %v2183, 1e-05
          %v2216 = vadd.f32 %v2184, 1e-05
          %v2217 = vadd.f32 %v2185, 1e-05
          %v2218 = vadd.f32 %v2186, 1e-05
          %v2219 = vadd.f32 %v2187, 1e-05
          %v2220 = vadd.f32 %v2188, 1e-05
          %v2221 = vadd.f32 %v2189, 1e-05
          %v2222 = vadd.f32 %v2190, 1e-05
          %v2223 = vadd.f32 %v2191, 1e-05
          %v2224 = vadd.f32 %v2192, 1e-05
          %v2225 = vadd.f32 %v2193, 1e-05
          %v2226 = vadd.f32 %v2194, 1e-05
          %v2227 = vadd.f32 %v2195, 1e-05
          %v2228 = vadd.f32 %v2196, 1e-05
          %v2229 = vadd.f32 %v2197, 1e-05
          %v2230 = vadd.f32 %v2198, 1e-05
          %v2231 = vadd.f32 %v2199, 1e-05
          %v2232 = vadd.f32 %v2200, 1e-05
          %v2233 = vadd.f32 %v2201, 1e-05
          %v2234 = vadd.f32 %v2202, 1e-05
          %v2235 = vadd.f32 %v2203, 1e-05
          %v2236 = vadd.f32 %v2204, 1e-05
          %v2237 = vrsqrt.pop %v2205
          %v2238 = vmul.f32 %v2237, %v2205
          %v2239 = vmul.f32 %v2238, %v2237
          %v2240 = vmul.f32 0.5, %v2239
          %v2241 = vsub.f32 1.5, %v2240
          %v2242 = vmul.f32 %v2237, %v2241
          %vm2243 = vweird.f32 %v2205
          %vm2244 = vweird.f32 %v2237
          %vm2245 = vmor %vm2243, %vm2244
          %v2246 = vsel %vm2245, %v2237, %v2242
          %v2247 = vrsqrt.pop %v2206
          %v2248 = vmul.f32 %v2247, %v2206
          %v2249 = vmul.f32 %v2248, %v2247
          %v2250 = vmul.f32 0.5, %v2249
          %v2251 = vsub.f32 1.5, %v2250
          %v2252 = vmul.f32 %v2247, %v2251
          %vm2253 = vweird.f32 %v2206
          %vm2254 = vweird.f32 %v2247
          %vm2255 = vmor %vm2253, %vm2254
          %v2256 = vsel %vm2255, %v2247, %v2252
          %v2257 = vrsqrt.pop %v2207
          %v2258 = vmul.f32 %v2257, %v2207
          %v2259 = vmul.f32 %v2258, %v2257
          %v2260 = vmul.f32 0.5, %v2259
          %v2261 = vsub.f32 1.5, %v2260
          %v2262 = vmul.f32 %v2257, %v2261
          %vm2263 = vweird.f32 %v2207
          %vm2264 = vweird.f32 %v2257
          %vm2265 = vmor %vm2263, %vm2264
          %v2266 = vsel %vm2265, %v2257, %v2262
          %v2267 = vrsqrt.pop %v2208
          %v2268 = vmul.f32 %v2267, %v2208
          %v2269 = vmul.f32 %v2268, %v2267
          %v2270 = vmul.f32 0.5, %v2269
          %v2271 = vsub.f32 1.5, %v2270
          %v2272 = vmul.f32 %v2267, %v2271
          %vm2273 = vweird.f32 %v2208
          %vm2274 = vweird.f32 %v2267
          %vm2275 = vmor %vm2273, %vm2274
          %v2276 = vsel %vm2275, %v2267, %v2272
          %v2277 = vrsqrt.pop %v2209
          %v2278 = vmul.f32 %v2277, %v2209
          %v2279 = vmul.f32 %v2278, %v2277
          %v2280 = vmul.f32 0.5, %v2279
          %v2281 = vsub.f32 1.5, %v2280
          %v2282 = vmul.f32 %v2277, %v2281
          %vm2283 = vweird.f32 %v2209
          %vm2284 = vweird.f32 %v2277
          %vm2285 = vmor %vm2283, %vm2284
          %v2286 = vsel %vm2285, %v2277, %v2282
          %v2287 = vrsqrt.pop %v2210
          %v2288 = vmul.f32 %v2287, %v2210
          %v2289 = vmul.f32 %v2288, %v2287
          %v2290 = vmul.f32 0.5, %v2289
          %v2291 = vsub.f32 1.5, %v2290
          %v2292 = vmul.f32 %v2287, %v2291
          %vm2293 = vweird.f32 %v2210
          %vm2294 = vweird.f32 %v2287
          %vm2295 = vmor %vm2293, %vm2294
          %v2296 = vsel %vm2295, %v2287, %v2292
          %v2297 = vrsqrt.pop %v2211
          %v2298 = vmul.f32 %v2297, %v2211
          %v2299 = vmul.f32 %v2298, %v2297
          %v2300 = vmul.f32 0.5, %v2299
          %v2301 = vsub.f32 1.5, %v2300
          %v2302 = vmul.f32 %v2297, %v2301
          %vm2303 = vweird.f32 %v2211
          %vm2304 = vweird.f32 %v2297
          %vm2305 = vmor %vm2303, %vm2304
          %v2306 = vsel %vm2305, %v2297, %v2302
          %v2307 = vrsqrt.pop %v2212
          %v2308 = vmul.f32 %v2307, %v2212
          %v2309 = vmul.f32 %v2308, %v2307
          %v2310 = vmul.f32 0.5, %v2309
          %v2311 = vsub.f32 1.5, %v2310
          %v2312 = vmul.f32 %v2307, %v2311
          %vm2313 = vweird.f32 %v2212
          %vm2314 = vweird.f32 %v2307
          %vm2315 = vmor %vm2313, %vm2314
          %v2316 = vsel %vm2315, %v2307, %v2312
          %v2317 = vrsqrt.pop %v2213
          %v2318 = vmul.f32 %v2317, %v2213
          %v2319 = vmul.f32 %v2318, %v2317
          %v2320 = vmul.f32 0.5, %v2319
          %v2321 = vsub.f32 1.5, %v2320
          %v2322 = vmul.f32 %v2317, %v2321
          %vm2323 = vweird.f32 %v2213
          %vm2324 = vweird.f32 %v2317
          %vm2325 = vmor %vm2323, %vm2324
          %v2326 = vsel %vm2325, %v2317, %v2322
          %v2327 = vrsqrt.pop %v2214
          %v2328 = vmul.f32 %v2327, %v2214
          %v2329 = vmul.f32 %v2328, %v2327
          %v2330 = vmul.f32 0.5, %v2329
          %v2331 = vsub.f32 1.5, %v2330
          %v2332 = vmul.f32 %v2327, %v2331
          %vm2333 = vweird.f32 %v2214
          %vm2334 = vweird.f32 %v2327
          %vm2335 = vmor %vm2333, %vm2334
          %v2336 = vsel %vm2335, %v2327, %v2332
          %v2337 = vrsqrt.pop %v2215
          %v2338 = vmul.f32 %v2337, %v2215
          %v2339 = vmul.f32 %v2338, %v2337
          %v2340 = vmul.f32 0.5, %v2339
          %v2341 = vsub.f32 1.5, %v2340
          %v2342 = vmul.f32 %v2337, %v2341
          %vm2343 = vweird.f32 %v2215
          %vm2344 = vweird.f32 %v2337
          %vm2345 = vmor %vm2343, %vm2344
          %v2346 = vsel %vm2345, %v2337, %v2342
          %v2347 = vrsqrt.pop %v2216
          %v2348 = vmul.f32 %v2347, %v2216
          %v2349 = vmul.f32 %v2348, %v2347
          %v2350 = vmul.f32 0.5, %v2349
          %v2351 = vsub.f32 1.5, %v2350
          %v2352 = vmul.f32 %v2347, %v2351
          %vm2353 = vweird.f32 %v2216
          %vm2354 = vweird.f32 %v2347
          %vm2355 = vmor %vm2353, %vm2354
          %v2356 = vsel %vm2355, %v2347, %v2352
          %v2357 = vrsqrt.pop %v2217
          %v2358 = vmul.f32 %v2357, %v2217
          %v2359 = vmul.f32 %v2358, %v2357
          %v2360 = vmul.f32 0.5, %v2359
          %v2361 = vsub.f32 1.5, %v2360
          %v2362 = vmul.f32 %v2357, %v2361
          %vm2363 = vweird.f32 %v2217
          %vm2364 = vweird.f32 %v2357
          %vm2365 = vmor %vm2363, %vm2364
          %v2366 = vsel %vm2365, %v2357, %v2362
          %v2367 = vrsqrt.pop %v2218
          %v2368 = vmul.f32 %v2367, %v2218
          %v2369 = vmul.f32 %v2368, %v2367
          %v2370 = vmul.f32 0.5, %v2369
          %v2371 = vsub.f32 1.5, %v2370
          %v2372 = vmul.f32 %v2367, %v2371
          %vm2373 = vweird.f32 %v2218
          %vm2374 = vweird.f32 %v2367
          %vm2375 = vmor %vm2373, %vm2374
          %v2376 = vsel %vm2375, %v2367, %v2372
          %v2377 = vrsqrt.pop %v2219
          %v2378 = vmul.f32 %v2377, %v2219
          %v2379 = vmul.f32 %v2378, %v2377
          %v2380 = vmul.f32 0.5, %v2379
          %v2381 = vsub.f32 1.5, %v2380
          %v2382 = vmul.f32 %v2377, %v2381
          %vm2383 = vweird.f32 %v2219
          %vm2384 = vweird.f32 %v2377
          %vm2385 = vmor %vm2383, %vm2384
          %v2386 = vsel %vm2385, %v2377, %v2382
          %v2387 = vrsqrt.pop %v2220
          %v2388 = vmul.f32 %v2387, %v2220
          %v2389 = vmul.f32 %v2388, %v2387
          %v2390 = vmul.f32 0.5, %v2389
          %v2391 = vsub.f32 1.5, %v2390
          %v2392 = vmul.f32 %v2387, %v2391
          %vm2393 = vweird.f32 %v2220
          %vm2394 = vweird.f32 %v2387
          %vm2395 = vmor %vm2393, %vm2394
          %v2396 = vsel %vm2395, %v2387, %v2392
          %v2397 = vrsqrt.pop %v2221
          %v2398 = vmul.f32 %v2397, %v2221
          %v2399 = vmul.f32 %v2398, %v2397
          %v2400 = vmul.f32 0.5, %v2399
          %v2401 = vsub.f32 1.5, %v2400
          %v2402 = vmul.f32 %v2397, %v2401
          %vm2403 = vweird.f32 %v2221
          %vm2404 = vweird.f32 %v2397
          %vm2405 = vmor %vm2403, %vm2404
          %v2406 = vsel %vm2405, %v2397, %v2402
          %v2407 = vrsqrt.pop %v2222
          %v2408 = vmul.f32 %v2407, %v2222
          %v2409 = vmul.f32 %v2408, %v2407
          %v2410 = vmul.f32 0.5, %v2409
          %v2411 = vsub.f32 1.5, %v2410
          %v2412 = vmul.f32 %v2407, %v2411
          %vm2413 = vweird.f32 %v2222
          %vm2414 = vweird.f32 %v2407
          %vm2415 = vmor %vm2413, %vm2414
          %v2416 = vsel %vm2415, %v2407, %v2412
          %v2417 = vrsqrt.pop %v2223
          %v2418 = vmul.f32 %v2417, %v2223
          %v2419 = vmul.f32 %v2418, %v2417
          %v2420 = vmul.f32 0.5, %v2419
          %v2421 = vsub.f32 1.5, %v2420
          %v2422 = vmul.f32 %v2417, %v2421
          %vm2423 = vweird.f32 %v2223
          %vm2424 = vweird.f32 %v2417
          %vm2425 = vmor %vm2423, %vm2424
          %v2426 = vsel %vm2425, %v2417, %v2422
          %v2427 = vrsqrt.pop %v2224
          %v2428 = vmul.f32 %v2427, %v2224
          %v2429 = vmul.f32 %v2428, %v2427
          %v2430 = vmul.f32 0.5, %v2429
          %v2431 = vsub.f32 1.5, %v2430
          %v2432 = vmul.f32 %v2427, %v2431
          %vm2433 = vweird.f32 %v2224
          %vm2434 = vweird.f32 %v2427
          %vm2435 = vmor %vm2433, %vm2434
          %v2436 = vsel %vm2435, %v2427, %v2432
          %v2437 = vrsqrt.pop %v2225
          %v2438 = vmul.f32 %v2437, %v2225
          %v2439 = vmul.f32 %v2438, %v2437
          %v2440 = vmul.f32 0.5, %v2439
          %v2441 = vsub.f32 1.5, %v2440
          %v2442 = vmul.f32 %v2437, %v2441
          %vm2443 = vweird.f32 %v2225
          %vm2444 = vweird.f32 %v2437
          %vm2445 = vmor %vm2443, %vm2444
          %v2446 = vsel %vm2445, %v2437, %v2442
          %v2447 = vrsqrt.pop %v2226
          %v2448 = vmul.f32 %v2447, %v2226
          %v2449 = vmul.f32 %v2448, %v2447
          %v2450 = vmul.f32 0.5, %v2449
          %v2451 = vsub.f32 1.5, %v2450
          %v2452 = vmul.f32 %v2447, %v2451
          %vm2453 = vweird.f32 %v2226
          %vm2454 = vweird.f32 %v2447
          %vm2455 = vmor %vm2453, %vm2454
          %v2456 = vsel %vm2455, %v2447, %v2452
          %v2457 = vrsqrt.pop %v2227
          %v2458 = vmul.f32 %v2457, %v2227
          %v2459 = vmul.f32 %v2458, %v2457
          %v2460 = vmul.f32 0.5, %v2459
          %v2461 = vsub.f32 1.5, %v2460
          %v2462 = vmul.f32 %v2457, %v2461
          %vm2463 = vweird.f32 %v2227
          %vm2464 = vweird.f32 %v2457
          %vm2465 = vmor %vm2463, %vm2464
          %v2466 = vsel %vm2465, %v2457, %v2462
          %v2467 = vrsqrt.pop %v2228
          %v2468 = vmul.f32 %v2467, %v2228
          %v2469 = vmul.f32 %v2468, %v2467
          %v2470 = vmul.f32 0.5, %v2469
          %v2471 = vsub.f32 1.5, %v2470
          %v2472 = vmul.f32 %v2467, %v2471
          %vm2473 = vweird.f32 %v2228
          %vm2474 = vweird.f32 %v2467
          %vm2475 = vmor %vm2473, %vm2474
          %v2476 = vsel %vm2475, %v2467, %v2472
          %v2477 = vrsqrt.pop %v2229
          %v2478 = vmul.f32 %v2477, %v2229
          %v2479 = vmul.f32 %v2478, %v2477
          %v2480 = vmul.f32 0.5, %v2479
          %v2481 = vsub.f32 1.5, %v2480
          %v2482 = vmul.f32 %v2477, %v2481
          %vm2483 = vweird.f32 %v2229
          %vm2484 = vweird.f32 %v2477
          %vm2485 = vmor %vm2483, %vm2484
          %v2486 = vsel %vm2485, %v2477, %v2482
          %v2487 = vrsqrt.pop %v2230
          %v2488 = vmul.f32 %v2487, %v2230
          %v2489 = vmul.f32 %v2488, %v2487
          %v2490 = vmul.f32 0.5, %v2489
          %v2491 = vsub.f32 1.5, %v2490
          %v2492 = vmul.f32 %v2487, %v2491
          %vm2493 = vweird.f32 %v2230
          %vm2494 = vweird.f32 %v2487
          %vm2495 = vmor %vm2493, %vm2494
          %v2496 = vsel %vm2495, %v2487, %v2492
          %v2497 = vrsqrt.pop %v2231
          %v2498 = vmul.f32 %v2497, %v2231
          %v2499 = vmul.f32 %v2498, %v2497
          %v2500 = vmul.f32 0.5, %v2499
          %v2501 = vsub.f32 1.5, %v2500
          %v2502 = vmul.f32 %v2497, %v2501
          %vm2503 = vweird.f32 %v2231
          %vm2504 = vweird.f32 %v2497
          %vm2505 = vmor %vm2503, %vm2504
          %v2506 = vsel %vm2505, %v2497, %v2502
          %v2507 = vrsqrt.pop %v2232
          %v2508 = vmul.f32 %v2507, %v2232
          %v2509 = vmul.f32 %v2508, %v2507
          %v2510 = vmul.f32 0.5, %v2509
          %v2511 = vsub.f32 1.5, %v2510
          %v2512 = vmul.f32 %v2507, %v2511
          %vm2513 = vweird.f32 %v2232
          %vm2514 = vweird.f32 %v2507
          %vm2515 = vmor %vm2513, %vm2514
          %v2516 = vsel %vm2515, %v2507, %v2512
          %v2517 = vrsqrt.pop %v2233
          %v2518 = vmul.f32 %v2517, %v2233
          %v2519 = vmul.f32 %v2518, %v2517
          %v2520 = vmul.f32 0.5, %v2519
          %v2521 = vsub.f32 1.5, %v2520
          %v2522 = vmul.f32 %v2517, %v2521
          %vm2523 = vweird.f32 %v2233
          %vm2524 = vweird.f32 %v2517
          %vm2525 = vmor %vm2523, %vm2524
          %v2526 = vsel %vm2525, %v2517, %v2522
          %v2527 = vrsqrt.pop %v2234
          %v2528 = vmul.f32 %v2527, %v2234
          %v2529 = vmul.f32 %v2528, %v2527
          %v2530 = vmul.f32 0.5, %v2529
          %v2531 = vsub.f32 1.5, %v2530
          %v2532 = vmul.f32 %v2527, %v2531
          %vm2533 = vweird.f32 %v2234
          %vm2534 = vweird.f32 %v2527
          %vm2535 = vmor %vm2533, %vm2534
          %v2536 = vsel %vm2535, %v2527, %v2532
          %v2537 = vrsqrt.pop %v2235
          %v2538 = vmul.f32 %v2537, %v2235
          %v2539 = vmul.f32 %v2538, %v2537
          %v2540 = vmul.f32 0.5, %v2539
          %v2541 = vsub.f32 1.5, %v2540
          %v2542 = vmul.f32 %v2537, %v2541
          %vm2543 = vweird.f32 %v2235
          %vm2544 = vweird.f32 %v2537
          %vm2545 = vmor %vm2543, %vm2544
          %v2546 = vsel %vm2545, %v2537, %v2542
          %v2547 = vrsqrt.pop %v2236
          %v2548 = vmul.f32 %v2547, %v2236
          %v2549 = vmul.f32 %v2548, %v2547
          %v2550 = vmul.f32 0.5, %v2549
          %v2551 = vsub.f32 1.5, %v2550
          %v2552 = vmul.f32 %v2547, %v2551
          %vm2553 = vweird.f32 %v2236
          %vm2554 = vweird.f32 %v2547
          %vm2555 = vmor %vm2553, %vm2554
          %v2556 = vsel %vm2555, %v2547, %v2552
          %v2557 = vmul.f32 %v2045, %v2246
          %v2558 = vmul.f32 %v2046, %v2256
          %v2559 = vmul.f32 %v2047, %v2266
          %v2560 = vmul.f32 %v2048, %v2276
          %v2561 = vmul.f32 %v2049, %v2286
          %v2562 = vmul.f32 %v2050, %v2296
          %v2563 = vmul.f32 %v2051, %v2306
          %v2564 = vmul.f32 %v2052, %v2316
          %v2565 = vmul.f32 %v2053, %v2326
          %v2566 = vmul.f32 %v2054, %v2336
          %v2567 = vmul.f32 %v2055, %v2346
          %v2568 = vmul.f32 %v2056, %v2356
          %v2569 = vmul.f32 %v2057, %v2366
          %v2570 = vmul.f32 %v2058, %v2376
          %v2571 = vmul.f32 %v2059, %v2386
          %v2572 = vmul.f32 %v2060, %v2396
          %v2573 = vmul.f32 %v2061, %v2406
          %v2574 = vmul.f32 %v2062, %v2416
          %v2575 = vmul.f32 %v2063, %v2426
          %v2576 = vmul.f32 %v2064, %v2436
          %v2577 = vmul.f32 %v2065, %v2446
          %v2578 = vmul.f32 %v2066, %v2456
          %v2579 = vmul.f32 %v2067, %v2466
          %v2580 = vmul.f32 %v2068, %v2476
          %v2581 = vmul.f32 %v2069, %v2486
          %v2582 = vmul.f32 %v2070, %v2496
          %v2583 = vmul.f32 %v2071, %v2506
          %v2584 = vmul.f32 %v2072, %v2516
          %v2585 = vmul.f32 %v2073, %v2526
          %v2586 = vmul.f32 %v2074, %v2536
          %v2587 = vmul.f32 %v2075, %v2546
          %v2588 = vmul.f32 %v2076, %v2556
          %v2589 = vld [vmem:[%s6] sm:$0x1]
          %v2591 = vperm.slane %v2589, 0
          %v2593 = vmul.f32 %v2557, %v2591
          %v2594 = vmul.f32 %v2558, %v2591
          %v2595 = vmul.f32 %v2559, %v2591
          %v2596 = vmul.f32 %v2560, %v2591
          %v2597 = vmul.f32 %v2561, %v2591
          %v2598 = vmul.f32 %v2562, %v2591
          %v2599 = vmul.f32 %v2563, %v2591
          %v2600 = vmul.f32 %v2564, %v2591
          %v2601 = vmul.f32 %v2565, %v2591
          %v2602 = vmul.f32 %v2566, %v2591
          %v2603 = vmul.f32 %v2567, %v2591
          %v2604 = vmul.f32 %v2568, %v2591
          %v2605 = vmul.f32 %v2569, %v2591
          %v2606 = vmul.f32 %v2570, %v2591
          %v2607 = vmul.f32 %v2571, %v2591
          %v2608 = vmul.f32 %v2572, %v2591
          %v2609 = vmul.f32 %v2573, %v2591
          %v2610 = vmul.f32 %v2574, %v2591
          %v2611 = vmul.f32 %v2575, %v2591
          %v2612 = vmul.f32 %v2576, %v2591
          %v2613 = vmul.f32 %v2577, %v2591
          %v2614 = vmul.f32 %v2578, %v2591
          %v2615 = vmul.f32 %v2579, %v2591
          %v2616 = vmul.f32 %v2580, %v2591
          %v2617 = vmul.f32 %v2581, %v2591
          %v2618 = vmul.f32 %v2582, %v2591
          %v2619 = vmul.f32 %v2583, %v2591
          %v2620 = vmul.f32 %v2584, %v2591
          %v2621 = vmul.f32 %v2585, %v2591
          %v2622 = vmul.f32 %v2586, %v2591
          %v2623 = vmul.f32 %v2587, %v2591
          %v2624 = vmul.f32 %v2588, %v2591
          %v2625 = vld [vmem:[#allocation13] sm:$0x1]
          %v2627 = vperm.slane %v2625, 0
          %v2629 = vadd.f32 %v2593, %v2627
          %v2630 = vadd.f32 %v2594, %v2627
          %v2631 = vadd.f32 %v2595, %v2627
          %v2632 = vadd.f32 %v2596, %v2627
          %v2633 = vadd.f32 %v2597, %v2627
          %v2634 = vadd.f32 %v2598, %v2627
          %v2635 = vadd.f32 %v2599, %v2627
          %v2636 = vadd.f32 %v2600, %v2627
          %v2637 = vadd.f32 %v2601, %v2627
          %v2638 = vadd.f32 %v2602, %v2627
          %v2639 = vadd.f32 %v2603, %v2627
          %v2640 = vadd.f32 %v2604, %v2627
          %v2641 = vadd.f32 %v2605, %v2627
          %v2642 = vadd.f32 %v2606, %v2627
          %v2643 = vadd.f32 %v2607, %v2627
          %v2644 = vadd.f32 %v2608, %v2627
          %v2645 = vadd.f32 %v2609, %v2627
          %v2646 = vadd.f32 %v2610, %v2627
          %v2647 = vadd.f32 %v2611, %v2627
          %v2648 = vadd.f32 %v2612, %v2627
          %v2649 = vadd.f32 %v2613, %v2627
          %v2650 = vadd.f32 %v2614, %v2627
          %v2651 = vadd.f32 %v2615, %v2627
          %v2652 = vadd.f32 %v2616, %v2627
          %v2653 = vadd.f32 %v2617, %v2627
          %v2654 = vadd.f32 %v2618, %v2627
          %v2655 = vadd.f32 %v2619, %v2627
          %v2656 = vadd.f32 %v2620, %v2627
          %v2657 = vadd.f32 %v2621, %v2627
          %v2658 = vadd.f32 %v2622, %v2627
          %v2659 = vadd.f32 %v2623, %v2627
          %v2660 = vadd.f32 %v2624, %v2627
          %2661 = vst [vmem:[#allocation3] sm:$0xff] %v2629
          %2662 = vst [vmem:[#allocation3 + $0x8] sm:$0xff] %v2630
          %2663 = vst [vmem:[#allocation3 + $0x10] sm:$0xff] %v2631
          %2664 = vst [vmem:[#allocation3 + $0x18] sm:$0xff] %v2632
          %2665 = vst [vmem:[#allocation3 + $0x20] sm:$0xff] %v2633
          %2666 = vst [vmem:[#allocation3 + $0x28] sm:$0xff] %v2634
          %2667 = vst [vmem:[#allocation3 + $0x30] sm:$0xff] %v2635
          %2668 = vst [vmem:[#allocation3 + $0x38] sm:$0xff] %v2636
          %2669 = vst [vmem:[#allocation3 + $0x40] sm:$0xff] %v2637
          %2670 = vst [vmem:[#allocation3 + $0x48] sm:$0xff] %v2638
          %2671 = vst [vmem:[#allocation3 + $0x50] sm:$0xff] %v2639
          %2672 = vst [vmem:[#allocation3 + $0x58] sm:$0xff] %v2640
          %2673 = vst [vmem:[#allocation3 + $0x60] sm:$0xff] %v2641
          %2674 = vst [vmem:[#allocation3 + $0x68] sm:$0xff] %v2642
          %2675 = vst [vmem:[#allocation3 + $0x70] sm:$0xff] %v2643
          %2676 = vst [vmem:[#allocation3 + $0x78] sm:$0xff] %v2644
          %2677 = vst [vmem:[#allocation3 + $0x80] sm:$0xff] %v2645
          %2678 = vst [vmem:[#allocation3 + $0x88] sm:$0xff] %v2646
          %2679 = vst [vmem:[#allocation3 + $0x90] sm:$0xff] %v2647
          %2680 = vst [vmem:[#allocation3 + $0x98] sm:$0xff] %v2648
          %2681 = vst [vmem:[#allocation3 + $0xa0] sm:$0xff] %v2649
          %2682 = vst [vmem:[#allocation3 + $0xa8] sm:$0xff] %v2650
          %2683 = vst [vmem:[#allocation3 + $0xb0] sm:$0xff] %v2651
          %2684 = vst [vmem:[#allocation3 + $0xb8] sm:$0xff] %v2652
          %2685 = vst [vmem:[#allocation3 + $0xc0] sm:$0xff] %v2653
          %2686 = vst [vmem:[#allocation3 + $0xc8] sm:$0xff] %v2654
          %2687 = vst [vmem:[#allocation3 + $0xd0] sm:$0xff] %v2655
          %2688 = vst [vmem:[#allocation3 + $0xd8] sm:$0xff] %v2656
          %2689 = vst [vmem:[#allocation3 + $0xe0] sm:$0xff] %v2657
          %2690 = vst [vmem:[#allocation3 + $0xe8] sm:$0xff] %v2658
          %2691 = vst [vmem:[#allocation3 + $0xf0] sm:$0xff] %v2659
          %2692 = vst [vmem:[#allocation3 + $0xf8] sm:$0xff] %v2660
          %2693 = vst [vmem:[#allocation4] sm:$0xff] 0.0
          %2694 = vst [vmem:[#allocation4 + $0x8] sm:$0xff] 0.0
          %2695 = vst [vmem:[#allocation4 + $0x10] sm:$0xff] 0.0
          %2696 = vst [vmem:[#allocation4 + $0x18] sm:$0xff] 0.0
          %2697 = vst [vmem:[#allocation4 + $0x20] sm:$0xff] 0.0
          %2698 = vst [vmem:[#allocation4 + $0x28] sm:$0xff] 0.0
          %2699 = vst [vmem:[#allocation4 + $0x30] sm:$0xff] 0.0
          %2700 = vst [vmem:[#allocation4 + $0x38] sm:$0xff] 0.0
          %2701 = vst [vmem:[#allocation4 + $0x40] sm:$0xff] 0.0
          %2702 = vst [vmem:[#allocation4 + $0x48] sm:$0xff] 0.0
          %2703 = vst [vmem:[#allocation4 + $0x50] sm:$0xff] 0.0
          %2704 = vst [vmem:[#allocation4 + $0x58] sm:$0xff] 0.0
          %2705 = vst [vmem:[#allocation4 + $0x60] sm:$0xff] 0.0
          %2706 = vst [vmem:[#allocation4 + $0x68] sm:$0xff] 0.0
          %2707 = vst [vmem:[#allocation4 + $0x70] sm:$0xff] 0.0
          %2708 = vst [vmem:[#allocation4 + $0x78] sm:$0xff] 0.0
          %2709 = vst [vmem:[#allocation4 + $0x80] sm:$0xff] 0.0
          %2710 = vst [vmem:[#allocation4 + $0x88] sm:$0xff] 0.0
          %2711 = vst [vmem:[#allocation4 + $0x90] sm:$0xff] 0.0
          %2712 = vst [vmem:[#allocation4 + $0x98] sm:$0xff] 0.0
          %2713 = vst [vmem:[#allocation4 + $0xa0] sm:$0xff] 0.0
          %2714 = vst [vmem:[#allocation4 + $0xa8] sm:$0xff] 0.0
          %2715 = vst [vmem:[#allocation4 + $0xb0] sm:$0xff] 0.0
          %2716 = vst [vmem:[#allocation4 + $0xb8] sm:$0xff] 0.0
          %2717 = vst [vmem:[#allocation4 + $0xc0] sm:$0xff] 0.0
          %2718 = vst [vmem:[#allocation4 + $0xc8] sm:$0xff] 0.0
          %2719 = vst [vmem:[#allocation4 + $0xd0] sm:$0xff] 0.0
          %2720 = vst [vmem:[#allocation4 + $0xd8] sm:$0xff] 0.0
          %2721 = vst [vmem:[#allocation4 + $0xe0] sm:$0xff] 0.0
          %2722 = vst [vmem:[#allocation4 + $0xe8] sm:$0xff] 0.0
          %2723 = vst [vmem:[#allocation4 + $0xf0] sm:$0xff] 0.0
          %2724 = vst [vmem:[#allocation4 + $0xf8] sm:$0xff] 0.0
        $region100: #{tpu_custom_call.1} parent=67 // pred_fallthru
          _
        %v2725 = vld [vmem:[#allocation3] sm:$0xff]
        %v2726 = vld [vmem:[#allocation3 + $0x8] sm:$0xff]
        %v2727 = vld [vmem:[#allocation3 + $0x10] sm:$0xff]
        %v2728 = vld [vmem:[#allocation3 + $0x18] sm:$0xff]
        %v2729 = vld [vmem:[#allocation3 + $0x20] sm:$0xff]
        %v2730 = vld [vmem:[#allocation3 + $0x28] sm:$0xff]
        %v2731 = vld [vmem:[#allocation3 + $0x30] sm:$0xff]
        %v2732 = vld [vmem:[#allocation3 + $0x38] sm:$0xff]
        %v2733 = vld [vmem:[#allocation3 + $0x40] sm:$0xff]
        %v2734 = vld [vmem:[#allocation3 + $0x48] sm:$0xff]
        %v2735 = vld [vmem:[#allocation3 + $0x50] sm:$0xff]
        %v2736 = vld [vmem:[#allocation3 + $0x58] sm:$0xff]
        %v2737 = vld [vmem:[#allocation3 + $0x60] sm:$0xff]
        %v2738 = vld [vmem:[#allocation3 + $0x68] sm:$0xff]
        %v2739 = vld [vmem:[#allocation3 + $0x70] sm:$0xff]
        %v2740 = vld [vmem:[#allocation3 + $0x78] sm:$0xff]
        %v2741 = vld [vmem:[#allocation3 + $0x80] sm:$0xff]
        %v2742 = vld [vmem:[#allocation3 + $0x88] sm:$0xff]
        %v2743 = vld [vmem:[#allocation3 + $0x90] sm:$0xff]
        %v2744 = vld [vmem:[#allocation3 + $0x98] sm:$0xff]
        %v2745 = vld [vmem:[#allocation3 + $0xa0] sm:$0xff]
        %v2746 = vld [vmem:[#allocation3 + $0xa8] sm:$0xff]
        %v2747 = vld [vmem:[#allocation3 + $0xb0] sm:$0xff]
        %v2748 = vld [vmem:[#allocation3 + $0xb8] sm:$0xff]
        %v2749 = vld [vmem:[#allocation3 + $0xc0] sm:$0xff]
        %v2750 = vld [vmem:[#allocation3 + $0xc8] sm:$0xff]
        %v2751 = vld [vmem:[#allocation3 + $0xd0] sm:$0xff]
        %v2752 = vld [vmem:[#allocation3 + $0xd8] sm:$0xff]
        %v2753 = vld [vmem:[#allocation3 + $0xe0] sm:$0xff]
        %v2754 = vld [vmem:[#allocation3 + $0xe8] sm:$0xff]
        %v2755 = vld [vmem:[#allocation3 + $0xf0] sm:$0xff]
        %v2756 = vld [vmem:[#allocation3 + $0xf8] sm:$0xff]
        %v2757 = vld [vmem:[#allocation14] sm:$0xff]
        %v2758 = vld [vmem:[#allocation14 + $0x8] sm:$0xff]
        %v2759 = vld [vmem:[#allocation14 + $0x10] sm:$0xff]
        %v2760 = vld [vmem:[#allocation14 + $0x18] sm:$0xff]
        %v2761 = vld [vmem:[#allocation14 + $0x20] sm:$0xff]
        %v2762 = vld [vmem:[#allocation14 + $0x28] sm:$0xff]
        %v2763 = vld [vmem:[#allocation14 + $0x30] sm:$0xff]
        %v2764 = vld [vmem:[#allocation14 + $0x38] sm:$0xff]
        %v2765 = vld [vmem:[#allocation14 + $0x40] sm:$0xff]
        %v2766 = vld [vmem:[#allocation14 + $0x48] sm:$0xff]
        %v2767 = vld [vmem:[#allocation14 + $0x50] sm:$0xff]
        %v2768 = vld [vmem:[#allocation14 + $0x58] sm:$0xff]
        %v2769 = vld [vmem:[#allocation14 + $0x60] sm:$0xff]
        %v2770 = vld [vmem:[#allocation14 + $0x68] sm:$0xff]
        %v2771 = vld [vmem:[#allocation14 + $0x70] sm:$0xff]
        %v2772 = vld [vmem:[#allocation14 + $0x78] sm:$0xff]
        %v2773 = vld [vmem:[#allocation14 + $0x80] sm:$0xff]
        %v2774 = vld [vmem:[#allocation14 + $0x88] sm:$0xff]
        %v2775 = vld [vmem:[#allocation14 + $0x90] sm:$0xff]
        %v2776 = vld [vmem:[#allocation14 + $0x98] sm:$0xff]
        %v2777 = vld [vmem:[#allocation14 + $0xa0] sm:$0xff]
        %v2778 = vld [vmem:[#allocation14 + $0xa8] sm:$0xff]
        %v2779 = vld [vmem:[#allocation14 + $0xb0] sm:$0xff]
        %v2780 = vld [vmem:[#allocation14 + $0xb8] sm:$0xff]
        %v2781 = vld [vmem:[#allocation14 + $0xc0] sm:$0xff]
        %v2782 = vld [vmem:[#allocation14 + $0xc8] sm:$0xff]
        %v2783 = vld [vmem:[#allocation14 + $0xd0] sm:$0xff]
        %v2784 = vld [vmem:[#allocation14 + $0xd8] sm:$0xff]
        %v2785 = vld [vmem:[#allocation14 + $0xe0] sm:$0xff]
        %v2786 = vld [vmem:[#allocation14 + $0xe8] sm:$0xff]
        %v2787 = vld [vmem:[#allocation14 + $0xf0] sm:$0xff]
        %v2788 = vld [vmem:[#allocation14 + $0xf8] sm:$0xff]
        %v2789 = vld [vmem:[#allocation14 + $0x100] sm:$0xff]
        %v2790 = vld [vmem:[#allocation14 + $0x108] sm:$0xff]
        %v2791 = vld [vmem:[#allocation14 + $0x110] sm:$0xff]
        %v2792 = vld [vmem:[#allocation14 + $0x118] sm:$0xff]
        %v2793 = vld [vmem:[#allocation14 + $0x120] sm:$0xff]
        %v2794 = vld [vmem:[#allocation14 + $0x128] sm:$0xff]
        %v2795 = vld [vmem:[#allocation14 + $0x130] sm:$0xff]
        %v2796 = vld [vmem:[#allocation14 + $0x138] sm:$0xff]
        %v2797 = vld [vmem:[#allocation14 + $0x140] sm:$0xff]
        %v2798 = vld [vmem:[#allocation14 + $0x148] sm:$0xff]
        %v2799 = vld [vmem:[#allocation14 + $0x150] sm:$0xff]
        %v2800 = vld [vmem:[#allocation14 + $0x158] sm:$0xff]
        %v2801 = vld [vmem:[#allocation14 + $0x160] sm:$0xff]
        %v2802 = vld [vmem:[#allocation14 + $0x168] sm:$0xff]
        %v2803 = vld [vmem:[#allocation14 + $0x170] sm:$0xff]
        %v2804 = vld [vmem:[#allocation14 + $0x178] sm:$0xff]
        %v2805 = vld [vmem:[#allocation14 + $0x180] sm:$0xff]
        %v2806 = vld [vmem:[#allocation14 + $0x188] sm:$0xff]
        %v2807 = vld [vmem:[#allocation14 + $0x190] sm:$0xff]
        %v2808 = vld [vmem:[#allocation14 + $0x198] sm:$0xff]
        %v2809 = vld [vmem:[#allocation14 + $0x1a0] sm:$0xff]
        %v2810 = vld [vmem:[#allocation14 + $0x1a8] sm:$0xff]
        %v2811 = vld [vmem:[#allocation14 + $0x1b0] sm:$0xff]
        %v2812 = vld [vmem:[#allocation14 + $0x1b8] sm:$0xff]
        %v2813 = vld [vmem:[#allocation14 + $0x1c0] sm:$0xff]
        %v2814 = vld [vmem:[#allocation14 + $0x1c8] sm:$0xff]
        %v2815 = vld [vmem:[#allocation14 + $0x1d0] sm:$0xff]
        %v2816 = vld [vmem:[#allocation14 + $0x1d8] sm:$0xff]
        %v2817 = vld [vmem:[#allocation14 + $0x1e0] sm:$0xff]
        %v2818 = vld [vmem:[#allocation14 + $0x1e8] sm:$0xff]
        %v2819 = vld [vmem:[#allocation14 + $0x1f0] sm:$0xff]
        %v2820 = vld [vmem:[#allocation14 + $0x1f8] sm:$0xff]
        %v2821 = vld [vmem:[%s579] sm:$0xf]
        %v2823 = vperm.slane %v2821, 0
        %v2824 = vperm.slane %v2821, 1
        %v2825 = vperm.slane %v2821, 2
        %v2826 = vperm.slane %v2821, 3
        %2831 = vmatpush.msra.mxu0 %v2817
        %2832 = vmatpush.msra.mxu0 %v2813
        %2833 = vmatpush.msra.mxu0 %v2809
        %2834 = vmatpush.msra.mxu0 %v2805
        %2835 = vmatpush.msra.mxu0 %v2801
        %2836 = vmatpush.msra.mxu0 %v2797
        %2837 = vmatpush.msra.mxu0 %v2793
        %2838 = vmatpush.msra.mxu0 %v2789
        %2839 = vmatpush.msra.mxu0 %v2785
        %2840 = vmatpush.msra.mxu0 %v2781
        %2841 = vmatpush.msra.mxu0 %v2777
        %2842 = vmatpush.msra.mxu0 %v2773
        %2843 = vmatpush.msra.mxu0 %v2769
        %2844 = vmatpush.msra.mxu0 %v2765
        %2845 = vmatpush.msra.mxu0 %v2761
        %2846 = vmatpush.msra.mxu0 %v2757
        %2847 = vmatmul.f32.gmra.mxu0 %v2725
        %v2848 = vpop.f32.mrf.mxu0
        %v2849 = vadd.f32 %v2823, %v2848
        %2850 = vmatmul.f32.gmra.mxu0 %v2726
        %v2851 = vpop.f32.mrf.mxu0
        %v2852 = vadd.f32 %v2823, %v2851
        %2853 = vmatmul.f32.gmra.mxu0 %v2727
        %v2854 = vpop.f32.mrf.mxu0
        %v2855 = vadd.f32 %v2823, %v2854
        %2856 = vmatmul.f32.gmra.mxu0 %v2728
        %v2857 = vpop.f32.mrf.mxu0
        %v2858 = vadd.f32 %v2823, %v2857
        %2859 = vmatmul.f32.gmra.mxu0 %v2729
        %v2860 = vpop.f32.mrf.mxu0
        %v2861 = vadd.f32 %v2823, %v2860
        %2862 = vmatmul.f32.gmra.mxu0 %v2730
        %v2863 = vpop.f32.mrf.mxu0
        %v2864 = vadd.f32 %v2823, %v2863
        %2865 = vmatmul.f32.gmra.mxu0 %v2731
        %v2866 = vpop.f32.mrf.mxu0
        %v2867 = vadd.f32 %v2823, %v2866
        %2868 = vmatmul.f32.gmra.mxu0 %v2732
        %v2869 = vpop.f32.mrf.mxu0
        %v2870 = vadd.f32 %v2823, %v2869
        %2871 = vmatmul.f32.gmra.mxu0 %v2733
        %v2872 = vpop.f32.mrf.mxu0
        %v2873 = vadd.f32 %v2823, %v2872
        %2874 = vmatmul.f32.gmra.mxu0 %v2734
        %v2875 = vpop.f32.mrf.mxu0
        %v2876 = vadd.f32 %v2823, %v2875
        %2877 = vmatmul.f32.gmra.mxu0 %v2735
        %v2878 = vpop.f32.mrf.mxu0
        %v2879 = vadd.f32 %v2823, %v2878
        %2880 = vmatmul.f32.gmra.mxu0 %v2736
        %v2881 = vpop.f32.mrf.mxu0
        %v2882 = vadd.f32 %v2823, %v2881
        %2883 = vmatmul.f32.gmra.mxu0 %v2737
        %v2884 = vpop.f32.mrf.mxu0
        %v2885 = vadd.f32 %v2823, %v2884
        %2886 = vmatmul.f32.gmra.mxu0 %v2738
        %v2887 = vpop.f32.mrf.mxu0
        %v2888 = vadd.f32 %v2823, %v2887
        %2889 = vmatmul.f32.gmra.mxu0 %v2739
        %v2890 = vpop.f32.mrf.mxu0
        %v2891 = vadd.f32 %v2823, %v2890
        %2892 = vmatmul.f32.gmra.mxu0 %v2740
        %v2893 = vpop.f32.mrf.mxu0
        %v2894 = vadd.f32 %v2823, %v2893
        %2895 = vmatmul.f32.gmra.mxu0 %v2741
        %v2896 = vpop.f32.mrf.mxu0
        %v2897 = vadd.f32 %v2823, %v2896
        %2898 = vmatmul.f32.gmra.mxu0 %v2742
        %v2899 = vpop.f32.mrf.mxu0
        %v2900 = vadd.f32 %v2823, %v2899
        %2901 = vmatmul.f32.gmra.mxu0 %v2743
        %v2902 = vpop.f32.mrf.mxu0
        %v2903 = vadd.f32 %v2823, %v2902
        %2904 = vmatmul.f32.gmra.mxu0 %v2744
        %v2905 = vpop.f32.mrf.mxu0
        %v2906 = vadd.f32 %v2823, %v2905
        %2907 = vmatmul.f32.gmra.mxu0 %v2745
        %v2908 = vpop.f32.mrf.mxu0
        %v2909 = vadd.f32 %v2823, %v2908
        %2910 = vmatmul.f32.gmra.mxu0 %v2746
        %v2911 = vpop.f32.mrf.mxu0
        %v2912 = vadd.f32 %v2823, %v2911
        %2913 = vmatmul.f32.gmra.mxu0 %v2747
        %v2914 = vpop.f32.mrf.mxu0
        %v2915 = vadd.f32 %v2823, %v2914
        %2916 = vmatmul.f32.gmra.mxu0 %v2748
        %v2917 = vpop.f32.mrf.mxu0
        %v2918 = vadd.f32 %v2823, %v2917
        %2919 = vmatmul.f32.gmra.mxu0 %v2749
        %v2920 = vpop.f32.mrf.mxu0
        %v2921 = vadd.f32 %v2823, %v2920
        %2922 = vmatmul.f32.gmra.mxu0 %v2750
        %v2923 = vpop.f32.mrf.mxu0
        %v2924 = vadd.f32 %v2823, %v2923
        %2925 = vmatmul.f32.gmra.mxu0 %v2751
        %v2926 = vpop.f32.mrf.mxu0
        %v2927 = vadd.f32 %v2823, %v2926
        %2928 = vmatmul.f32.gmra.mxu0 %v2752
        %v2929 = vpop.f32.mrf.mxu0
        %v2930 = vadd.f32 %v2823, %v2929
        %2931 = vmatmul.f32.gmra.mxu0 %v2753
        %v2932 = vpop.f32.mrf.mxu0
        %v2933 = vadd.f32 %v2823, %v2932
        %2934 = vmatmul.f32.gmra.mxu0 %v2754
        %v2935 = vpop.f32.mrf.mxu0
        %v2936 = vadd.f32 %v2823, %v2935
        %2937 = vmatmul.f32.gmra.mxu0 %v2755
        %v2938 = vpop.f32.mrf.mxu0
        %v2939 = vadd.f32 %v2823, %v2938
        %2940 = vmatmul.f32.gmra.mxu0 %v2756
        %v2941 = vpop.f32.mrf.mxu0
        %v2942 = vadd.f32 %v2823, %v2941
        %2943 = vdwg.mxu0
        %2944 = vmatpush.msra.mxu0 %v2818
        %2945 = vmatpush.msra.mxu0 %v2814
        %2946 = vmatpush.msra.mxu0 %v2810
        %2947 = vmatpush.msra.mxu0 %v2806
        %2948 = vmatpush.msra.mxu0 %v2802
        %2949 = vmatpush.msra.mxu0 %v2798
        %2950 = vmatpush.msra.mxu0 %v2794
        %2951 = vmatpush.msra.mxu0 %v2790
        %2952 = vmatpush.msra.mxu0 %v2786
        %2953 = vmatpush.msra.mxu0 %v2782
        %2954 = vmatpush.msra.mxu0 %v2778
        %2955 = vmatpush.msra.mxu0 %v2774
        %2956 = vmatpush.msra.mxu0 %v2770
        %2957 = vmatpush.msra.mxu0 %v2766
        %2958 = vmatpush.msra.mxu0 %v2762
        %2959 = vmatpush.msra.mxu0 %v2758
        %2960 = vmatmul.f32.gmra.mxu0 %v2725
        %v2961 = vpop.f32.mrf.mxu0
        %v2962 = vadd.f32 %v2824, %v2961
        %2963 = vmatmul.f32.gmra.mxu0 %v2726
        %v2964 = vpop.f32.mrf.mxu0
        %v2965 = vadd.f32 %v2824, %v2964
        %2966 = vmatmul.f32.gmra.mxu0 %v2727
        %v2967 = vpop.f32.mrf.mxu0
        %v2968 = vadd.f32 %v2824, %v2967
        %2969 = vmatmul.f32.gmra.mxu0 %v2728
        %v2970 = vpop.f32.mrf.mxu0
        %v2971 = vadd.f32 %v2824, %v2970
        %2972 = vmatmul.f32.gmra.mxu0 %v2729
        %v2973 = vpop.f32.mrf.mxu0
        %v2974 = vadd.f32 %v2824, %v2973
        %2975 = vmatmul.f32.gmra.mxu0 %v2730
        %v2976 = vpop.f32.mrf.mxu0
        %v2977 = vadd.f32 %v2824, %v2976
        %2978 = vmatmul.f32.gmra.mxu0 %v2731
        %v2979 = vpop.f32.mrf.mxu0
        %v2980 = vadd.f32 %v2824, %v2979
        %2981 = vmatmul.f32.gmra.mxu0 %v2732
        %v2982 = vpop.f32.mrf.mxu0
        %v2983 = vadd.f32 %v2824, %v2982
        %2984 = vmatmul.f32.gmra.mxu0 %v2733
        %v2985 = vpop.f32.mrf.mxu0
        %v2986 = vadd.f32 %v2824, %v2985
        %2987 = vmatmul.f32.gmra.mxu0 %v2734
        %v2988 = vpop.f32.mrf.mxu0
        %v2989 = vadd.f32 %v2824, %v2988
        %2990 = vmatmul.f32.gmra.mxu0 %v2735
        %v2991 = vpop.f32.mrf.mxu0
        %v2992 = vadd.f32 %v2824, %v2991
        %2993 = vmatmul.f32.gmra.mxu0 %v2736
        %v2994 = vpop.f32.mrf.mxu0
        %v2995 = vadd.f32 %v2824, %v2994
        %2996 = vmatmul.f32.gmra.mxu0 %v2737
        %v2997 = vpop.f32.mrf.mxu0
        %v2998 = vadd.f32 %v2824, %v2997
        %2999 = vmatmul.f32.gmra.mxu0 %v2738
        %v3000 = vpop.f32.mrf.mxu0
        %v3001 = vadd.f32 %v2824, %v3000
        %3002 = vmatmul.f32.gmra.mxu0 %v2739
        %v3003 = vpop.f32.mrf.mxu0
        %v3004 = vadd.f32 %v2824, %v3003
        %3005 = vmatmul.f32.gmra.mxu0 %v2740
        %v3006 = vpop.f32.mrf.mxu0
        %v3007 = vadd.f32 %v2824, %v3006
        %3008 = vmatmul.f32.gmra.mxu0 %v2741
        %v3009 = vpop.f32.mrf.mxu0
        %v3010 = vadd.f32 %v2824, %v3009
        %3011 = vmatmul.f32.gmra.mxu0 %v2742
        %v3012 = vpop.f32.mrf.mxu0
        %v3013 = vadd.f32 %v2824, %v3012
        %3014 = vmatmul.f32.gmra.mxu0 %v2743
        %v3015 = vpop.f32.mrf.mxu0
        %v3016 = vadd.f32 %v2824, %v3015
        %3017 = vmatmul.f32.gmra.mxu0 %v2744
        %v3018 = vpop.f32.mrf.mxu0
        %v3019 = vadd.f32 %v2824, %v3018
        %3020 = vmatmul.f32.gmra.mxu0 %v2745
        %v3021 = vpop.f32.mrf.mxu0
        %v3022 = vadd.f32 %v2824, %v3021
        %3023 = vmatmul.f32.gmra.mxu0 %v2746
        %v3024 = vpop.f32.mrf.mxu0
        %v3025 = vadd.f32 %v2824, %v3024
        %3026 = vmatmul.f32.gmra.mxu0 %v2747
        %v3027 = vpop.f32.mrf.mxu0
        %v3028 = vadd.f32 %v2824, %v3027
        %3029 = vmatmul.f32.gmra.mxu0 %v2748
        %v3030 = vpop.f32.mrf.mxu0
        %v3031 = vadd.f32 %v2824, %v3030
        %3032 = vmatmul.f32.gmra.mxu0 %v2749
        %v3033 = vpop.f32.mrf.mxu0
        %v3034 = vadd.f32 %v2824, %v3033
        %3035 = vmatmul.f32.gmra.mxu0 %v2750
        %v3036 = vpop.f32.mrf.mxu0
        %v3037 = vadd.f32 %v2824, %v3036
        %3038 = vmatmul.f32.gmra.mxu0 %v2751
        %v3039 = vpop.f32.mrf.mxu0
        %v3040 = vadd.f32 %v2824, %v3039
        %3041 = vmatmul.f32.gmra.mxu0 %v2752
        %v3042 = vpop.f32.mrf.mxu0
        %v3043 = vadd.f32 %v2824, %v3042
        %3044 = vmatmul.f32.gmra.mxu0 %v2753
        %v3045 = vpop.f32.mrf.mxu0
        %v3046 = vadd.f32 %v2824, %v3045
        %3047 = vmatmul.f32.gmra.mxu0 %v2754
        %v3048 = vpop.f32.mrf.mxu0
        %v3049 = vadd.f32 %v2824, %v3048
        %3050 = vmatmul.f32.gmra.mxu0 %v2755
        %v3051 = vpop.f32.mrf.mxu0
        %v3052 = vadd.f32 %v2824, %v3051
        %3053 = vmatmul.f32.gmra.mxu0 %v2756
        %v3054 = vpop.f32.mrf.mxu0
        %v3055 = vadd.f32 %v2824, %v3054
        %3056 = vdwg.mxu0
        %3057 = vmatpush.msra.mxu0 %v2819
        %3058 = vmatpush.msra.mxu0 %v2815
        %3059 = vmatpush.msra.mxu0 %v2811
        %3060 = vmatpush.msra.mxu0 %v2807
        %3061 = vmatpush.msra.mxu0 %v2803
        %3062 = vmatpush.msra.mxu0 %v2799
        %3063 = vmatpush.msra.mxu0 %v2795
        %3064 = vmatpush.msra.mxu0 %v2791
        %3065 = vmatpush.msra.mxu0 %v2787
        %3066 = vmatpush.msra.mxu0 %v2783
        %3067 = vmatpush.msra.mxu0 %v2779
        %3068 = vmatpush.msra.mxu0 %v2775
        %3069 = vmatpush.msra.mxu0 %v2771
        %3070 = vmatpush.msra.mxu0 %v2767
        %3071 = vmatpush.msra.mxu0 %v2763
        %3072 = vmatpush.msra.mxu0 %v2759
        %3073 = vmatmul.f32.gmra.mxu0 %v2725
        %v3074 = vpop.f32.mrf.mxu0
        %v3075 = vadd.f32 %v2825, %v3074
        %3076 = vmatmul.f32.gmra.mxu0 %v2726
        %v3077 = vpop.f32.mrf.mxu0
        %v3078 = vadd.f32 %v2825, %v3077
        %3079 = vmatmul.f32.gmra.mxu0 %v2727
        %v3080 = vpop.f32.mrf.mxu0
        %v3081 = vadd.f32 %v2825, %v3080
        %3082 = vmatmul.f32.gmra.mxu0 %v2728
        %v3083 = vpop.f32.mrf.mxu0
        %v3084 = vadd.f32 %v2825, %v3083
        %3085 = vmatmul.f32.gmra.mxu0 %v2729
        %v3086 = vpop.f32.mrf.mxu0
        %v3087 = vadd.f32 %v2825, %v3086
        %3088 = vmatmul.f32.gmra.mxu0 %v2730
        %v3089 = vpop.f32.mrf.mxu0
        %v3090 = vadd.f32 %v2825, %v3089
        %3091 = vmatmul.f32.gmra.mxu0 %v2731
        %v3092 = vpop.f32.mrf.mxu0
        %v3093 = vadd.f32 %v2825, %v3092
        %3094 = vmatmul.f32.gmra.mxu0 %v2732
        %v3095 = vpop.f32.mrf.mxu0
        %v3096 = vadd.f32 %v2825, %v3095
        %3097 = vmatmul.f32.gmra.mxu0 %v2733
        %v3098 = vpop.f32.mrf.mxu0
        %v3099 = vadd.f32 %v2825, %v3098
        %3100 = vmatmul.f32.gmra.mxu0 %v2734
        %v3101 = vpop.f32.mrf.mxu0
        %v3102 = vadd.f32 %v2825, %v3101
        %3103 = vmatmul.f32.gmra.mxu0 %v2735
        %v3104 = vpop.f32.mrf.mxu0
        %v3105 = vadd.f32 %v2825, %v3104
        %3106 = vmatmul.f32.gmra.mxu0 %v2736
        %v3107 = vpop.f32.mrf.mxu0
        %v3108 = vadd.f32 %v2825, %v3107
        %3109 = vmatmul.f32.gmra.mxu0 %v2737
        %v3110 = vpop.f32.mrf.mxu0
        %v3111 = vadd.f32 %v2825, %v3110
        %3112 = vmatmul.f32.gmra.mxu0 %v2738
        %v3113 = vpop.f32.mrf.mxu0
        %v3114 = vadd.f32 %v2825, %v3113
        %3115 = vmatmul.f32.gmra.mxu0 %v2739
        %v3116 = vpop.f32.mrf.mxu0
        %v3117 = vadd.f32 %v2825, %v3116
        %3118 = vmatmul.f32.gmra.mxu0 %v2740
        %v3119 = vpop.f32.mrf.mxu0
        %v3120 = vadd.f32 %v2825, %v3119
        %3121 = vmatmul.f32.gmra.mxu0 %v2741
        %v3122 = vpop.f32.mrf.mxu0
        %v3123 = vadd.f32 %v2825, %v3122
        %3124 = vmatmul.f32.gmra.mxu0 %v2742
        %v3125 = vpop.f32.mrf.mxu0
        %v3126 = vadd.f32 %v2825, %v3125
        %3127 = vmatmul.f32.gmra.mxu0 %v2743
        %v3128 = vpop.f32.mrf.mxu0
        %v3129 = vadd.f32 %v2825, %v3128
        %3130 = vmatmul.f32.gmra.mxu0 %v2744
        %v3131 = vpop.f32.mrf.mxu0
        %v3132 = vadd.f32 %v2825, %v3131
        %3133 = vmatmul.f32.gmra.mxu0 %v2745
        %v3134 = vpop.f32.mrf.mxu0
        %v3135 = vadd.f32 %v2825, %v3134
        %3136 = vmatmul.f32.gmra.mxu0 %v2746
        %v3137 = vpop.f32.mrf.mxu0
        %v3138 = vadd.f32 %v2825, %v3137
        %3139 = vmatmul.f32.gmra.mxu0 %v2747
        %v3140 = vpop.f32.mrf.mxu0
        %v3141 = vadd.f32 %v2825, %v3140
        %3142 = vmatmul.f32.gmra.mxu0 %v2748
        %v3143 = vpop.f32.mrf.mxu0
        %v3144 = vadd.f32 %v2825, %v3143
        %3145 = vmatmul.f32.gmra.mxu0 %v2749
        %v3146 = vpop.f32.mrf.mxu0
        %v3147 = vadd.f32 %v2825, %v3146
        %3148 = vmatmul.f32.gmra.mxu0 %v2750
        %v3149 = vpop.f32.mrf.mxu0
        %v3150 = vadd.f32 %v2825, %v3149
        %3151 = vmatmul.f32.gmra.mxu0 %v2751
        %v3152 = vpop.f32.mrf.mxu0
        %v3153 = vadd.f32 %v2825, %v3152
        %3154 = vmatmul.f32.gmra.mxu0 %v2752
        %v3155 = vpop.f32.mrf.mxu0
        %v3156 = vadd.f32 %v2825, %v3155
        %3157 = vmatmul.f32.gmra.mxu0 %v2753
        %v3158 = vpop.f32.mrf.mxu0
        %v3159 = vadd.f32 %v2825, %v3158
        %3160 = vmatmul.f32.gmra.mxu0 %v2754
        %v3161 = vpop.f32.mrf.mxu0
        %v3162 = vadd.f32 %v2825, %v3161
        %3163 = vmatmul.f32.gmra.mxu0 %v2755
        %v3164 = vpop.f32.mrf.mxu0
        %v3165 = vadd.f32 %v2825, %v3164
        %3166 = vmatmul.f32.gmra.mxu0 %v2756
        %v3167 = vpop.f32.mrf.mxu0
        %v3168 = vadd.f32 %v2825, %v3167
        %3169 = vdwg.mxu0
        %3170 = vmatpush.msra.mxu0 %v2820
        %3171 = vmatpush.msra.mxu0 %v2816
        %3172 = vmatpush.msra.mxu0 %v2812
        %3173 = vmatpush.msra.mxu0 %v2808
        %3174 = vmatpush.msra.mxu0 %v2804
        %3175 = vmatpush.msra.mxu0 %v2800
        %3176 = vmatpush.msra.mxu0 %v2796
        %3177 = vmatpush.msra.mxu0 %v2792
        %3178 = vmatpush.msra.mxu0 %v2788
        %3179 = vmatpush.msra.mxu0 %v2784
        %3180 = vmatpush.msra.mxu0 %v2780
        %3181 = vmatpush.msra.mxu0 %v2776
        %3182 = vmatpush.msra.mxu0 %v2772
        %3183 = vmatpush.msra.mxu0 %v2768
        %3184 = vmatpush.msra.mxu0 %v2764
        %3185 = vmatpush.msra.mxu0 %v2760
        %3186 = vmatmul.f32.gmra.mxu0 %v2725
        %v3187 = vpop.f32.mrf.mxu0
        %v3188 = vadd.f32 %v2826, %v3187
        %3189 = vmatmul.f32.gmra.mxu0 %v2726
        %v3190 = vpop.f32.mrf.mxu0
        %v3191 = vadd.f32 %v2826, %v3190
        %3192 = vmatmul.f32.gmra.mxu0 %v2727
        %v3193 = vpop.f32.mrf.mxu0
        %v3194 = vadd.f32 %v2826, %v3193
        %3195 = vmatmul.f32.gmra.mxu0 %v2728
        %v3196 = vpop.f32.mrf.mxu0
        %v3197 = vadd.f32 %v2826, %v3196
        %3198 = vmatmul.f32.gmra.mxu0 %v2729
        %v3199 = vpop.f32.mrf.mxu0
        %v3200 = vadd.f32 %v2826, %v3199
        %3201 = vmatmul.f32.gmra.mxu0 %v2730
        %v3202 = vpop.f32.mrf.mxu0
        %v3203 = vadd.f32 %v2826, %v3202
        %3204 = vmatmul.f32.gmra.mxu0 %v2731
        %v3205 = vpop.f32.mrf.mxu0
        %v3206 = vadd.f32 %v2826, %v3205
        %3207 = vmatmul.f32.gmra.mxu0 %v2732
        %v3208 = vpop.f32.mrf.mxu0
        %v3209 = vadd.f32 %v2826, %v3208
        %3210 = vmatmul.f32.gmra.mxu0 %v2733
        %v3211 = vpop.f32.mrf.mxu0
        %v3212 = vadd.f32 %v2826, %v3211
        %3213 = vmatmul.f32.gmra.mxu0 %v2734
        %v3214 = vpop.f32.mrf.mxu0
        %v3215 = vadd.f32 %v2826, %v3214
        %3216 = vmatmul.f32.gmra.mxu0 %v2735
        %v3217 = vpop.f32.mrf.mxu0
        %v3218 = vadd.f32 %v2826, %v3217
        %3219 = vmatmul.f32.gmra.mxu0 %v2736
        %v3220 = vpop.f32.mrf.mxu0
        %v3221 = vadd.f32 %v2826, %v3220
        %3222 = vmatmul.f32.gmra.mxu0 %v2737
        %v3223 = vpop.f32.mrf.mxu0
        %v3224 = vadd.f32 %v2826, %v3223
        %3225 = vmatmul.f32.gmra.mxu0 %v2738
        %v3226 = vpop.f32.mrf.mxu0
        %v3227 = vadd.f32 %v2826, %v3226
        %3228 = vmatmul.f32.gmra.mxu0 %v2739
        %v3229 = vpop.f32.mrf.mxu0
        %v3230 = vadd.f32 %v2826, %v3229
        %3231 = vmatmul.f32.gmra.mxu0 %v2740
        %v3232 = vpop.f32.mrf.mxu0
        %v3233 = vadd.f32 %v2826, %v3232
        %3234 = vmatmul.f32.gmra.mxu0 %v2741
        %v3235 = vpop.f32.mrf.mxu0
        %v3236 = vadd.f32 %v2826, %v3235
        %3237 = vmatmul.f32.gmra.mxu0 %v2742
        %v3238 = vpop.f32.mrf.mxu0
        %v3239 = vadd.f32 %v2826, %v3238
        %3240 = vmatmul.f32.gmra.mxu0 %v2743
        %v3241 = vpop.f32.mrf.mxu0
        %v3242 = vadd.f32 %v2826, %v3241
        %3243 = vmatmul.f32.gmra.mxu0 %v2744
        %v3244 = vpop.f32.mrf.mxu0
        %v3245 = vadd.f32 %v2826, %v3244
        %3246 = vmatmul.f32.gmra.mxu0 %v2745
        %v3247 = vpop.f32.mrf.mxu0
        %v3248 = vadd.f32 %v2826, %v3247
        %3249 = vmatmul.f32.gmra.mxu0 %v2746
        %v3250 = vpop.f32.mrf.mxu0
        %v3251 = vadd.f32 %v2826, %v3250
        %3252 = vmatmul.f32.gmra.mxu0 %v2747
        %v3253 = vpop.f32.mrf.mxu0
        %v3254 = vadd.f32 %v2826, %v3253
        %3255 = vmatmul.f32.gmra.mxu0 %v2748
        %v3256 = vpop.f32.mrf.mxu0
        %v3257 = vadd.f32 %v2826, %v3256
        %3258 = vmatmul.f32.gmra.mxu0 %v2749
        %v3259 = vpop.f32.mrf.mxu0
        %v3260 = vadd.f32 %v2826, %v3259
        %3261 = vmatmul.f32.gmra.mxu0 %v2750
        %v3262 = vpop.f32.mrf.mxu0
        %v3263 = vadd.f32 %v2826, %v3262
        %3264 = vmatmul.f32.gmra.mxu0 %v2751
        %v3265 = vpop.f32.mrf.mxu0
        %v3266 = vadd.f32 %v2826, %v3265
        %3267 = vmatmul.f32.gmra.mxu0 %v2752
        %v3268 = vpop.f32.mrf.mxu0
        %v3269 = vadd.f32 %v2826, %v3268
        %3270 = vmatmul.f32.gmra.mxu0 %v2753
        %v3271 = vpop.f32.mrf.mxu0
        %v3272 = vadd.f32 %v2826, %v3271
        %3273 = vmatmul.f32.gmra.mxu0 %v2754
        %v3274 = vpop.f32.mrf.mxu0
        %v3275 = vadd.f32 %v2826, %v3274
        %3276 = vmatmul.f32.gmra.mxu0 %v2755
        %v3277 = vpop.f32.mrf.mxu0
        %v3278 = vadd.f32 %v2826, %v3277
        %3279 = vmatmul.f32.gmra.mxu0 %v2756
        %v3280 = vpop.f32.mrf.mxu0
        %v3281 = vadd.f32 %v2826, %v3280
        %3282 = vdwg.mxu0
        %v3283 = vmul.f32 %v2849, 0.70710677
        %v3284 = vmul.f32 %v2962, 0.70710677
        %v3285 = vmul.f32 %v3075, 0.70710677
        %v3286 = vmul.f32 %v3188, 0.70710677
        %v3287 = vmul.f32 %v2852, 0.70710677
        %v3288 = vmul.f32 %v2965, 0.70710677
        %v3289 = vmul.f32 %v3078, 0.70710677
        %v3290 = vmul.f32 %v3191, 0.70710677
        %v3291 = vmul.f32 %v2855, 0.70710677
        %v3292 = vmul.f32 %v2968, 0.70710677
        %v3293 = vmul.f32 %v3081, 0.70710677
        %v3294 = vmul.f32 %v3194, 0.70710677
        %v3295 = vmul.f32 %v2858, 0.70710677
        %v3296 = vmul.f32 %v2971, 0.70710677
        %v3297 = vmul.f32 %v3084, 0.70710677
        %v3298 = vmul.f32 %v3197, 0.70710677
        %v3299 = vmul.f32 %v2861, 0.70710677
        %v3300 = vmul.f32 %v2974, 0.70710677
        %v3301 = vmul.f32 %v3087, 0.70710677
        %v3302 = vmul.f32 %v3200, 0.70710677
        %v3303 = vmul.f32 %v2864, 0.70710677
        %v3304 = vmul.f32 %v2977, 0.70710677
        %v3305 = vmul.f32 %v3090, 0.70710677
        %v3306 = vmul.f32 %v3203, 0.70710677
        %v3307 = vmul.f32 %v2867, 0.70710677
        %v3308 = vmul.f32 %v2980, 0.70710677
        %v3309 = vmul.f32 %v3093, 0.70710677
        %v3310 = vmul.f32 %v3206, 0.70710677
        %v3311 = vmul.f32 %v2870, 0.70710677
        %v3312 = vmul.f32 %v2983, 0.70710677
        %v3313 = vmul.f32 %v3096, 0.70710677
        %v3314 = vmul.f32 %v3209, 0.70710677
        %v3315 = vmul.f32 %v2873, 0.70710677
        %v3316 = vmul.f32 %v2986, 0.70710677
        %v3317 = vmul.f32 %v3099, 0.70710677
        %v3318 = vmul.f32 %v3212, 0.70710677
        %v3319 = vmul.f32 %v2876, 0.70710677
        %v3320 = vmul.f32 %v2989, 0.70710677
        %v3321 = vmul.f32 %v3102, 0.70710677
        %v3322 = vmul.f32 %v3215, 0.70710677
        %v3323 = vmul.f32 %v2879, 0.70710677
        %v3324 = vmul.f32 %v2992, 0.70710677
        %v3325 = vmul.f32 %v3105, 0.70710677
        %v3326 = vmul.f32 %v3218, 0.70710677
        %v3327 = vmul.f32 %v2882, 0.70710677
        %v3328 = vmul.f32 %v2995, 0.70710677
        %v3329 = vmul.f32 %v3108, 0.70710677
        %v3330 = vmul.f32 %v3221, 0.70710677
        %v3331 = vmul.f32 %v2885, 0.70710677
        %v3332 = vmul.f32 %v2998, 0.70710677
        %v3333 = vmul.f32 %v3111, 0.70710677
        %v3334 = vmul.f32 %v3224, 0.70710677
        %v3335 = vmul.f32 %v2888, 0.70710677
        %v3336 = vmul.f32 %v3001, 0.70710677
        %v3337 = vmul.f32 %v3114, 0.70710677
        %v3338 = vmul.f32 %v3227, 0.70710677
        %v3339 = vmul.f32 %v2891, 0.70710677
        %v3340 = vmul.f32 %v3004, 0.70710677
        %v3341 = vmul.f32 %v3117, 0.70710677
        %v3342 = vmul.f32 %v3230, 0.70710677
        %v3343 = vmul.f32 %v2894, 0.70710677
        %v3344 = vmul.f32 %v3007, 0.70710677
        %v3345 = vmul.f32 %v3120, 0.70710677
        %v3346 = vmul.f32 %v3233, 0.70710677
        %v3347 = vmul.f32 %v2897, 0.70710677
        %v3348 = vmul.f32 %v3010, 0.70710677
        %v3349 = vmul.f32 %v3123, 0.70710677
        %v3350 = vmul.f32 %v3236, 0.70710677
        %v3351 = vmul.f32 %v2900, 0.70710677
        %v3352 = vmul.f32 %v3013, 0.70710677
        %v3353 = vmul.f32 %v3126, 0.70710677
        %v3354 = vmul.f32 %v3239, 0.70710677
        %v3355 = vmul.f32 %v2903, 0.70710677
        %v3356 = vmul.f32 %v3016, 0.70710677
        %v3357 = vmul.f32 %v3129, 0.70710677
        %v3358 = vmul.f32 %v3242, 0.70710677
        %v3359 = vmul.f32 %v2906, 0.70710677
        %v3360 = vmul.f32 %v3019, 0.70710677
        %v3361 = vmul.f32 %v3132, 0.70710677
        %v3362 = vmul.f32 %v3245, 0.70710677
        %v3363 = vmul.f32 %v2909, 0.70710677
        %v3364 = vmul.f32 %v3022, 0.70710677
        %v3365 = vmul.f32 %v3135, 0.70710677
        %v3366 = vmul.f32 %v3248, 0.70710677
        %v3367 = vmul.f32 %v2912, 0.70710677
        %v3368 = vmul.f32 %v3025, 0.70710677
        %v3369 = vmul.f32 %v3138, 0.70710677
        %v3370 = vmul.f32 %v3251, 0.70710677
        %v3371 = vmul.f32 %v2915, 0.70710677
        %v3372 = vmul.f32 %v3028, 0.70710677
        %v3373 = vmul.f32 %v3141, 0.70710677
        %v3374 = vmul.f32 %v3254, 0.70710677
        %v3375 = vmul.f32 %v2918, 0.70710677
        %v3376 = vmul.f32 %v3031, 0.70710677
        %v3377 = vmul.f32 %v3144, 0.70710677
        %v3378 = vmul.f32 %v3257, 0.70710677
        %v3379 = vmul.f32 %v2921, 0.70710677
        %v3380 = vmul.f32 %v3034, 0.70710677
        %v3381 = vmul.f32 %v3147, 0.70710677
        %v3382 = vmul.f32 %v3260, 0.70710677
        %v3383 = vmul.f32 %v2924, 0.70710677
        %v3384 = vmul.f32 %v3037, 0.70710677
        %v3385 = vmul.f32 %v3150, 0.70710677
        %v3386 = vmul.f32 %v3263, 0.70710677
        %v3387 = vmul.f32 %v2927, 0.70710677
        %v3388 = vmul.f32 %v3040, 0.70710677
        %v3389 = vmul.f32 %v3153, 0.70710677
        %v3390 = vmul.f32 %v3266, 0.70710677
        %v3391 = vmul.f32 %v2930, 0.70710677
        %v3392 = vmul.f32 %v3043, 0.70710677
        %v3393 = vmul.f32 %v3156, 0.70710677
        %v3394 = vmul.f32 %v3269, 0.70710677
        %v3395 = vmul.f32 %v2933, 0.70710677
        %v3396 = vmul.f32 %v3046, 0.70710677
        %v3397 = vmul.f32 %v3159, 0.70710677
        %v3398 = vmul.f32 %v3272, 0.70710677
        %v3399 = vmul.f32 %v2936, 0.70710677
        %v3400 = vmul.f32 %v3049, 0.70710677
        %v3401 = vmul.f32 %v3162, 0.70710677
        %v3402 = vmul.f32 %v3275, 0.70710677
        %v3403 = vmul.f32 %v2939, 0.70710677
        %v3404 = vmul.f32 %v3052, 0.70710677
        %v3405 = vmul.f32 %v3165, 0.70710677
        %v3406 = vmul.f32 %v3278, 0.70710677
        %v3407 = vmul.f32 %v2942, 0.70710677
        %v3408 = vmul.f32 %v3055, 0.70710677
        %v3409 = vmul.f32 %v3168, 0.70710677
        %v3410 = vmul.f32 %v3281, 0.70710677
        %v3411 = vmul.f32 %v3283, %v3283
        %v3412 = vmin.f32 16.0, %v3411
        %v3413 = vmul.f32 %v3412, 2.1237322e-06
        %v3414 = vadd.f32 %v3413, 0.00028619796
        %v3415 = vmul.f32 %v3412, %v3414
        %v3416 = vadd.f32 %v3415, 0.0036580483
        %v3417 = vmul.f32 %v3412, %v3416
        %v3418 = vadd.f32 %v3417, 0.05243302
        %v3419 = vmul.f32 %v3412, %v3418
        %v3420 = vadd.f32 %v3419, 0.18741608
        %v3421 = vmul.f32 %v3412, %v3420
        %v3422 = vadd.f32 %v3421, 1.1283791
        %v3423 = vmul.f32 %v3283, %v3422
        %v3424 = vmul.f32 %v3412, 3.8918573e-05
        %v3425 = vadd.f32 %v3424, 0.001143296
        %v3426 = vmul.f32 %v3412, %v3425
        %v3427 = vadd.f32 %v3426, 0.014752088
        %v3428 = vmul.f32 %v3412, %v3427
        %v3429 = vadd.f32 %v3428, 0.112945676
        %v3430 = vmul.f32 %v3412, %v3429
        %v3431 = vadd.f32 %v3430, 0.4994258
        %v3432 = vmul.f32 %v3412, %v3431
        %v3433 = vadd.f32 %v3432, 1.0
        %v3434 = vrcp.pop %v3433
        %v3435 = vmul.f32 %v3433, %v3434
        %v3436 = vsub.f32 1.0, %v3435
        %v3437 = vmul.f32 %v3434, %v3436
        %v3438 = vadd.f32 %v3434, %v3437
        %vm3439 = vweird.f32 %v3433
        %vm3440 = vweird.f32 %v3434
        %vm3441 = vmor %vm3439, %vm3440
        %v3442 = vsel %vm3441, %v3434, %v3438
        %v3443 = vand.u32 2147483647, %v3433
        %vm3444 = vcmp.eq.f32.partialorder %v3443, 8.507059e+37
        %v3445 = vand.u32 %v3433, 2147483648
        %v3446 = vor.u32 1.1754944e-38, %v3445
        %v3447 = vsel %vm3444, %v3446, %v3442
        %v3448 = vmul.f32 %v3423, %v3447
        %v3449 = vmin.f32 %v3448, 1.0
        %v3450 = vmax.f32 %v3449, -1.0
        %v3451 = vmul.f32 %v3284, %v3284
        %v3452 = vmin.f32 16.0, %v3451
        %v3453 = vmul.f32 %v3452, 2.1237322e-06
        %v3454 = vadd.f32 %v3453, 0.00028619796
        %v3455 = vmul.f32 %v3452, %v3454
        %v3456 = vadd.f32 %v3455, 0.0036580483
        %v3457 = vmul.f32 %v3452, %v3456
        %v3458 = vadd.f32 %v3457, 0.05243302
        %v3459 = vmul.f32 %v3452, %v3458
        %v3460 = vadd.f32 %v3459, 0.18741608
        %v3461 = vmul.f32 %v3452, %v3460
        %v3462 = vadd.f32 %v3461, 1.1283791
        %v3463 = vmul.f32 %v3284, %v3462
        %v3464 = vmul.f32 %v3452, 3.8918573e-05
        %v3465 = vadd.f32 %v3464, 0.001143296
        %v3466 = vmul.f32 %v3452, %v3465
        %v3467 = vadd.f32 %v3466, 0.014752088
        %v3468 = vmul.f32 %v3452, %v3467
        %v3469 = vadd.f32 %v3468, 0.112945676
        %v3470 = vmul.f32 %v3452, %v3469
        %v3471 = vadd.f32 %v3470, 0.4994258
        %v3472 = vmul.f32 %v3452, %v3471
        %v3473 = vadd.f32 %v3472, 1.0
        %v3474 = vrcp.pop %v3473
        %v3475 = vmul.f32 %v3473, %v3474
        %v3476 = vsub.f32 1.0, %v3475
        %v3477 = vmul.f32 %v3474, %v3476
        %v3478 = vadd.f32 %v3474, %v3477
        %vm3479 = vweird.f32 %v3473
        %vm3480 = vweird.f32 %v3474
        %vm3481 = vmor %vm3479, %vm3480
        %v3482 = vsel %vm3481, %v3474, %v3478
        %v3483 = vand.u32 2147483647, %v3473
        %vm3484 = vcmp.eq.f32.partialorder %v3483, 8.507059e+37
        %v3485 = vand.u32 %v3473, 2147483648
        %v3486 = vor.u32 1.1754944e-38, %v3485
        %v3487 = vsel %vm3484, %v3486, %v3482
        %v3488 = vmul.f32 %v3463, %v3487
        %v3489 = vmin.f32 %v3488, 1.0
        %v3490 = vmax.f32 %v3489, -1.0
        %v3491 = vmul.f32 %v3285, %v3285
        %v3492 = vmin.f32 16.0, %v3491
        %v3493 = vmul.f32 %v3492, 2.1237322e-06
        %v3494 = vadd.f32 %v3493, 0.00028619796
        %v3495 = vmul.f32 %v3492, %v3494
        %v3496 = vadd.f32 %v3495, 0.0036580483
        %v3497 = vmul.f32 %v3492, %v3496
        %v3498 = vadd.f32 %v3497, 0.05243302
        %v3499 = vmul.f32 %v3492, %v3498
        %v3500 = vadd.f32 %v3499, 0.18741608
        %v3501 = vmul.f32 %v3492, %v3500
        %v3502 = vadd.f32 %v3501, 1.1283791
        %v3503 = vmul.f32 %v3285, %v3502
        %v3504 = vmul.f32 %v3492, 3.8918573e-05
        %v3505 = vadd.f32 %v3504, 0.001143296
        %v3506 = vmul.f32 %v3492, %v3505
        %v3507 = vadd.f32 %v3506, 0.014752088
        %v3508 = vmul.f32 %v3492, %v3507
        %v3509 = vadd.f32 %v3508, 0.112945676
        %v3510 = vmul.f32 %v3492, %v3509
        %v3511 = vadd.f32 %v3510, 0.4994258
        %v3512 = vmul.f32 %v3492, %v3511
        %v3513 = vadd.f32 %v3512, 1.0
        %v3514 = vrcp.pop %v3513
        %v3515 = vmul.f32 %v3513, %v3514
        %v3516 = vsub.f32 1.0, %v3515
        %v3517 = vmul.f32 %v3514, %v3516
        %v3518 = vadd.f32 %v3514, %v3517
        %vm3519 = vweird.f32 %v3513
        %vm3520 = vweird.f32 %v3514
        %vm3521 = vmor %vm3519, %vm3520
        %v3522 = vsel %vm3521, %v3514, %v3518
        %v3523 = vand.u32 2147483647, %v3513
        %vm3524 = vcmp.eq.f32.partialorder %v3523, 8.507059e+37
        %v3525 = vand.u32 %v3513, 2147483648
        %v3526 = vor.u32 1.1754944e-38, %v3525
        %v3527 = vsel %vm3524, %v3526, %v3522
        %v3528 = vmul.f32 %v3503, %v3527
        %v3529 = vmin.f32 %v3528, 1.0
        %v3530 = vmax.f32 %v3529, -1.0
        %v3531 = vmul.f32 %v3286, %v3286
        %v3532 = vmin.f32 16.0, %v3531
        %v3533 = vmul.f32 %v3532, 2.1237322e-06
        %v3534 = vadd.f32 %v3533, 0.00028619796
        %v3535 = vmul.f32 %v3532, %v3534
        %v3536 = vadd.f32 %v3535, 0.0036580483
        %v3537 = vmul.f32 %v3532, %v3536
        %v3538 = vadd.f32 %v3537, 0.05243302
        %v3539 = vmul.f32 %v3532, %v3538
        %v3540 = vadd.f32 %v3539, 0.18741608
        %v3541 = vmul.f32 %v3532, %v3540
        %v3542 = vadd.f32 %v3541, 1.1283791
        %v3543 = vmul.f32 %v3286, %v3542
        %v3544 = vmul.f32 %v3532, 3.8918573e-05
        %v3545 = vadd.f32 %v3544, 0.001143296
        %v3546 = vmul.f32 %v3532, %v3545
        %v3547 = vadd.f32 %v3546, 0.014752088
        %v3548 = vmul.f32 %v3532, %v3547
        %v3549 = vadd.f32 %v3548, 0.112945676
        %v3550 = vmul.f32 %v3532, %v3549
        %v3551 = vadd.f32 %v3550, 0.4994258
        %v3552 = vmul.f32 %v3532, %v3551
        %v3553 = vadd.f32 %v3552, 1.0
        %v3554 = vrcp.pop %v3553
        %v3555 = vmul.f32 %v3553, %v3554
        %v3556 = vsub.f32 1.0, %v3555
        %v3557 = vmul.f32 %v3554, %v3556
        %v3558 = vadd.f32 %v3554, %v3557
        %vm3559 = vweird.f32 %v3553
        %vm3560 = vweird.f32 %v3554
        %vm3561 = vmor %vm3559, %vm3560
        %v3562 = vsel %vm3561, %v3554, %v3558
        %v3563 = vand.u32 2147483647, %v3553
        %vm3564 = vcmp.eq.f32.partialorder %v3563, 8.507059e+37
        %v3565 = vand.u32 %v3553, 2147483648
        %v3566 = vor.u32 1.1754944e-38, %v3565
        %v3567 = vsel %vm3564, %v3566, %v3562
        %v3568 = vmul.f32 %v3543, %v3567
        %v3569 = vmin.f32 %v3568, 1.0
        %v3570 = vmax.f32 %v3569, -1.0
        %v3571 = vmul.f32 %v3287, %v3287
        %v3572 = vmin.f32 16.0, %v3571
        %v3573 = vmul.f32 %v3572, 2.1237322e-06
        %v3574 = vadd.f32 %v3573, 0.00028619796
        %v3575 = vmul.f32 %v3572, %v3574
        %v3576 = vadd.f32 %v3575, 0.0036580483
        %v3577 = vmul.f32 %v3572, %v3576
        %v3578 = vadd.f32 %v3577, 0.05243302
        %v3579 = vmul.f32 %v3572, %v3578
        %v3580 = vadd.f32 %v3579, 0.18741608
        %v3581 = vmul.f32 %v3572, %v3580
        %v3582 = vadd.f32 %v3581, 1.1283791
        %v3583 = vmul.f32 %v3287, %v3582
        %v3584 = vmul.f32 %v3572, 3.8918573e-05
        %v3585 = vadd.f32 %v3584, 0.001143296
        %v3586 = vmul.f32 %v3572, %v3585
        %v3587 = vadd.f32 %v3586, 0.014752088
        %v3588 = vmul.f32 %v3572, %v3587
        %v3589 = vadd.f32 %v3588, 0.112945676
        %v3590 = vmul.f32 %v3572, %v3589
        %v3591 = vadd.f32 %v3590, 0.4994258
        %v3592 = vmul.f32 %v3572, %v3591
        %v3593 = vadd.f32 %v3592, 1.0
        %v3594 = vrcp.pop %v3593
        %v3595 = vmul.f32 %v3593, %v3594
        %v3596 = vsub.f32 1.0, %v3595
        %v3597 = vmul.f32 %v3594, %v3596
        %v3598 = vadd.f32 %v3594, %v3597
        %vm3599 = vweird.f32 %v3593
        %vm3600 = vweird.f32 %v3594
        %vm3601 = vmor %vm3599, %vm3600
        %v3602 = vsel %vm3601, %v3594, %v3598
        %v3603 = vand.u32 2147483647, %v3593
        %vm3604 = vcmp.eq.f32.partialorder %v3603, 8.507059e+37
        %v3605 = vand.u32 %v3593, 2147483648
        %v3606 = vor.u32 1.1754944e-38, %v3605
        %v3607 = vsel %vm3604, %v3606, %v3602
        %v3608 = vmul.f32 %v3583, %v3607
        %v3609 = vmin.f32 %v3608, 1.0
        %v3610 = vmax.f32 %v3609, -1.0
        %v3611 = vmul.f32 %v3288, %v3288
        %v3612 = vmin.f32 16.0, %v3611
        %v3613 = vmul.f32 %v3612, 2.1237322e-06
        %v3614 = vadd.f32 %v3613, 0.00028619796
        %v3615 = vmul.f32 %v3612, %v3614
        %v3616 = vadd.f32 %v3615, 0.0036580483
        %v3617 = vmul.f32 %v3612, %v3616
        %v3618 = vadd.f32 %v3617, 0.05243302
        %v3619 = vmul.f32 %v3612, %v3618
        %v3620 = vadd.f32 %v3619, 0.18741608
        %v3621 = vmul.f32 %v3612, %v3620
        %v3622 = vadd.f32 %v3621, 1.1283791
        %v3623 = vmul.f32 %v3288, %v3622
        %v3624 = vmul.f32 %v3612, 3.8918573e-05
        %v3625 = vadd.f32 %v3624, 0.001143296
        %v3626 = vmul.f32 %v3612, %v3625
        %v3627 = vadd.f32 %v3626, 0.014752088
        %v3628 = vmul.f32 %v3612, %v3627
        %v3629 = vadd.f32 %v3628, 0.112945676
        %v3630 = vmul.f32 %v3612, %v3629
        %v3631 = vadd.f32 %v3630, 0.4994258
        %v3632 = vmul.f32 %v3612, %v3631
        %v3633 = vadd.f32 %v3632, 1.0
        %v3634 = vrcp.pop %v3633
        %v3635 = vmul.f32 %v3633, %v3634
        %v3636 = vsub.f32 1.0, %v3635
        %v3637 = vmul.f32 %v3634, %v3636
        %v3638 = vadd.f32 %v3634, %v3637
        %vm3639 = vweird.f32 %v3633
        %vm3640 = vweird.f32 %v3634
        %vm3641 = vmor %vm3639, %vm3640
        %v3642 = vsel %vm3641, %v3634, %v3638
        %v3643 = vand.u32 2147483647, %v3633
        %vm3644 = vcmp.eq.f32.partialorder %v3643, 8.507059e+37
        %v3645 = vand.u32 %v3633, 2147483648
        %v3646 = vor.u32 1.1754944e-38, %v3645
        %v3647 = vsel %vm3644, %v3646, %v3642
        %v3648 = vmul.f32 %v3623, %v3647
        %v3649 = vmin.f32 %v3648, 1.0
        %v3650 = vmax.f32 %v3649, -1.0
        %v3651 = vmul.f32 %v3289, %v3289
        %v3652 = vmin.f32 16.0, %v3651
        %v3653 = vmul.f32 %v3652, 2.1237322e-06
        %v3654 = vadd.f32 %v3653, 0.00028619796
        %v3655 = vmul.f32 %v3652, %v3654
        %v3656 = vadd.f32 %v3655, 0.0036580483
        %v3657 = vmul.f32 %v3652, %v3656
        %v3658 = vadd.f32 %v3657, 0.05243302
        %v3659 = vmul.f32 %v3652, %v3658
        %v3660 = vadd.f32 %v3659, 0.18741608
        %v3661 = vmul.f32 %v3652, %v3660
        %v3662 = vadd.f32 %v3661, 1.1283791
        %v3663 = vmul.f32 %v3289, %v3662
        %v3664 = vmul.f32 %v3652, 3.8918573e-05
        %v3665 = vadd.f32 %v3664, 0.001143296
        %v3666 = vmul.f32 %v3652, %v3665
        %v3667 = vadd.f32 %v3666, 0.014752088
        %v3668 = vmul.f32 %v3652, %v3667
        %v3669 = vadd.f32 %v3668, 0.112945676
        %v3670 = vmul.f32 %v3652, %v3669
        %v3671 = vadd.f32 %v3670, 0.4994258
        %v3672 = vmul.f32 %v3652, %v3671
        %v3673 = vadd.f32 %v3672, 1.0
        %v3674 = vrcp.pop %v3673
        %v3675 = vmul.f32 %v3673, %v3674
        %v3676 = vsub.f32 1.0, %v3675
        %v3677 = vmul.f32 %v3674, %v3676
        %v3678 = vadd.f32 %v3674, %v3677
        %vm3679 = vweird.f32 %v3673
        %vm3680 = vweird.f32 %v3674
        %vm3681 = vmor %vm3679, %vm3680
        %v3682 = vsel %vm3681, %v3674, %v3678
        %v3683 = vand.u32 2147483647, %v3673
        %vm3684 = vcmp.eq.f32.partialorder %v3683, 8.507059e+37
        %v3685 = vand.u32 %v3673, 2147483648
        %v3686 = vor.u32 1.1754944e-38, %v3685
        %v3687 = vsel %vm3684, %v3686, %v3682
        %v3688 = vmul.f32 %v3663, %v3687
        %v3689 = vmin.f32 %v3688, 1.0
        %v3690 = vmax.f32 %v3689, -1.0
        %v3691 = vmul.f32 %v3290, %v3290
        %v3692 = vmin.f32 16.0, %v3691
        %v3693 = vmul.f32 %v3692, 2.1237322e-06
        %v3694 = vadd.f32 %v3693, 0.00028619796
        %v3695 = vmul.f32 %v3692, %v3694
        %v3696 = vadd.f32 %v3695, 0.0036580483
        %v3697 = vmul.f32 %v3692, %v3696
        %v3698 = vadd.f32 %v3697, 0.05243302
        %v3699 = vmul.f32 %v3692, %v3698
        %v3700 = vadd.f32 %v3699, 0.18741608
        %v3701 = vmul.f32 %v3692, %v3700
        %v3702 = vadd.f32 %v3701, 1.1283791
        %v3703 = vmul.f32 %v3290, %v3702
        %v3704 = vmul.f32 %v3692, 3.8918573e-05
        %v3705 = vadd.f32 %v3704, 0.001143296
        %v3706 = vmul.f32 %v3692, %v3705
        %v3707 = vadd.f32 %v3706, 0.014752088
        %v3708 = vmul.f32 %v3692, %v3707
        %v3709 = vadd.f32 %v3708, 0.112945676
        %v3710 = vmul.f32 %v3692, %v3709
        %v3711 = vadd.f32 %v3710, 0.4994258
        %v3712 = vmul.f32 %v3692, %v3711
        %v3713 = vadd.f32 %v3712, 1.0
        %v3714 = vrcp.pop %v3713
        %v3715 = vmul.f32 %v3713, %v3714
        %v3716 = vsub.f32 1.0, %v3715
        %v3717 = vmul.f32 %v3714, %v3716
        %v3718 = vadd.f32 %v3714, %v3717
        %vm3719 = vweird.f32 %v3713
        %vm3720 = vweird.f32 %v3714
        %vm3721 = vmor %vm3719, %vm3720
        %v3722 = vsel %vm3721, %v3714, %v3718
        %v3723 = vand.u32 2147483647, %v3713
        %vm3724 = vcmp.eq.f32.partialorder %v3723, 8.507059e+37
        %v3725 = vand.u32 %v3713, 2147483648
        %v3726 = vor.u32 1.1754944e-38, %v3725
        %v3727 = vsel %vm3724, %v3726, %v3722
        %v3728 = vmul.f32 %v3703, %v3727
        %v3729 = vmin.f32 %v3728, 1.0
        %v3730 = vmax.f32 %v3729, -1.0
        %v3731 = vmul.f32 %v3291, %v3291
        %v3732 = vmin.f32 16.0, %v3731
        %v3733 = vmul.f32 %v3732, 2.1237322e-06
        %v3734 = vadd.f32 %v3733, 0.00028619796
        %v3735 = vmul.f32 %v3732, %v3734
        %v3736 = vadd.f32 %v3735, 0.0036580483
        %v3737 = vmul.f32 %v3732, %v3736
        %v3738 = vadd.f32 %v3737, 0.05243302
        %v3739 = vmul.f32 %v3732, %v3738
        %v3740 = vadd.f32 %v3739, 0.18741608
        %v3741 = vmul.f32 %v3732, %v3740
        %v3742 = vadd.f32 %v3741, 1.1283791
        %v3743 = vmul.f32 %v3291, %v3742
        %v3744 = vmul.f32 %v3732, 3.8918573e-05
        %v3745 = vadd.f32 %v3744, 0.001143296
        %v3746 = vmul.f32 %v3732, %v3745
        %v3747 = vadd.f32 %v3746, 0.014752088
        %v3748 = vmul.f32 %v3732, %v3747
        %v3749 = vadd.f32 %v3748, 0.112945676
        %v3750 = vmul.f32 %v3732, %v3749
        %v3751 = vadd.f32 %v3750, 0.4994258
        %v3752 = vmul.f32 %v3732, %v3751
        %v3753 = vadd.f32 %v3752, 1.0
        %v3754 = vrcp.pop %v3753
        %v3755 = vmul.f32 %v3753, %v3754
        %v3756 = vsub.f32 1.0, %v3755
        %v3757 = vmul.f32 %v3754, %v3756
        %v3758 = vadd.f32 %v3754, %v3757
        %vm3759 = vweird.f32 %v3753
        %vm3760 = vweird.f32 %v3754
        %vm3761 = vmor %vm3759, %vm3760
        %v3762 = vsel %vm3761, %v3754, %v3758
        %v3763 = vand.u32 2147483647, %v3753
        %vm3764 = vcmp.eq.f32.partialorder %v3763, 8.507059e+37
        %v3765 = vand.u32 %v3753, 2147483648
        %v3766 = vor.u32 1.1754944e-38, %v3765
        %v3767 = vsel %vm3764, %v3766, %v3762
        %v3768 = vmul.f32 %v3743, %v3767
        %v3769 = vmin.f32 %v3768, 1.0
        %v3770 = vmax.f32 %v3769, -1.0
        %v3771 = vmul.f32 %v3292, %v3292
        %v3772 = vmin.f32 16.0, %v3771
        %v3773 = vmul.f32 %v3772, 2.1237322e-06
        %v3774 = vadd.f32 %v3773, 0.00028619796
        %v3775 = vmul.f32 %v3772, %v3774
        %v3776 = vadd.f32 %v3775, 0.0036580483
        %v3777 = vmul.f32 %v3772, %v3776
        %v3778 = vadd.f32 %v3777, 0.05243302
        %v3779 = vmul.f32 %v3772, %v3778
        %v3780 = vadd.f32 %v3779, 0.18741608
        %v3781 = vmul.f32 %v3772, %v3780
        %v3782 = vadd.f32 %v3781, 1.1283791
        %v3783 = vmul.f32 %v3292, %v3782
        %v3784 = vmul.f32 %v3772, 3.8918573e-05
        %v3785 = vadd.f32 %v3784, 0.001143296
        %v3786 = vmul.f32 %v3772, %v3785
        %v3787 = vadd.f32 %v3786, 0.014752088
        %v3788 = vmul.f32 %v3772, %v3787
        %v3789 = vadd.f32 %v3788, 0.112945676
        %v3790 = vmul.f32 %v3772, %v3789
        %v3791 = vadd.f32 %v3790, 0.4994258
        %v3792 = vmul.f32 %v3772, %v3791
        %v3793 = vadd.f32 %v3792, 1.0
        %v3794 = vrcp.pop %v3793
        %v3795 = vmul.f32 %v3793, %v3794
        %v3796 = vsub.f32 1.0, %v3795
        %v3797 = vmul.f32 %v3794, %v3796
        %v3798 = vadd.f32 %v3794, %v3797
        %vm3799 = vweird.f32 %v3793
        %vm3800 = vweird.f32 %v3794
        %vm3801 = vmor %vm3799, %vm3800
        %v3802 = vsel %vm3801, %v3794, %v3798
        %v3803 = vand.u32 2147483647, %v3793
        %vm3804 = vcmp.eq.f32.partialorder %v3803, 8.507059e+37
        %v3805 = vand.u32 %v3793, 2147483648
        %v3806 = vor.u32 1.1754944e-38, %v3805
        %v3807 = vsel %vm3804, %v3806, %v3802
        %v3808 = vmul.f32 %v3783, %v3807
        %v3809 = vmin.f32 %v3808, 1.0
        %v3810 = vmax.f32 %v3809, -1.0
        %v3811 = vmul.f32 %v3293, %v3293
        %v3812 = vmin.f32 16.0, %v3811
        %v3813 = vmul.f32 %v3812, 2.1237322e-06
        %v3814 = vadd.f32 %v3813, 0.00028619796
        %v3815 = vmul.f32 %v3812, %v3814
        %v3816 = vadd.f32 %v3815, 0.0036580483
        %v3817 = vmul.f32 %v3812, %v3816
        %v3818 = vadd.f32 %v3817, 0.05243302
        %v3819 = vmul.f32 %v3812, %v3818
        %v3820 = vadd.f32 %v3819, 0.18741608
        %v3821 = vmul.f32 %v3812, %v3820
        %v3822 = vadd.f32 %v3821, 1.1283791
        %v3823 = vmul.f32 %v3293, %v3822
        %v3824 = vmul.f32 %v3812, 3.8918573e-05
        %v3825 = vadd.f32 %v3824, 0.001143296
        %v3826 = vmul.f32 %v3812, %v3825
        %v3827 = vadd.f32 %v3826, 0.014752088
        %v3828 = vmul.f32 %v3812, %v3827
        %v3829 = vadd.f32 %v3828, 0.112945676
        %v3830 = vmul.f32 %v3812, %v3829
        %v3831 = vadd.f32 %v3830, 0.4994258
        %v3832 = vmul.f32 %v3812, %v3831
        %v3833 = vadd.f32 %v3832, 1.0
        %v3834 = vrcp.pop %v3833
        %v3835 = vmul.f32 %v3833, %v3834
        %v3836 = vsub.f32 1.0, %v3835
        %v3837 = vmul.f32 %v3834, %v3836
        %v3838 = vadd.f32 %v3834, %v3837
        %vm3839 = vweird.f32 %v3833
        %vm3840 = vweird.f32 %v3834
        %vm3841 = vmor %vm3839, %vm3840
        %v3842 = vsel %vm3841, %v3834, %v3838
        %v3843 = vand.u32 2147483647, %v3833
        %vm3844 = vcmp.eq.f32.partialorder %v3843, 8.507059e+37
        %v3845 = vand.u32 %v3833, 2147483648
        %v3846 = vor.u32 1.1754944e-38, %v3845
        %v3847 = vsel %vm3844, %v3846, %v3842
        %v3848 = vmul.f32 %v3823, %v3847
        %v3849 = vmin.f32 %v3848, 1.0
        %v3850 = vmax.f32 %v3849, -1.0
        %v3851 = vmul.f32 %v3294, %v3294
        %v3852 = vmin.f32 16.0, %v3851
        %v3853 = vmul.f32 %v3852, 2.1237322e-06
        %v3854 = vadd.f32 %v3853, 0.00028619796
        %v3855 = vmul.f32 %v3852, %v3854
        %v3856 = vadd.f32 %v3855, 0.0036580483
        %v3857 = vmul.f32 %v3852, %v3856
        %v3858 = vadd.f32 %v3857, 0.05243302
        %v3859 = vmul.f32 %v3852, %v3858
        %v3860 = vadd.f32 %v3859, 0.18741608
        %v3861 = vmul.f32 %v3852, %v3860
        %v3862 = vadd.f32 %v3861, 1.1283791
        %v3863 = vmul.f32 %v3294, %v3862
        %v3864 = vmul.f32 %v3852, 3.8918573e-05
        %v3865 = vadd.f32 %v3864, 0.001143296
        %v3866 = vmul.f32 %v3852, %v3865
        %v3867 = vadd.f32 %v3866, 0.014752088
        %v3868 = vmul.f32 %v3852, %v3867
        %v3869 = vadd.f32 %v3868, 0.112945676
        %v3870 = vmul.f32 %v3852, %v3869
        %v3871 = vadd.f32 %v3870, 0.4994258
        %v3872 = vmul.f32 %v3852, %v3871
        %v3873 = vadd.f32 %v3872, 1.0
        %v3874 = vrcp.pop %v3873
        %v3875 = vmul.f32 %v3873, %v3874
        %v3876 = vsub.f32 1.0, %v3875
        %v3877 = vmul.f32 %v3874, %v3876
        %v3878 = vadd.f32 %v3874, %v3877
        %vm3879 = vweird.f32 %v3873
        %vm3880 = vweird.f32 %v3874
        %vm3881 = vmor %vm3879, %vm3880
        %v3882 = vsel %vm3881, %v3874, %v3878
        %v3883 = vand.u32 2147483647, %v3873
        %vm3884 = vcmp.eq.f32.partialorder %v3883, 8.507059e+37
        %v3885 = vand.u32 %v3873, 2147483648
        %v3886 = vor.u32 1.1754944e-38, %v3885
        %v3887 = vsel %vm3884, %v3886, %v3882
        %v3888 = vmul.f32 %v3863, %v3887
        %v3889 = vmin.f32 %v3888, 1.0
        %v3890 = vmax.f32 %v3889, -1.0
        %v3891 = vmul.f32 %v3295, %v3295
        %v3892 = vmin.f32 16.0, %v3891
        %v3893 = vmul.f32 %v3892, 2.1237322e-06
        %v3894 = vadd.f32 %v3893, 0.00028619796
        %v3895 = vmul.f32 %v3892, %v3894
        %v3896 = vadd.f32 %v3895, 0.0036580483
        %v3897 = vmul.f32 %v3892, %v3896
        %v3898 = vadd.f32 %v3897, 0.05243302
        %v3899 = vmul.f32 %v3892, %v3898
        %v3900 = vadd.f32 %v3899, 0.18741608
        %v3901 = vmul.f32 %v3892, %v3900
        %v3902 = vadd.f32 %v3901, 1.1283791
        %v3903 = vmul.f32 %v3295, %v3902
        %v3904 = vmul.f32 %v3892, 3.8918573e-05
        %v3905 = vadd.f32 %v3904, 0.001143296
        %v3906 = vmul.f32 %v3892, %v3905
        %v3907 = vadd.f32 %v3906, 0.014752088
        %v3908 = vmul.f32 %v3892, %v3907
        %v3909 = vadd.f32 %v3908, 0.112945676
        %v3910 = vmul.f32 %v3892, %v3909
        %v3911 = vadd.f32 %v3910, 0.4994258
        %v3912 = vmul.f32 %v3892, %v3911
        %v3913 = vadd.f32 %v3912, 1.0
        %v3914 = vrcp.pop %v3913
        %v3915 = vmul.f32 %v3913, %v3914
        %v3916 = vsub.f32 1.0, %v3915
        %v3917 = vmul.f32 %v3914, %v3916
        %v3918 = vadd.f32 %v3914, %v3917
        %vm3919 = vweird.f32 %v3913
        %vm3920 = vweird.f32 %v3914
        %vm3921 = vmor %vm3919, %vm3920
        %v3922 = vsel %vm3921, %v3914, %v3918
        %v3923 = vand.u32 2147483647, %v3913
        %vm3924 = vcmp.eq.f32.partialorder %v3923, 8.507059e+37
        %v3925 = vand.u32 %v3913, 2147483648
        %v3926 = vor.u32 1.1754944e-38, %v3925
        %v3927 = vsel %vm3924, %v3926, %v3922
        %v3928 = vmul.f32 %v3903, %v3927
        %v3929 = vmin.f32 %v3928, 1.0
        %v3930 = vmax.f32 %v3929, -1.0
        %v3931 = vmul.f32 %v3296, %v3296
        %v3932 = vmin.f32 16.0, %v3931
        %v3933 = vmul.f32 %v3932, 2.1237322e-06
        %v3934 = vadd.f32 %v3933, 0.00028619796
        %v3935 = vmul.f32 %v3932, %v3934
        %v3936 = vadd.f32 %v3935, 0.0036580483
        %v3937 = vmul.f32 %v3932, %v3936
        %v3938 = vadd.f32 %v3937, 0.05243302
        %v3939 = vmul.f32 %v3932, %v3938
        %v3940 = vadd.f32 %v3939, 0.18741608
        %v3941 = vmul.f32 %v3932, %v3940
        %v3942 = vadd.f32 %v3941, 1.1283791
        %v3943 = vmul.f32 %v3296, %v3942
        %v3944 = vmul.f32 %v3932, 3.8918573e-05
        %v3945 = vadd.f32 %v3944, 0.001143296
        %v3946 = vmul.f32 %v3932, %v3945
        %v3947 = vadd.f32 %v3946, 0.014752088
        %v3948 = vmul.f32 %v3932, %v3947
        %v3949 = vadd.f32 %v3948, 0.112945676
        %v3950 = vmul.f32 %v3932, %v3949
        %v3951 = vadd.f32 %v3950, 0.4994258
        %v3952 = vmul.f32 %v3932, %v3951
        %v3953 = vadd.f32 %v3952, 1.0
        %v3954 = vrcp.pop %v3953
        %v3955 = vmul.f32 %v3953, %v3954
        %v3956 = vsub.f32 1.0, %v3955
        %v3957 = vmul.f32 %v3954, %v3956
        %v3958 = vadd.f32 %v3954, %v3957
        %vm3959 = vweird.f32 %v3953
        %vm3960 = vweird.f32 %v3954
        %vm3961 = vmor %vm3959, %vm3960
        %v3962 = vsel %vm3961, %v3954, %v3958
        %v3963 = vand.u32 2147483647, %v3953
        %vm3964 = vcmp.eq.f32.partialorder %v3963, 8.507059e+37
        %v3965 = vand.u32 %v3953, 2147483648
        %v3966 = vor.u32 1.1754944e-38, %v3965
        %v3967 = vsel %vm3964, %v3966, %v3962
        %v3968 = vmul.f32 %v3943, %v3967
        %v3969 = vmin.f32 %v3968, 1.0
        %v3970 = vmax.f32 %v3969, -1.0
        %v3971 = vmul.f32 %v3297, %v3297
        %v3972 = vmin.f32 16.0, %v3971
        %v3973 = vmul.f32 %v3972, 2.1237322e-06
        %v3974 = vadd.f32 %v3973, 0.00028619796
        %v3975 = vmul.f32 %v3972, %v3974
        %v3976 = vadd.f32 %v3975, 0.0036580483
        %v3977 = vmul.f32 %v3972, %v3976
        %v3978 = vadd.f32 %v3977, 0.05243302
        %v3979 = vmul.f32 %v3972, %v3978
        %v3980 = vadd.f32 %v3979, 0.18741608
        %v3981 = vmul.f32 %v3972, %v3980
        %v3982 = vadd.f32 %v3981, 1.1283791
        %v3983 = vmul.f32 %v3297, %v3982
        %v3984 = vmul.f32 %v3972, 3.8918573e-05
        %v3985 = vadd.f32 %v3984, 0.001143296
        %v3986 = vmul.f32 %v3972, %v3985
        %v3987 = vadd.f32 %v3986, 0.014752088
        %v3988 = vmul.f32 %v3972, %v3987
        %v3989 = vadd.f32 %v3988, 0.112945676
        %v3990 = vmul.f32 %v3972, %v3989
        %v3991 = vadd.f32 %v3990, 0.4994258
        %v3992 = vmul.f32 %v3972, %v3991
        %v3993 = vadd.f32 %v3992, 1.0
        %v3994 = vrcp.pop %v3993
        %v3995 = vmul.f32 %v3993, %v3994
        %v3996 = vsub.f32 1.0, %v3995
        %v3997 = vmul.f32 %v3994, %v3996
        %v3998 = vadd.f32 %v3994, %v3997
        %vm3999 = vweird.f32 %v3993
        %vm4000 = vweird.f32 %v3994
        %vm4001 = vmor %vm3999, %vm4000
        %v4002 = vsel %vm4001, %v3994, %v3998
        %v4003 = vand.u32 2147483647, %v3993
        %vm4004 = vcmp.eq.f32.partialorder %v4003, 8.507059e+37
        %v4005 = vand.u32 %v3993, 2147483648
        %v4006 = vor.u32 1.1754944e-38, %v4005
        %v4007 = vsel %vm4004, %v4006, %v4002
        %v4008 = vmul.f32 %v3983, %v4007
        %v4009 = vmin.f32 %v4008, 1.0
        %v4010 = vmax.f32 %v4009, -1.0
        %v4011 = vmul.f32 %v3298, %v3298
        %v4012 = vmin.f32 16.0, %v4011
        %v4013 = vmul.f32 %v4012, 2.1237322e-06
        %v4014 = vadd.f32 %v4013, 0.00028619796
        %v4015 = vmul.f32 %v4012, %v4014
        %v4016 = vadd.f32 %v4015, 0.0036580483
        %v4017 = vmul.f32 %v4012, %v4016
        %v4018 = vadd.f32 %v4017, 0.05243302
        %v4019 = vmul.f32 %v4012, %v4018
        %v4020 = vadd.f32 %v4019, 0.18741608
        %v4021 = vmul.f32 %v4012, %v4020
        %v4022 = vadd.f32 %v4021, 1.1283791
        %v4023 = vmul.f32 %v3298, %v4022
        %v4024 = vmul.f32 %v4012, 3.8918573e-05
        %v4025 = vadd.f32 %v4024, 0.001143296
        %v4026 = vmul.f32 %v4012, %v4025
        %v4027 = vadd.f32 %v4026, 0.014752088
        %v4028 = vmul.f32 %v4012, %v4027
        %v4029 = vadd.f32 %v4028, 0.112945676
        %v4030 = vmul.f32 %v4012, %v4029
        %v4031 = vadd.f32 %v4030, 0.4994258
        %v4032 = vmul.f32 %v4012, %v4031
        %v4033 = vadd.f32 %v4032, 1.0
        %v4034 = vrcp.pop %v4033
        %v4035 = vmul.f32 %v4033, %v4034
        %v4036 = vsub.f32 1.0, %v4035
        %v4037 = vmul.f32 %v4034, %v4036
        %v4038 = vadd.f32 %v4034, %v4037
        %vm4039 = vweird.f32 %v4033
        %vm4040 = vweird.f32 %v4034
        %vm4041 = vmor %vm4039, %vm4040
        %v4042 = vsel %vm4041, %v4034, %v4038
        %v4043 = vand.u32 2147483647, %v4033
        %vm4044 = vcmp.eq.f32.partialorder %v4043, 8.507059e+37
        %v4045 = vand.u32 %v4033, 2147483648
        %v4046 = vor.u32 1.1754944e-38, %v4045
        %v4047 = vsel %vm4044, %v4046, %v4042
        %v4048 = vmul.f32 %v4023, %v4047
        %v4049 = vmin.f32 %v4048, 1.0
        %v4050 = vmax.f32 %v4049, -1.0
        %v4051 = vmul.f32 %v3299, %v3299
        %v4052 = vmin.f32 16.0, %v4051
        %v4053 = vmul.f32 %v4052, 2.1237322e-06
        %v4054 = vadd.f32 %v4053, 0.00028619796
        %v4055 = vmul.f32 %v4052, %v4054
        %v4056 = vadd.f32 %v4055, 0.0036580483
        %v4057 = vmul.f32 %v4052, %v4056
        %v4058 = vadd.f32 %v4057, 0.05243302
        %v4059 = vmul.f32 %v4052, %v4058
        %v4060 = vadd.f32 %v4059, 0.18741608
        %v4061 = vmul.f32 %v4052, %v4060
        %v4062 = vadd.f32 %v4061, 1.1283791
        %v4063 = vmul.f32 %v3299, %v4062
        %v4064 = vmul.f32 %v4052, 3.8918573e-05
        %v4065 = vadd.f32 %v4064, 0.001143296
        %v4066 = vmul.f32 %v4052, %v4065
        %v4067 = vadd.f32 %v4066, 0.014752088
        %v4068 = vmul.f32 %v4052, %v4067
        %v4069 = vadd.f32 %v4068, 0.112945676
        %v4070 = vmul.f32 %v4052, %v4069
        %v4071 = vadd.f32 %v4070, 0.4994258
        %v4072 = vmul.f32 %v4052, %v4071
        %v4073 = vadd.f32 %v4072, 1.0
        %v4074 = vrcp.pop %v4073
        %v4075 = vmul.f32 %v4073, %v4074
        %v4076 = vsub.f32 1.0, %v4075
        %v4077 = vmul.f32 %v4074, %v4076
        %v4078 = vadd.f32 %v4074, %v4077
        %vm4079 = vweird.f32 %v4073
        %vm4080 = vweird.f32 %v4074
        %vm4081 = vmor %vm4079, %vm4080
        %v4082 = vsel %vm4081, %v4074, %v4078
        %v4083 = vand.u32 2147483647, %v4073
        %vm4084 = vcmp.eq.f32.partialorder %v4083, 8.507059e+37
        %v4085 = vand.u32 %v4073, 2147483648
        %v4086 = vor.u32 1.1754944e-38, %v4085
        %v4087 = vsel %vm4084, %v4086, %v4082
        %v4088 = vmul.f32 %v4063, %v4087
        %v4089 = vmin.f32 %v4088, 1.0
        %v4090 = vmax.f32 %v4089, -1.0
        %v4091 = vmul.f32 %v3300, %v3300
        %v4092 = vmin.f32 16.0, %v4091
        %v4093 = vmul.f32 %v4092, 2.1237322e-06
        %v4094 = vadd.f32 %v4093, 0.00028619796
        %v4095 = vmul.f32 %v4092, %v4094
        %v4096 = vadd.f32 %v4095, 0.0036580483
        %v4097 = vmul.f32 %v4092, %v4096
        %v4098 = vadd.f32 %v4097, 0.05243302
        %v4099 = vmul.f32 %v4092, %v4098
        %v4100 = vadd.f32 %v4099, 0.18741608
        %v4101 = vmul.f32 %v4092, %v4100
        %v4102 = vadd.f32 %v4101, 1.1283791
        %v4103 = vmul.f32 %v3300, %v4102
        %v4104 = vmul.f32 %v4092, 3.8918573e-05
        %v4105 = vadd.f32 %v4104, 0.001143296
        %v4106 = vmul.f32 %v4092, %v4105
        %v4107 = vadd.f32 %v4106, 0.014752088
        %v4108 = vmul.f32 %v4092, %v4107
        %v4109 = vadd.f32 %v4108, 0.112945676
        %v4110 = vmul.f32 %v4092, %v4109
        %v4111 = vadd.f32 %v4110, 0.4994258
        %v4112 = vmul.f32 %v4092, %v4111
        %v4113 = vadd.f32 %v4112, 1.0
        %v4114 = vrcp.pop %v4113
        %v4115 = vmul.f32 %v4113, %v4114
        %v4116 = vsub.f32 1.0, %v4115
        %v4117 = vmul.f32 %v4114, %v4116
        %v4118 = vadd.f32 %v4114, %v4117
        %vm4119 = vweird.f32 %v4113
        %vm4120 = vweird.f32 %v4114
        %vm4121 = vmor %vm4119, %vm4120
        %v4122 = vsel %vm4121, %v4114, %v4118
        %v4123 = vand.u32 2147483647, %v4113
        %vm4124 = vcmp.eq.f32.partialorder %v4123, 8.507059e+37
        %v4125 = vand.u32 %v4113, 2147483648
        %v4126 = vor.u32 1.1754944e-38, %v4125
        %v4127 = vsel %vm4124, %v4126, %v4122
        %v4128 = vmul.f32 %v4103, %v4127
        %v4129 = vmin.f32 %v4128, 1.0
        %v4130 = vmax.f32 %v4129, -1.0
        %v4131 = vmul.f32 %v3301, %v3301
        %v4132 = vmin.f32 16.0, %v4131
        %v4133 = vmul.f32 %v4132, 2.1237322e-06
        %v4134 = vadd.f32 %v4133, 0.00028619796
        %v4135 = vmul.f32 %v4132, %v4134
        %v4136 = vadd.f32 %v4135, 0.0036580483
        %v4137 = vmul.f32 %v4132, %v4136
        %v4138 = vadd.f32 %v4137, 0.05243302
        %v4139 = vmul.f32 %v4132, %v4138
        %v4140 = vadd.f32 %v4139, 0.18741608
        %v4141 = vmul.f32 %v4132, %v4140
        %v4142 = vadd.f32 %v4141, 1.1283791
        %v4143 = vmul.f32 %v3301, %v4142
        %v4144 = vmul.f32 %v4132, 3.8918573e-05
        %v4145 = vadd.f32 %v4144, 0.001143296
        %v4146 = vmul.f32 %v4132, %v4145
        %v4147 = vadd.f32 %v4146, 0.014752088
        %v4148 = vmul.f32 %v4132, %v4147
        %v4149 = vadd.f32 %v4148, 0.112945676
        %v4150 = vmul.f32 %v4132, %v4149
        %v4151 = vadd.f32 %v4150, 0.4994258
        %v4152 = vmul.f32 %v4132, %v4151
        %v4153 = vadd.f32 %v4152, 1.0
        %v4154 = vrcp.pop %v4153
        %v4155 = vmul.f32 %v4153, %v4154
        %v4156 = vsub.f32 1.0, %v4155
        %v4157 = vmul.f32 %v4154, %v4156
        %v4158 = vadd.f32 %v4154, %v4157
        %vm4159 = vweird.f32 %v4153
        %vm4160 = vweird.f32 %v4154
        %vm4161 = vmor %vm4159, %vm4160
        %v4162 = vsel %vm4161, %v4154, %v4158
        %v4163 = vand.u32 2147483647, %v4153
        %vm4164 = vcmp.eq.f32.partialorder %v4163, 8.507059e+37
        %v4165 = vand.u32 %v4153, 2147483648
        %v4166 = vor.u32 1.1754944e-38, %v4165
        %v4167 = vsel %vm4164, %v4166, %v4162
        %v4168 = vmul.f32 %v4143, %v4167
        %v4169 = vmin.f32 %v4168, 1.0
        %v4170 = vmax.f32 %v4169, -1.0
        %v4171 = vmul.f32 %v3302, %v3302
        %v4172 = vmin.f32 16.0, %v4171
        %v4173 = vmul.f32 %v4172, 2.1237322e-06
        %v4174 = vadd.f32 %v4173, 0.00028619796
        %v4175 = vmul.f32 %v4172, %v4174
        %v4176 = vadd.f32 %v4175, 0.0036580483
        %v4177 = vmul.f32 %v4172, %v4176
        %v4178 = vadd.f32 %v4177, 0.05243302
        %v4179 = vmul.f32 %v4172, %v4178
        %v4180 = vadd.f32 %v4179, 0.18741608
        %v4181 = vmul.f32 %v4172, %v4180
        %v4182 = vadd.f32 %v4181, 1.1283791
        %v4183 = vmul.f32 %v3302, %v4182
        %v4184 = vmul.f32 %v4172, 3.8918573e-05
        %v4185 = vadd.f32 %v4184, 0.001143296
        %v4186 = vmul.f32 %v4172, %v4185
        %v4187 = vadd.f32 %v4186, 0.014752088
        %v4188 = vmul.f32 %v4172, %v4187
        %v4189 = vadd.f32 %v4188, 0.112945676
        %v4190 = vmul.f32 %v4172, %v4189
        %v4191 = vadd.f32 %v4190, 0.4994258
        %v4192 = vmul.f32 %v4172, %v4191
        %v4193 = vadd.f32 %v4192, 1.0
        %v4194 = vrcp.pop %v4193
        %v4195 = vmul.f32 %v4193, %v4194
        %v4196 = vsub.f32 1.0, %v4195
        %v4197 = vmul.f32 %v4194, %v4196
        %v4198 = vadd.f32 %v4194, %v4197
        %vm4199 = vweird.f32 %v4193
        %vm4200 = vweird.f32 %v4194
        %vm4201 = vmor %vm4199, %vm4200
        %v4202 = vsel %vm4201, %v4194, %v4198
        %v4203 = vand.u32 2147483647, %v4193
        %vm4204 = vcmp.eq.f32.partialorder %v4203, 8.507059e+37
        %v4205 = vand.u32 %v4193, 2147483648
        %v4206 = vor.u32 1.1754944e-38, %v4205
        %v4207 = vsel %vm4204, %v4206, %v4202
        %v4208 = vmul.f32 %v4183, %v4207
        %v4209 = vmin.f32 %v4208, 1.0
        %v4210 = vmax.f32 %v4209, -1.0
        %v4211 = vmul.f32 %v3303, %v3303
        %v4212 = vmin.f32 16.0, %v4211
        %v4213 = vmul.f32 %v4212, 2.1237322e-06
        %v4214 = vadd.f32 %v4213, 0.00028619796
        %v4215 = vmul.f32 %v4212, %v4214
        %v4216 = vadd.f32 %v4215, 0.0036580483
        %v4217 = vmul.f32 %v4212, %v4216
        %v4218 = vadd.f32 %v4217, 0.05243302
        %v4219 = vmul.f32 %v4212, %v4218
        %v4220 = vadd.f32 %v4219, 0.18741608
        %v4221 = vmul.f32 %v4212, %v4220
        %v4222 = vadd.f32 %v4221, 1.1283791
        %v4223 = vmul.f32 %v3303, %v4222
        %v4224 = vmul.f32 %v4212, 3.8918573e-05
        %v4225 = vadd.f32 %v4224, 0.001143296
        %v4226 = vmul.f32 %v4212, %v4225
        %v4227 = vadd.f32 %v4226, 0.014752088
        %v4228 = vmul.f32 %v4212, %v4227
        %v4229 = vadd.f32 %v4228, 0.112945676
        %v4230 = vmul.f32 %v4212, %v4229
        %v4231 = vadd.f32 %v4230, 0.4994258
        %v4232 = vmul.f32 %v4212, %v4231
        %v4233 = vadd.f32 %v4232, 1.0
        %v4234 = vrcp.pop %v4233
        %v4235 = vmul.f32 %v4233, %v4234
        %v4236 = vsub.f32 1.0, %v4235
        %v4237 = vmul.f32 %v4234, %v4236
        %v4238 = vadd.f32 %v4234, %v4237
        %vm4239 = vweird.f32 %v4233
        %vm4240 = vweird.f32 %v4234
        %vm4241 = vmor %vm4239, %vm4240
        %v4242 = vsel %vm4241, %v4234, %v4238
        %v4243 = vand.u32 2147483647, %v4233
        %vm4244 = vcmp.eq.f32.partialorder %v4243, 8.507059e+37
        %v4245 = vand.u32 %v4233, 2147483648
        %v4246 = vor.u32 1.1754944e-38, %v4245
        %v4247 = vsel %vm4244, %v4246, %v4242
        %v4248 = vmul.f32 %v4223, %v4247
        %v4249 = vmin.f32 %v4248, 1.0
        %v4250 = vmax.f32 %v4249, -1.0
        %v4251 = vmul.f32 %v3304, %v3304
        %v4252 = vmin.f32 16.0, %v4251
        %v4253 = vmul.f32 %v4252, 2.1237322e-06
        %v4254 = vadd.f32 %v4253, 0.00028619796
        %v4255 = vmul.f32 %v4252, %v4254
        %v4256 = vadd.f32 %v4255, 0.0036580483
        %v4257 = vmul.f32 %v4252, %v4256
        %v4258 = vadd.f32 %v4257, 0.05243302
        %v4259 = vmul.f32 %v4252, %v4258
        %v4260 = vadd.f32 %v4259, 0.18741608
        %v4261 = vmul.f32 %v4252, %v4260
        %v4262 = vadd.f32 %v4261, 1.1283791
        %v4263 = vmul.f32 %v3304, %v4262
        %v4264 = vmul.f32 %v4252, 3.8918573e-05
        %v4265 = vadd.f32 %v4264, 0.001143296
        %v4266 = vmul.f32 %v4252, %v4265
        %v4267 = vadd.f32 %v4266, 0.014752088
        %v4268 = vmul.f32 %v4252, %v4267
        %v4269 = vadd.f32 %v4268, 0.112945676
        %v4270 = vmul.f32 %v4252, %v4269
        %v4271 = vadd.f32 %v4270, 0.4994258
        %v4272 = vmul.f32 %v4252, %v4271
        %v4273 = vadd.f32 %v4272, 1.0
        %v4274 = vrcp.pop %v4273
        %v4275 = vmul.f32 %v4273, %v4274
        %v4276 = vsub.f32 1.0, %v4275
        %v4277 = vmul.f32 %v4274, %v4276
        %v4278 = vadd.f32 %v4274, %v4277
        %vm4279 = vweird.f32 %v4273
        %vm4280 = vweird.f32 %v4274
        %vm4281 = vmor %vm4279, %vm4280
        %v4282 = vsel %vm4281, %v4274, %v4278
        %v4283 = vand.u32 2147483647, %v4273
        %vm4284 = vcmp.eq.f32.partialorder %v4283, 8.507059e+37
        %v4285 = vand.u32 %v4273, 2147483648
        %v4286 = vor.u32 1.1754944e-38, %v4285
        %v4287 = vsel %vm4284, %v4286, %v4282
        %v4288 = vmul.f32 %v4263, %v4287
        %v4289 = vmin.f32 %v4288, 1.0
        %v4290 = vmax.f32 %v4289, -1.0
        %v4291 = vmul.f32 %v3305, %v3305
        %v4292 = vmin.f32 16.0, %v4291
        %v4293 = vmul.f32 %v4292, 2.1237322e-06
        %v4294 = vadd.f32 %v4293, 0.00028619796
        %v4295 = vmul.f32 %v4292, %v4294
        %v4296 = vadd.f32 %v4295, 0.0036580483
        %v4297 = vmul.f32 %v4292, %v4296
        %v4298 = vadd.f32 %v4297, 0.05243302
        %v4299 = vmul.f32 %v4292, %v4298
        %v4300 = vadd.f32 %v4299, 0.18741608
        %v4301 = vmul.f32 %v4292, %v4300
        %v4302 = vadd.f32 %v4301, 1.1283791
        %v4303 = vmul.f32 %v3305, %v4302
        %v4304 = vmul.f32 %v4292, 3.8918573e-05
        %v4305 = vadd.f32 %v4304, 0.001143296
        %v4306 = vmul.f32 %v4292, %v4305
        %v4307 = vadd.f32 %v4306, 0.014752088
        %v4308 = vmul.f32 %v4292, %v4307
        %v4309 = vadd.f32 %v4308, 0.112945676
        %v4310 = vmul.f32 %v4292, %v4309
        %v4311 = vadd.f32 %v4310, 0.4994258
        %v4312 = vmul.f32 %v4292, %v4311
        %v4313 = vadd.f32 %v4312, 1.0
        %v4314 = vrcp.pop %v4313
        %v4315 = vmul.f32 %v4313, %v4314
        %v4316 = vsub.f32 1.0, %v4315
        %v4317 = vmul.f32 %v4314, %v4316
        %v4318 = vadd.f32 %v4314, %v4317
        %vm4319 = vweird.f32 %v4313
        %vm4320 = vweird.f32 %v4314
        %vm4321 = vmor %vm4319, %vm4320
        %v4322 = vsel %vm4321, %v4314, %v4318
        %v4323 = vand.u32 2147483647, %v4313
        %vm4324 = vcmp.eq.f32.partialorder %v4323, 8.507059e+37
        %v4325 = vand.u32 %v4313, 2147483648
        %v4326 = vor.u32 1.1754944e-38, %v4325
        %v4327 = vsel %vm4324, %v4326, %v4322
        %v4328 = vmul.f32 %v4303, %v4327
        %v4329 = vmin.f32 %v4328, 1.0
        %v4330 = vmax.f32 %v4329, -1.0
        %v4331 = vmul.f32 %v3306, %v3306
        %v4332 = vmin.f32 16.0, %v4331
        %v4333 = vmul.f32 %v4332, 2.1237322e-06
        %v4334 = vadd.f32 %v4333, 0.00028619796
        %v4335 = vmul.f32 %v4332, %v4334
        %v4336 = vadd.f32 %v4335, 0.0036580483
        %v4337 = vmul.f32 %v4332, %v4336
        %v4338 = vadd.f32 %v4337, 0.05243302
        %v4339 = vmul.f32 %v4332, %v4338
        %v4340 = vadd.f32 %v4339, 0.18741608
        %v4341 = vmul.f32 %v4332, %v4340
        %v4342 = vadd.f32 %v4341, 1.1283791
        %v4343 = vmul.f32 %v3306, %v4342
        %v4344 = vmul.f32 %v4332, 3.8918573e-05
        %v4345 = vadd.f32 %v4344, 0.001143296
        %v4346 = vmul.f32 %v4332, %v4345
        %v4347 = vadd.f32 %v4346, 0.014752088
        %v4348 = vmul.f32 %v4332, %v4347
        %v4349 = vadd.f32 %v4348, 0.112945676
        %v4350 = vmul.f32 %v4332, %v4349
        %v4351 = vadd.f32 %v4350, 0.4994258
        %v4352 = vmul.f32 %v4332, %v4351
        %v4353 = vadd.f32 %v4352, 1.0
        %v4354 = vrcp.pop %v4353
        %v4355 = vmul.f32 %v4353, %v4354
        %v4356 = vsub.f32 1.0, %v4355
        %v4357 = vmul.f32 %v4354, %v4356
        %v4358 = vadd.f32 %v4354, %v4357
        %vm4359 = vweird.f32 %v4353
        %vm4360 = vweird.f32 %v4354
        %vm4361 = vmor %vm4359, %vm4360
        %v4362 = vsel %vm4361, %v4354, %v4358
        %v4363 = vand.u32 2147483647, %v4353
        %vm4364 = vcmp.eq.f32.partialorder %v4363, 8.507059e+37
        %v4365 = vand.u32 %v4353, 2147483648
        %v4366 = vor.u32 1.1754944e-38, %v4365
        %v4367 = vsel %vm4364, %v4366, %v4362
        %v4368 = vmul.f32 %v4343, %v4367
        %v4369 = vmin.f32 %v4368, 1.0
        %v4370 = vmax.f32 %v4369, -1.0
        %v4371 = vmul.f32 %v3307, %v3307
        %v4372 = vmin.f32 16.0, %v4371
        %v4373 = vmul.f32 %v4372, 2.1237322e-06
        %v4374 = vadd.f32 %v4373, 0.00028619796
        %v4375 = vmul.f32 %v4372, %v4374
        %v4376 = vadd.f32 %v4375, 0.0036580483
        %v4377 = vmul.f32 %v4372, %v4376
        %v4378 = vadd.f32 %v4377, 0.05243302
        %v4379 = vmul.f32 %v4372, %v4378
        %v4380 = vadd.f32 %v4379, 0.18741608
        %v4381 = vmul.f32 %v4372, %v4380
        %v4382 = vadd.f32 %v4381, 1.1283791
        %v4383 = vmul.f32 %v3307, %v4382
        %v4384 = vmul.f32 %v4372, 3.8918573e-05
        %v4385 = vadd.f32 %v4384, 0.001143296
        %v4386 = vmul.f32 %v4372, %v4385
        %v4387 = vadd.f32 %v4386, 0.014752088
        %v4388 = vmul.f32 %v4372, %v4387
        %v4389 = vadd.f32 %v4388, 0.112945676
        %v4390 = vmul.f32 %v4372, %v4389
        %v4391 = vadd.f32 %v4390, 0.4994258
        %v4392 = vmul.f32 %v4372, %v4391
        %v4393 = vadd.f32 %v4392, 1.0
        %v4394 = vrcp.pop %v4393
        %v4395 = vmul.f32 %v4393, %v4394
        %v4396 = vsub.f32 1.0, %v4395
        %v4397 = vmul.f32 %v4394, %v4396
        %v4398 = vadd.f32 %v4394, %v4397
        %vm4399 = vweird.f32 %v4393
        %vm4400 = vweird.f32 %v4394
        %vm4401 = vmor %vm4399, %vm4400
        %v4402 = vsel %vm4401, %v4394, %v4398
        %v4403 = vand.u32 2147483647, %v4393
        %vm4404 = vcmp.eq.f32.partialorder %v4403, 8.507059e+37
        %v4405 = vand.u32 %v4393, 2147483648
        %v4406 = vor.u32 1.1754944e-38, %v4405
        %v4407 = vsel %vm4404, %v4406, %v4402
        %v4408 = vmul.f32 %v4383, %v4407
        %v4409 = vmin.f32 %v4408, 1.0
        %v4410 = vmax.f32 %v4409, -1.0
        %v4411 = vmul.f32 %v3308, %v3308
        %v4412 = vmin.f32 16.0, %v4411
        %v4413 = vmul.f32 %v4412, 2.1237322e-06
        %v4414 = vadd.f32 %v4413, 0.00028619796
        %v4415 = vmul.f32 %v4412, %v4414
        %v4416 = vadd.f32 %v4415, 0.0036580483
        %v4417 = vmul.f32 %v4412, %v4416
        %v4418 = vadd.f32 %v4417, 0.05243302
        %v4419 = vmul.f32 %v4412, %v4418
        %v4420 = vadd.f32 %v4419, 0.18741608
        %v4421 = vmul.f32 %v4412, %v4420
        %v4422 = vadd.f32 %v4421, 1.1283791
        %v4423 = vmul.f32 %v3308, %v4422
        %v4424 = vmul.f32 %v4412, 3.8918573e-05
        %v4425 = vadd.f32 %v4424, 0.001143296
        %v4426 = vmul.f32 %v4412, %v4425
        %v4427 = vadd.f32 %v4426, 0.014752088
        %v4428 = vmul.f32 %v4412, %v4427
        %v4429 = vadd.f32 %v4428, 0.112945676
        %v4430 = vmul.f32 %v4412, %v4429
        %v4431 = vadd.f32 %v4430, 0.4994258
        %v4432 = vmul.f32 %v4412, %v4431
        %v4433 = vadd.f32 %v4432, 1.0
        %v4434 = vrcp.pop %v4433
        %v4435 = vmul.f32 %v4433, %v4434
        %v4436 = vsub.f32 1.0, %v4435
        %v4437 = vmul.f32 %v4434, %v4436
        %v4438 = vadd.f32 %v4434, %v4437
        %vm4439 = vweird.f32 %v4433
        %vm4440 = vweird.f32 %v4434
        %vm4441 = vmor %vm4439, %vm4440
        %v4442 = vsel %vm4441, %v4434, %v4438
        %v4443 = vand.u32 2147483647, %v4433
        %vm4444 = vcmp.eq.f32.partialorder %v4443, 8.507059e+37
        %v4445 = vand.u32 %v4433, 2147483648
        %v4446 = vor.u32 1.1754944e-38, %v4445
        %v4447 = vsel %vm4444, %v4446, %v4442
        %v4448 = vmul.f32 %v4423, %v4447
        %v4449 = vmin.f32 %v4448, 1.0
        %v4450 = vmax.f32 %v4449, -1.0
        %v4451 = vmul.f32 %v3309, %v3309
        %v4452 = vmin.f32 16.0, %v4451
        %v4453 = vmul.f32 %v4452, 2.1237322e-06
        %v4454 = vadd.f32 %v4453, 0.00028619796
        %v4455 = vmul.f32 %v4452, %v4454
        %v4456 = vadd.f32 %v4455, 0.0036580483
        %v4457 = vmul.f32 %v4452, %v4456
        %v4458 = vadd.f32 %v4457, 0.05243302
        %v4459 = vmul.f32 %v4452, %v4458
        %v4460 = vadd.f32 %v4459, 0.18741608
        %v4461 = vmul.f32 %v4452, %v4460
        %v4462 = vadd.f32 %v4461, 1.1283791
        %v4463 = vmul.f32 %v3309, %v4462
        %v4464 = vmul.f32 %v4452, 3.8918573e-05
        %v4465 = vadd.f32 %v4464, 0.001143296
        %v4466 = vmul.f32 %v4452, %v4465
        %v4467 = vadd.f32 %v4466, 0.014752088
        %v4468 = vmul.f32 %v4452, %v4467
        %v4469 = vadd.f32 %v4468, 0.112945676
        %v4470 = vmul.f32 %v4452, %v4469
        %v4471 = vadd.f32 %v4470, 0.4994258
        %v4472 = vmul.f32 %v4452, %v4471
        %v4473 = vadd.f32 %v4472, 1.0
        %v4474 = vrcp.pop %v4473
        %v4475 = vmul.f32 %v4473, %v4474
        %v4476 = vsub.f32 1.0, %v4475
        %v4477 = vmul.f32 %v4474, %v4476
        %v4478 = vadd.f32 %v4474, %v4477
        %vm4479 = vweird.f32 %v4473
        %vm4480 = vweird.f32 %v4474
        %vm4481 = vmor %vm4479, %vm4480
        %v4482 = vsel %vm4481, %v4474, %v4478
        %v4483 = vand.u32 2147483647, %v4473
        %vm4484 = vcmp.eq.f32.partialorder %v4483, 8.507059e+37
        %v4485 = vand.u32 %v4473, 2147483648
        %v4486 = vor.u32 1.1754944e-38, %v4485
        %v4487 = vsel %vm4484, %v4486, %v4482
        %v4488 = vmul.f32 %v4463, %v4487
        %v4489 = vmin.f32 %v4488, 1.0
        %v4490 = vmax.f32 %v4489, -1.0
        %v4491 = vmul.f32 %v3310, %v3310
        %v4492 = vmin.f32 16.0, %v4491
        %v4493 = vmul.f32 %v4492, 2.1237322e-06
        %v4494 = vadd.f32 %v4493, 0.00028619796
        %v4495 = vmul.f32 %v4492, %v4494
        %v4496 = vadd.f32 %v4495, 0.0036580483
        %v4497 = vmul.f32 %v4492, %v4496
        %v4498 = vadd.f32 %v4497, 0.05243302
        %v4499 = vmul.f32 %v4492, %v4498
        %v4500 = vadd.f32 %v4499, 0.18741608
        %v4501 = vmul.f32 %v4492, %v4500
        %v4502 = vadd.f32 %v4501, 1.1283791
        %v4503 = vmul.f32 %v3310, %v4502
        %v4504 = vmul.f32 %v4492, 3.8918573e-05
        %v4505 = vadd.f32 %v4504, 0.001143296
        %v4506 = vmul.f32 %v4492, %v4505
        %v4507 = vadd.f32 %v4506, 0.014752088
        %v4508 = vmul.f32 %v4492, %v4507
        %v4509 = vadd.f32 %v4508, 0.112945676
        %v4510 = vmul.f32 %v4492, %v4509
        %v4511 = vadd.f32 %v4510, 0.4994258
        %v4512 = vmul.f32 %v4492, %v4511
        %v4513 = vadd.f32 %v4512, 1.0
        %v4514 = vrcp.pop %v4513
        %v4515 = vmul.f32 %v4513, %v4514
        %v4516 = vsub.f32 1.0, %v4515
        %v4517 = vmul.f32 %v4514, %v4516
        %v4518 = vadd.f32 %v4514, %v4517
        %vm4519 = vweird.f32 %v4513
        %vm4520 = vweird.f32 %v4514
        %vm4521 = vmor %vm4519, %vm4520
        %v4522 = vsel %vm4521, %v4514, %v4518
        %v4523 = vand.u32 2147483647, %v4513
        %vm4524 = vcmp.eq.f32.partialorder %v4523, 8.507059e+37
        %v4525 = vand.u32 %v4513, 2147483648
        %v4526 = vor.u32 1.1754944e-38, %v4525
        %v4527 = vsel %vm4524, %v4526, %v4522
        %v4528 = vmul.f32 %v4503, %v4527
        %v4529 = vmin.f32 %v4528, 1.0
        %v4530 = vmax.f32 %v4529, -1.0
        %v4531 = vmul.f32 %v3311, %v3311
        %v4532 = vmin.f32 16.0, %v4531
        %v4533 = vmul.f32 %v4532, 2.1237322e-06
        %v4534 = vadd.f32 %v4533, 0.00028619796
        %v4535 = vmul.f32 %v4532, %v4534
        %v4536 = vadd.f32 %v4535, 0.0036580483
        %v4537 = vmul.f32 %v4532, %v4536
        %v4538 = vadd.f32 %v4537, 0.05243302
        %v4539 = vmul.f32 %v4532, %v4538
        %v4540 = vadd.f32 %v4539, 0.18741608
        %v4541 = vmul.f32 %v4532, %v4540
        %v4542 = vadd.f32 %v4541, 1.1283791
        %v4543 = vmul.f32 %v3311, %v4542
        %v4544 = vmul.f32 %v4532, 3.8918573e-05
        %v4545 = vadd.f32 %v4544, 0.001143296
        %v4546 = vmul.f32 %v4532, %v4545
        %v4547 = vadd.f32 %v4546, 0.014752088
        %v4548 = vmul.f32 %v4532, %v4547
        %v4549 = vadd.f32 %v4548, 0.112945676
        %v4550 = vmul.f32 %v4532, %v4549
        %v4551 = vadd.f32 %v4550, 0.4994258
        %v4552 = vmul.f32 %v4532, %v4551
        %v4553 = vadd.f32 %v4552, 1.0
        %v4554 = vrcp.pop %v4553
        %v4555 = vmul.f32 %v4553, %v4554
        %v4556 = vsub.f32 1.0, %v4555
        %v4557 = vmul.f32 %v4554, %v4556
        %v4558 = vadd.f32 %v4554, %v4557
        %vm4559 = vweird.f32 %v4553
        %vm4560 = vweird.f32 %v4554
        %vm4561 = vmor %vm4559, %vm4560
        %v4562 = vsel %vm4561, %v4554, %v4558
        %v4563 = vand.u32 2147483647, %v4553
        %vm4564 = vcmp.eq.f32.partialorder %v4563, 8.507059e+37
        %v4565 = vand.u32 %v4553, 2147483648
        %v4566 = vor.u32 1.1754944e-38, %v4565
        %v4567 = vsel %vm4564, %v4566, %v4562
        %v4568 = vmul.f32 %v4543, %v4567
        %v4569 = vmin.f32 %v4568, 1.0
        %v4570 = vmax.f32 %v4569, -1.0
        %v4571 = vmul.f32 %v3312, %v3312
        %v4572 = vmin.f32 16.0, %v4571
        %v4573 = vmul.f32 %v4572, 2.1237322e-06
        %v4574 = vadd.f32 %v4573, 0.00028619796
        %v4575 = vmul.f32 %v4572, %v4574
        %v4576 = vadd.f32 %v4575, 0.0036580483
        %v4577 = vmul.f32 %v4572, %v4576
        %v4578 = vadd.f32 %v4577, 0.05243302
        %v4579 = vmul.f32 %v4572, %v4578
        %v4580 = vadd.f32 %v4579, 0.18741608
        %v4581 = vmul.f32 %v4572, %v4580
        %v4582 = vadd.f32 %v4581, 1.1283791
        %v4583 = vmul.f32 %v3312, %v4582
        %v4584 = vmul.f32 %v4572, 3.8918573e-05
        %v4585 = vadd.f32 %v4584, 0.001143296
        %v4586 = vmul.f32 %v4572, %v4585
        %v4587 = vadd.f32 %v4586, 0.014752088
        %v4588 = vmul.f32 %v4572, %v4587
        %v4589 = vadd.f32 %v4588, 0.112945676
        %v4590 = vmul.f32 %v4572, %v4589
        %v4591 = vadd.f32 %v4590, 0.4994258
        %v4592 = vmul.f32 %v4572, %v4591
        %v4593 = vadd.f32 %v4592, 1.0
        %v4594 = vrcp.pop %v4593
        %v4595 = vmul.f32 %v4593, %v4594
        %v4596 = vsub.f32 1.0, %v4595
        %v4597 = vmul.f32 %v4594, %v4596
        %v4598 = vadd.f32 %v4594, %v4597
        %vm4599 = vweird.f32 %v4593
        %vm4600 = vweird.f32 %v4594
        %vm4601 = vmor %vm4599, %vm4600
        %v4602 = vsel %vm4601, %v4594, %v4598
        %v4603 = vand.u32 2147483647, %v4593
        %vm4604 = vcmp.eq.f32.partialorder %v4603, 8.507059e+37
        %v4605 = vand.u32 %v4593, 2147483648
        %v4606 = vor.u32 1.1754944e-38, %v4605
        %v4607 = vsel %vm4604, %v4606, %v4602
        %v4608 = vmul.f32 %v4583, %v4607
        %v4609 = vmin.f32 %v4608, 1.0
        %v4610 = vmax.f32 %v4609, -1.0
        %v4611 = vmul.f32 %v3313, %v3313
        %v4612 = vmin.f32 16.0, %v4611
        %v4613 = vmul.f32 %v4612, 2.1237322e-06
        %v4614 = vadd.f32 %v4613, 0.00028619796
        %v4615 = vmul.f32 %v4612, %v4614
        %v4616 = vadd.f32 %v4615, 0.0036580483
        %v4617 = vmul.f32 %v4612, %v4616
        %v4618 = vadd.f32 %v4617, 0.05243302
        %v4619 = vmul.f32 %v4612, %v4618
        %v4620 = vadd.f32 %v4619, 0.18741608
        %v4621 = vmul.f32 %v4612, %v4620
        %v4622 = vadd.f32 %v4621, 1.1283791
        %v4623 = vmul.f32 %v3313, %v4622
        %v4624 = vmul.f32 %v4612, 3.8918573e-05
        %v4625 = vadd.f32 %v4624, 0.001143296
        %v4626 = vmul.f32 %v4612, %v4625
        %v4627 = vadd.f32 %v4626, 0.014752088
        %v4628 = vmul.f32 %v4612, %v4627
        %v4629 = vadd.f32 %v4628, 0.112945676
        %v4630 = vmul.f32 %v4612, %v4629
        %v4631 = vadd.f32 %v4630, 0.4994258
        %v4632 = vmul.f32 %v4612, %v4631
        %v4633 = vadd.f32 %v4632, 1.0
        %v4634 = vrcp.pop %v4633
        %v4635 = vmul.f32 %v4633, %v4634
        %v4636 = vsub.f32 1.0, %v4635
        %v4637 = vmul.f32 %v4634, %v4636
        %v4638 = vadd.f32 %v4634, %v4637
        %vm4639 = vweird.f32 %v4633
        %vm4640 = vweird.f32 %v4634
        %vm4641 = vmor %vm4639, %vm4640
        %v4642 = vsel %vm4641, %v4634, %v4638
        %v4643 = vand.u32 2147483647, %v4633
        %vm4644 = vcmp.eq.f32.partialorder %v4643, 8.507059e+37
        %v4645 = vand.u32 %v4633, 2147483648
        %v4646 = vor.u32 1.1754944e-38, %v4645
        %v4647 = vsel %vm4644, %v4646, %v4642
        %v4648 = vmul.f32 %v4623, %v4647
        %v4649 = vmin.f32 %v4648, 1.0
        %v4650 = vmax.f32 %v4649, -1.0
        %v4651 = vmul.f32 %v3314, %v3314
        %v4652 = vmin.f32 16.0, %v4651
        %v4653 = vmul.f32 %v4652, 2.1237322e-06
        %v4654 = vadd.f32 %v4653, 0.00028619796
        %v4655 = vmul.f32 %v4652, %v4654
        %v4656 = vadd.f32 %v4655, 0.0036580483
        %v4657 = vmul.f32 %v4652, %v4656
        %v4658 = vadd.f32 %v4657, 0.05243302
        %v4659 = vmul.f32 %v4652, %v4658
        %v4660 = vadd.f32 %v4659, 0.18741608
        %v4661 = vmul.f32 %v4652, %v4660
        %v4662 = vadd.f32 %v4661, 1.1283791
        %v4663 = vmul.f32 %v3314, %v4662
        %v4664 = vmul.f32 %v4652, 3.8918573e-05
        %v4665 = vadd.f32 %v4664, 0.001143296
        %v4666 = vmul.f32 %v4652, %v4665
        %v4667 = vadd.f32 %v4666, 0.014752088
        %v4668 = vmul.f32 %v4652, %v4667
        %v4669 = vadd.f32 %v4668, 0.112945676
        %v4670 = vmul.f32 %v4652, %v4669
        %v4671 = vadd.f32 %v4670, 0.4994258
        %v4672 = vmul.f32 %v4652, %v4671
        %v4673 = vadd.f32 %v4672, 1.0
        %v4674 = vrcp.pop %v4673
        %v4675 = vmul.f32 %v4673, %v4674
        %v4676 = vsub.f32 1.0, %v4675
        %v4677 = vmul.f32 %v4674, %v4676
        %v4678 = vadd.f32 %v4674, %v4677
        %vm4679 = vweird.f32 %v4673
        %vm4680 = vweird.f32 %v4674
        %vm4681 = vmor %vm4679, %vm4680
        %v4682 = vsel %vm4681, %v4674, %v4678
        %v4683 = vand.u32 2147483647, %v4673
        %vm4684 = vcmp.eq.f32.partialorder %v4683, 8.507059e+37
        %v4685 = vand.u32 %v4673, 2147483648
        %v4686 = vor.u32 1.1754944e-38, %v4685
        %v4687 = vsel %vm4684, %v4686, %v4682
        %v4688 = vmul.f32 %v4663, %v4687
        %v4689 = vmin.f32 %v4688, 1.0
        %v4690 = vmax.f32 %v4689, -1.0
        %v4691 = vmul.f32 %v3315, %v3315
        %v4692 = vmin.f32 16.0, %v4691
        %v4693 = vmul.f32 %v4692, 2.1237322e-06
        %v4694 = vadd.f32 %v4693, 0.00028619796
        %v4695 = vmul.f32 %v4692, %v4694
        %v4696 = vadd.f32 %v4695, 0.0036580483
        %v4697 = vmul.f32 %v4692, %v4696
        %v4698 = vadd.f32 %v4697, 0.05243302
        %v4699 = vmul.f32 %v4692, %v4698
        %v4700 = vadd.f32 %v4699, 0.18741608
        %v4701 = vmul.f32 %v4692, %v4700
        %v4702 = vadd.f32 %v4701, 1.1283791
        %v4703 = vmul.f32 %v3315, %v4702
        %v4704 = vmul.f32 %v4692, 3.8918573e-05
        %v4705 = vadd.f32 %v4704, 0.001143296
        %v4706 = vmul.f32 %v4692, %v4705
        %v4707 = vadd.f32 %v4706, 0.014752088
        %v4708 = vmul.f32 %v4692, %v4707
        %v4709 = vadd.f32 %v4708, 0.112945676
        %v4710 = vmul.f32 %v4692, %v4709
        %v4711 = vadd.f32 %v4710, 0.4994258
        %v4712 = vmul.f32 %v4692, %v4711
        %v4713 = vadd.f32 %v4712, 1.0
        %v4714 = vrcp.pop %v4713
        %v4715 = vmul.f32 %v4713, %v4714
        %v4716 = vsub.f32 1.0, %v4715
        %v4717 = vmul.f32 %v4714, %v4716
        %v4718 = vadd.f32 %v4714, %v4717
        %vm4719 = vweird.f32 %v4713
        %vm4720 = vweird.f32 %v4714
        %vm4721 = vmor %vm4719, %vm4720
        %v4722 = vsel %vm4721, %v4714, %v4718
        %v4723 = vand.u32 2147483647, %v4713
        %vm4724 = vcmp.eq.f32.partialorder %v4723, 8.507059e+37
        %v4725 = vand.u32 %v4713, 2147483648
        %v4726 = vor.u32 1.1754944e-38, %v4725
        %v4727 = vsel %vm4724, %v4726, %v4722
        %v4728 = vmul.f32 %v4703, %v4727
        %v4729 = vmin.f32 %v4728, 1.0
        %v4730 = vmax.f32 %v4729, -1.0
        %v4731 = vmul.f32 %v3316, %v3316
        %v4732 = vmin.f32 16.0, %v4731
        %v4733 = vmul.f32 %v4732, 2.1237322e-06
        %v4734 = vadd.f32 %v4733, 0.00028619796
        %v4735 = vmul.f32 %v4732, %v4734
        %v4736 = vadd.f32 %v4735, 0.0036580483
        %v4737 = vmul.f32 %v4732, %v4736
        %v4738 = vadd.f32 %v4737, 0.05243302
        %v4739 = vmul.f32 %v4732, %v4738
        %v4740 = vadd.f32 %v4739, 0.18741608
        %v4741 = vmul.f32 %v4732, %v4740
        %v4742 = vadd.f32 %v4741, 1.1283791
        %v4743 = vmul.f32 %v3316, %v4742
        %v4744 = vmul.f32 %v4732, 3.8918573e-05
        %v4745 = vadd.f32 %v4744, 0.001143296
        %v4746 = vmul.f32 %v4732, %v4745
        %v4747 = vadd.f32 %v4746, 0.014752088
        %v4748 = vmul.f32 %v4732, %v4747
        %v4749 = vadd.f32 %v4748, 0.112945676
        %v4750 = vmul.f32 %v4732, %v4749
        %v4751 = vadd.f32 %v4750, 0.4994258
        %v4752 = vmul.f32 %v4732, %v4751
        %v4753 = vadd.f32 %v4752, 1.0
        %v4754 = vrcp.pop %v4753
        %v4755 = vmul.f32 %v4753, %v4754
        %v4756 = vsub.f32 1.0, %v4755
        %v4757 = vmul.f32 %v4754, %v4756
        %v4758 = vadd.f32 %v4754, %v4757
        %vm4759 = vweird.f32 %v4753
        %vm4760 = vweird.f32 %v4754
        %vm4761 = vmor %vm4759, %vm4760
        %v4762 = vsel %vm4761, %v4754, %v4758
        %v4763 = vand.u32 2147483647, %v4753
        %vm4764 = vcmp.eq.f32.partialorder %v4763, 8.507059e+37
        %v4765 = vand.u32 %v4753, 2147483648
        %v4766 = vor.u32 1.1754944e-38, %v4765
        %v4767 = vsel %vm4764, %v4766, %v4762
        %v4768 = vmul.f32 %v4743, %v4767
        %v4769 = vmin.f32 %v4768, 1.0
        %v4770 = vmax.f32 %v4769, -1.0
        %v4771 = vmul.f32 %v3317, %v3317
        %v4772 = vmin.f32 16.0, %v4771
        %v4773 = vmul.f32 %v4772, 2.1237322e-06
        %v4774 = vadd.f32 %v4773, 0.00028619796
        %v4775 = vmul.f32 %v4772, %v4774
        %v4776 = vadd.f32 %v4775, 0.0036580483
        %v4777 = vmul.f32 %v4772, %v4776
        %v4778 = vadd.f32 %v4777, 0.05243302
        %v4779 = vmul.f32 %v4772, %v4778
        %v4780 = vadd.f32 %v4779, 0.18741608
        %v4781 = vmul.f32 %v4772, %v4780
        %v4782 = vadd.f32 %v4781, 1.1283791
        %v4783 = vmul.f32 %v3317, %v4782
        %v4784 = vmul.f32 %v4772, 3.8918573e-05
        %v4785 = vadd.f32 %v4784, 0.001143296
        %v4786 = vmul.f32 %v4772, %v4785
        %v4787 = vadd.f32 %v4786, 0.014752088
        %v4788 = vmul.f32 %v4772, %v4787
        %v4789 = vadd.f32 %v4788, 0.112945676
        %v4790 = vmul.f32 %v4772, %v4789
        %v4791 = vadd.f32 %v4790, 0.4994258
        %v4792 = vmul.f32 %v4772, %v4791
        %v4793 = vadd.f32 %v4792, 1.0
        %v4794 = vrcp.pop %v4793
        %v4795 = vmul.f32 %v4793, %v4794
        %v4796 = vsub.f32 1.0, %v4795
        %v4797 = vmul.f32 %v4794, %v4796
        %v4798 = vadd.f32 %v4794, %v4797
        %vm4799 = vweird.f32 %v4793
        %vm4800 = vweird.f32 %v4794
        %vm4801 = vmor %vm4799, %vm4800
        %v4802 = vsel %vm4801, %v4794, %v4798
        %v4803 = vand.u32 2147483647, %v4793
        %vm4804 = vcmp.eq.f32.partialorder %v4803, 8.507059e+37
        %v4805 = vand.u32 %v4793, 2147483648
        %v4806 = vor.u32 1.1754944e-38, %v4805
        %v4807 = vsel %vm4804, %v4806, %v4802
        %v4808 = vmul.f32 %v4783, %v4807
        %v4809 = vmin.f32 %v4808, 1.0
        %v4810 = vmax.f32 %v4809, -1.0
        %v4811 = vmul.f32 %v3318, %v3318
        %v4812 = vmin.f32 16.0, %v4811
        %v4813 = vmul.f32 %v4812, 2.1237322e-06
        %v4814 = vadd.f32 %v4813, 0.00028619796
        %v4815 = vmul.f32 %v4812, %v4814
        %v4816 = vadd.f32 %v4815, 0.0036580483
        %v4817 = vmul.f32 %v4812, %v4816
        %v4818 = vadd.f32 %v4817, 0.05243302
        %v4819 = vmul.f32 %v4812, %v4818
        %v4820 = vadd.f32 %v4819, 0.18741608
        %v4821 = vmul.f32 %v4812, %v4820
        %v4822 = vadd.f32 %v4821, 1.1283791
        %v4823 = vmul.f32 %v3318, %v4822
        %v4824 = vmul.f32 %v4812, 3.8918573e-05
        %v4825 = vadd.f32 %v4824, 0.001143296
        %v4826 = vmul.f32 %v4812, %v4825
        %v4827 = vadd.f32 %v4826, 0.014752088
        %v4828 = vmul.f32 %v4812, %v4827
        %v4829 = vadd.f32 %v4828, 0.112945676
        %v4830 = vmul.f32 %v4812, %v4829
        %v4831 = vadd.f32 %v4830, 0.4994258
        %v4832 = vmul.f32 %v4812, %v4831
        %v4833 = vadd.f32 %v4832, 1.0
        %v4834 = vrcp.pop %v4833
        %v4835 = vmul.f32 %v4833, %v4834
        %v4836 = vsub.f32 1.0, %v4835
        %v4837 = vmul.f32 %v4834, %v4836
        %v4838 = vadd.f32 %v4834, %v4837
        %vm4839 = vweird.f32 %v4833
        %vm4840 = vweird.f32 %v4834
        %vm4841 = vmor %vm4839, %vm4840
        %v4842 = vsel %vm4841, %v4834, %v4838
        %v4843 = vand.u32 2147483647, %v4833
        %vm4844 = vcmp.eq.f32.partialorder %v4843, 8.507059e+37
        %v4845 = vand.u32 %v4833, 2147483648
        %v4846 = vor.u32 1.1754944e-38, %v4845
        %v4847 = vsel %vm4844, %v4846, %v4842
        %v4848 = vmul.f32 %v4823, %v4847
        %v4849 = vmin.f32 %v4848, 1.0
        %v4850 = vmax.f32 %v4849, -1.0
        %v4851 = vmul.f32 %v3319, %v3319
        %v4852 = vmin.f32 16.0, %v4851
        %v4853 = vmul.f32 %v4852, 2.1237322e-06
        %v4854 = vadd.f32 %v4853, 0.00028619796
        %v4855 = vmul.f32 %v4852, %v4854
        %v4856 = vadd.f32 %v4855, 0.0036580483
        %v4857 = vmul.f32 %v4852, %v4856
        %v4858 = vadd.f32 %v4857, 0.05243302
        %v4859 = vmul.f32 %v4852, %v4858
        %v4860 = vadd.f32 %v4859, 0.18741608
        %v4861 = vmul.f32 %v4852, %v4860
        %v4862 = vadd.f32 %v4861, 1.1283791
        %v4863 = vmul.f32 %v3319, %v4862
        %v4864 = vmul.f32 %v4852, 3.8918573e-05
        %v4865 = vadd.f32 %v4864, 0.001143296
        %v4866 = vmul.f32 %v4852, %v4865
        %v4867 = vadd.f32 %v4866, 0.014752088
        %v4868 = vmul.f32 %v4852, %v4867
        %v4869 = vadd.f32 %v4868, 0.112945676
        %v4870 = vmul.f32 %v4852, %v4869
        %v4871 = vadd.f32 %v4870, 0.4994258
        %v4872 = vmul.f32 %v4852, %v4871
        %v4873 = vadd.f32 %v4872, 1.0
        %v4874 = vrcp.pop %v4873
        %v4875 = vmul.f32 %v4873, %v4874
        %v4876 = vsub.f32 1.0, %v4875
        %v4877 = vmul.f32 %v4874, %v4876
        %v4878 = vadd.f32 %v4874, %v4877
        %vm4879 = vweird.f32 %v4873
        %vm4880 = vweird.f32 %v4874
        %vm4881 = vmor %vm4879, %vm4880
        %v4882 = vsel %vm4881, %v4874, %v4878
        %v4883 = vand.u32 2147483647, %v4873
        %vm4884 = vcmp.eq.f32.partialorder %v4883, 8.507059e+37
        %v4885 = vand.u32 %v4873, 2147483648
        %v4886 = vor.u32 1.1754944e-38, %v4885
        %v4887 = vsel %vm4884, %v4886, %v4882
        %v4888 = vmul.f32 %v4863, %v4887
        %v4889 = vmin.f32 %v4888, 1.0
        %v4890 = vmax.f32 %v4889, -1.0
        %v4891 = vmul.f32 %v3320, %v3320
        %v4892 = vmin.f32 16.0, %v4891
        %v4893 = vmul.f32 %v4892, 2.1237322e-06
        %v4894 = vadd.f32 %v4893, 0.00028619796
        %v4895 = vmul.f32 %v4892, %v4894
        %v4896 = vadd.f32 %v4895, 0.0036580483
        %v4897 = vmul.f32 %v4892, %v4896
        %v4898 = vadd.f32 %v4897, 0.05243302
        %v4899 = vmul.f32 %v4892, %v4898
        %v4900 = vadd.f32 %v4899, 0.18741608
        %v4901 = vmul.f32 %v4892, %v4900
        %v4902 = vadd.f32 %v4901, 1.1283791
        %v4903 = vmul.f32 %v3320, %v4902
        %v4904 = vmul.f32 %v4892, 3.8918573e-05
        %v4905 = vadd.f32 %v4904, 0.001143296
        %v4906 = vmul.f32 %v4892, %v4905
        %v4907 = vadd.f32 %v4906, 0.014752088
        %v4908 = vmul.f32 %v4892, %v4907
        %v4909 = vadd.f32 %v4908, 0.112945676
        %v4910 = vmul.f32 %v4892, %v4909
        %v4911 = vadd.f32 %v4910, 0.4994258
        %v4912 = vmul.f32 %v4892, %v4911
        %v4913 = vadd.f32 %v4912, 1.0
        %v4914 = vrcp.pop %v4913
        %v4915 = vmul.f32 %v4913, %v4914
        %v4916 = vsub.f32 1.0, %v4915
        %v4917 = vmul.f32 %v4914, %v4916
        %v4918 = vadd.f32 %v4914, %v4917
        %vm4919 = vweird.f32 %v4913
        %vm4920 = vweird.f32 %v4914
        %vm4921 = vmor %vm4919, %vm4920
        %v4922 = vsel %vm4921, %v4914, %v4918
        %v4923 = vand.u32 2147483647, %v4913
        %vm4924 = vcmp.eq.f32.partialorder %v4923, 8.507059e+37
        %v4925 = vand.u32 %v4913, 2147483648
        %v4926 = vor.u32 1.1754944e-38, %v4925
        %v4927 = vsel %vm4924, %v4926, %v4922
        %v4928 = vmul.f32 %v4903, %v4927
        %v4929 = vmin.f32 %v4928, 1.0
        %v4930 = vmax.f32 %v4929, -1.0
        %v4931 = vmul.f32 %v3321, %v3321
        %v4932 = vmin.f32 16.0, %v4931
        %v4933 = vmul.f32 %v4932, 2.1237322e-06
        %v4934 = vadd.f32 %v4933, 0.00028619796
        %v4935 = vmul.f32 %v4932, %v4934
        %v4936 = vadd.f32 %v4935, 0.0036580483
        %v4937 = vmul.f32 %v4932, %v4936
        %v4938 = vadd.f32 %v4937, 0.05243302
        %v4939 = vmul.f32 %v4932, %v4938
        %v4940 = vadd.f32 %v4939, 0.18741608
        %v4941 = vmul.f32 %v4932, %v4940
        %v4942 = vadd.f32 %v4941, 1.1283791
        %v4943 = vmul.f32 %v3321, %v4942
        %v4944 = vmul.f32 %v4932, 3.8918573e-05
        %v4945 = vadd.f32 %v4944, 0.001143296
        %v4946 = vmul.f32 %v4932, %v4945
        %v4947 = vadd.f32 %v4946, 0.014752088
        %v4948 = vmul.f32 %v4932, %v4947
        %v4949 = vadd.f32 %v4948, 0.112945676
        %v4950 = vmul.f32 %v4932, %v4949
        %v4951 = vadd.f32 %v4950, 0.4994258
        %v4952 = vmul.f32 %v4932, %v4951
        %v4953 = vadd.f32 %v4952, 1.0
        %v4954 = vrcp.pop %v4953
        %v4955 = vmul.f32 %v4953, %v4954
        %v4956 = vsub.f32 1.0, %v4955
        %v4957 = vmul.f32 %v4954, %v4956
        %v4958 = vadd.f32 %v4954, %v4957
        %vm4959 = vweird.f32 %v4953
        %vm4960 = vweird.f32 %v4954
        %vm4961 = vmor %vm4959, %vm4960
        %v4962 = vsel %vm4961, %v4954, %v4958
        %v4963 = vand.u32 2147483647, %v4953
        %vm4964 = vcmp.eq.f32.partialorder %v4963, 8.507059e+37
        %v4965 = vand.u32 %v4953, 2147483648
        %v4966 = vor.u32 1.1754944e-38, %v4965
        %v4967 = vsel %vm4964, %v4966, %v4962
        %v4968 = vmul.f32 %v4943, %v4967
        %v4969 = vmin.f32 %v4968, 1.0
        %v4970 = vmax.f32 %v4969, -1.0
        %v4971 = vmul.f32 %v3322, %v3322
        %v4972 = vmin.f32 16.0, %v4971
        %v4973 = vmul.f32 %v4972, 2.1237322e-06
        %v4974 = vadd.f32 %v4973, 0.00028619796
        %v4975 = vmul.f32 %v4972, %v4974
        %v4976 = vadd.f32 %v4975, 0.0036580483
        %v4977 = vmul.f32 %v4972, %v4976
        %v4978 = vadd.f32 %v4977, 0.05243302
        %v4979 = vmul.f32 %v4972, %v4978
        %v4980 = vadd.f32 %v4979, 0.18741608
        %v4981 = vmul.f32 %v4972, %v4980
        %v4982 = vadd.f32 %v4981, 1.1283791
        %v4983 = vmul.f32 %v3322, %v4982
        %v4984 = vmul.f32 %v4972, 3.8918573e-05
        %v4985 = vadd.f32 %v4984, 0.001143296
        %v4986 = vmul.f32 %v4972, %v4985
        %v4987 = vadd.f32 %v4986, 0.014752088
        %v4988 = vmul.f32 %v4972, %v4987
        %v4989 = vadd.f32 %v4988, 0.112945676
        %v4990 = vmul.f32 %v4972, %v4989
        %v4991 = vadd.f32 %v4990, 0.4994258
        %v4992 = vmul.f32 %v4972, %v4991
        %v4993 = vadd.f32 %v4992, 1.0
        %v4994 = vrcp.pop %v4993
        %v4995 = vmul.f32 %v4993, %v4994
        %v4996 = vsub.f32 1.0, %v4995
        %v4997 = vmul.f32 %v4994, %v4996
        %v4998 = vadd.f32 %v4994, %v4997
        %vm4999 = vweird.f32 %v4993
        %vm5000 = vweird.f32 %v4994
        %vm5001 = vmor %vm4999, %vm5000
        %v5002 = vsel %vm5001, %v4994, %v4998
        %v5003 = vand.u32 2147483647, %v4993
        %vm5004 = vcmp.eq.f32.partialorder %v5003, 8.507059e+37
        %v5005 = vand.u32 %v4993, 2147483648
        %v5006 = vor.u32 1.1754944e-38, %v5005
        %v5007 = vsel %vm5004, %v5006, %v5002
        %v5008 = vmul.f32 %v4983, %v5007
        %v5009 = vmin.f32 %v5008, 1.0
        %v5010 = vmax.f32 %v5009, -1.0
        %v5011 = vmul.f32 %v3323, %v3323
        %v5012 = vmin.f32 16.0, %v5011
        %v5013 = vmul.f32 %v5012, 2.1237322e-06
        %v5014 = vadd.f32 %v5013, 0.00028619796
        %v5015 = vmul.f32 %v5012, %v5014
        %v5016 = vadd.f32 %v5015, 0.0036580483
        %v5017 = vmul.f32 %v5012, %v5016
        %v5018 = vadd.f32 %v5017, 0.05243302
        %v5019 = vmul.f32 %v5012, %v5018
        %v5020 = vadd.f32 %v5019, 0.18741608
        %v5021 = vmul.f32 %v5012, %v5020
        %v5022 = vadd.f32 %v5021, 1.1283791
        %v5023 = vmul.f32 %v3323, %v5022
        %v5024 = vmul.f32 %v5012, 3.8918573e-05
        %v5025 = vadd.f32 %v5024, 0.001143296
        %v5026 = vmul.f32 %v5012, %v5025
        %v5027 = vadd.f32 %v5026, 0.014752088
        %v5028 = vmul.f32 %v5012, %v5027
        %v5029 = vadd.f32 %v5028, 0.112945676
        %v5030 = vmul.f32 %v5012, %v5029
        %v5031 = vadd.f32 %v5030, 0.4994258
        %v5032 = vmul.f32 %v5012, %v5031
        %v5033 = vadd.f32 %v5032, 1.0
        %v5034 = vrcp.pop %v5033
        %v5035 = vmul.f32 %v5033, %v5034
        %v5036 = vsub.f32 1.0, %v5035
        %v5037 = vmul.f32 %v5034, %v5036
        %v5038 = vadd.f32 %v5034, %v5037
        %vm5039 = vweird.f32 %v5033
        %vm5040 = vweird.f32 %v5034
        %vm5041 = vmor %vm5039, %vm5040
        %v5042 = vsel %vm5041, %v5034, %v5038
        %v5043 = vand.u32 2147483647, %v5033
        %vm5044 = vcmp.eq.f32.partialorder %v5043, 8.507059e+37
        %v5045 = vand.u32 %v5033, 2147483648
        %v5046 = vor.u32 1.1754944e-38, %v5045
        %v5047 = vsel %vm5044, %v5046, %v5042
        %v5048 = vmul.f32 %v5023, %v5047
        %v5049 = vmin.f32 %v5048, 1.0
        %v5050 = vmax.f32 %v5049, -1.0
        %v5051 = vmul.f32 %v3324, %v3324
        %v5052 = vmin.f32 16.0, %v5051
        %v5053 = vmul.f32 %v5052, 2.1237322e-06
        %v5054 = vadd.f32 %v5053, 0.00028619796
        %v5055 = vmul.f32 %v5052, %v5054
        %v5056 = vadd.f32 %v5055, 0.0036580483
        %v5057 = vmul.f32 %v5052, %v5056
        %v5058 = vadd.f32 %v5057, 0.05243302
        %v5059 = vmul.f32 %v5052, %v5058
        %v5060 = vadd.f32 %v5059, 0.18741608
        %v5061 = vmul.f32 %v5052, %v5060
        %v5062 = vadd.f32 %v5061, 1.1283791
        %v5063 = vmul.f32 %v3324, %v5062
        %v5064 = vmul.f32 %v5052, 3.8918573e-05
        %v5065 = vadd.f32 %v5064, 0.001143296
        %v5066 = vmul.f32 %v5052, %v5065
        %v5067 = vadd.f32 %v5066, 0.014752088
        %v5068 = vmul.f32 %v5052, %v5067
        %v5069 = vadd.f32 %v5068, 0.112945676
        %v5070 = vmul.f32 %v5052, %v5069
        %v5071 = vadd.f32 %v5070, 0.4994258
        %v5072 = vmul.f32 %v5052, %v5071
        %v5073 = vadd.f32 %v5072, 1.0
        %v5074 = vrcp.pop %v5073
        %v5075 = vmul.f32 %v5073, %v5074
        %v5076 = vsub.f32 1.0, %v5075
        %v5077 = vmul.f32 %v5074, %v5076
        %v5078 = vadd.f32 %v5074, %v5077
        %vm5079 = vweird.f32 %v5073
        %vm5080 = vweird.f32 %v5074
        %vm5081 = vmor %vm5079, %vm5080
        %v5082 = vsel %vm5081, %v5074, %v5078
        %v5083 = vand.u32 2147483647, %v5073
        %vm5084 = vcmp.eq.f32.partialorder %v5083, 8.507059e+37
        %v5085 = vand.u32 %v5073, 2147483648
        %v5086 = vor.u32 1.1754944e-38, %v5085
        %v5087 = vsel %vm5084, %v5086, %v5082
        %v5088 = vmul.f32 %v5063, %v5087
        %v5089 = vmin.f32 %v5088, 1.0
        %v5090 = vmax.f32 %v5089, -1.0
        %v5091 = vmul.f32 %v3325, %v3325
        %v5092 = vmin.f32 16.0, %v5091
        %v5093 = vmul.f32 %v5092, 2.1237322e-06
        %v5094 = vadd.f32 %v5093, 0.00028619796
        %v5095 = vmul.f32 %v5092, %v5094
        %v5096 = vadd.f32 %v5095, 0.0036580483
        %v5097 = vmul.f32 %v5092, %v5096
        %v5098 = vadd.f32 %v5097, 0.05243302
        %v5099 = vmul.f32 %v5092, %v5098
        %v5100 = vadd.f32 %v5099, 0.18741608
        %v5101 = vmul.f32 %v5092, %v5100
        %v5102 = vadd.f32 %v5101, 1.1283791
        %v5103 = vmul.f32 %v3325, %v5102
        %v5104 = vmul.f32 %v5092, 3.8918573e-05
        %v5105 = vadd.f32 %v5104, 0.001143296
        %v5106 = vmul.f32 %v5092, %v5105
        %v5107 = vadd.f32 %v5106, 0.014752088
        %v5108 = vmul.f32 %v5092, %v5107
        %v5109 = vadd.f32 %v5108, 0.112945676
        %v5110 = vmul.f32 %v5092, %v5109
        %v5111 = vadd.f32 %v5110, 0.4994258
        %v5112 = vmul.f32 %v5092, %v5111
        %v5113 = vadd.f32 %v5112, 1.0
        %v5114 = vrcp.pop %v5113
        %v5115 = vmul.f32 %v5113, %v5114
        %v5116 = vsub.f32 1.0, %v5115
        %v5117 = vmul.f32 %v5114, %v5116
        %v5118 = vadd.f32 %v5114, %v5117
        %vm5119 = vweird.f32 %v5113
        %vm5120 = vweird.f32 %v5114
        %vm5121 = vmor %vm5119, %vm5120
        %v5122 = vsel %vm5121, %v5114, %v5118
        %v5123 = vand.u32 2147483647, %v5113
        %vm5124 = vcmp.eq.f32.partialorder %v5123, 8.507059e+37
        %v5125 = vand.u32 %v5113, 2147483648
        %v5126 = vor.u32 1.1754944e-38, %v5125
        %v5127 = vsel %vm5124, %v5126, %v5122
        %v5128 = vmul.f32 %v5103, %v5127
        %v5129 = vmin.f32 %v5128, 1.0
        %v5130 = vmax.f32 %v5129, -1.0
        %v5131 = vmul.f32 %v3326, %v3326
        %v5132 = vmin.f32 16.0, %v5131
        %v5133 = vmul.f32 %v5132, 2.1237322e-06
        %v5134 = vadd.f32 %v5133, 0.00028619796
        %v5135 = vmul.f32 %v5132, %v5134
        %v5136 = vadd.f32 %v5135, 0.0036580483
        %v5137 = vmul.f32 %v5132, %v5136
        %v5138 = vadd.f32 %v5137, 0.05243302
        %v5139 = vmul.f32 %v5132, %v5138
        %v5140 = vadd.f32 %v5139, 0.18741608
        %v5141 = vmul.f32 %v5132, %v5140
        %v5142 = vadd.f32 %v5141, 1.1283791
        %v5143 = vmul.f32 %v3326, %v5142
        %v5144 = vmul.f32 %v5132, 3.8918573e-05
        %v5145 = vadd.f32 %v5144, 0.001143296
        %v5146 = vmul.f32 %v5132, %v5145
        %v5147 = vadd.f32 %v5146, 0.014752088
        %v5148 = vmul.f32 %v5132, %v5147
        %v5149 = vadd.f32 %v5148, 0.112945676
        %v5150 = vmul.f32 %v5132, %v5149
        %v5151 = vadd.f32 %v5150, 0.4994258
        %v5152 = vmul.f32 %v5132, %v5151
        %v5153 = vadd.f32 %v5152, 1.0
        %v5154 = vrcp.pop %v5153
        %v5155 = vmul.f32 %v5153, %v5154
        %v5156 = vsub.f32 1.0, %v5155
        %v5157 = vmul.f32 %v5154, %v5156
        %v5158 = vadd.f32 %v5154, %v5157
        %vm5159 = vweird.f32 %v5153
        %vm5160 = vweird.f32 %v5154
        %vm5161 = vmor %vm5159, %vm5160
        %v5162 = vsel %vm5161, %v5154, %v5158
        %v5163 = vand.u32 2147483647, %v5153
        %vm5164 = vcmp.eq.f32.partialorder %v5163, 8.507059e+37
        %v5165 = vand.u32 %v5153, 2147483648
        %v5166 = vor.u32 1.1754944e-38, %v5165
        %v5167 = vsel %vm5164, %v5166, %v5162
        %v5168 = vmul.f32 %v5143, %v5167
        %v5169 = vmin.f32 %v5168, 1.0
        %v5170 = vmax.f32 %v5169, -1.0
        %v5171 = vmul.f32 %v3327, %v3327
        %v5172 = vmin.f32 16.0, %v5171
        %v5173 = vmul.f32 %v5172, 2.1237322e-06
        %v5174 = vadd.f32 %v5173, 0.00028619796
        %v5175 = vmul.f32 %v5172, %v5174
        %v5176 = vadd.f32 %v5175, 0.0036580483
        %v5177 = vmul.f32 %v5172, %v5176
        %v5178 = vadd.f32 %v5177, 0.05243302
        %v5179 = vmul.f32 %v5172, %v5178
        %v5180 = vadd.f32 %v5179, 0.18741608
        %v5181 = vmul.f32 %v5172, %v5180
        %v5182 = vadd.f32 %v5181, 1.1283791
        %v5183 = vmul.f32 %v3327, %v5182
        %v5184 = vmul.f32 %v5172, 3.8918573e-05
        %v5185 = vadd.f32 %v5184, 0.001143296
        %v5186 = vmul.f32 %v5172, %v5185
        %v5187 = vadd.f32 %v5186, 0.014752088
        %v5188 = vmul.f32 %v5172, %v5187
        %v5189 = vadd.f32 %v5188, 0.112945676
        %v5190 = vmul.f32 %v5172, %v5189
        %v5191 = vadd.f32 %v5190, 0.4994258
        %v5192 = vmul.f32 %v5172, %v5191
        %v5193 = vadd.f32 %v5192, 1.0
        %v5194 = vrcp.pop %v5193
        %v5195 = vmul.f32 %v5193, %v5194
        %v5196 = vsub.f32 1.0, %v5195
        %v5197 = vmul.f32 %v5194, %v5196
        %v5198 = vadd.f32 %v5194, %v5197
        %vm5199 = vweird.f32 %v5193
        %vm5200 = vweird.f32 %v5194
        %vm5201 = vmor %vm5199, %vm5200
        %v5202 = vsel %vm5201, %v5194, %v5198
        %v5203 = vand.u32 2147483647, %v5193
        %vm5204 = vcmp.eq.f32.partialorder %v5203, 8.507059e+37
        %v5205 = vand.u32 %v5193, 2147483648
        %v5206 = vor.u32 1.1754944e-38, %v5205
        %v5207 = vsel %vm5204, %v5206, %v5202
        %v5208 = vmul.f32 %v5183, %v5207
        %v5209 = vmin.f32 %v5208, 1.0
        %v5210 = vmax.f32 %v5209, -1.0
        %v5211 = vmul.f32 %v3328, %v3328
        %v5212 = vmin.f32 16.0, %v5211
        %v5213 = vmul.f32 %v5212, 2.1237322e-06
        %v5214 = vadd.f32 %v5213, 0.00028619796
        %v5215 = vmul.f32 %v5212, %v5214
        %v5216 = vadd.f32 %v5215, 0.0036580483
        %v5217 = vmul.f32 %v5212, %v5216
        %v5218 = vadd.f32 %v5217, 0.05243302
        %v5219 = vmul.f32 %v5212, %v5218
        %v5220 = vadd.f32 %v5219, 0.18741608
        %v5221 = vmul.f32 %v5212, %v5220
        %v5222 = vadd.f32 %v5221, 1.1283791
        %v5223 = vmul.f32 %v3328, %v5222
        %v5224 = vmul.f32 %v5212, 3.8918573e-05
        %v5225 = vadd.f32 %v5224, 0.001143296
        %v5226 = vmul.f32 %v5212, %v5225
        %v5227 = vadd.f32 %v5226, 0.014752088
        %v5228 = vmul.f32 %v5212, %v5227
        %v5229 = vadd.f32 %v5228, 0.112945676
        %v5230 = vmul.f32 %v5212, %v5229
        %v5231 = vadd.f32 %v5230, 0.4994258
        %v5232 = vmul.f32 %v5212, %v5231
        %v5233 = vadd.f32 %v5232, 1.0
        %v5234 = vrcp.pop %v5233
        %v5235 = vmul.f32 %v5233, %v5234
        %v5236 = vsub.f32 1.0, %v5235
        %v5237 = vmul.f32 %v5234, %v5236
        %v5238 = vadd.f32 %v5234, %v5237
        %vm5239 = vweird.f32 %v5233
        %vm5240 = vweird.f32 %v5234
        %vm5241 = vmor %vm5239, %vm5240
        %v5242 = vsel %vm5241, %v5234, %v5238
        %v5243 = vand.u32 2147483647, %v5233
        %vm5244 = vcmp.eq.f32.partialorder %v5243, 8.507059e+37
        %v5245 = vand.u32 %v5233, 2147483648
        %v5246 = vor.u32 1.1754944e-38, %v5245
        %v5247 = vsel %vm5244, %v5246, %v5242
        %v5248 = vmul.f32 %v5223, %v5247
        %v5249 = vmin.f32 %v5248, 1.0
        %v5250 = vmax.f32 %v5249, -1.0
        %v5251 = vmul.f32 %v3329, %v3329
        %v5252 = vmin.f32 16.0, %v5251
        %v5253 = vmul.f32 %v5252, 2.1237322e-06
        %v5254 = vadd.f32 %v5253, 0.00028619796
        %v5255 = vmul.f32 %v5252, %v5254
        %v5256 = vadd.f32 %v5255, 0.0036580483
        %v5257 = vmul.f32 %v5252, %v5256
        %v5258 = vadd.f32 %v5257, 0.05243302
        %v5259 = vmul.f32 %v5252, %v5258
        %v5260 = vadd.f32 %v5259, 0.18741608
        %v5261 = vmul.f32 %v5252, %v5260
        %v5262 = vadd.f32 %v5261, 1.1283791
        %v5263 = vmul.f32 %v3329, %v5262
        %v5264 = vmul.f32 %v5252, 3.8918573e-05
        %v5265 = vadd.f32 %v5264, 0.001143296
        %v5266 = vmul.f32 %v5252, %v5265
        %v5267 = vadd.f32 %v5266, 0.014752088
        %v5268 = vmul.f32 %v5252, %v5267
        %v5269 = vadd.f32 %v5268, 0.112945676
        %v5270 = vmul.f32 %v5252, %v5269
        %v5271 = vadd.f32 %v5270, 0.4994258
        %v5272 = vmul.f32 %v5252, %v5271
        %v5273 = vadd.f32 %v5272, 1.0
        %v5274 = vrcp.pop %v5273
        %v5275 = vmul.f32 %v5273, %v5274
        %v5276 = vsub.f32 1.0, %v5275
        %v5277 = vmul.f32 %v5274, %v5276
        %v5278 = vadd.f32 %v5274, %v5277
        %vm5279 = vweird.f32 %v5273
        %vm5280 = vweird.f32 %v5274
        %vm5281 = vmor %vm5279, %vm5280
        %v5282 = vsel %vm5281, %v5274, %v5278
        %v5283 = vand.u32 2147483647, %v5273
        %vm5284 = vcmp.eq.f32.partialorder %v5283, 8.507059e+37
        %v5285 = vand.u32 %v5273, 2147483648
        %v5286 = vor.u32 1.1754944e-38, %v5285
        %v5287 = vsel %vm5284, %v5286, %v5282
        %v5288 = vmul.f32 %v5263, %v5287
        %v5289 = vmin.f32 %v5288, 1.0
        %v5290 = vmax.f32 %v5289, -1.0
        %v5291 = vmul.f32 %v3330, %v3330
        %v5292 = vmin.f32 16.0, %v5291
        %v5293 = vmul.f32 %v5292, 2.1237322e-06
        %v5294 = vadd.f32 %v5293, 0.00028619796
        %v5295 = vmul.f32 %v5292, %v5294
        %v5296 = vadd.f32 %v5295, 0.0036580483
        %v5297 = vmul.f32 %v5292, %v5296
        %v5298 = vadd.f32 %v5297, 0.05243302
        %v5299 = vmul.f32 %v5292, %v5298
        %v5300 = vadd.f32 %v5299, 0.18741608
        %v5301 = vmul.f32 %v5292, %v5300
        %v5302 = vadd.f32 %v5301, 1.1283791
        %v5303 = vmul.f32 %v3330, %v5302
        %v5304 = vmul.f32 %v5292, 3.8918573e-05
        %v5305 = vadd.f32 %v5304, 0.001143296
        %v5306 = vmul.f32 %v5292, %v5305
        %v5307 = vadd.f32 %v5306, 0.014752088
        %v5308 = vmul.f32 %v5292, %v5307
        %v5309 = vadd.f32 %v5308, 0.112945676
        %v5310 = vmul.f32 %v5292, %v5309
        %v5311 = vadd.f32 %v5310, 0.4994258
        %v5312 = vmul.f32 %v5292, %v5311
        %v5313 = vadd.f32 %v5312, 1.0
        %v5314 = vrcp.pop %v5313
        %v5315 = vmul.f32 %v5313, %v5314
        %v5316 = vsub.f32 1.0, %v5315
        %v5317 = vmul.f32 %v5314, %v5316
        %v5318 = vadd.f32 %v5314, %v5317
        %vm5319 = vweird.f32 %v5313
        %vm5320 = vweird.f32 %v5314
        %vm5321 = vmor %vm5319, %vm5320
        %v5322 = vsel %vm5321, %v5314, %v5318
        %v5323 = vand.u32 2147483647, %v5313
        %vm5324 = vcmp.eq.f32.partialorder %v5323, 8.507059e+37
        %v5325 = vand.u32 %v5313, 2147483648
        %v5326 = vor.u32 1.1754944e-38, %v5325
        %v5327 = vsel %vm5324, %v5326, %v5322
        %v5328 = vmul.f32 %v5303, %v5327
        %v5329 = vmin.f32 %v5328, 1.0
        %v5330 = vmax.f32 %v5329, -1.0
        %v5331 = vmul.f32 %v3331, %v3331
        %v5332 = vmin.f32 16.0, %v5331
        %v5333 = vmul.f32 %v5332, 2.1237322e-06
        %v5334 = vadd.f32 %v5333, 0.00028619796
        %v5335 = vmul.f32 %v5332, %v5334
        %v5336 = vadd.f32 %v5335, 0.0036580483
        %v5337 = vmul.f32 %v5332, %v5336
        %v5338 = vadd.f32 %v5337, 0.05243302
        %v5339 = vmul.f32 %v5332, %v5338
        %v5340 = vadd.f32 %v5339, 0.18741608
        %v5341 = vmul.f32 %v5332, %v5340
        %v5342 = vadd.f32 %v5341, 1.1283791
        %v5343 = vmul.f32 %v3331, %v5342
        %v5344 = vmul.f32 %v5332, 3.8918573e-05
        %v5345 = vadd.f32 %v5344, 0.001143296
        %v5346 = vmul.f32 %v5332, %v5345
        %v5347 = vadd.f32 %v5346, 0.014752088
        %v5348 = vmul.f32 %v5332, %v5347
        %v5349 = vadd.f32 %v5348, 0.112945676
        %v5350 = vmul.f32 %v5332, %v5349
        %v5351 = vadd.f32 %v5350, 0.4994258
        %v5352 = vmul.f32 %v5332, %v5351
        %v5353 = vadd.f32 %v5352, 1.0
        %v5354 = vrcp.pop %v5353
        %v5355 = vmul.f32 %v5353, %v5354
        %v5356 = vsub.f32 1.0, %v5355
        %v5357 = vmul.f32 %v5354, %v5356
        %v5358 = vadd.f32 %v5354, %v5357
        %vm5359 = vweird.f32 %v5353
        %vm5360 = vweird.f32 %v5354
        %vm5361 = vmor %vm5359, %vm5360
        %v5362 = vsel %vm5361, %v5354, %v5358
        %v5363 = vand.u32 2147483647, %v5353
        %vm5364 = vcmp.eq.f32.partialorder %v5363, 8.507059e+37
        %v5365 = vand.u32 %v5353, 2147483648
        %v5366 = vor.u32 1.1754944e-38, %v5365
        %v5367 = vsel %vm5364, %v5366, %v5362
        %v5368 = vmul.f32 %v5343, %v5367
        %v5369 = vmin.f32 %v5368, 1.0
        %v5370 = vmax.f32 %v5369, -1.0
        %v5371 = vmul.f32 %v3332, %v3332
        %v5372 = vmin.f32 16.0, %v5371
        %v5373 = vmul.f32 %v5372, 2.1237322e-06
        %v5374 = vadd.f32 %v5373, 0.00028619796
        %v5375 = vmul.f32 %v5372, %v5374
        %v5376 = vadd.f32 %v5375, 0.0036580483
        %v5377 = vmul.f32 %v5372, %v5376
        %v5378 = vadd.f32 %v5377, 0.05243302
        %v5379 = vmul.f32 %v5372, %v5378
        %v5380 = vadd.f32 %v5379, 0.18741608
        %v5381 = vmul.f32 %v5372, %v5380
        %v5382 = vadd.f32 %v5381, 1.1283791
        %v5383 = vmul.f32 %v3332, %v5382
        %v5384 = vmul.f32 %v5372, 3.8918573e-05
        %v5385 = vadd.f32 %v5384, 0.001143296
        %v5386 = vmul.f32 %v5372, %v5385
        %v5387 = vadd.f32 %v5386, 0.014752088
        %v5388 = vmul.f32 %v5372, %v5387
        %v5389 = vadd.f32 %v5388, 0.112945676
        %v5390 = vmul.f32 %v5372, %v5389
        %v5391 = vadd.f32 %v5390, 0.4994258
        %v5392 = vmul.f32 %v5372, %v5391
        %v5393 = vadd.f32 %v5392, 1.0
        %v5394 = vrcp.pop %v5393
        %v5395 = vmul.f32 %v5393, %v5394
        %v5396 = vsub.f32 1.0, %v5395
        %v5397 = vmul.f32 %v5394, %v5396
        %v5398 = vadd.f32 %v5394, %v5397
        %vm5399 = vweird.f32 %v5393
        %vm5400 = vweird.f32 %v5394
        %vm5401 = vmor %vm5399, %vm5400
        %v5402 = vsel %vm5401, %v5394, %v5398
        %v5403 = vand.u32 2147483647, %v5393
        %vm5404 = vcmp.eq.f32.partialorder %v5403, 8.507059e+37
        %v5405 = vand.u32 %v5393, 2147483648
        %v5406 = vor.u32 1.1754944e-38, %v5405
        %v5407 = vsel %vm5404, %v5406, %v5402
        %v5408 = vmul.f32 %v5383, %v5407
        %v5409 = vmin.f32 %v5408, 1.0
        %v5410 = vmax.f32 %v5409, -1.0
        %v5411 = vmul.f32 %v3333, %v3333
        %v5412 = vmin.f32 16.0, %v5411
        %v5413 = vmul.f32 %v5412, 2.1237322e-06
        %v5414 = vadd.f32 %v5413, 0.00028619796
        %v5415 = vmul.f32 %v5412, %v5414
        %v5416 = vadd.f32 %v5415, 0.0036580483
        %v5417 = vmul.f32 %v5412, %v5416
        %v5418 = vadd.f32 %v5417, 0.05243302
        %v5419 = vmul.f32 %v5412, %v5418
        %v5420 = vadd.f32 %v5419, 0.18741608
        %v5421 = vmul.f32 %v5412, %v5420
        %v5422 = vadd.f32 %v5421, 1.1283791
        %v5423 = vmul.f32 %v3333, %v5422
        %v5424 = vmul.f32 %v5412, 3.8918573e-05
        %v5425 = vadd.f32 %v5424, 0.001143296
        %v5426 = vmul.f32 %v5412, %v5425
        %v5427 = vadd.f32 %v5426, 0.014752088
        %v5428 = vmul.f32 %v5412, %v5427
        %v5429 = vadd.f32 %v5428, 0.112945676
        %v5430 = vmul.f32 %v5412, %v5429
        %v5431 = vadd.f32 %v5430, 0.4994258
        %v5432 = vmul.f32 %v5412, %v5431
        %v5433 = vadd.f32 %v5432, 1.0
        %v5434 = vrcp.pop %v5433
        %v5435 = vmul.f32 %v5433, %v5434
        %v5436 = vsub.f32 1.0, %v5435
        %v5437 = vmul.f32 %v5434, %v5436
        %v5438 = vadd.f32 %v5434, %v5437
        %vm5439 = vweird.f32 %v5433
        %vm5440 = vweird.f32 %v5434
        %vm5441 = vmor %vm5439, %vm5440
        %v5442 = vsel %vm5441, %v5434, %v5438
        %v5443 = vand.u32 2147483647, %v5433
        %vm5444 = vcmp.eq.f32.partialorder %v5443, 8.507059e+37
        %v5445 = vand.u32 %v5433, 2147483648
        %v5446 = vor.u32 1.1754944e-38, %v5445
        %v5447 = vsel %vm5444, %v5446, %v5442
        %v5448 = vmul.f32 %v5423, %v5447
        %v5449 = vmin.f32 %v5448, 1.0
        %v5450 = vmax.f32 %v5449, -1.0
        %v5451 = vmul.f32 %v3334, %v3334
        %v5452 = vmin.f32 16.0, %v5451
        %v5453 = vmul.f32 %v5452, 2.1237322e-06
        %v5454 = vadd.f32 %v5453, 0.00028619796
        %v5455 = vmul.f32 %v5452, %v5454
        %v5456 = vadd.f32 %v5455, 0.0036580483
        %v5457 = vmul.f32 %v5452, %v5456
        %v5458 = vadd.f32 %v5457, 0.05243302
        %v5459 = vmul.f32 %v5452, %v5458
        %v5460 = vadd.f32 %v5459, 0.18741608
        %v5461 = vmul.f32 %v5452, %v5460
        %v5462 = vadd.f32 %v5461, 1.1283791
        %v5463 = vmul.f32 %v3334, %v5462
        %v5464 = vmul.f32 %v5452, 3.8918573e-05
        %v5465 = vadd.f32 %v5464, 0.001143296
        %v5466 = vmul.f32 %v5452, %v5465
        %v5467 = vadd.f32 %v5466, 0.014752088
        %v5468 = vmul.f32 %v5452, %v5467
        %v5469 = vadd.f32 %v5468, 0.112945676
        %v5470 = vmul.f32 %v5452, %v5469
        %v5471 = vadd.f32 %v5470, 0.4994258
        %v5472 = vmul.f32 %v5452, %v5471
        %v5473 = vadd.f32 %v5472, 1.0
        %v5474 = vrcp.pop %v5473
        %v5475 = vmul.f32 %v5473, %v5474
        %v5476 = vsub.f32 1.0, %v5475
        %v5477 = vmul.f32 %v5474, %v5476
        %v5478 = vadd.f32 %v5474, %v5477
        %vm5479 = vweird.f32 %v5473
        %vm5480 = vweird.f32 %v5474
        %vm5481 = vmor %vm5479, %vm5480
        %v5482 = vsel %vm5481, %v5474, %v5478
        %v5483 = vand.u32 2147483647, %v5473
        %vm5484 = vcmp.eq.f32.partialorder %v5483, 8.507059e+37
        %v5485 = vand.u32 %v5473, 2147483648
        %v5486 = vor.u32 1.1754944e-38, %v5485
        %v5487 = vsel %vm5484, %v5486, %v5482
        %v5488 = vmul.f32 %v5463, %v5487
        %v5489 = vmin.f32 %v5488, 1.0
        %v5490 = vmax.f32 %v5489, -1.0
        %v5491 = vmul.f32 %v3335, %v3335
        %v5492 = vmin.f32 16.0, %v5491
        %v5493 = vmul.f32 %v5492, 2.1237322e-06
        %v5494 = vadd.f32 %v5493, 0.00028619796
        %v5495 = vmul.f32 %v5492, %v5494
        %v5496 = vadd.f32 %v5495, 0.0036580483
        %v5497 = vmul.f32 %v5492, %v5496
        %v5498 = vadd.f32 %v5497, 0.05243302
        %v5499 = vmul.f32 %v5492, %v5498
        %v5500 = vadd.f32 %v5499, 0.18741608
        %v5501 = vmul.f32 %v5492, %v5500
        %v5502 = vadd.f32 %v5501, 1.1283791
        %v5503 = vmul.f32 %v3335, %v5502
        %v5504 = vmul.f32 %v5492, 3.8918573e-05
        %v5505 = vadd.f32 %v5504, 0.001143296
        %v5506 = vmul.f32 %v5492, %v5505
        %v5507 = vadd.f32 %v5506, 0.014752088
        %v5508 = vmul.f32 %v5492, %v5507
        %v5509 = vadd.f32 %v5508, 0.112945676
        %v5510 = vmul.f32 %v5492, %v5509
        %v5511 = vadd.f32 %v5510, 0.4994258
        %v5512 = vmul.f32 %v5492, %v5511
        %v5513 = vadd.f32 %v5512, 1.0
        %v5514 = vrcp.pop %v5513
        %v5515 = vmul.f32 %v5513, %v5514
        %v5516 = vsub.f32 1.0, %v5515
        %v5517 = vmul.f32 %v5514, %v5516
        %v5518 = vadd.f32 %v5514, %v5517
        %vm5519 = vweird.f32 %v5513
        %vm5520 = vweird.f32 %v5514
        %vm5521 = vmor %vm5519, %vm5520
        %v5522 = vsel %vm5521, %v5514, %v5518
        %v5523 = vand.u32 2147483647, %v5513
        %vm5524 = vcmp.eq.f32.partialorder %v5523, 8.507059e+37
        %v5525 = vand.u32 %v5513, 2147483648
        %v5526 = vor.u32 1.1754944e-38, %v5525
        %v5527 = vsel %vm5524, %v5526, %v5522
        %v5528 = vmul.f32 %v5503, %v5527
        %v5529 = vmin.f32 %v5528, 1.0
        %v5530 = vmax.f32 %v5529, -1.0
        %v5531 = vmul.f32 %v3336, %v3336
        %v5532 = vmin.f32 16.0, %v5531
        %v5533 = vmul.f32 %v5532, 2.1237322e-06
        %v5534 = vadd.f32 %v5533, 0.00028619796
        %v5535 = vmul.f32 %v5532, %v5534
        %v5536 = vadd.f32 %v5535, 0.0036580483
        %v5537 = vmul.f32 %v5532, %v5536
        %v5538 = vadd.f32 %v5537, 0.05243302
        %v5539 = vmul.f32 %v5532, %v5538
        %v5540 = vadd.f32 %v5539, 0.18741608
        %v5541 = vmul.f32 %v5532, %v5540
        %v5542 = vadd.f32 %v5541, 1.1283791
        %v5543 = vmul.f32 %v3336, %v5542
        %v5544 = vmul.f32 %v5532, 3.8918573e-05
        %v5545 = vadd.f32 %v5544, 0.001143296
        %v5546 = vmul.f32 %v5532, %v5545
        %v5547 = vadd.f32 %v5546, 0.014752088
        %v5548 = vmul.f32 %v5532, %v5547
        %v5549 = vadd.f32 %v5548, 0.112945676
        %v5550 = vmul.f32 %v5532, %v5549
        %v5551 = vadd.f32 %v5550, 0.4994258
        %v5552 = vmul.f32 %v5532, %v5551
        %v5553 = vadd.f32 %v5552, 1.0
        %v5554 = vrcp.pop %v5553
        %v5555 = vmul.f32 %v5553, %v5554
        %v5556 = vsub.f32 1.0, %v5555
        %v5557 = vmul.f32 %v5554, %v5556
        %v5558 = vadd.f32 %v5554, %v5557
        %vm5559 = vweird.f32 %v5553
        %vm5560 = vweird.f32 %v5554
        %vm5561 = vmor %vm5559, %vm5560
        %v5562 = vsel %vm5561, %v5554, %v5558
        %v5563 = vand.u32 2147483647, %v5553
        %vm5564 = vcmp.eq.f32.partialorder %v5563, 8.507059e+37
        %v5565 = vand.u32 %v5553, 2147483648
        %v5566 = vor.u32 1.1754944e-38, %v5565
        %v5567 = vsel %vm5564, %v5566, %v5562
        %v5568 = vmul.f32 %v5543, %v5567
        %v5569 = vmin.f32 %v5568, 1.0
        %v5570 = vmax.f32 %v5569, -1.0
        %v5571 = vmul.f32 %v3337, %v3337
        %v5572 = vmin.f32 16.0, %v5571
        %v5573 = vmul.f32 %v5572, 2.1237322e-06
        %v5574 = vadd.f32 %v5573, 0.00028619796
        %v5575 = vmul.f32 %v5572, %v5574
        %v5576 = vadd.f32 %v5575, 0.0036580483
        %v5577 = vmul.f32 %v5572, %v5576
        %v5578 = vadd.f32 %v5577, 0.05243302
        %v5579 = vmul.f32 %v5572, %v5578
        %v5580 = vadd.f32 %v5579, 0.18741608
        %v5581 = vmul.f32 %v5572, %v5580
        %v5582 = vadd.f32 %v5581, 1.1283791
        %v5583 = vmul.f32 %v3337, %v5582
        %v5584 = vmul.f32 %v5572, 3.8918573e-05
        %v5585 = vadd.f32 %v5584, 0.001143296
        %v5586 = vmul.f32 %v5572, %v5585
        %v5587 = vadd.f32 %v5586, 0.014752088
        %v5588 = vmul.f32 %v5572, %v5587
        %v5589 = vadd.f32 %v5588, 0.112945676
        %v5590 = vmul.f32 %v5572, %v5589
        %v5591 = vadd.f32 %v5590, 0.4994258
        %v5592 = vmul.f32 %v5572, %v5591
        %v5593 = vadd.f32 %v5592, 1.0
        %v5594 = vrcp.pop %v5593
        %v5595 = vmul.f32 %v5593, %v5594
        %v5596 = vsub.f32 1.0, %v5595
        %v5597 = vmul.f32 %v5594, %v5596
        %v5598 = vadd.f32 %v5594, %v5597
        %vm5599 = vweird.f32 %v5593
        %vm5600 = vweird.f32 %v5594
        %vm5601 = vmor %vm5599, %vm5600
        %v5602 = vsel %vm5601, %v5594, %v5598
        %v5603 = vand.u32 2147483647, %v5593
        %vm5604 = vcmp.eq.f32.partialorder %v5603, 8.507059e+37
        %v5605 = vand.u32 %v5593, 2147483648
        %v5606 = vor.u32 1.1754944e-38, %v5605
        %v5607 = vsel %vm5604, %v5606, %v5602
        %v5608 = vmul.f32 %v5583, %v5607
        %v5609 = vmin.f32 %v5608, 1.0
        %v5610 = vmax.f32 %v5609, -1.0
        %v5611 = vmul.f32 %v3338, %v3338
        %v5612 = vmin.f32 16.0, %v5611
        %v5613 = vmul.f32 %v5612, 2.1237322e-06
        %v5614 = vadd.f32 %v5613, 0.00028619796
        %v5615 = vmul.f32 %v5612, %v5614
        %v5616 = vadd.f32 %v5615, 0.0036580483
        %v5617 = vmul.f32 %v5612, %v5616
        %v5618 = vadd.f32 %v5617, 0.05243302
        %v5619 = vmul.f32 %v5612, %v5618
        %v5620 = vadd.f32 %v5619, 0.18741608
        %v5621 = vmul.f32 %v5612, %v5620
        %v5622 = vadd.f32 %v5621, 1.1283791
        %v5623 = vmul.f32 %v3338, %v5622
        %v5624 = vmul.f32 %v5612, 3.8918573e-05
        %v5625 = vadd.f32 %v5624, 0.001143296
        %v5626 = vmul.f32 %v5612, %v5625
        %v5627 = vadd.f32 %v5626, 0.014752088
        %v5628 = vmul.f32 %v5612, %v5627
        %v5629 = vadd.f32 %v5628, 0.112945676
        %v5630 = vmul.f32 %v5612, %v5629
        %v5631 = vadd.f32 %v5630, 0.4994258
        %v5632 = vmul.f32 %v5612, %v5631
        %v5633 = vadd.f32 %v5632, 1.0
        %v5634 = vrcp.pop %v5633
        %v5635 = vmul.f32 %v5633, %v5634
        %v5636 = vsub.f32 1.0, %v5635
        %v5637 = vmul.f32 %v5634, %v5636
        %v5638 = vadd.f32 %v5634, %v5637
        %vm5639 = vweird.f32 %v5633
        %vm5640 = vweird.f32 %v5634
        %vm5641 = vmor %vm5639, %vm5640
        %v5642 = vsel %vm5641, %v5634, %v5638
        %v5643 = vand.u32 2147483647, %v5633
        %vm5644 = vcmp.eq.f32.partialorder %v5643, 8.507059e+37
        %v5645 = vand.u32 %v5633, 2147483648
        %v5646 = vor.u32 1.1754944e-38, %v5645
        %v5647 = vsel %vm5644, %v5646, %v5642
        %v5648 = vmul.f32 %v5623, %v5647
        %v5649 = vmin.f32 %v5648, 1.0
        %v5650 = vmax.f32 %v5649, -1.0
        %v5651 = vmul.f32 %v3339, %v3339
        %v5652 = vmin.f32 16.0, %v5651
        %v5653 = vmul.f32 %v5652, 2.1237322e-06
        %v5654 = vadd.f32 %v5653, 0.00028619796
        %v5655 = vmul.f32 %v5652, %v5654
        %v5656 = vadd.f32 %v5655, 0.0036580483
        %v5657 = vmul.f32 %v5652, %v5656
        %v5658 = vadd.f32 %v5657, 0.05243302
        %v5659 = vmul.f32 %v5652, %v5658
        %v5660 = vadd.f32 %v5659, 0.18741608
        %v5661 = vmul.f32 %v5652, %v5660
        %v5662 = vadd.f32 %v5661, 1.1283791
        %v5663 = vmul.f32 %v3339, %v5662
        %v5664 = vmul.f32 %v5652, 3.8918573e-05
        %v5665 = vadd.f32 %v5664, 0.001143296
        %v5666 = vmul.f32 %v5652, %v5665
        %v5667 = vadd.f32 %v5666, 0.014752088
        %v5668 = vmul.f32 %v5652, %v5667
        %v5669 = vadd.f32 %v5668, 0.112945676
        %v5670 = vmul.f32 %v5652, %v5669
        %v5671 = vadd.f32 %v5670, 0.4994258
        %v5672 = vmul.f32 %v5652, %v5671
        %v5673 = vadd.f32 %v5672, 1.0
        %v5674 = vrcp.pop %v5673
        %v5675 = vmul.f32 %v5673, %v5674
        %v5676 = vsub.f32 1.0, %v5675
        %v5677 = vmul.f32 %v5674, %v5676
        %v5678 = vadd.f32 %v5674, %v5677
        %vm5679 = vweird.f32 %v5673
        %vm5680 = vweird.f32 %v5674
        %vm5681 = vmor %vm5679, %vm5680
        %v5682 = vsel %vm5681, %v5674, %v5678
        %v5683 = vand.u32 2147483647, %v5673
        %vm5684 = vcmp.eq.f32.partialorder %v5683, 8.507059e+37
        %v5685 = vand.u32 %v5673, 2147483648
        %v5686 = vor.u32 1.1754944e-38, %v5685
        %v5687 = vsel %vm5684, %v5686, %v5682
        %v5688 = vmul.f32 %v5663, %v5687
        %v5689 = vmin.f32 %v5688, 1.0
        %v5690 = vmax.f32 %v5689, -1.0
        %v5691 = vmul.f32 %v3340, %v3340
        %v5692 = vmin.f32 16.0, %v5691
        %v5693 = vmul.f32 %v5692, 2.1237322e-06
        %v5694 = vadd.f32 %v5693, 0.00028619796
        %v5695 = vmul.f32 %v5692, %v5694
        %v5696 = vadd.f32 %v5695, 0.0036580483
        %v5697 = vmul.f32 %v5692, %v5696
        %v5698 = vadd.f32 %v5697, 0.05243302
        %v5699 = vmul.f32 %v5692, %v5698
        %v5700 = vadd.f32 %v5699, 0.18741608
        %v5701 = vmul.f32 %v5692, %v5700
        %v5702 = vadd.f32 %v5701, 1.1283791
        %v5703 = vmul.f32 %v3340, %v5702
        %v5704 = vmul.f32 %v5692, 3.8918573e-05
        %v5705 = vadd.f32 %v5704, 0.001143296
        %v5706 = vmul.f32 %v5692, %v5705
        %v5707 = vadd.f32 %v5706, 0.014752088
        %v5708 = vmul.f32 %v5692, %v5707
        %v5709 = vadd.f32 %v5708, 0.112945676
        %v5710 = vmul.f32 %v5692, %v5709
        %v5711 = vadd.f32 %v5710, 0.4994258
        %v5712 = vmul.f32 %v5692, %v5711
        %v5713 = vadd.f32 %v5712, 1.0
        %v5714 = vrcp.pop %v5713
        %v5715 = vmul.f32 %v5713, %v5714
        %v5716 = vsub.f32 1.0, %v5715
        %v5717 = vmul.f32 %v5714, %v5716
        %v5718 = vadd.f32 %v5714, %v5717
        %vm5719 = vweird.f32 %v5713
        %vm5720 = vweird.f32 %v5714
        %vm5721 = vmor %vm5719, %vm5720
        %v5722 = vsel %vm5721, %v5714, %v5718
        %v5723 = vand.u32 2147483647, %v5713
        %vm5724 = vcmp.eq.f32.partialorder %v5723, 8.507059e+37
        %v5725 = vand.u32 %v5713, 2147483648
        %v5726 = vor.u32 1.1754944e-38, %v5725
        %v5727 = vsel %vm5724, %v5726, %v5722
        %v5728 = vmul.f32 %v5703, %v5727
        %v5729 = vmin.f32 %v5728, 1.0
        %v5730 = vmax.f32 %v5729, -1.0
        %v5731 = vmul.f32 %v3341, %v3341
        %v5732 = vmin.f32 16.0, %v5731
        %v5733 = vmul.f32 %v5732, 2.1237322e-06
        %v5734 = vadd.f32 %v5733, 0.00028619796
        %v5735 = vmul.f32 %v5732, %v5734
        %v5736 = vadd.f32 %v5735, 0.0036580483
        %v5737 = vmul.f32 %v5732, %v5736
        %v5738 = vadd.f32 %v5737, 0.05243302
        %v5739 = vmul.f32 %v5732, %v5738
        %v5740 = vadd.f32 %v5739, 0.18741608
        %v5741 = vmul.f32 %v5732, %v5740
        %v5742 = vadd.f32 %v5741, 1.1283791
        %v5743 = vmul.f32 %v3341, %v5742
        %v5744 = vmul.f32 %v5732, 3.8918573e-05
        %v5745 = vadd.f32 %v5744, 0.001143296
        %v5746 = vmul.f32 %v5732, %v5745
        %v5747 = vadd.f32 %v5746, 0.014752088
        %v5748 = vmul.f32 %v5732, %v5747
        %v5749 = vadd.f32 %v5748, 0.112945676
        %v5750 = vmul.f32 %v5732, %v5749
        %v5751 = vadd.f32 %v5750, 0.4994258
        %v5752 = vmul.f32 %v5732, %v5751
        %v5753 = vadd.f32 %v5752, 1.0
        %v5754 = vrcp.pop %v5753
        %v5755 = vmul.f32 %v5753, %v5754
        %v5756 = vsub.f32 1.0, %v5755
        %v5757 = vmul.f32 %v5754, %v5756
        %v5758 = vadd.f32 %v5754, %v5757
        %vm5759 = vweird.f32 %v5753
        %vm5760 = vweird.f32 %v5754
        %vm5761 = vmor %vm5759, %vm5760
        %v5762 = vsel %vm5761, %v5754, %v5758
        %v5763 = vand.u32 2147483647, %v5753
        %vm5764 = vcmp.eq.f32.partialorder %v5763, 8.507059e+37
        %v5765 = vand.u32 %v5753, 2147483648
        %v5766 = vor.u32 1.1754944e-38, %v5765
        %v5767 = vsel %vm5764, %v5766, %v5762
        %v5768 = vmul.f32 %v5743, %v5767
        %v5769 = vmin.f32 %v5768, 1.0
        %v5770 = vmax.f32 %v5769, -1.0
        %v5771 = vmul.f32 %v3342, %v3342
        %v5772 = vmin.f32 16.0, %v5771
        %v5773 = vmul.f32 %v5772, 2.1237322e-06
        %v5774 = vadd.f32 %v5773, 0.00028619796
        %v5775 = vmul.f32 %v5772, %v5774
        %v5776 = vadd.f32 %v5775, 0.0036580483
        %v5777 = vmul.f32 %v5772, %v5776
        %v5778 = vadd.f32 %v5777, 0.05243302
        %v5779 = vmul.f32 %v5772, %v5778
        %v5780 = vadd.f32 %v5779, 0.18741608
        %v5781 = vmul.f32 %v5772, %v5780
        %v5782 = vadd.f32 %v5781, 1.1283791
        %v5783 = vmul.f32 %v3342, %v5782
        %v5784 = vmul.f32 %v5772, 3.8918573e-05
        %v5785 = vadd.f32 %v5784, 0.001143296
        %v5786 = vmul.f32 %v5772, %v5785
        %v5787 = vadd.f32 %v5786, 0.014752088
        %v5788 = vmul.f32 %v5772, %v5787
        %v5789 = vadd.f32 %v5788, 0.112945676
        %v5790 = vmul.f32 %v5772, %v5789
        %v5791 = vadd.f32 %v5790, 0.4994258
        %v5792 = vmul.f32 %v5772, %v5791
        %v5793 = vadd.f32 %v5792, 1.0
        %v5794 = vrcp.pop %v5793
        %v5795 = vmul.f32 %v5793, %v5794
        %v5796 = vsub.f32 1.0, %v5795
        %v5797 = vmul.f32 %v5794, %v5796
        %v5798 = vadd.f32 %v5794, %v5797
        %vm5799 = vweird.f32 %v5793
        %vm5800 = vweird.f32 %v5794
        %vm5801 = vmor %vm5799, %vm5800
        %v5802 = vsel %vm5801, %v5794, %v5798
        %v5803 = vand.u32 2147483647, %v5793
        %vm5804 = vcmp.eq.f32.partialorder %v5803, 8.507059e+37
        %v5805 = vand.u32 %v5793, 2147483648
        %v5806 = vor.u32 1.1754944e-38, %v5805
        %v5807 = vsel %vm5804, %v5806, %v5802
        %v5808 = vmul.f32 %v5783, %v5807
        %v5809 = vmin.f32 %v5808, 1.0
        %v5810 = vmax.f32 %v5809, -1.0
        %v5811 = vmul.f32 %v3343, %v3343
        %v5812 = vmin.f32 16.0, %v5811
        %v5813 = vmul.f32 %v5812, 2.1237322e-06
        %v5814 = vadd.f32 %v5813, 0.00028619796
        %v5815 = vmul.f32 %v5812, %v5814
        %v5816 = vadd.f32 %v5815, 0.0036580483
        %v5817 = vmul.f32 %v5812, %v5816
        %v5818 = vadd.f32 %v5817, 0.05243302
        %v5819 = vmul.f32 %v5812, %v5818
        %v5820 = vadd.f32 %v5819, 0.18741608
        %v5821 = vmul.f32 %v5812, %v5820
        %v5822 = vadd.f32 %v5821, 1.1283791
        %v5823 = vmul.f32 %v3343, %v5822
        %v5824 = vmul.f32 %v5812, 3.8918573e-05
        %v5825 = vadd.f32 %v5824, 0.001143296
        %v5826 = vmul.f32 %v5812, %v5825
        %v5827 = vadd.f32 %v5826, 0.014752088
        %v5828 = vmul.f32 %v5812, %v5827
        %v5829 = vadd.f32 %v5828, 0.112945676
        %v5830 = vmul.f32 %v5812, %v5829
        %v5831 = vadd.f32 %v5830, 0.4994258
        %v5832 = vmul.f32 %v5812, %v5831
        %v5833 = vadd.f32 %v5832, 1.0
        %v5834 = vrcp.pop %v5833
        %v5835 = vmul.f32 %v5833, %v5834
        %v5836 = vsub.f32 1.0, %v5835
        %v5837 = vmul.f32 %v5834, %v5836
        %v5838 = vadd.f32 %v5834, %v5837
        %vm5839 = vweird.f32 %v5833
        %vm5840 = vweird.f32 %v5834
        %vm5841 = vmor %vm5839, %vm5840
        %v5842 = vsel %vm5841, %v5834, %v5838
        %v5843 = vand.u32 2147483647, %v5833
        %vm5844 = vcmp.eq.f32.partialorder %v5843, 8.507059e+37
        %v5845 = vand.u32 %v5833, 2147483648
        %v5846 = vor.u32 1.1754944e-38, %v5845
        %v5847 = vsel %vm5844, %v5846, %v5842
        %v5848 = vmul.f32 %v5823, %v5847
        %v5849 = vmin.f32 %v5848, 1.0
        %v5850 = vmax.f32 %v5849, -1.0
        %v5851 = vmul.f32 %v3344, %v3344
        %v5852 = vmin.f32 16.0, %v5851
        %v5853 = vmul.f32 %v5852, 2.1237322e-06
        %v5854 = vadd.f32 %v5853, 0.00028619796
        %v5855 = vmul.f32 %v5852, %v5854
        %v5856 = vadd.f32 %v5855, 0.0036580483
        %v5857 = vmul.f32 %v5852, %v5856
        %v5858 = vadd.f32 %v5857, 0.05243302
        %v5859 = vmul.f32 %v5852, %v5858
        %v5860 = vadd.f32 %v5859, 0.18741608
        %v5861 = vmul.f32 %v5852, %v5860
        %v5862 = vadd.f32 %v5861, 1.1283791
        %v5863 = vmul.f32 %v3344, %v5862
        %v5864 = vmul.f32 %v5852, 3.8918573e-05
        %v5865 = vadd.f32 %v5864, 0.001143296
        %v5866 = vmul.f32 %v5852, %v5865
        %v5867 = vadd.f32 %v5866, 0.014752088
        %v5868 = vmul.f32 %v5852, %v5867
        %v5869 = vadd.f32 %v5868, 0.112945676
        %v5870 = vmul.f32 %v5852, %v5869
        %v5871 = vadd.f32 %v5870, 0.4994258
        %v5872 = vmul.f32 %v5852, %v5871
        %v5873 = vadd.f32 %v5872, 1.0
        %v5874 = vrcp.pop %v5873
        %v5875 = vmul.f32 %v5873, %v5874
        %v5876 = vsub.f32 1.0, %v5875
        %v5877 = vmul.f32 %v5874, %v5876
        %v5878 = vadd.f32 %v5874, %v5877
        %vm5879 = vweird.f32 %v5873
        %vm5880 = vweird.f32 %v5874
        %vm5881 = vmor %vm5879, %vm5880
        %v5882 = vsel %vm5881, %v5874, %v5878
        %v5883 = vand.u32 2147483647, %v5873
        %vm5884 = vcmp.eq.f32.partialorder %v5883, 8.507059e+37
        %v5885 = vand.u32 %v5873, 2147483648
        %v5886 = vor.u32 1.1754944e-38, %v5885
        %v5887 = vsel %vm5884, %v5886, %v5882
        %v5888 = vmul.f32 %v5863, %v5887
        %v5889 = vmin.f32 %v5888, 1.0
        %v5890 = vmax.f32 %v5889, -1.0
        %v5891 = vmul.f32 %v3345, %v3345
        %v5892 = vmin.f32 16.0, %v5891
        %v5893 = vmul.f32 %v5892, 2.1237322e-06
        %v5894 = vadd.f32 %v5893, 0.00028619796
        %v5895 = vmul.f32 %v5892, %v5894
        %v5896 = vadd.f32 %v5895, 0.0036580483
        %v5897 = vmul.f32 %v5892, %v5896
        %v5898 = vadd.f32 %v5897, 0.05243302
        %v5899 = vmul.f32 %v5892, %v5898
        %v5900 = vadd.f32 %v5899, 0.18741608
        %v5901 = vmul.f32 %v5892, %v5900
        %v5902 = vadd.f32 %v5901, 1.1283791
        %v5903 = vmul.f32 %v3345, %v5902
        %v5904 = vmul.f32 %v5892, 3.8918573e-05
        %v5905 = vadd.f32 %v5904, 0.001143296
        %v5906 = vmul.f32 %v5892, %v5905
        %v5907 = vadd.f32 %v5906, 0.014752088
        %v5908 = vmul.f32 %v5892, %v5907
        %v5909 = vadd.f32 %v5908, 0.112945676
        %v5910 = vmul.f32 %v5892, %v5909
        %v5911 = vadd.f32 %v5910, 0.4994258
        %v5912 = vmul.f32 %v5892, %v5911
        %v5913 = vadd.f32 %v5912, 1.0
        %v5914 = vrcp.pop %v5913
        %v5915 = vmul.f32 %v5913, %v5914
        %v5916 = vsub.f32 1.0, %v5915
        %v5917 = vmul.f32 %v5914, %v5916
        %v5918 = vadd.f32 %v5914, %v5917
        %vm5919 = vweird.f32 %v5913
        %vm5920 = vweird.f32 %v5914
        %vm5921 = vmor %vm5919, %vm5920
        %v5922 = vsel %vm5921, %v5914, %v5918
        %v5923 = vand.u32 2147483647, %v5913
        %vm5924 = vcmp.eq.f32.partialorder %v5923, 8.507059e+37
        %v5925 = vand.u32 %v5913, 2147483648
        %v5926 = vor.u32 1.1754944e-38, %v5925
        %v5927 = vsel %vm5924, %v5926, %v5922
        %v5928 = vmul.f32 %v5903, %v5927
        %v5929 = vmin.f32 %v5928, 1.0
        %v5930 = vmax.f32 %v5929, -1.0
        %v5931 = vmul.f32 %v3346, %v3346
        %v5932 = vmin.f32 16.0, %v5931
        %v5933 = vmul.f32 %v5932, 2.1237322e-06
        %v5934 = vadd.f32 %v5933, 0.00028619796
        %v5935 = vmul.f32 %v5932, %v5934
        %v5936 = vadd.f32 %v5935, 0.0036580483
        %v5937 = vmul.f32 %v5932, %v5936
        %v5938 = vadd.f32 %v5937, 0.05243302
        %v5939 = vmul.f32 %v5932, %v5938
        %v5940 = vadd.f32 %v5939, 0.18741608
        %v5941 = vmul.f32 %v5932, %v5940
        %v5942 = vadd.f32 %v5941, 1.1283791
        %v5943 = vmul.f32 %v3346, %v5942
        %v5944 = vmul.f32 %v5932, 3.8918573e-05
        %v5945 = vadd.f32 %v5944, 0.001143296
        %v5946 = vmul.f32 %v5932, %v5945
        %v5947 = vadd.f32 %v5946, 0.014752088
        %v5948 = vmul.f32 %v5932, %v5947
        %v5949 = vadd.f32 %v5948, 0.112945676
        %v5950 = vmul.f32 %v5932, %v5949
        %v5951 = vadd.f32 %v5950, 0.4994258
        %v5952 = vmul.f32 %v5932, %v5951
        %v5953 = vadd.f32 %v5952, 1.0
        %v5954 = vrcp.pop %v5953
        %v5955 = vmul.f32 %v5953, %v5954
        %v5956 = vsub.f32 1.0, %v5955
        %v5957 = vmul.f32 %v5954, %v5956
        %v5958 = vadd.f32 %v5954, %v5957
        %vm5959 = vweird.f32 %v5953
        %vm5960 = vweird.f32 %v5954
        %vm5961 = vmor %vm5959, %vm5960
        %v5962 = vsel %vm5961, %v5954, %v5958
        %v5963 = vand.u32 2147483647, %v5953
        %vm5964 = vcmp.eq.f32.partialorder %v5963, 8.507059e+37
        %v5965 = vand.u32 %v5953, 2147483648
        %v5966 = vor.u32 1.1754944e-38, %v5965
        %v5967 = vsel %vm5964, %v5966, %v5962
        %v5968 = vmul.f32 %v5943, %v5967
        %v5969 = vmin.f32 %v5968, 1.0
        %v5970 = vmax.f32 %v5969, -1.0
        %v5971 = vmul.f32 %v3347, %v3347
        %v5972 = vmin.f32 16.0, %v5971
        %v5973 = vmul.f32 %v5972, 2.1237322e-06
        %v5974 = vadd.f32 %v5973, 0.00028619796
        %v5975 = vmul.f32 %v5972, %v5974
        %v5976 = vadd.f32 %v5975, 0.0036580483
        %v5977 = vmul.f32 %v5972, %v5976
        %v5978 = vadd.f32 %v5977, 0.05243302
        %v5979 = vmul.f32 %v5972, %v5978
        %v5980 = vadd.f32 %v5979, 0.18741608
        %v5981 = vmul.f32 %v5972, %v5980
        %v5982 = vadd.f32 %v5981, 1.1283791
        %v5983 = vmul.f32 %v3347, %v5982
        %v5984 = vmul.f32 %v5972, 3.8918573e-05
        %v5985 = vadd.f32 %v5984, 0.001143296
        %v5986 = vmul.f32 %v5972, %v5985
        %v5987 = vadd.f32 %v5986, 0.014752088
        %v5988 = vmul.f32 %v5972, %v5987
        %v5989 = vadd.f32 %v5988, 0.112945676
        %v5990 = vmul.f32 %v5972, %v5989
        %v5991 = vadd.f32 %v5990, 0.4994258
        %v5992 = vmul.f32 %v5972, %v5991
        %v5993 = vadd.f32 %v5992, 1.0
        %v5994 = vrcp.pop %v5993
        %v5995 = vmul.f32 %v5993, %v5994
        %v5996 = vsub.f32 1.0, %v5995
        %v5997 = vmul.f32 %v5994, %v5996
        %v5998 = vadd.f32 %v5994, %v5997
        %vm5999 = vweird.f32 %v5993
        %vm6000 = vweird.f32 %v5994
        %vm6001 = vmor %vm5999, %vm6000
        %v6002 = vsel %vm6001, %v5994, %v5998
        %v6003 = vand.u32 2147483647, %v5993
        %vm6004 = vcmp.eq.f32.partialorder %v6003, 8.507059e+37
        %v6005 = vand.u32 %v5993, 2147483648
        %v6006 = vor.u32 1.1754944e-38, %v6005
        %v6007 = vsel %vm6004, %v6006, %v6002
        %v6008 = vmul.f32 %v5983, %v6007
        %v6009 = vmin.f32 %v6008, 1.0
        %v6010 = vmax.f32 %v6009, -1.0
        %v6011 = vmul.f32 %v3348, %v3348
        %v6012 = vmin.f32 16.0, %v6011
        %v6013 = vmul.f32 %v6012, 2.1237322e-06
        %v6014 = vadd.f32 %v6013, 0.00028619796
        %v6015 = vmul.f32 %v6012, %v6014
        %v6016 = vadd.f32 %v6015, 0.0036580483
        %v6017 = vmul.f32 %v6012, %v6016
        %v6018 = vadd.f32 %v6017, 0.05243302
        %v6019 = vmul.f32 %v6012, %v6018
        %v6020 = vadd.f32 %v6019, 0.18741608
        %v6021 = vmul.f32 %v6012, %v6020
        %v6022 = vadd.f32 %v6021, 1.1283791
        %v6023 = vmul.f32 %v3348, %v6022
        %v6024 = vmul.f32 %v6012, 3.8918573e-05
        %v6025 = vadd.f32 %v6024, 0.001143296
        %v6026 = vmul.f32 %v6012, %v6025
        %v6027 = vadd.f32 %v6026, 0.014752088
        %v6028 = vmul.f32 %v6012, %v6027
        %v6029 = vadd.f32 %v6028, 0.112945676
        %v6030 = vmul.f32 %v6012, %v6029
        %v6031 = vadd.f32 %v6030, 0.4994258
        %v6032 = vmul.f32 %v6012, %v6031
        %v6033 = vadd.f32 %v6032, 1.0
        %v6034 = vrcp.pop %v6033
        %v6035 = vmul.f32 %v6033, %v6034
        %v6036 = vsub.f32 1.0, %v6035
        %v6037 = vmul.f32 %v6034, %v6036
        %v6038 = vadd.f32 %v6034, %v6037
        %vm6039 = vweird.f32 %v6033
        %vm6040 = vweird.f32 %v6034
        %vm6041 = vmor %vm6039, %vm6040
        %v6042 = vsel %vm6041, %v6034, %v6038
        %v6043 = vand.u32 2147483647, %v6033
        %vm6044 = vcmp.eq.f32.partialorder %v6043, 8.507059e+37
        %v6045 = vand.u32 %v6033, 2147483648
        %v6046 = vor.u32 1.1754944e-38, %v6045
        %v6047 = vsel %vm6044, %v6046, %v6042
        %v6048 = vmul.f32 %v6023, %v6047
        %v6049 = vmin.f32 %v6048, 1.0
        %v6050 = vmax.f32 %v6049, -1.0
        %v6051 = vmul.f32 %v3349, %v3349
        %v6052 = vmin.f32 16.0, %v6051
        %v6053 = vmul.f32 %v6052, 2.1237322e-06
        %v6054 = vadd.f32 %v6053, 0.00028619796
        %v6055 = vmul.f32 %v6052, %v6054
        %v6056 = vadd.f32 %v6055, 0.0036580483
        %v6057 = vmul.f32 %v6052, %v6056
        %v6058 = vadd.f32 %v6057, 0.05243302
        %v6059 = vmul.f32 %v6052, %v6058
        %v6060 = vadd.f32 %v6059, 0.18741608
        %v6061 = vmul.f32 %v6052, %v6060
        %v6062 = vadd.f32 %v6061, 1.1283791
        %v6063 = vmul.f32 %v3349, %v6062
        %v6064 = vmul.f32 %v6052, 3.8918573e-05
        %v6065 = vadd.f32 %v6064, 0.001143296
        %v6066 = vmul.f32 %v6052, %v6065
        %v6067 = vadd.f32 %v6066, 0.014752088
        %v6068 = vmul.f32 %v6052, %v6067
        %v6069 = vadd.f32 %v6068, 0.112945676
        %v6070 = vmul.f32 %v6052, %v6069
        %v6071 = vadd.f32 %v6070, 0.4994258
        %v6072 = vmul.f32 %v6052, %v6071
        %v6073 = vadd.f32 %v6072, 1.0
        %v6074 = vrcp.pop %v6073
        %v6075 = vmul.f32 %v6073, %v6074
        %v6076 = vsub.f32 1.0, %v6075
        %v6077 = vmul.f32 %v6074, %v6076
        %v6078 = vadd.f32 %v6074, %v6077
        %vm6079 = vweird.f32 %v6073
        %vm6080 = vweird.f32 %v6074
        %vm6081 = vmor %vm6079, %vm6080
        %v6082 = vsel %vm6081, %v6074, %v6078
        %v6083 = vand.u32 2147483647, %v6073
        %vm6084 = vcmp.eq.f32.partialorder %v6083, 8.507059e+37
        %v6085 = vand.u32 %v6073, 2147483648
        %v6086 = vor.u32 1.1754944e-38, %v6085
        %v6087 = vsel %vm6084, %v6086, %v6082
        %v6088 = vmul.f32 %v6063, %v6087
        %v6089 = vmin.f32 %v6088, 1.0
        %v6090 = vmax.f32 %v6089, -1.0
        %v6091 = vmul.f32 %v3350, %v3350
        %v6092 = vmin.f32 16.0, %v6091
        %v6093 = vmul.f32 %v6092, 2.1237322e-06
        %v6094 = vadd.f32 %v6093, 0.00028619796
        %v6095 = vmul.f32 %v6092, %v6094
        %v6096 = vadd.f32 %v6095, 0.0036580483
        %v6097 = vmul.f32 %v6092, %v6096
        %v6098 = vadd.f32 %v6097, 0.05243302
        %v6099 = vmul.f32 %v6092, %v6098
        %v6100 = vadd.f32 %v6099, 0.18741608
        %v6101 = vmul.f32 %v6092, %v6100
        %v6102 = vadd.f32 %v6101, 1.1283791
        %v6103 = vmul.f32 %v3350, %v6102
        %v6104 = vmul.f32 %v6092, 3.8918573e-05
        %v6105 = vadd.f32 %v6104, 0.001143296
        %v6106 = vmul.f32 %v6092, %v6105
        %v6107 = vadd.f32 %v6106, 0.014752088
        %v6108 = vmul.f32 %v6092, %v6107
        %v6109 = vadd.f32 %v6108, 0.112945676
        %v6110 = vmul.f32 %v6092, %v6109
        %v6111 = vadd.f32 %v6110, 0.4994258
        %v6112 = vmul.f32 %v6092, %v6111
        %v6113 = vadd.f32 %v6112, 1.0
        %v6114 = vrcp.pop %v6113
        %v6115 = vmul.f32 %v6113, %v6114
        %v6116 = vsub.f32 1.0, %v6115
        %v6117 = vmul.f32 %v6114, %v6116
        %v6118 = vadd.f32 %v6114, %v6117
        %vm6119 = vweird.f32 %v6113
        %vm6120 = vweird.f32 %v6114
        %vm6121 = vmor %vm6119, %vm6120
        %v6122 = vsel %vm6121, %v6114, %v6118
        %v6123 = vand.u32 2147483647, %v6113
        %vm6124 = vcmp.eq.f32.partialorder %v6123, 8.507059e+37
        %v6125 = vand.u32 %v6113, 2147483648
        %v6126 = vor.u32 1.1754944e-38, %v6125
        %v6127 = vsel %vm6124, %v6126, %v6122
        %v6128 = vmul.f32 %v6103, %v6127
        %v6129 = vmin.f32 %v6128, 1.0
        %v6130 = vmax.f32 %v6129, -1.0
        %v6131 = vmul.f32 %v3351, %v3351
        %v6132 = vmin.f32 16.0, %v6131
        %v6133 = vmul.f32 %v6132, 2.1237322e-06
        %v6134 = vadd.f32 %v6133, 0.00028619796
        %v6135 = vmul.f32 %v6132, %v6134
        %v6136 = vadd.f32 %v6135, 0.0036580483
        %v6137 = vmul.f32 %v6132, %v6136
        %v6138 = vadd.f32 %v6137, 0.05243302
        %v6139 = vmul.f32 %v6132, %v6138
        %v6140 = vadd.f32 %v6139, 0.18741608
        %v6141 = vmul.f32 %v6132, %v6140
        %v6142 = vadd.f32 %v6141, 1.1283791
        %v6143 = vmul.f32 %v3351, %v6142
        %v6144 = vmul.f32 %v6132, 3.8918573e-05
        %v6145 = vadd.f32 %v6144, 0.001143296
        %v6146 = vmul.f32 %v6132, %v6145
        %v6147 = vadd.f32 %v6146, 0.014752088
        %v6148 = vmul.f32 %v6132, %v6147
        %v6149 = vadd.f32 %v6148, 0.112945676
        %v6150 = vmul.f32 %v6132, %v6149
        %v6151 = vadd.f32 %v6150, 0.4994258
        %v6152 = vmul.f32 %v6132, %v6151
        %v6153 = vadd.f32 %v6152, 1.0
        %v6154 = vrcp.pop %v6153
        %v6155 = vmul.f32 %v6153, %v6154
        %v6156 = vsub.f32 1.0, %v6155
        %v6157 = vmul.f32 %v6154, %v6156
        %v6158 = vadd.f32 %v6154, %v6157
        %vm6159 = vweird.f32 %v6153
        %vm6160 = vweird.f32 %v6154
        %vm6161 = vmor %vm6159, %vm6160
        %v6162 = vsel %vm6161, %v6154, %v6158
        %v6163 = vand.u32 2147483647, %v6153
        %vm6164 = vcmp.eq.f32.partialorder %v6163, 8.507059e+37
        %v6165 = vand.u32 %v6153, 2147483648
        %v6166 = vor.u32 1.1754944e-38, %v6165
        %v6167 = vsel %vm6164, %v6166, %v6162
        %v6168 = vmul.f32 %v6143, %v6167
        %v6169 = vmin.f32 %v6168, 1.0
        %v6170 = vmax.f32 %v6169, -1.0
        %v6171 = vmul.f32 %v3352, %v3352
        %v6172 = vmin.f32 16.0, %v6171
        %v6173 = vmul.f32 %v6172, 2.1237322e-06
        %v6174 = vadd.f32 %v6173, 0.00028619796
        %v6175 = vmul.f32 %v6172, %v6174
        %v6176 = vadd.f32 %v6175, 0.0036580483
        %v6177 = vmul.f32 %v6172, %v6176
        %v6178 = vadd.f32 %v6177, 0.05243302
        %v6179 = vmul.f32 %v6172, %v6178
        %v6180 = vadd.f32 %v6179, 0.18741608
        %v6181 = vmul.f32 %v6172, %v6180
        %v6182 = vadd.f32 %v6181, 1.1283791
        %v6183 = vmul.f32 %v3352, %v6182
        %v6184 = vmul.f32 %v6172, 3.8918573e-05
        %v6185 = vadd.f32 %v6184, 0.001143296
        %v6186 = vmul.f32 %v6172, %v6185
        %v6187 = vadd.f32 %v6186, 0.014752088
        %v6188 = vmul.f32 %v6172, %v6187
        %v6189 = vadd.f32 %v6188, 0.112945676
        %v6190 = vmul.f32 %v6172, %v6189
        %v6191 = vadd.f32 %v6190, 0.4994258
        %v6192 = vmul.f32 %v6172, %v6191
        %v6193 = vadd.f32 %v6192, 1.0
        %v6194 = vrcp.pop %v6193
        %v6195 = vmul.f32 %v6193, %v6194
        %v6196 = vsub.f32 1.0, %v6195
        %v6197 = vmul.f32 %v6194, %v6196
        %v6198 = vadd.f32 %v6194, %v6197
        %vm6199 = vweird.f32 %v6193
        %vm6200 = vweird.f32 %v6194
        %vm6201 = vmor %vm6199, %vm6200
        %v6202 = vsel %vm6201, %v6194, %v6198
        %v6203 = vand.u32 2147483647, %v6193
        %vm6204 = vcmp.eq.f32.partialorder %v6203, 8.507059e+37
        %v6205 = vand.u32 %v6193, 2147483648
        %v6206 = vor.u32 1.1754944e-38, %v6205
        %v6207 = vsel %vm6204, %v6206, %v6202
        %v6208 = vmul.f32 %v6183, %v6207
        %v6209 = vmin.f32 %v6208, 1.0
        %v6210 = vmax.f32 %v6209, -1.0
        %v6211 = vmul.f32 %v3353, %v3353
        %v6212 = vmin.f32 16.0, %v6211
        %v6213 = vmul.f32 %v6212, 2.1237322e-06
        %v6214 = vadd.f32 %v6213, 0.00028619796
        %v6215 = vmul.f32 %v6212, %v6214
        %v6216 = vadd.f32 %v6215, 0.0036580483
        %v6217 = vmul.f32 %v6212, %v6216
        %v6218 = vadd.f32 %v6217, 0.05243302
        %v6219 = vmul.f32 %v6212, %v6218
        %v6220 = vadd.f32 %v6219, 0.18741608
        %v6221 = vmul.f32 %v6212, %v6220
        %v6222 = vadd.f32 %v6221, 1.1283791
        %v6223 = vmul.f32 %v3353, %v6222
        %v6224 = vmul.f32 %v6212, 3.8918573e-05
        %v6225 = vadd.f32 %v6224, 0.001143296
        %v6226 = vmul.f32 %v6212, %v6225
        %v6227 = vadd.f32 %v6226, 0.014752088
        %v6228 = vmul.f32 %v6212, %v6227
        %v6229 = vadd.f32 %v6228, 0.112945676
        %v6230 = vmul.f32 %v6212, %v6229
        %v6231 = vadd.f32 %v6230, 0.4994258
        %v6232 = vmul.f32 %v6212, %v6231
        %v6233 = vadd.f32 %v6232, 1.0
        %v6234 = vrcp.pop %v6233
        %v6235 = vmul.f32 %v6233, %v6234
        %v6236 = vsub.f32 1.0, %v6235
        %v6237 = vmul.f32 %v6234, %v6236
        %v6238 = vadd.f32 %v6234, %v6237
        %vm6239 = vweird.f32 %v6233
        %vm6240 = vweird.f32 %v6234
        %vm6241 = vmor %vm6239, %vm6240
        %v6242 = vsel %vm6241, %v6234, %v6238
        %v6243 = vand.u32 2147483647, %v6233
        %vm6244 = vcmp.eq.f32.partialorder %v6243, 8.507059e+37
        %v6245 = vand.u32 %v6233, 2147483648
        %v6246 = vor.u32 1.1754944e-38, %v6245
        %v6247 = vsel %vm6244, %v6246, %v6242
        %v6248 = vmul.f32 %v6223, %v6247
        %v6249 = vmin.f32 %v6248, 1.0
        %v6250 = vmax.f32 %v6249, -1.0
        %v6251 = vmul.f32 %v3354, %v3354
        %v6252 = vmin.f32 16.0, %v6251
        %v6253 = vmul.f32 %v6252, 2.1237322e-06
        %v6254 = vadd.f32 %v6253, 0.00028619796
        %v6255 = vmul.f32 %v6252, %v6254
        %v6256 = vadd.f32 %v6255, 0.0036580483
        %v6257 = vmul.f32 %v6252, %v6256
        %v6258 = vadd.f32 %v6257, 0.05243302
        %v6259 = vmul.f32 %v6252, %v6258
        %v6260 = vadd.f32 %v6259, 0.18741608
        %v6261 = vmul.f32 %v6252, %v6260
        %v6262 = vadd.f32 %v6261, 1.1283791
        %v6263 = vmul.f32 %v3354, %v6262
        %v6264 = vmul.f32 %v6252, 3.8918573e-05
        %v6265 = vadd.f32 %v6264, 0.001143296
        %v6266 = vmul.f32 %v6252, %v6265
        %v6267 = vadd.f32 %v6266, 0.014752088
        %v6268 = vmul.f32 %v6252, %v6267
        %v6269 = vadd.f32 %v6268, 0.112945676
        %v6270 = vmul.f32 %v6252, %v6269
        %v6271 = vadd.f32 %v6270, 0.4994258
        %v6272 = vmul.f32 %v6252, %v6271
        %v6273 = vadd.f32 %v6272, 1.0
        %v6274 = vrcp.pop %v6273
        %v6275 = vmul.f32 %v6273, %v6274
        %v6276 = vsub.f32 1.0, %v6275
        %v6277 = vmul.f32 %v6274, %v6276
        %v6278 = vadd.f32 %v6274, %v6277
        %vm6279 = vweird.f32 %v6273
        %vm6280 = vweird.f32 %v6274
        %vm6281 = vmor %vm6279, %vm6280
        %v6282 = vsel %vm6281, %v6274, %v6278
        %v6283 = vand.u32 2147483647, %v6273
        %vm6284 = vcmp.eq.f32.partialorder %v6283, 8.507059e+37
        %v6285 = vand.u32 %v6273, 2147483648
        %v6286 = vor.u32 1.1754944e-38, %v6285
        %v6287 = vsel %vm6284, %v6286, %v6282
        %v6288 = vmul.f32 %v6263, %v6287
        %v6289 = vmin.f32 %v6288, 1.0
        %v6290 = vmax.f32 %v6289, -1.0
        %v6291 = vmul.f32 %v3355, %v3355
        %v6292 = vmin.f32 16.0, %v6291
        %v6293 = vmul.f32 %v6292, 2.1237322e-06
        %v6294 = vadd.f32 %v6293, 0.00028619796
        %v6295 = vmul.f32 %v6292, %v6294
        %v6296 = vadd.f32 %v6295, 0.0036580483
        %v6297 = vmul.f32 %v6292, %v6296
        %v6298 = vadd.f32 %v6297, 0.05243302
        %v6299 = vmul.f32 %v6292, %v6298
        %v6300 = vadd.f32 %v6299, 0.18741608
        %v6301 = vmul.f32 %v6292, %v6300
        %v6302 = vadd.f32 %v6301, 1.1283791
        %v6303 = vmul.f32 %v3355, %v6302
        %v6304 = vmul.f32 %v6292, 3.8918573e-05
        %v6305 = vadd.f32 %v6304, 0.001143296
        %v6306 = vmul.f32 %v6292, %v6305
        %v6307 = vadd.f32 %v6306, 0.014752088
        %v6308 = vmul.f32 %v6292, %v6307
        %v6309 = vadd.f32 %v6308, 0.112945676
        %v6310 = vmul.f32 %v6292, %v6309
        %v6311 = vadd.f32 %v6310, 0.4994258
        %v6312 = vmul.f32 %v6292, %v6311
        %v6313 = vadd.f32 %v6312, 1.0
        %v6314 = vrcp.pop %v6313
        %v6315 = vmul.f32 %v6313, %v6314
        %v6316 = vsub.f32 1.0, %v6315
        %v6317 = vmul.f32 %v6314, %v6316
        %v6318 = vadd.f32 %v6314, %v6317
        %vm6319 = vweird.f32 %v6313
        %vm6320 = vweird.f32 %v6314
        %vm6321 = vmor %vm6319, %vm6320
        %v6322 = vsel %vm6321, %v6314, %v6318
        %v6323 = vand.u32 2147483647, %v6313
        %vm6324 = vcmp.eq.f32.partialorder %v6323, 8.507059e+37
        %v6325 = vand.u32 %v6313, 2147483648
        %v6326 = vor.u32 1.1754944e-38, %v6325
        %v6327 = vsel %vm6324, %v6326, %v6322
        %v6328 = vmul.f32 %v6303, %v6327
        %v6329 = vmin.f32 %v6328, 1.0
        %v6330 = vmax.f32 %v6329, -1.0
        %v6331 = vmul.f32 %v3356, %v3356
        %v6332 = vmin.f32 16.0, %v6331
        %v6333 = vmul.f32 %v6332, 2.1237322e-06
        %v6334 = vadd.f32 %v6333, 0.00028619796
        %v6335 = vmul.f32 %v6332, %v6334
        %v6336 = vadd.f32 %v6335, 0.0036580483
        %v6337 = vmul.f32 %v6332, %v6336
        %v6338 = vadd.f32 %v6337, 0.05243302
        %v6339 = vmul.f32 %v6332, %v6338
        %v6340 = vadd.f32 %v6339, 0.18741608
        %v6341 = vmul.f32 %v6332, %v6340
        %v6342 = vadd.f32 %v6341, 1.1283791
        %v6343 = vmul.f32 %v3356, %v6342
        %v6344 = vmul.f32 %v6332, 3.8918573e-05
        %v6345 = vadd.f32 %v6344, 0.001143296
        %v6346 = vmul.f32 %v6332, %v6345
        %v6347 = vadd.f32 %v6346, 0.014752088
        %v6348 = vmul.f32 %v6332, %v6347
        %v6349 = vadd.f32 %v6348, 0.112945676
        %v6350 = vmul.f32 %v6332, %v6349
        %v6351 = vadd.f32 %v6350, 0.4994258
        %v6352 = vmul.f32 %v6332, %v6351
        %v6353 = vadd.f32 %v6352, 1.0
        %v6354 = vrcp.pop %v6353
        %v6355 = vmul.f32 %v6353, %v6354
        %v6356 = vsub.f32 1.0, %v6355
        %v6357 = vmul.f32 %v6354, %v6356
        %v6358 = vadd.f32 %v6354, %v6357
        %vm6359 = vweird.f32 %v6353
        %vm6360 = vweird.f32 %v6354
        %vm6361 = vmor %vm6359, %vm6360
        %v6362 = vsel %vm6361, %v6354, %v6358
        %v6363 = vand.u32 2147483647, %v6353
        %vm6364 = vcmp.eq.f32.partialorder %v6363, 8.507059e+37
        %v6365 = vand.u32 %v6353, 2147483648
        %v6366 = vor.u32 1.1754944e-38, %v6365
        %v6367 = vsel %vm6364, %v6366, %v6362
        %v6368 = vmul.f32 %v6343, %v6367
        %v6369 = vmin.f32 %v6368, 1.0
        %v6370 = vmax.f32 %v6369, -1.0
        %v6371 = vmul.f32 %v3357, %v3357
        %v6372 = vmin.f32 16.0, %v6371
        %v6373 = vmul.f32 %v6372, 2.1237322e-06
        %v6374 = vadd.f32 %v6373, 0.00028619796
        %v6375 = vmul.f32 %v6372, %v6374
        %v6376 = vadd.f32 %v6375, 0.0036580483
        %v6377 = vmul.f32 %v6372, %v6376
        %v6378 = vadd.f32 %v6377, 0.05243302
        %v6379 = vmul.f32 %v6372, %v6378
        %v6380 = vadd.f32 %v6379, 0.18741608
        %v6381 = vmul.f32 %v6372, %v6380
        %v6382 = vadd.f32 %v6381, 1.1283791
        %v6383 = vmul.f32 %v3357, %v6382
        %v6384 = vmul.f32 %v6372, 3.8918573e-05
        %v6385 = vadd.f32 %v6384, 0.001143296
        %v6386 = vmul.f32 %v6372, %v6385
        %v6387 = vadd.f32 %v6386, 0.014752088
        %v6388 = vmul.f32 %v6372, %v6387
        %v6389 = vadd.f32 %v6388, 0.112945676
        %v6390 = vmul.f32 %v6372, %v6389
        %v6391 = vadd.f32 %v6390, 0.4994258
        %v6392 = vmul.f32 %v6372, %v6391
        %v6393 = vadd.f32 %v6392, 1.0
        %v6394 = vrcp.pop %v6393
        %v6395 = vmul.f32 %v6393, %v6394
        %v6396 = vsub.f32 1.0, %v6395
        %v6397 = vmul.f32 %v6394, %v6396
        %v6398 = vadd.f32 %v6394, %v6397
        %vm6399 = vweird.f32 %v6393
        %vm6400 = vweird.f32 %v6394
        %vm6401 = vmor %vm6399, %vm6400
        %v6402 = vsel %vm6401, %v6394, %v6398
        %v6403 = vand.u32 2147483647, %v6393
        %vm6404 = vcmp.eq.f32.partialorder %v6403, 8.507059e+37
        %v6405 = vand.u32 %v6393, 2147483648
        %v6406 = vor.u32 1.1754944e-38, %v6405
        %v6407 = vsel %vm6404, %v6406, %v6402
        %v6408 = vmul.f32 %v6383, %v6407
        %v6409 = vmin.f32 %v6408, 1.0
        %v6410 = vmax.f32 %v6409, -1.0
        %v6411 = vmul.f32 %v3358, %v3358
        %v6412 = vmin.f32 16.0, %v6411
        %v6413 = vmul.f32 %v6412, 2.1237322e-06
        %v6414 = vadd.f32 %v6413, 0.00028619796
        %v6415 = vmul.f32 %v6412, %v6414
        %v6416 = vadd.f32 %v6415, 0.0036580483
        %v6417 = vmul.f32 %v6412, %v6416
        %v6418 = vadd.f32 %v6417, 0.05243302
        %v6419 = vmul.f32 %v6412, %v6418
        %v6420 = vadd.f32 %v6419, 0.18741608
        %v6421 = vmul.f32 %v6412, %v6420
        %v6422 = vadd.f32 %v6421, 1.1283791
        %v6423 = vmul.f32 %v3358, %v6422
        %v6424 = vmul.f32 %v6412, 3.8918573e-05
        %v6425 = vadd.f32 %v6424, 0.001143296
        %v6426 = vmul.f32 %v6412, %v6425
        %v6427 = vadd.f32 %v6426, 0.014752088
        %v6428 = vmul.f32 %v6412, %v6427
        %v6429 = vadd.f32 %v6428, 0.112945676
        %v6430 = vmul.f32 %v6412, %v6429
        %v6431 = vadd.f32 %v6430, 0.4994258
        %v6432 = vmul.f32 %v6412, %v6431
        %v6433 = vadd.f32 %v6432, 1.0
        %v6434 = vrcp.pop %v6433
        %v6435 = vmul.f32 %v6433, %v6434
        %v6436 = vsub.f32 1.0, %v6435
        %v6437 = vmul.f32 %v6434, %v6436
        %v6438 = vadd.f32 %v6434, %v6437
        %vm6439 = vweird.f32 %v6433
        %vm6440 = vweird.f32 %v6434
        %vm6441 = vmor %vm6439, %vm6440
        %v6442 = vsel %vm6441, %v6434, %v6438
        %v6443 = vand.u32 2147483647, %v6433
        %vm6444 = vcmp.eq.f32.partialorder %v6443, 8.507059e+37
        %v6445 = vand.u32 %v6433, 2147483648
        %v6446 = vor.u32 1.1754944e-38, %v6445
        %v6447 = vsel %vm6444, %v6446, %v6442
        %v6448 = vmul.f32 %v6423, %v6447
        %v6449 = vmin.f32 %v6448, 1.0
        %v6450 = vmax.f32 %v6449, -1.0
        %v6451 = vmul.f32 %v3359, %v3359
        %v6452 = vmin.f32 16.0, %v6451
        %v6453 = vmul.f32 %v6452, 2.1237322e-06
        %v6454 = vadd.f32 %v6453, 0.00028619796
        %v6455 = vmul.f32 %v6452, %v6454
        %v6456 = vadd.f32 %v6455, 0.0036580483
        %v6457 = vmul.f32 %v6452, %v6456
        %v6458 = vadd.f32 %v6457, 0.05243302
        %v6459 = vmul.f32 %v6452, %v6458
        %v6460 = vadd.f32 %v6459, 0.18741608
        %v6461 = vmul.f32 %v6452, %v6460
        %v6462 = vadd.f32 %v6461, 1.1283791
        %v6463 = vmul.f32 %v3359, %v6462
        %v6464 = vmul.f32 %v6452, 3.8918573e-05
        %v6465 = vadd.f32 %v6464, 0.001143296
        %v6466 = vmul.f32 %v6452, %v6465
        %v6467 = vadd.f32 %v6466, 0.014752088
        %v6468 = vmul.f32 %v6452, %v6467
        %v6469 = vadd.f32 %v6468, 0.112945676
        %v6470 = vmul.f32 %v6452, %v6469
        %v6471 = vadd.f32 %v6470, 0.4994258
        %v6472 = vmul.f32 %v6452, %v6471
        %v6473 = vadd.f32 %v6472, 1.0
        %v6474 = vrcp.pop %v6473
        %v6475 = vmul.f32 %v6473, %v6474
        %v6476 = vsub.f32 1.0, %v6475
        %v6477 = vmul.f32 %v6474, %v6476
        %v6478 = vadd.f32 %v6474, %v6477
        %vm6479 = vweird.f32 %v6473
        %vm6480 = vweird.f32 %v6474
        %vm6481 = vmor %vm6479, %vm6480
        %v6482 = vsel %vm6481, %v6474, %v6478
        %v6483 = vand.u32 2147483647, %v6473
        %vm6484 = vcmp.eq.f32.partialorder %v6483, 8.507059e+37
        %v6485 = vand.u32 %v6473, 2147483648
        %v6486 = vor.u32 1.1754944e-38, %v6485
        %v6487 = vsel %vm6484, %v6486, %v6482
        %v6488 = vmul.f32 %v6463, %v6487
        %v6489 = vmin.f32 %v6488, 1.0
        %v6490 = vmax.f32 %v6489, -1.0
        %v6491 = vmul.f32 %v3360, %v3360
        %v6492 = vmin.f32 16.0, %v6491
        %v6493 = vmul.f32 %v6492, 2.1237322e-06
        %v6494 = vadd.f32 %v6493, 0.00028619796
        %v6495 = vmul.f32 %v6492, %v6494
        %v6496 = vadd.f32 %v6495, 0.0036580483
        %v6497 = vmul.f32 %v6492, %v6496
        %v6498 = vadd.f32 %v6497, 0.05243302
        %v6499 = vmul.f32 %v6492, %v6498
        %v6500 = vadd.f32 %v6499, 0.18741608
        %v6501 = vmul.f32 %v6492, %v6500
        %v6502 = vadd.f32 %v6501, 1.1283791
        %v6503 = vmul.f32 %v3360, %v6502
        %v6504 = vmul.f32 %v6492, 3.8918573e-05
        %v6505 = vadd.f32 %v6504, 0.001143296
        %v6506 = vmul.f32 %v6492, %v6505
        %v6507 = vadd.f32 %v6506, 0.014752088
        %v6508 = vmul.f32 %v6492, %v6507
        %v6509 = vadd.f32 %v6508, 0.112945676
        %v6510 = vmul.f32 %v6492, %v6509
        %v6511 = vadd.f32 %v6510, 0.4994258
        %v6512 = vmul.f32 %v6492, %v6511
        %v6513 = vadd.f32 %v6512, 1.0
        %v6514 = vrcp.pop %v6513
        %v6515 = vmul.f32 %v6513, %v6514
        %v6516 = vsub.f32 1.0, %v6515
        %v6517 = vmul.f32 %v6514, %v6516
        %v6518 = vadd.f32 %v6514, %v6517
        %vm6519 = vweird.f32 %v6513
        %vm6520 = vweird.f32 %v6514
        %vm6521 = vmor %vm6519, %vm6520
        %v6522 = vsel %vm6521, %v6514, %v6518
        %v6523 = vand.u32 2147483647, %v6513
        %vm6524 = vcmp.eq.f32.partialorder %v6523, 8.507059e+37
        %v6525 = vand.u32 %v6513, 2147483648
        %v6526 = vor.u32 1.1754944e-38, %v6525
        %v6527 = vsel %vm6524, %v6526, %v6522
        %v6528 = vmul.f32 %v6503, %v6527
        %v6529 = vmin.f32 %v6528, 1.0
        %v6530 = vmax.f32 %v6529, -1.0
        %v6531 = vmul.f32 %v3361, %v3361
        %v6532 = vmin.f32 16.0, %v6531
        %v6533 = vmul.f32 %v6532, 2.1237322e-06
        %v6534 = vadd.f32 %v6533, 0.00028619796
        %v6535 = vmul.f32 %v6532, %v6534
        %v6536 = vadd.f32 %v6535, 0.0036580483
        %v6537 = vmul.f32 %v6532, %v6536
        %v6538 = vadd.f32 %v6537, 0.05243302
        %v6539 = vmul.f32 %v6532, %v6538
        %v6540 = vadd.f32 %v6539, 0.18741608
        %v6541 = vmul.f32 %v6532, %v6540
        %v6542 = vadd.f32 %v6541, 1.1283791
        %v6543 = vmul.f32 %v3361, %v6542
        %v6544 = vmul.f32 %v6532, 3.8918573e-05
        %v6545 = vadd.f32 %v6544, 0.001143296
        %v6546 = vmul.f32 %v6532, %v6545
        %v6547 = vadd.f32 %v6546, 0.014752088
        %v6548 = vmul.f32 %v6532, %v6547
        %v6549 = vadd.f32 %v6548, 0.112945676
        %v6550 = vmul.f32 %v6532, %v6549
        %v6551 = vadd.f32 %v6550, 0.4994258
        %v6552 = vmul.f32 %v6532, %v6551
        %v6553 = vadd.f32 %v6552, 1.0
        %v6554 = vrcp.pop %v6553
        %v6555 = vmul.f32 %v6553, %v6554
        %v6556 = vsub.f32 1.0, %v6555
        %v6557 = vmul.f32 %v6554, %v6556
        %v6558 = vadd.f32 %v6554, %v6557
        %vm6559 = vweird.f32 %v6553
        %vm6560 = vweird.f32 %v6554
        %vm6561 = vmor %vm6559, %vm6560
        %v6562 = vsel %vm6561, %v6554, %v6558
        %v6563 = vand.u32 2147483647, %v6553
        %vm6564 = vcmp.eq.f32.partialorder %v6563, 8.507059e+37
        %v6565 = vand.u32 %v6553, 2147483648
        %v6566 = vor.u32 1.1754944e-38, %v6565
        %v6567 = vsel %vm6564, %v6566, %v6562
        %v6568 = vmul.f32 %v6543, %v6567
        %v6569 = vmin.f32 %v6568, 1.0
        %v6570 = vmax.f32 %v6569, -1.0
        %v6571 = vmul.f32 %v3362, %v3362
        %v6572 = vmin.f32 16.0, %v6571
        %v6573 = vmul.f32 %v6572, 2.1237322e-06
        %v6574 = vadd.f32 %v6573, 0.00028619796
        %v6575 = vmul.f32 %v6572, %v6574
        %v6576 = vadd.f32 %v6575, 0.0036580483
        %v6577 = vmul.f32 %v6572, %v6576
        %v6578 = vadd.f32 %v6577, 0.05243302
        %v6579 = vmul.f32 %v6572, %v6578
        %v6580 = vadd.f32 %v6579, 0.18741608
        %v6581 = vmul.f32 %v6572, %v6580
        %v6582 = vadd.f32 %v6581, 1.1283791
        %v6583 = vmul.f32 %v3362, %v6582
        %v6584 = vmul.f32 %v6572, 3.8918573e-05
        %v6585 = vadd.f32 %v6584, 0.001143296
        %v6586 = vmul.f32 %v6572, %v6585
        %v6587 = vadd.f32 %v6586, 0.014752088
        %v6588 = vmul.f32 %v6572, %v6587
        %v6589 = vadd.f32 %v6588, 0.112945676
        %v6590 = vmul.f32 %v6572, %v6589
        %v6591 = vadd.f32 %v6590, 0.4994258
        %v6592 = vmul.f32 %v6572, %v6591
        %v6593 = vadd.f32 %v6592, 1.0
        %v6594 = vrcp.pop %v6593
        %v6595 = vmul.f32 %v6593, %v6594
        %v6596 = vsub.f32 1.0, %v6595
        %v6597 = vmul.f32 %v6594, %v6596
        %v6598 = vadd.f32 %v6594, %v6597
        %vm6599 = vweird.f32 %v6593
        %vm6600 = vweird.f32 %v6594
        %vm6601 = vmor %vm6599, %vm6600
        %v6602 = vsel %vm6601, %v6594, %v6598
        %v6603 = vand.u32 2147483647, %v6593
        %vm6604 = vcmp.eq.f32.partialorder %v6603, 8.507059e+37
        %v6605 = vand.u32 %v6593, 2147483648
        %v6606 = vor.u32 1.1754944e-38, %v6605
        %v6607 = vsel %vm6604, %v6606, %v6602
        %v6608 = vmul.f32 %v6583, %v6607
        %v6609 = vmin.f32 %v6608, 1.0
        %v6610 = vmax.f32 %v6609, -1.0
        %v6611 = vmul.f32 %v3363, %v3363
        %v6612 = vmin.f32 16.0, %v6611
        %v6613 = vmul.f32 %v6612, 2.1237322e-06
        %v6614 = vadd.f32 %v6613, 0.00028619796
        %v6615 = vmul.f32 %v6612, %v6614
        %v6616 = vadd.f32 %v6615, 0.0036580483
        %v6617 = vmul.f32 %v6612, %v6616
        %v6618 = vadd.f32 %v6617, 0.05243302
        %v6619 = vmul.f32 %v6612, %v6618
        %v6620 = vadd.f32 %v6619, 0.18741608
        %v6621 = vmul.f32 %v6612, %v6620
        %v6622 = vadd.f32 %v6621, 1.1283791
        %v6623 = vmul.f32 %v3363, %v6622
        %v6624 = vmul.f32 %v6612, 3.8918573e-05
        %v6625 = vadd.f32 %v6624, 0.001143296
        %v6626 = vmul.f32 %v6612, %v6625
        %v6627 = vadd.f32 %v6626, 0.014752088
        %v6628 = vmul.f32 %v6612, %v6627
        %v6629 = vadd.f32 %v6628, 0.112945676
        %v6630 = vmul.f32 %v6612, %v6629
        %v6631 = vadd.f32 %v6630, 0.4994258
        %v6632 = vmul.f32 %v6612, %v6631
        %v6633 = vadd.f32 %v6632, 1.0
        %v6634 = vrcp.pop %v6633
        %v6635 = vmul.f32 %v6633, %v6634
        %v6636 = vsub.f32 1.0, %v6635
        %v6637 = vmul.f32 %v6634, %v6636
        %v6638 = vadd.f32 %v6634, %v6637
        %vm6639 = vweird.f32 %v6633
        %vm6640 = vweird.f32 %v6634
        %vm6641 = vmor %vm6639, %vm6640
        %v6642 = vsel %vm6641, %v6634, %v6638
        %v6643 = vand.u32 2147483647, %v6633
        %vm6644 = vcmp.eq.f32.partialorder %v6643, 8.507059e+37
        %v6645 = vand.u32 %v6633, 2147483648
        %v6646 = vor.u32 1.1754944e-38, %v6645
        %v6647 = vsel %vm6644, %v6646, %v6642
        %v6648 = vmul.f32 %v6623, %v6647
        %v6649 = vmin.f32 %v6648, 1.0
        %v6650 = vmax.f32 %v6649, -1.0
        %v6651 = vmul.f32 %v3364, %v3364
        %v6652 = vmin.f32 16.0, %v6651
        %v6653 = vmul.f32 %v6652, 2.1237322e-06
        %v6654 = vadd.f32 %v6653, 0.00028619796
        %v6655 = vmul.f32 %v6652, %v6654
        %v6656 = vadd.f32 %v6655, 0.0036580483
        %v6657 = vmul.f32 %v6652, %v6656
        %v6658 = vadd.f32 %v6657, 0.05243302
        %v6659 = vmul.f32 %v6652, %v6658
        %v6660 = vadd.f32 %v6659, 0.18741608
        %v6661 = vmul.f32 %v6652, %v6660
        %v6662 = vadd.f32 %v6661, 1.1283791
        %v6663 = vmul.f32 %v3364, %v6662
        %v6664 = vmul.f32 %v6652, 3.8918573e-05
        %v6665 = vadd.f32 %v6664, 0.001143296
        %v6666 = vmul.f32 %v6652, %v6665
        %v6667 = vadd.f32 %v6666, 0.014752088
        %v6668 = vmul.f32 %v6652, %v6667
        %v6669 = vadd.f32 %v6668, 0.112945676
        %v6670 = vmul.f32 %v6652, %v6669
        %v6671 = vadd.f32 %v6670, 0.4994258
        %v6672 = vmul.f32 %v6652, %v6671
        %v6673 = vadd.f32 %v6672, 1.0
        %v6674 = vrcp.pop %v6673
        %v6675 = vmul.f32 %v6673, %v6674
        %v6676 = vsub.f32 1.0, %v6675
        %v6677 = vmul.f32 %v6674, %v6676
        %v6678 = vadd.f32 %v6674, %v6677
        %vm6679 = vweird.f32 %v6673
        %vm6680 = vweird.f32 %v6674
        %vm6681 = vmor %vm6679, %vm6680
        %v6682 = vsel %vm6681, %v6674, %v6678
        %v6683 = vand.u32 2147483647, %v6673
        %vm6684 = vcmp.eq.f32.partialorder %v6683, 8.507059e+37
        %v6685 = vand.u32 %v6673, 2147483648
        %v6686 = vor.u32 1.1754944e-38, %v6685
        %v6687 = vsel %vm6684, %v6686, %v6682
        %v6688 = vmul.f32 %v6663, %v6687
        %v6689 = vmin.f32 %v6688, 1.0
        %v6690 = vmax.f32 %v6689, -1.0
        %v6691 = vmul.f32 %v3365, %v3365
        %v6692 = vmin.f32 16.0, %v6691
        %v6693 = vmul.f32 %v6692, 2.1237322e-06
        %v6694 = vadd.f32 %v6693, 0.00028619796
        %v6695 = vmul.f32 %v6692, %v6694
        %v6696 = vadd.f32 %v6695, 0.0036580483
        %v6697 = vmul.f32 %v6692, %v6696
        %v6698 = vadd.f32 %v6697, 0.05243302
        %v6699 = vmul.f32 %v6692, %v6698
        %v6700 = vadd.f32 %v6699, 0.18741608
        %v6701 = vmul.f32 %v6692, %v6700
        %v6702 = vadd.f32 %v6701, 1.1283791
        %v6703 = vmul.f32 %v3365, %v6702
        %v6704 = vmul.f32 %v6692, 3.8918573e-05
        %v6705 = vadd.f32 %v6704, 0.001143296
        %v6706 = vmul.f32 %v6692, %v6705
        %v6707 = vadd.f32 %v6706, 0.014752088
        %v6708 = vmul.f32 %v6692, %v6707
        %v6709 = vadd.f32 %v6708, 0.112945676
        %v6710 = vmul.f32 %v6692, %v6709
        %v6711 = vadd.f32 %v6710, 0.4994258
        %v6712 = vmul.f32 %v6692, %v6711
        %v6713 = vadd.f32 %v6712, 1.0
        %v6714 = vrcp.pop %v6713
        %v6715 = vmul.f32 %v6713, %v6714
        %v6716 = vsub.f32 1.0, %v6715
        %v6717 = vmul.f32 %v6714, %v6716
        %v6718 = vadd.f32 %v6714, %v6717
        %vm6719 = vweird.f32 %v6713
        %vm6720 = vweird.f32 %v6714
        %vm6721 = vmor %vm6719, %vm6720
        %v6722 = vsel %vm6721, %v6714, %v6718
        %v6723 = vand.u32 2147483647, %v6713
        %vm6724 = vcmp.eq.f32.partialorder %v6723, 8.507059e+37
        %v6725 = vand.u32 %v6713, 2147483648
        %v6726 = vor.u32 1.1754944e-38, %v6725
        %v6727 = vsel %vm6724, %v6726, %v6722
        %v6728 = vmul.f32 %v6703, %v6727
        %v6729 = vmin.f32 %v6728, 1.0
        %v6730 = vmax.f32 %v6729, -1.0
        %v6731 = vmul.f32 %v3366, %v3366
        %v6732 = vmin.f32 16.0, %v6731
        %v6733 = vmul.f32 %v6732, 2.1237322e-06
        %v6734 = vadd.f32 %v6733, 0.00028619796
        %v6735 = vmul.f32 %v6732, %v6734
        %v6736 = vadd.f32 %v6735, 0.0036580483
        %v6737 = vmul.f32 %v6732, %v6736
        %v6738 = vadd.f32 %v6737, 0.05243302
        %v6739 = vmul.f32 %v6732, %v6738
        %v6740 = vadd.f32 %v6739, 0.18741608
        %v6741 = vmul.f32 %v6732, %v6740
        %v6742 = vadd.f32 %v6741, 1.1283791
        %v6743 = vmul.f32 %v3366, %v6742
        %v6744 = vmul.f32 %v6732, 3.8918573e-05
        %v6745 = vadd.f32 %v6744, 0.001143296
        %v6746 = vmul.f32 %v6732, %v6745
        %v6747 = vadd.f32 %v6746, 0.014752088
        %v6748 = vmul.f32 %v6732, %v6747
        %v6749 = vadd.f32 %v6748, 0.112945676
        %v6750 = vmul.f32 %v6732, %v6749
        %v6751 = vadd.f32 %v6750, 0.4994258
        %v6752 = vmul.f32 %v6732, %v6751
        %v6753 = vadd.f32 %v6752, 1.0
        %v6754 = vrcp.pop %v6753
        %v6755 = vmul.f32 %v6753, %v6754
        %v6756 = vsub.f32 1.0, %v6755
        %v6757 = vmul.f32 %v6754, %v6756
        %v6758 = vadd.f32 %v6754, %v6757
        %vm6759 = vweird.f32 %v6753
        %vm6760 = vweird.f32 %v6754
        %vm6761 = vmor %vm6759, %vm6760
        %v6762 = vsel %vm6761, %v6754, %v6758
        %v6763 = vand.u32 2147483647, %v6753
        %vm6764 = vcmp.eq.f32.partialorder %v6763, 8.507059e+37
        %v6765 = vand.u32 %v6753, 2147483648
        %v6766 = vor.u32 1.1754944e-38, %v6765
        %v6767 = vsel %vm6764, %v6766, %v6762
        %v6768 = vmul.f32 %v6743, %v6767
        %v6769 = vmin.f32 %v6768, 1.0
        %v6770 = vmax.f32 %v6769, -1.0
        %v6771 = vmul.f32 %v3367, %v3367
        %v6772 = vmin.f32 16.0, %v6771
        %v6773 = vmul.f32 %v6772, 2.1237322e-06
        %v6774 = vadd.f32 %v6773, 0.00028619796
        %v6775 = vmul.f32 %v6772, %v6774
        %v6776 = vadd.f32 %v6775, 0.0036580483
        %v6777 = vmul.f32 %v6772, %v6776
        %v6778 = vadd.f32 %v6777, 0.05243302
        %v6779 = vmul.f32 %v6772, %v6778
        %v6780 = vadd.f32 %v6779, 0.18741608
        %v6781 = vmul.f32 %v6772, %v6780
        %v6782 = vadd.f32 %v6781, 1.1283791
        %v6783 = vmul.f32 %v3367, %v6782
        %v6784 = vmul.f32 %v6772, 3.8918573e-05
        %v6785 = vadd.f32 %v6784, 0.001143296
        %v6786 = vmul.f32 %v6772, %v6785
        %v6787 = vadd.f32 %v6786, 0.014752088
        %v6788 = vmul.f32 %v6772, %v6787
        %v6789 = vadd.f32 %v6788, 0.112945676
        %v6790 = vmul.f32 %v6772, %v6789
        %v6791 = vadd.f32 %v6790, 0.4994258
        %v6792 = vmul.f32 %v6772, %v6791
        %v6793 = vadd.f32 %v6792, 1.0
        %v6794 = vrcp.pop %v6793
        %v6795 = vmul.f32 %v6793, %v6794
        %v6796 = vsub.f32 1.0, %v6795
        %v6797 = vmul.f32 %v6794, %v6796
        %v6798 = vadd.f32 %v6794, %v6797
        %vm6799 = vweird.f32 %v6793
        %vm6800 = vweird.f32 %v6794
        %vm6801 = vmor %vm6799, %vm6800
        %v6802 = vsel %vm6801, %v6794, %v6798
        %v6803 = vand.u32 2147483647, %v6793
        %vm6804 = vcmp.eq.f32.partialorder %v6803, 8.507059e+37
        %v6805 = vand.u32 %v6793, 2147483648
        %v6806 = vor.u32 1.1754944e-38, %v6805
        %v6807 = vsel %vm6804, %v6806, %v6802
        %v6808 = vmul.f32 %v6783, %v6807
        %v6809 = vmin.f32 %v6808, 1.0
        %v6810 = vmax.f32 %v6809, -1.0
        %v6811 = vmul.f32 %v3368, %v3368
        %v6812 = vmin.f32 16.0, %v6811
        %v6813 = vmul.f32 %v6812, 2.1237322e-06
        %v6814 = vadd.f32 %v6813, 0.00028619796
        %v6815 = vmul.f32 %v6812, %v6814
        %v6816 = vadd.f32 %v6815, 0.0036580483
        %v6817 = vmul.f32 %v6812, %v6816
        %v6818 = vadd.f32 %v6817, 0.05243302
        %v6819 = vmul.f32 %v6812, %v6818
        %v6820 = vadd.f32 %v6819, 0.18741608
        %v6821 = vmul.f32 %v6812, %v6820
        %v6822 = vadd.f32 %v6821, 1.1283791
        %v6823 = vmul.f32 %v3368, %v6822
        %v6824 = vmul.f32 %v6812, 3.8918573e-05
        %v6825 = vadd.f32 %v6824, 0.001143296
        %v6826 = vmul.f32 %v6812, %v6825
        %v6827 = vadd.f32 %v6826, 0.014752088
        %v6828 = vmul.f32 %v6812, %v6827
        %v6829 = vadd.f32 %v6828, 0.112945676
        %v6830 = vmul.f32 %v6812, %v6829
        %v6831 = vadd.f32 %v6830, 0.4994258
        %v6832 = vmul.f32 %v6812, %v6831
        %v6833 = vadd.f32 %v6832, 1.0
        %v6834 = vrcp.pop %v6833
        %v6835 = vmul.f32 %v6833, %v6834
        %v6836 = vsub.f32 1.0, %v6835
        %v6837 = vmul.f32 %v6834, %v6836
        %v6838 = vadd.f32 %v6834, %v6837
        %vm6839 = vweird.f32 %v6833
        %vm6840 = vweird.f32 %v6834
        %vm6841 = vmor %vm6839, %vm6840
        %v6842 = vsel %vm6841, %v6834, %v6838
        %v6843 = vand.u32 2147483647, %v6833
        %vm6844 = vcmp.eq.f32.partialorder %v6843, 8.507059e+37
        %v6845 = vand.u32 %v6833, 2147483648
        %v6846 = vor.u32 1.1754944e-38, %v6845
        %v6847 = vsel %vm6844, %v6846, %v6842
        %v6848 = vmul.f32 %v6823, %v6847
        %v6849 = vmin.f32 %v6848, 1.0
        %v6850 = vmax.f32 %v6849, -1.0
        %v6851 = vmul.f32 %v3369, %v3369
        %v6852 = vmin.f32 16.0, %v6851
        %v6853 = vmul.f32 %v6852, 2.1237322e-06
        %v6854 = vadd.f32 %v6853, 0.00028619796
        %v6855 = vmul.f32 %v6852, %v6854
        %v6856 = vadd.f32 %v6855, 0.0036580483
        %v6857 = vmul.f32 %v6852, %v6856
        %v6858 = vadd.f32 %v6857, 0.05243302
        %v6859 = vmul.f32 %v6852, %v6858
        %v6860 = vadd.f32 %v6859, 0.18741608
        %v6861 = vmul.f32 %v6852, %v6860
        %v6862 = vadd.f32 %v6861, 1.1283791
        %v6863 = vmul.f32 %v3369, %v6862
        %v6864 = vmul.f32 %v6852, 3.8918573e-05
        %v6865 = vadd.f32 %v6864, 0.001143296
        %v6866 = vmul.f32 %v6852, %v6865
        %v6867 = vadd.f32 %v6866, 0.014752088
        %v6868 = vmul.f32 %v6852, %v6867
        %v6869 = vadd.f32 %v6868, 0.112945676
        %v6870 = vmul.f32 %v6852, %v6869
        %v6871 = vadd.f32 %v6870, 0.4994258
        %v6872 = vmul.f32 %v6852, %v6871
        %v6873 = vadd.f32 %v6872, 1.0
        %v6874 = vrcp.pop %v6873
        %v6875 = vmul.f32 %v6873, %v6874
        %v6876 = vsub.f32 1.0, %v6875
        %v6877 = vmul.f32 %v6874, %v6876
        %v6878 = vadd.f32 %v6874, %v6877
        %vm6879 = vweird.f32 %v6873
        %vm6880 = vweird.f32 %v6874
        %vm6881 = vmor %vm6879, %vm6880
        %v6882 = vsel %vm6881, %v6874, %v6878
        %v6883 = vand.u32 2147483647, %v6873
        %vm6884 = vcmp.eq.f32.partialorder %v6883, 8.507059e+37
        %v6885 = vand.u32 %v6873, 2147483648
        %v6886 = vor.u32 1.1754944e-38, %v6885
        %v6887 = vsel %vm6884, %v6886, %v6882
        %v6888 = vmul.f32 %v6863, %v6887
        %v6889 = vmin.f32 %v6888, 1.0
        %v6890 = vmax.f32 %v6889, -1.0
        %v6891 = vmul.f32 %v3370, %v3370
        %v6892 = vmin.f32 16.0, %v6891
        %v6893 = vmul.f32 %v6892, 2.1237322e-06
        %v6894 = vadd.f32 %v6893, 0.00028619796
        %v6895 = vmul.f32 %v6892, %v6894
        %v6896 = vadd.f32 %v6895, 0.0036580483
        %v6897 = vmul.f32 %v6892, %v6896
        %v6898 = vadd.f32 %v6897, 0.05243302
        %v6899 = vmul.f32 %v6892, %v6898
        %v6900 = vadd.f32 %v6899, 0.18741608
        %v6901 = vmul.f32 %v6892, %v6900
        %v6902 = vadd.f32 %v6901, 1.1283791
        %v6903 = vmul.f32 %v3370, %v6902
        %v6904 = vmul.f32 %v6892, 3.8918573e-05
        %v6905 = vadd.f32 %v6904, 0.001143296
        %v6906 = vmul.f32 %v6892, %v6905
        %v6907 = vadd.f32 %v6906, 0.014752088
        %v6908 = vmul.f32 %v6892, %v6907
        %v6909 = vadd.f32 %v6908, 0.112945676
        %v6910 = vmul.f32 %v6892, %v6909
        %v6911 = vadd.f32 %v6910, 0.4994258
        %v6912 = vmul.f32 %v6892, %v6911
        %v6913 = vadd.f32 %v6912, 1.0
        %v6914 = vrcp.pop %v6913
        %v6915 = vmul.f32 %v6913, %v6914
        %v6916 = vsub.f32 1.0, %v6915
        %v6917 = vmul.f32 %v6914, %v6916
        %v6918 = vadd.f32 %v6914, %v6917
        %vm6919 = vweird.f32 %v6913
        %vm6920 = vweird.f32 %v6914
        %vm6921 = vmor %vm6919, %vm6920
        %v6922 = vsel %vm6921, %v6914, %v6918
        %v6923 = vand.u32 2147483647, %v6913
        %vm6924 = vcmp.eq.f32.partialorder %v6923, 8.507059e+37
        %v6925 = vand.u32 %v6913, 2147483648
        %v6926 = vor.u32 1.1754944e-38, %v6925
        %v6927 = vsel %vm6924, %v6926, %v6922
        %v6928 = vmul.f32 %v6903, %v6927
        %v6929 = vmin.f32 %v6928, 1.0
        %v6930 = vmax.f32 %v6929, -1.0
        %v6931 = vmul.f32 %v3371, %v3371
        %v6932 = vmin.f32 16.0, %v6931
        %v6933 = vmul.f32 %v6932, 2.1237322e-06
        %v6934 = vadd.f32 %v6933, 0.00028619796
        %v6935 = vmul.f32 %v6932, %v6934
        %v6936 = vadd.f32 %v6935, 0.0036580483
        %v6937 = vmul.f32 %v6932, %v6936
        %v6938 = vadd.f32 %v6937, 0.05243302
        %v6939 = vmul.f32 %v6932, %v6938
        %v6940 = vadd.f32 %v6939, 0.18741608
        %v6941 = vmul.f32 %v6932, %v6940
        %v6942 = vadd.f32 %v6941, 1.1283791
        %v6943 = vmul.f32 %v3371, %v6942
        %v6944 = vmul.f32 %v6932, 3.8918573e-05
        %v6945 = vadd.f32 %v6944, 0.001143296
        %v6946 = vmul.f32 %v6932, %v6945
        %v6947 = vadd.f32 %v6946, 0.014752088
        %v6948 = vmul.f32 %v6932, %v6947
        %v6949 = vadd.f32 %v6948, 0.112945676
        %v6950 = vmul.f32 %v6932, %v6949
        %v6951 = vadd.f32 %v6950, 0.4994258
        %v6952 = vmul.f32 %v6932, %v6951
        %v6953 = vadd.f32 %v6952, 1.0
        %v6954 = vrcp.pop %v6953
        %v6955 = vmul.f32 %v6953, %v6954
        %v6956 = vsub.f32 1.0, %v6955
        %v6957 = vmul.f32 %v6954, %v6956
        %v6958 = vadd.f32 %v6954, %v6957
        %vm6959 = vweird.f32 %v6953
        %vm6960 = vweird.f32 %v6954
        %vm6961 = vmor %vm6959, %vm6960
        %v6962 = vsel %vm6961, %v6954, %v6958
        %v6963 = vand.u32 2147483647, %v6953
        %vm6964 = vcmp.eq.f32.partialorder %v6963, 8.507059e+37
        %v6965 = vand.u32 %v6953, 2147483648
        %v6966 = vor.u32 1.1754944e-38, %v6965
        %v6967 = vsel %vm6964, %v6966, %v6962
        %v6968 = vmul.f32 %v6943, %v6967
        %v6969 = vmin.f32 %v6968, 1.0
        %v6970 = vmax.f32 %v6969, -1.0
        %v6971 = vmul.f32 %v3372, %v3372
        %v6972 = vmin.f32 16.0, %v6971
        %v6973 = vmul.f32 %v6972, 2.1237322e-06
        %v6974 = vadd.f32 %v6973, 0.00028619796
        %v6975 = vmul.f32 %v6972, %v6974
        %v6976 = vadd.f32 %v6975, 0.0036580483
        %v6977 = vmul.f32 %v6972, %v6976
        %v6978 = vadd.f32 %v6977, 0.05243302
        %v6979 = vmul.f32 %v6972, %v6978
        %v6980 = vadd.f32 %v6979, 0.18741608
        %v6981 = vmul.f32 %v6972, %v6980
        %v6982 = vadd.f32 %v6981, 1.1283791
        %v6983 = vmul.f32 %v3372, %v6982
        %v6984 = vmul.f32 %v6972, 3.8918573e-05
        %v6985 = vadd.f32 %v6984, 0.001143296
        %v6986 = vmul.f32 %v6972, %v6985
        %v6987 = vadd.f32 %v6986, 0.014752088
        %v6988 = vmul.f32 %v6972, %v6987
        %v6989 = vadd.f32 %v6988, 0.112945676
        %v6990 = vmul.f32 %v6972, %v6989
        %v6991 = vadd.f32 %v6990, 0.4994258
        %v6992 = vmul.f32 %v6972, %v6991
        %v6993 = vadd.f32 %v6992, 1.0
        %v6994 = vrcp.pop %v6993
        %v6995 = vmul.f32 %v6993, %v6994
        %v6996 = vsub.f32 1.0, %v6995
        %v6997 = vmul.f32 %v6994, %v6996
        %v6998 = vadd.f32 %v6994, %v6997
        %vm6999 = vweird.f32 %v6993
        %vm7000 = vweird.f32 %v6994
        %vm7001 = vmor %vm6999, %vm7000
        %v7002 = vsel %vm7001, %v6994, %v6998
        %v7003 = vand.u32 2147483647, %v6993
        %vm7004 = vcmp.eq.f32.partialorder %v7003, 8.507059e+37
        %v7005 = vand.u32 %v6993, 2147483648
        %v7006 = vor.u32 1.1754944e-38, %v7005
        %v7007 = vsel %vm7004, %v7006, %v7002
        %v7008 = vmul.f32 %v6983, %v7007
        %v7009 = vmin.f32 %v7008, 1.0
        %v7010 = vmax.f32 %v7009, -1.0
        %v7011 = vmul.f32 %v3373, %v3373
        %v7012 = vmin.f32 16.0, %v7011
        %v7013 = vmul.f32 %v7012, 2.1237322e-06
        %v7014 = vadd.f32 %v7013, 0.00028619796
        %v7015 = vmul.f32 %v7012, %v7014
        %v7016 = vadd.f32 %v7015, 0.0036580483
        %v7017 = vmul.f32 %v7012, %v7016
        %v7018 = vadd.f32 %v7017, 0.05243302
        %v7019 = vmul.f32 %v7012, %v7018
        %v7020 = vadd.f32 %v7019, 0.18741608
        %v7021 = vmul.f32 %v7012, %v7020
        %v7022 = vadd.f32 %v7021, 1.1283791
        %v7023 = vmul.f32 %v3373, %v7022
        %v7024 = vmul.f32 %v7012, 3.8918573e-05
        %v7025 = vadd.f32 %v7024, 0.001143296
        %v7026 = vmul.f32 %v7012, %v7025
        %v7027 = vadd.f32 %v7026, 0.014752088
        %v7028 = vmul.f32 %v7012, %v7027
        %v7029 = vadd.f32 %v7028, 0.112945676
        %v7030 = vmul.f32 %v7012, %v7029
        %v7031 = vadd.f32 %v7030, 0.4994258
        %v7032 = vmul.f32 %v7012, %v7031
        %v7033 = vadd.f32 %v7032, 1.0
        %v7034 = vrcp.pop %v7033
        %v7035 = vmul.f32 %v7033, %v7034
        %v7036 = vsub.f32 1.0, %v7035
        %v7037 = vmul.f32 %v7034, %v7036
        %v7038 = vadd.f32 %v7034, %v7037
        %vm7039 = vweird.f32 %v7033
        %vm7040 = vweird.f32 %v7034
        %vm7041 = vmor %vm7039, %vm7040
        %v7042 = vsel %vm7041, %v7034, %v7038
        %v7043 = vand.u32 2147483647, %v7033
        %vm7044 = vcmp.eq.f32.partialorder %v7043, 8.507059e+37
        %v7045 = vand.u32 %v7033, 2147483648
        %v7046 = vor.u32 1.1754944e-38, %v7045
        %v7047 = vsel %vm7044, %v7046, %v7042
        %v7048 = vmul.f32 %v7023, %v7047
        %v7049 = vmin.f32 %v7048, 1.0
        %v7050 = vmax.f32 %v7049, -1.0
        %v7051 = vmul.f32 %v3374, %v3374
        %v7052 = vmin.f32 16.0, %v7051
        %v7053 = vmul.f32 %v7052, 2.1237322e-06
        %v7054 = vadd.f32 %v7053, 0.00028619796
        %v7055 = vmul.f32 %v7052, %v7054
        %v7056 = vadd.f32 %v7055, 0.0036580483
        %v7057 = vmul.f32 %v7052, %v7056
        %v7058 = vadd.f32 %v7057, 0.05243302
        %v7059 = vmul.f32 %v7052, %v7058
        %v7060 = vadd.f32 %v7059, 0.18741608
        %v7061 = vmul.f32 %v7052, %v7060
        %v7062 = vadd.f32 %v7061, 1.1283791
        %v7063 = vmul.f32 %v3374, %v7062
        %v7064 = vmul.f32 %v7052, 3.8918573e-05
        %v7065 = vadd.f32 %v7064, 0.001143296
        %v7066 = vmul.f32 %v7052, %v7065
        %v7067 = vadd.f32 %v7066, 0.014752088
        %v7068 = vmul.f32 %v7052, %v7067
        %v7069 = vadd.f32 %v7068, 0.112945676
        %v7070 = vmul.f32 %v7052, %v7069
        %v7071 = vadd.f32 %v7070, 0.4994258
        %v7072 = vmul.f32 %v7052, %v7071
        %v7073 = vadd.f32 %v7072, 1.0
        %v7074 = vrcp.pop %v7073
        %v7075 = vmul.f32 %v7073, %v7074
        %v7076 = vsub.f32 1.0, %v7075
        %v7077 = vmul.f32 %v7074, %v7076
        %v7078 = vadd.f32 %v7074, %v7077
        %vm7079 = vweird.f32 %v7073
        %vm7080 = vweird.f32 %v7074
        %vm7081 = vmor %vm7079, %vm7080
        %v7082 = vsel %vm7081, %v7074, %v7078
        %v7083 = vand.u32 2147483647, %v7073
        %vm7084 = vcmp.eq.f32.partialorder %v7083, 8.507059e+37
        %v7085 = vand.u32 %v7073, 2147483648
        %v7086 = vor.u32 1.1754944e-38, %v7085
        %v7087 = vsel %vm7084, %v7086, %v7082
        %v7088 = vmul.f32 %v7063, %v7087
        %v7089 = vmin.f32 %v7088, 1.0
        %v7090 = vmax.f32 %v7089, -1.0
        %v7091 = vmul.f32 %v3375, %v3375
        %v7092 = vmin.f32 16.0, %v7091
        %v7093 = vmul.f32 %v7092, 2.1237322e-06
        %v7094 = vadd.f32 %v7093, 0.00028619796
        %v7095 = vmul.f32 %v7092, %v7094
        %v7096 = vadd.f32 %v7095, 0.0036580483
        %v7097 = vmul.f32 %v7092, %v7096
        %v7098 = vadd.f32 %v7097, 0.05243302
        %v7099 = vmul.f32 %v7092, %v7098
        %v7100 = vadd.f32 %v7099, 0.18741608
        %v7101 = vmul.f32 %v7092, %v7100
        %v7102 = vadd.f32 %v7101, 1.1283791
        %v7103 = vmul.f32 %v3375, %v7102
        %v7104 = vmul.f32 %v7092, 3.8918573e-05
        %v7105 = vadd.f32 %v7104, 0.001143296
        %v7106 = vmul.f32 %v7092, %v7105
        %v7107 = vadd.f32 %v7106, 0.014752088
        %v7108 = vmul.f32 %v7092, %v7107
        %v7109 = vadd.f32 %v7108, 0.112945676
        %v7110 = vmul.f32 %v7092, %v7109
        %v7111 = vadd.f32 %v7110, 0.4994258
        %v7112 = vmul.f32 %v7092, %v7111
        %v7113 = vadd.f32 %v7112, 1.0
        %v7114 = vrcp.pop %v7113
        %v7115 = vmul.f32 %v7113, %v7114
        %v7116 = vsub.f32 1.0, %v7115
        %v7117 = vmul.f32 %v7114, %v7116
        %v7118 = vadd.f32 %v7114, %v7117
        %vm7119 = vweird.f32 %v7113
        %vm7120 = vweird.f32 %v7114
        %vm7121 = vmor %vm7119, %vm7120
        %v7122 = vsel %vm7121, %v7114, %v7118
        %v7123 = vand.u32 2147483647, %v7113
        %vm7124 = vcmp.eq.f32.partialorder %v7123, 8.507059e+37
        %v7125 = vand.u32 %v7113, 2147483648
        %v7126 = vor.u32 1.1754944e-38, %v7125
        %v7127 = vsel %vm7124, %v7126, %v7122
        %v7128 = vmul.f32 %v7103, %v7127
        %v7129 = vmin.f32 %v7128, 1.0
        %v7130 = vmax.f32 %v7129, -1.0
        %v7131 = vmul.f32 %v3376, %v3376
        %v7132 = vmin.f32 16.0, %v7131
        %v7133 = vmul.f32 %v7132, 2.1237322e-06
        %v7134 = vadd.f32 %v7133, 0.00028619796
        %v7135 = vmul.f32 %v7132, %v7134
        %v7136 = vadd.f32 %v7135, 0.0036580483
        %v7137 = vmul.f32 %v7132, %v7136
        %v7138 = vadd.f32 %v7137, 0.05243302
        %v7139 = vmul.f32 %v7132, %v7138
        %v7140 = vadd.f32 %v7139, 0.18741608
        %v7141 = vmul.f32 %v7132, %v7140
        %v7142 = vadd.f32 %v7141, 1.1283791
        %v7143 = vmul.f32 %v3376, %v7142
        %v7144 = vmul.f32 %v7132, 3.8918573e-05
        %v7145 = vadd.f32 %v7144, 0.001143296
        %v7146 = vmul.f32 %v7132, %v7145
        %v7147 = vadd.f32 %v7146, 0.014752088
        %v7148 = vmul.f32 %v7132, %v7147
        %v7149 = vadd.f32 %v7148, 0.112945676
        %v7150 = vmul.f32 %v7132, %v7149
        %v7151 = vadd.f32 %v7150, 0.4994258
        %v7152 = vmul.f32 %v7132, %v7151
        %v7153 = vadd.f32 %v7152, 1.0
        %v7154 = vrcp.pop %v7153
        %v7155 = vmul.f32 %v7153, %v7154
        %v7156 = vsub.f32 1.0, %v7155
        %v7157 = vmul.f32 %v7154, %v7156
        %v7158 = vadd.f32 %v7154, %v7157
        %vm7159 = vweird.f32 %v7153
        %vm7160 = vweird.f32 %v7154
        %vm7161 = vmor %vm7159, %vm7160
        %v7162 = vsel %vm7161, %v7154, %v7158
        %v7163 = vand.u32 2147483647, %v7153
        %vm7164 = vcmp.eq.f32.partialorder %v7163, 8.507059e+37
        %v7165 = vand.u32 %v7153, 2147483648
        %v7166 = vor.u32 1.1754944e-38, %v7165
        %v7167 = vsel %vm7164, %v7166, %v7162
        %v7168 = vmul.f32 %v7143, %v7167
        %v7169 = vmin.f32 %v7168, 1.0
        %v7170 = vmax.f32 %v7169, -1.0
        %v7171 = vmul.f32 %v3377, %v3377
        %v7172 = vmin.f32 16.0, %v7171
        %v7173 = vmul.f32 %v7172, 2.1237322e-06
        %v7174 = vadd.f32 %v7173, 0.00028619796
        %v7175 = vmul.f32 %v7172, %v7174
        %v7176 = vadd.f32 %v7175, 0.0036580483
        %v7177 = vmul.f32 %v7172, %v7176
        %v7178 = vadd.f32 %v7177, 0.05243302
        %v7179 = vmul.f32 %v7172, %v7178
        %v7180 = vadd.f32 %v7179, 0.18741608
        %v7181 = vmul.f32 %v7172, %v7180
        %v7182 = vadd.f32 %v7181, 1.1283791
        %v7183 = vmul.f32 %v3377, %v7182
        %v7184 = vmul.f32 %v7172, 3.8918573e-05
        %v7185 = vadd.f32 %v7184, 0.001143296
        %v7186 = vmul.f32 %v7172, %v7185
        %v7187 = vadd.f32 %v7186, 0.014752088
        %v7188 = vmul.f32 %v7172, %v7187
        %v7189 = vadd.f32 %v7188, 0.112945676
        %v7190 = vmul.f32 %v7172, %v7189
        %v7191 = vadd.f32 %v7190, 0.4994258
        %v7192 = vmul.f32 %v7172, %v7191
        %v7193 = vadd.f32 %v7192, 1.0
        %v7194 = vrcp.pop %v7193
        %v7195 = vmul.f32 %v7193, %v7194
        %v7196 = vsub.f32 1.0, %v7195
        %v7197 = vmul.f32 %v7194, %v7196
        %v7198 = vadd.f32 %v7194, %v7197
        %vm7199 = vweird.f32 %v7193
        %vm7200 = vweird.f32 %v7194
        %vm7201 = vmor %vm7199, %vm7200
        %v7202 = vsel %vm7201, %v7194, %v7198
        %v7203 = vand.u32 2147483647, %v7193
        %vm7204 = vcmp.eq.f32.partialorder %v7203, 8.507059e+37
        %v7205 = vand.u32 %v7193, 2147483648
        %v7206 = vor.u32 1.1754944e-38, %v7205
        %v7207 = vsel %vm7204, %v7206, %v7202
        %v7208 = vmul.f32 %v7183, %v7207
        %v7209 = vmin.f32 %v7208, 1.0
        %v7210 = vmax.f32 %v7209, -1.0
        %v7211 = vmul.f32 %v3378, %v3378
        %v7212 = vmin.f32 16.0, %v7211
        %v7213 = vmul.f32 %v7212, 2.1237322e-06
        %v7214 = vadd.f32 %v7213, 0.00028619796
        %v7215 = vmul.f32 %v7212, %v7214
        %v7216 = vadd.f32 %v7215, 0.0036580483
        %v7217 = vmul.f32 %v7212, %v7216
        %v7218 = vadd.f32 %v7217, 0.05243302
        %v7219 = vmul.f32 %v7212, %v7218
        %v7220 = vadd.f32 %v7219, 0.18741608
        %v7221 = vmul.f32 %v7212, %v7220
        %v7222 = vadd.f32 %v7221, 1.1283791
        %v7223 = vmul.f32 %v3378, %v7222
        %v7224 = vmul.f32 %v7212, 3.8918573e-05
        %v7225 = vadd.f32 %v7224, 0.001143296
        %v7226 = vmul.f32 %v7212, %v7225
        %v7227 = vadd.f32 %v7226, 0.014752088
        %v7228 = vmul.f32 %v7212, %v7227
        %v7229 = vadd.f32 %v7228, 0.112945676
        %v7230 = vmul.f32 %v7212, %v7229
        %v7231 = vadd.f32 %v7230, 0.4994258
        %v7232 = vmul.f32 %v7212, %v7231
        %v7233 = vadd.f32 %v7232, 1.0
        %v7234 = vrcp.pop %v7233
        %v7235 = vmul.f32 %v7233, %v7234
        %v7236 = vsub.f32 1.0, %v7235
        %v7237 = vmul.f32 %v7234, %v7236
        %v7238 = vadd.f32 %v7234, %v7237
        %vm7239 = vweird.f32 %v7233
        %vm7240 = vweird.f32 %v7234
        %vm7241 = vmor %vm7239, %vm7240
        %v7242 = vsel %vm7241, %v7234, %v7238
        %v7243 = vand.u32 2147483647, %v7233
        %vm7244 = vcmp.eq.f32.partialorder %v7243, 8.507059e+37
        %v7245 = vand.u32 %v7233, 2147483648
        %v7246 = vor.u32 1.1754944e-38, %v7245
        %v7247 = vsel %vm7244, %v7246, %v7242
        %v7248 = vmul.f32 %v7223, %v7247
        %v7249 = vmin.f32 %v7248, 1.0
        %v7250 = vmax.f32 %v7249, -1.0
        %v7251 = vmul.f32 %v3379, %v3379
        %v7252 = vmin.f32 16.0, %v7251
        %v7253 = vmul.f32 %v7252, 2.1237322e-06
        %v7254 = vadd.f32 %v7253, 0.00028619796
        %v7255 = vmul.f32 %v7252, %v7254
        %v7256 = vadd.f32 %v7255, 0.0036580483
        %v7257 = vmul.f32 %v7252, %v7256
        %v7258 = vadd.f32 %v7257, 0.05243302
        %v7259 = vmul.f32 %v7252, %v7258
        %v7260 = vadd.f32 %v7259, 0.18741608
        %v7261 = vmul.f32 %v7252, %v7260
        %v7262 = vadd.f32 %v7261, 1.1283791
        %v7263 = vmul.f32 %v3379, %v7262
        %v7264 = vmul.f32 %v7252, 3.8918573e-05
        %v7265 = vadd.f32 %v7264, 0.001143296
        %v7266 = vmul.f32 %v7252, %v7265
        %v7267 = vadd.f32 %v7266, 0.014752088
        %v7268 = vmul.f32 %v7252, %v7267
        %v7269 = vadd.f32 %v7268, 0.112945676
        %v7270 = vmul.f32 %v7252, %v7269
        %v7271 = vadd.f32 %v7270, 0.4994258
        %v7272 = vmul.f32 %v7252, %v7271
        %v7273 = vadd.f32 %v7272, 1.0
        %v7274 = vrcp.pop %v7273
        %v7275 = vmul.f32 %v7273, %v7274
        %v7276 = vsub.f32 1.0, %v7275
        %v7277 = vmul.f32 %v7274, %v7276
        %v7278 = vadd.f32 %v7274, %v7277
        %vm7279 = vweird.f32 %v7273
        %vm7280 = vweird.f32 %v7274
        %vm7281 = vmor %vm7279, %vm7280
        %v7282 = vsel %vm7281, %v7274, %v7278
        %v7283 = vand.u32 2147483647, %v7273
        %vm7284 = vcmp.eq.f32.partialorder %v7283, 8.507059e+37
        %v7285 = vand.u32 %v7273, 2147483648
        %v7286 = vor.u32 1.1754944e-38, %v7285
        %v7287 = vsel %vm7284, %v7286, %v7282
        %v7288 = vmul.f32 %v7263, %v7287
        %v7289 = vmin.f32 %v7288, 1.0
        %v7290 = vmax.f32 %v7289, -1.0
        %v7291 = vmul.f32 %v3380, %v3380
        %v7292 = vmin.f32 16.0, %v7291
        %v7293 = vmul.f32 %v7292, 2.1237322e-06
        %v7294 = vadd.f32 %v7293, 0.00028619796
        %v7295 = vmul.f32 %v7292, %v7294
        %v7296 = vadd.f32 %v7295, 0.0036580483
        %v7297 = vmul.f32 %v7292, %v7296
        %v7298 = vadd.f32 %v7297, 0.05243302
        %v7299 = vmul.f32 %v7292, %v7298
        %v7300 = vadd.f32 %v7299, 0.18741608
        %v7301 = vmul.f32 %v7292, %v7300
        %v7302 = vadd.f32 %v7301, 1.1283791
        %v7303 = vmul.f32 %v3380, %v7302
        %v7304 = vmul.f32 %v7292, 3.8918573e-05
        %v7305 = vadd.f32 %v7304, 0.001143296
        %v7306 = vmul.f32 %v7292, %v7305
        %v7307 = vadd.f32 %v7306, 0.014752088
        %v7308 = vmul.f32 %v7292, %v7307
        %v7309 = vadd.f32 %v7308, 0.112945676
        %v7310 = vmul.f32 %v7292, %v7309
        %v7311 = vadd.f32 %v7310, 0.4994258
        %v7312 = vmul.f32 %v7292, %v7311
        %v7313 = vadd.f32 %v7312, 1.0
        %v7314 = vrcp.pop %v7313
        %v7315 = vmul.f32 %v7313, %v7314
        %v7316 = vsub.f32 1.0, %v7315
        %v7317 = vmul.f32 %v7314, %v7316
        %v7318 = vadd.f32 %v7314, %v7317
        %vm7319 = vweird.f32 %v7313
        %vm7320 = vweird.f32 %v7314
        %vm7321 = vmor %vm7319, %vm7320
        %v7322 = vsel %vm7321, %v7314, %v7318
        %v7323 = vand.u32 2147483647, %v7313
        %vm7324 = vcmp.eq.f32.partialorder %v7323, 8.507059e+37
        %v7325 = vand.u32 %v7313, 2147483648
        %v7326 = vor.u32 1.1754944e-38, %v7325
        %v7327 = vsel %vm7324, %v7326, %v7322
        %v7328 = vmul.f32 %v7303, %v7327
        %v7329 = vmin.f32 %v7328, 1.0
        %v7330 = vmax.f32 %v7329, -1.0
        %v7331 = vmul.f32 %v3381, %v3381
        %v7332 = vmin.f32 16.0, %v7331
        %v7333 = vmul.f32 %v7332, 2.1237322e-06
        %v7334 = vadd.f32 %v7333, 0.00028619796
        %v7335 = vmul.f32 %v7332, %v7334
        %v7336 = vadd.f32 %v7335, 0.0036580483
        %v7337 = vmul.f32 %v7332, %v7336
        %v7338 = vadd.f32 %v7337, 0.05243302
        %v7339 = vmul.f32 %v7332, %v7338
        %v7340 = vadd.f32 %v7339, 0.18741608
        %v7341 = vmul.f32 %v7332, %v7340
        %v7342 = vadd.f32 %v7341, 1.1283791
        %v7343 = vmul.f32 %v3381, %v7342
        %v7344 = vmul.f32 %v7332, 3.8918573e-05
        %v7345 = vadd.f32 %v7344, 0.001143296
        %v7346 = vmul.f32 %v7332, %v7345
        %v7347 = vadd.f32 %v7346, 0.014752088
        %v7348 = vmul.f32 %v7332, %v7347
        %v7349 = vadd.f32 %v7348, 0.112945676
        %v7350 = vmul.f32 %v7332, %v7349
        %v7351 = vadd.f32 %v7350, 0.4994258
        %v7352 = vmul.f32 %v7332, %v7351
        %v7353 = vadd.f32 %v7352, 1.0
        %v7354 = vrcp.pop %v7353
        %v7355 = vmul.f32 %v7353, %v7354
        %v7356 = vsub.f32 1.0, %v7355
        %v7357 = vmul.f32 %v7354, %v7356
        %v7358 = vadd.f32 %v7354, %v7357
        %vm7359 = vweird.f32 %v7353
        %vm7360 = vweird.f32 %v7354
        %vm7361 = vmor %vm7359, %vm7360
        %v7362 = vsel %vm7361, %v7354, %v7358
        %v7363 = vand.u32 2147483647, %v7353
        %vm7364 = vcmp.eq.f32.partialorder %v7363, 8.507059e+37
        %v7365 = vand.u32 %v7353, 2147483648
        %v7366 = vor.u32 1.1754944e-38, %v7365
        %v7367 = vsel %vm7364, %v7366, %v7362
        %v7368 = vmul.f32 %v7343, %v7367
        %v7369 = vmin.f32 %v7368, 1.0
        %v7370 = vmax.f32 %v7369, -1.0
        %v7371 = vmul.f32 %v3382, %v3382
        %v7372 = vmin.f32 16.0, %v7371
        %v7373 = vmul.f32 %v7372, 2.1237322e-06
        %v7374 = vadd.f32 %v7373, 0.00028619796
        %v7375 = vmul.f32 %v7372, %v7374
        %v7376 = vadd.f32 %v7375, 0.0036580483
        %v7377 = vmul.f32 %v7372, %v7376
        %v7378 = vadd.f32 %v7377, 0.05243302
        %v7379 = vmul.f32 %v7372, %v7378
        %v7380 = vadd.f32 %v7379, 0.18741608
        %v7381 = vmul.f32 %v7372, %v7380
        %v7382 = vadd.f32 %v7381, 1.1283791
        %v7383 = vmul.f32 %v3382, %v7382
        %v7384 = vmul.f32 %v7372, 3.8918573e-05
        %v7385 = vadd.f32 %v7384, 0.001143296
        %v7386 = vmul.f32 %v7372, %v7385
        %v7387 = vadd.f32 %v7386, 0.014752088
        %v7388 = vmul.f32 %v7372, %v7387
        %v7389 = vadd.f32 %v7388, 0.112945676
        %v7390 = vmul.f32 %v7372, %v7389
        %v7391 = vadd.f32 %v7390, 0.4994258
        %v7392 = vmul.f32 %v7372, %v7391
        %v7393 = vadd.f32 %v7392, 1.0
        %v7394 = vrcp.pop %v7393
        %v7395 = vmul.f32 %v7393, %v7394
        %v7396 = vsub.f32 1.0, %v7395
        %v7397 = vmul.f32 %v7394, %v7396
        %v7398 = vadd.f32 %v7394, %v7397
        %vm7399 = vweird.f32 %v7393
        %vm7400 = vweird.f32 %v7394
        %vm7401 = vmor %vm7399, %vm7400
        %v7402 = vsel %vm7401, %v7394, %v7398
        %v7403 = vand.u32 2147483647, %v7393
        %vm7404 = vcmp.eq.f32.partialorder %v7403, 8.507059e+37
        %v7405 = vand.u32 %v7393, 2147483648
        %v7406 = vor.u32 1.1754944e-38, %v7405
        %v7407 = vsel %vm7404, %v7406, %v7402
        %v7408 = vmul.f32 %v7383, %v7407
        %v7409 = vmin.f32 %v7408, 1.0
        %v7410 = vmax.f32 %v7409, -1.0
        %v7411 = vmul.f32 %v3383, %v3383
        %v7412 = vmin.f32 16.0, %v7411
        %v7413 = vmul.f32 %v7412, 2.1237322e-06
        %v7414 = vadd.f32 %v7413, 0.00028619796
        %v7415 = vmul.f32 %v7412, %v7414
        %v7416 = vadd.f32 %v7415, 0.0036580483
        %v7417 = vmul.f32 %v7412, %v7416
        %v7418 = vadd.f32 %v7417, 0.05243302
        %v7419 = vmul.f32 %v7412, %v7418
        %v7420 = vadd.f32 %v7419, 0.18741608
        %v7421 = vmul.f32 %v7412, %v7420
        %v7422 = vadd.f32 %v7421, 1.1283791
        %v7423 = vmul.f32 %v3383, %v7422
        %v7424 = vmul.f32 %v7412, 3.8918573e-05
        %v7425 = vadd.f32 %v7424, 0.001143296
        %v7426 = vmul.f32 %v7412, %v7425
        %v7427 = vadd.f32 %v7426, 0.014752088
        %v7428 = vmul.f32 %v7412, %v7427
        %v7429 = vadd.f32 %v7428, 0.112945676
        %v7430 = vmul.f32 %v7412, %v7429
        %v7431 = vadd.f32 %v7430, 0.4994258
        %v7432 = vmul.f32 %v7412, %v7431
        %v7433 = vadd.f32 %v7432, 1.0
        %v7434 = vrcp.pop %v7433
        %v7435 = vmul.f32 %v7433, %v7434
        %v7436 = vsub.f32 1.0, %v7435
        %v7437 = vmul.f32 %v7434, %v7436
        %v7438 = vadd.f32 %v7434, %v7437
        %vm7439 = vweird.f32 %v7433
        %vm7440 = vweird.f32 %v7434
        %vm7441 = vmor %vm7439, %vm7440
        %v7442 = vsel %vm7441, %v7434, %v7438
        %v7443 = vand.u32 2147483647, %v7433
        %vm7444 = vcmp.eq.f32.partialorder %v7443, 8.507059e+37
        %v7445 = vand.u32 %v7433, 2147483648
        %v7446 = vor.u32 1.1754944e-38, %v7445
        %v7447 = vsel %vm7444, %v7446, %v7442
        %v7448 = vmul.f32 %v7423, %v7447
        %v7449 = vmin.f32 %v7448, 1.0
        %v7450 = vmax.f32 %v7449, -1.0
        %v7451 = vmul.f32 %v3384, %v3384
        %v7452 = vmin.f32 16.0, %v7451
        %v7453 = vmul.f32 %v7452, 2.1237322e-06
        %v7454 = vadd.f32 %v7453, 0.00028619796
        %v7455 = vmul.f32 %v7452, %v7454
        %v7456 = vadd.f32 %v7455, 0.0036580483
        %v7457 = vmul.f32 %v7452, %v7456
        %v7458 = vadd.f32 %v7457, 0.05243302
        %v7459 = vmul.f32 %v7452, %v7458
        %v7460 = vadd.f32 %v7459, 0.18741608
        %v7461 = vmul.f32 %v7452, %v7460
        %v7462 = vadd.f32 %v7461, 1.1283791
        %v7463 = vmul.f32 %v3384, %v7462
        %v7464 = vmul.f32 %v7452, 3.8918573e-05
        %v7465 = vadd.f32 %v7464, 0.001143296
        %v7466 = vmul.f32 %v7452, %v7465
        %v7467 = vadd.f32 %v7466, 0.014752088
        %v7468 = vmul.f32 %v7452, %v7467
        %v7469 = vadd.f32 %v7468, 0.112945676
        %v7470 = vmul.f32 %v7452, %v7469
        %v7471 = vadd.f32 %v7470, 0.4994258
        %v7472 = vmul.f32 %v7452, %v7471
        %v7473 = vadd.f32 %v7472, 1.0
        %v7474 = vrcp.pop %v7473
        %v7475 = vmul.f32 %v7473, %v7474
        %v7476 = vsub.f32 1.0, %v7475
        %v7477 = vmul.f32 %v7474, %v7476
        %v7478 = vadd.f32 %v7474, %v7477
        %vm7479 = vweird.f32 %v7473
        %vm7480 = vweird.f32 %v7474
        %vm7481 = vmor %vm7479, %vm7480
        %v7482 = vsel %vm7481, %v7474, %v7478
        %v7483 = vand.u32 2147483647, %v7473
        %vm7484 = vcmp.eq.f32.partialorder %v7483, 8.507059e+37
        %v7485 = vand.u32 %v7473, 2147483648
        %v7486 = vor.u32 1.1754944e-38, %v7485
        %v7487 = vsel %vm7484, %v7486, %v7482
        %v7488 = vmul.f32 %v7463, %v7487
        %v7489 = vmin.f32 %v7488, 1.0
        %v7490 = vmax.f32 %v7489, -1.0
        %v7491 = vmul.f32 %v3385, %v3385
        %v7492 = vmin.f32 16.0, %v7491
        %v7493 = vmul.f32 %v7492, 2.1237322e-06
        %v7494 = vadd.f32 %v7493, 0.00028619796
        %v7495 = vmul.f32 %v7492, %v7494
        %v7496 = vadd.f32 %v7495, 0.0036580483
        %v7497 = vmul.f32 %v7492, %v7496
        %v7498 = vadd.f32 %v7497, 0.05243302
        %v7499 = vmul.f32 %v7492, %v7498
        %v7500 = vadd.f32 %v7499, 0.18741608
        %v7501 = vmul.f32 %v7492, %v7500
        %v7502 = vadd.f32 %v7501, 1.1283791
        %v7503 = vmul.f32 %v3385, %v7502
        %v7504 = vmul.f32 %v7492, 3.8918573e-05
        %v7505 = vadd.f32 %v7504, 0.001143296
        %v7506 = vmul.f32 %v7492, %v7505
        %v7507 = vadd.f32 %v7506, 0.014752088
        %v7508 = vmul.f32 %v7492, %v7507
        %v7509 = vadd.f32 %v7508, 0.112945676
        %v7510 = vmul.f32 %v7492, %v7509
        %v7511 = vadd.f32 %v7510, 0.4994258
        %v7512 = vmul.f32 %v7492, %v7511
        %v7513 = vadd.f32 %v7512, 1.0
        %v7514 = vrcp.pop %v7513
        %v7515 = vmul.f32 %v7513, %v7514
        %v7516 = vsub.f32 1.0, %v7515
        %v7517 = vmul.f32 %v7514, %v7516
        %v7518 = vadd.f32 %v7514, %v7517
        %vm7519 = vweird.f32 %v7513
        %vm7520 = vweird.f32 %v7514
        %vm7521 = vmor %vm7519, %vm7520
        %v7522 = vsel %vm7521, %v7514, %v7518
        %v7523 = vand.u32 2147483647, %v7513
        %vm7524 = vcmp.eq.f32.partialorder %v7523, 8.507059e+37
        %v7525 = vand.u32 %v7513, 2147483648
        %v7526 = vor.u32 1.1754944e-38, %v7525
        %v7527 = vsel %vm7524, %v7526, %v7522
        %v7528 = vmul.f32 %v7503, %v7527
        %v7529 = vmin.f32 %v7528, 1.0
        %v7530 = vmax.f32 %v7529, -1.0
        %v7531 = vmul.f32 %v3386, %v3386
        %v7532 = vmin.f32 16.0, %v7531
        %v7533 = vmul.f32 %v7532, 2.1237322e-06
        %v7534 = vadd.f32 %v7533, 0.00028619796
        %v7535 = vmul.f32 %v7532, %v7534
        %v7536 = vadd.f32 %v7535, 0.0036580483
        %v7537 = vmul.f32 %v7532, %v7536
        %v7538 = vadd.f32 %v7537, 0.05243302
        %v7539 = vmul.f32 %v7532, %v7538
        %v7540 = vadd.f32 %v7539, 0.18741608
        %v7541 = vmul.f32 %v7532, %v7540
        %v7542 = vadd.f32 %v7541, 1.1283791
        %v7543 = vmul.f32 %v3386, %v7542
        %v7544 = vmul.f32 %v7532, 3.8918573e-05
        %v7545 = vadd.f32 %v7544, 0.001143296
        %v7546 = vmul.f32 %v7532, %v7545
        %v7547 = vadd.f32 %v7546, 0.014752088
        %v7548 = vmul.f32 %v7532, %v7547
        %v7549 = vadd.f32 %v7548, 0.112945676
        %v7550 = vmul.f32 %v7532, %v7549
        %v7551 = vadd.f32 %v7550, 0.4994258
        %v7552 = vmul.f32 %v7532, %v7551
        %v7553 = vadd.f32 %v7552, 1.0
        %v7554 = vrcp.pop %v7553
        %v7555 = vmul.f32 %v7553, %v7554
        %v7556 = vsub.f32 1.0, %v7555
        %v7557 = vmul.f32 %v7554, %v7556
        %v7558 = vadd.f32 %v7554, %v7557
        %vm7559 = vweird.f32 %v7553
        %vm7560 = vweird.f32 %v7554
        %vm7561 = vmor %vm7559, %vm7560
        %v7562 = vsel %vm7561, %v7554, %v7558
        %v7563 = vand.u32 2147483647, %v7553
        %vm7564 = vcmp.eq.f32.partialorder %v7563, 8.507059e+37
        %v7565 = vand.u32 %v7553, 2147483648
        %v7566 = vor.u32 1.1754944e-38, %v7565
        %v7567 = vsel %vm7564, %v7566, %v7562
        %v7568 = vmul.f32 %v7543, %v7567
        %v7569 = vmin.f32 %v7568, 1.0
        %v7570 = vmax.f32 %v7569, -1.0
        %v7571 = vmul.f32 %v3387, %v3387
        %v7572 = vmin.f32 16.0, %v7571
        %v7573 = vmul.f32 %v7572, 2.1237322e-06
        %v7574 = vadd.f32 %v7573, 0.00028619796
        %v7575 = vmul.f32 %v7572, %v7574
        %v7576 = vadd.f32 %v7575, 0.0036580483
        %v7577 = vmul.f32 %v7572, %v7576
        %v7578 = vadd.f32 %v7577, 0.05243302
        %v7579 = vmul.f32 %v7572, %v7578
        %v7580 = vadd.f32 %v7579, 0.18741608
        %v7581 = vmul.f32 %v7572, %v7580
        %v7582 = vadd.f32 %v7581, 1.1283791
        %v7583 = vmul.f32 %v3387, %v7582
        %v7584 = vmul.f32 %v7572, 3.8918573e-05
        %v7585 = vadd.f32 %v7584, 0.001143296
        %v7586 = vmul.f32 %v7572, %v7585
        %v7587 = vadd.f32 %v7586, 0.014752088
        %v7588 = vmul.f32 %v7572, %v7587
        %v7589 = vadd.f32 %v7588, 0.112945676
        %v7590 = vmul.f32 %v7572, %v7589
        %v7591 = vadd.f32 %v7590, 0.4994258
        %v7592 = vmul.f32 %v7572, %v7591
        %v7593 = vadd.f32 %v7592, 1.0
        %v7594 = vrcp.pop %v7593
        %v7595 = vmul.f32 %v7593, %v7594
        %v7596 = vsub.f32 1.0, %v7595
        %v7597 = vmul.f32 %v7594, %v7596
        %v7598 = vadd.f32 %v7594, %v7597
        %vm7599 = vweird.f32 %v7593
        %vm7600 = vweird.f32 %v7594
        %vm7601 = vmor %vm7599, %vm7600
        %v7602 = vsel %vm7601, %v7594, %v7598
        %v7603 = vand.u32 2147483647, %v7593
        %vm7604 = vcmp.eq.f32.partialorder %v7603, 8.507059e+37
        %v7605 = vand.u32 %v7593, 2147483648
        %v7606 = vor.u32 1.1754944e-38, %v7605
        %v7607 = vsel %vm7604, %v7606, %v7602
        %v7608 = vmul.f32 %v7583, %v7607
        %v7609 = vmin.f32 %v7608, 1.0
        %v7610 = vmax.f32 %v7609, -1.0
        %v7611 = vmul.f32 %v3388, %v3388
        %v7612 = vmin.f32 16.0, %v7611
        %v7613 = vmul.f32 %v7612, 2.1237322e-06
        %v7614 = vadd.f32 %v7613, 0.00028619796
        %v7615 = vmul.f32 %v7612, %v7614
        %v7616 = vadd.f32 %v7615, 0.0036580483
        %v7617 = vmul.f32 %v7612, %v7616
        %v7618 = vadd.f32 %v7617, 0.05243302
        %v7619 = vmul.f32 %v7612, %v7618
        %v7620 = vadd.f32 %v7619, 0.18741608
        %v7621 = vmul.f32 %v7612, %v7620
        %v7622 = vadd.f32 %v7621, 1.1283791
        %v7623 = vmul.f32 %v3388, %v7622
        %v7624 = vmul.f32 %v7612, 3.8918573e-05
        %v7625 = vadd.f32 %v7624, 0.001143296
        %v7626 = vmul.f32 %v7612, %v7625
        %v7627 = vadd.f32 %v7626, 0.014752088
        %v7628 = vmul.f32 %v7612, %v7627
        %v7629 = vadd.f32 %v7628, 0.112945676
        %v7630 = vmul.f32 %v7612, %v7629
        %v7631 = vadd.f32 %v7630, 0.4994258
        %v7632 = vmul.f32 %v7612, %v7631
        %v7633 = vadd.f32 %v7632, 1.0
        %v7634 = vrcp.pop %v7633
        %v7635 = vmul.f32 %v7633, %v7634
        %v7636 = vsub.f32 1.0, %v7635
        %v7637 = vmul.f32 %v7634, %v7636
        %v7638 = vadd.f32 %v7634, %v7637
        %vm7639 = vweird.f32 %v7633
        %vm7640 = vweird.f32 %v7634
        %vm7641 = vmor %vm7639, %vm7640
        %v7642 = vsel %vm7641, %v7634, %v7638
        %v7643 = vand.u32 2147483647, %v7633
        %vm7644 = vcmp.eq.f32.partialorder %v7643, 8.507059e+37
        %v7645 = vand.u32 %v7633, 2147483648
        %v7646 = vor.u32 1.1754944e-38, %v7645
        %v7647 = vsel %vm7644, %v7646, %v7642
        %v7648 = vmul.f32 %v7623, %v7647
        %v7649 = vmin.f32 %v7648, 1.0
        %v7650 = vmax.f32 %v7649, -1.0
        %v7651 = vmul.f32 %v3389, %v3389
        %v7652 = vmin.f32 16.0, %v7651
        %v7653 = vmul.f32 %v7652, 2.1237322e-06
        %v7654 = vadd.f32 %v7653, 0.00028619796
        %v7655 = vmul.f32 %v7652, %v7654
        %v7656 = vadd.f32 %v7655, 0.0036580483
        %v7657 = vmul.f32 %v7652, %v7656
        %v7658 = vadd.f32 %v7657, 0.05243302
        %v7659 = vmul.f32 %v7652, %v7658
        %v7660 = vadd.f32 %v7659, 0.18741608
        %v7661 = vmul.f32 %v7652, %v7660
        %v7662 = vadd.f32 %v7661, 1.1283791
        %v7663 = vmul.f32 %v3389, %v7662
        %v7664 = vmul.f32 %v7652, 3.8918573e-05
        %v7665 = vadd.f32 %v7664, 0.001143296
        %v7666 = vmul.f32 %v7652, %v7665
        %v7667 = vadd.f32 %v7666, 0.014752088
        %v7668 = vmul.f32 %v7652, %v7667
        %v7669 = vadd.f32 %v7668, 0.112945676
        %v7670 = vmul.f32 %v7652, %v7669
        %v7671 = vadd.f32 %v7670, 0.4994258
        %v7672 = vmul.f32 %v7652, %v7671
        %v7673 = vadd.f32 %v7672, 1.0
        %v7674 = vrcp.pop %v7673
        %v7675 = vmul.f32 %v7673, %v7674
        %v7676 = vsub.f32 1.0, %v7675
        %v7677 = vmul.f32 %v7674, %v7676
        %v7678 = vadd.f32 %v7674, %v7677
        %vm7679 = vweird.f32 %v7673
        %vm7680 = vweird.f32 %v7674
        %vm7681 = vmor %vm7679, %vm7680
        %v7682 = vsel %vm7681, %v7674, %v7678
        %v7683 = vand.u32 2147483647, %v7673
        %vm7684 = vcmp.eq.f32.partialorder %v7683, 8.507059e+37
        %v7685 = vand.u32 %v7673, 2147483648
        %v7686 = vor.u32 1.1754944e-38, %v7685
        %v7687 = vsel %vm7684, %v7686, %v7682
        %v7688 = vmul.f32 %v7663, %v7687
        %v7689 = vmin.f32 %v7688, 1.0
        %v7690 = vmax.f32 %v7689, -1.0
        %v7691 = vmul.f32 %v3390, %v3390
        %v7692 = vmin.f32 16.0, %v7691
        %v7693 = vmul.f32 %v7692, 2.1237322e-06
        %v7694 = vadd.f32 %v7693, 0.00028619796
        %v7695 = vmul.f32 %v7692, %v7694
        %v7696 = vadd.f32 %v7695, 0.0036580483
        %v7697 = vmul.f32 %v7692, %v7696
        %v7698 = vadd.f32 %v7697, 0.05243302
        %v7699 = vmul.f32 %v7692, %v7698
        %v7700 = vadd.f32 %v7699, 0.18741608
        %v7701 = vmul.f32 %v7692, %v7700
        %v7702 = vadd.f32 %v7701, 1.1283791
        %v7703 = vmul.f32 %v3390, %v7702
        %v7704 = vmul.f32 %v7692, 3.8918573e-05
        %v7705 = vadd.f32 %v7704, 0.001143296
        %v7706 = vmul.f32 %v7692, %v7705
        %v7707 = vadd.f32 %v7706, 0.014752088
        %v7708 = vmul.f32 %v7692, %v7707
        %v7709 = vadd.f32 %v7708, 0.112945676
        %v7710 = vmul.f32 %v7692, %v7709
        %v7711 = vadd.f32 %v7710, 0.4994258
        %v7712 = vmul.f32 %v7692, %v7711
        %v7713 = vadd.f32 %v7712, 1.0
        %v7714 = vrcp.pop %v7713
        %v7715 = vmul.f32 %v7713, %v7714
        %v7716 = vsub.f32 1.0, %v7715
        %v7717 = vmul.f32 %v7714, %v7716
        %v7718 = vadd.f32 %v7714, %v7717
        %vm7719 = vweird.f32 %v7713
        %vm7720 = vweird.f32 %v7714
        %vm7721 = vmor %vm7719, %vm7720
        %v7722 = vsel %vm7721, %v7714, %v7718
        %v7723 = vand.u32 2147483647, %v7713
        %vm7724 = vcmp.eq.f32.partialorder %v7723, 8.507059e+37
        %v7725 = vand.u32 %v7713, 2147483648
        %v7726 = vor.u32 1.1754944e-38, %v7725
        %v7727 = vsel %vm7724, %v7726, %v7722
        %v7728 = vmul.f32 %v7703, %v7727
        %v7729 = vmin.f32 %v7728, 1.0
        %v7730 = vmax.f32 %v7729, -1.0
        %v7731 = vmul.f32 %v3391, %v3391
        %v7732 = vmin.f32 16.0, %v7731
        %v7733 = vmul.f32 %v7732, 2.1237322e-06
        %v7734 = vadd.f32 %v7733, 0.00028619796
        %v7735 = vmul.f32 %v7732, %v7734
        %v7736 = vadd.f32 %v7735, 0.0036580483
        %v7737 = vmul.f32 %v7732, %v7736
        %v7738 = vadd.f32 %v7737, 0.05243302
        %v7739 = vmul.f32 %v7732, %v7738
        %v7740 = vadd.f32 %v7739, 0.18741608
        %v7741 = vmul.f32 %v7732, %v7740
        %v7742 = vadd.f32 %v7741, 1.1283791
        %v7743 = vmul.f32 %v3391, %v7742
        %v7744 = vmul.f32 %v7732, 3.8918573e-05
        %v7745 = vadd.f32 %v7744, 0.001143296
        %v7746 = vmul.f32 %v7732, %v7745
        %v7747 = vadd.f32 %v7746, 0.014752088
        %v7748 = vmul.f32 %v7732, %v7747
        %v7749 = vadd.f32 %v7748, 0.112945676
        %v7750 = vmul.f32 %v7732, %v7749
        %v7751 = vadd.f32 %v7750, 0.4994258
        %v7752 = vmul.f32 %v7732, %v7751
        %v7753 = vadd.f32 %v7752, 1.0
        %v7754 = vrcp.pop %v7753
        %v7755 = vmul.f32 %v7753, %v7754
        %v7756 = vsub.f32 1.0, %v7755
        %v7757 = vmul.f32 %v7754, %v7756
        %v7758 = vadd.f32 %v7754, %v7757
        %vm7759 = vweird.f32 %v7753
        %vm7760 = vweird.f32 %v7754
        %vm7761 = vmor %vm7759, %vm7760
        %v7762 = vsel %vm7761, %v7754, %v7758
        %v7763 = vand.u32 2147483647, %v7753
        %vm7764 = vcmp.eq.f32.partialorder %v7763, 8.507059e+37
        %v7765 = vand.u32 %v7753, 2147483648
        %v7766 = vor.u32 1.1754944e-38, %v7765
        %v7767 = vsel %vm7764, %v7766, %v7762
        %v7768 = vmul.f32 %v7743, %v7767
        %v7769 = vmin.f32 %v7768, 1.0
        %v7770 = vmax.f32 %v7769, -1.0
        %v7771 = vmul.f32 %v3392, %v3392
        %v7772 = vmin.f32 16.0, %v7771
        %v7773 = vmul.f32 %v7772, 2.1237322e-06
        %v7774 = vadd.f32 %v7773, 0.00028619796
        %v7775 = vmul.f32 %v7772, %v7774
        %v7776 = vadd.f32 %v7775, 0.0036580483
        %v7777 = vmul.f32 %v7772, %v7776
        %v7778 = vadd.f32 %v7777, 0.05243302
        %v7779 = vmul.f32 %v7772, %v7778
        %v7780 = vadd.f32 %v7779, 0.18741608
        %v7781 = vmul.f32 %v7772, %v7780
        %v7782 = vadd.f32 %v7781, 1.1283791
        %v7783 = vmul.f32 %v3392, %v7782
        %v7784 = vmul.f32 %v7772, 3.8918573e-05
        %v7785 = vadd.f32 %v7784, 0.001143296
        %v7786 = vmul.f32 %v7772, %v7785
        %v7787 = vadd.f32 %v7786, 0.014752088
        %v7788 = vmul.f32 %v7772, %v7787
        %v7789 = vadd.f32 %v7788, 0.112945676
        %v7790 = vmul.f32 %v7772, %v7789
        %v7791 = vadd.f32 %v7790, 0.4994258
        %v7792 = vmul.f32 %v7772, %v7791
        %v7793 = vadd.f32 %v7792, 1.0
        %v7794 = vrcp.pop %v7793
        %v7795 = vmul.f32 %v7793, %v7794
        %v7796 = vsub.f32 1.0, %v7795
        %v7797 = vmul.f32 %v7794, %v7796
        %v7798 = vadd.f32 %v7794, %v7797
        %vm7799 = vweird.f32 %v7793
        %vm7800 = vweird.f32 %v7794
        %vm7801 = vmor %vm7799, %vm7800
        %v7802 = vsel %vm7801, %v7794, %v7798
        %v7803 = vand.u32 2147483647, %v7793
        %vm7804 = vcmp.eq.f32.partialorder %v7803, 8.507059e+37
        %v7805 = vand.u32 %v7793, 2147483648
        %v7806 = vor.u32 1.1754944e-38, %v7805
        %v7807 = vsel %vm7804, %v7806, %v7802
        %v7808 = vmul.f32 %v7783, %v7807
        %v7809 = vmin.f32 %v7808, 1.0
        %v7810 = vmax.f32 %v7809, -1.0
        %v7811 = vmul.f32 %v3393, %v3393
        %v7812 = vmin.f32 16.0, %v7811
        %v7813 = vmul.f32 %v7812, 2.1237322e-06
        %v7814 = vadd.f32 %v7813, 0.00028619796
        %v7815 = vmul.f32 %v7812, %v7814
        %v7816 = vadd.f32 %v7815, 0.0036580483
        %v7817 = vmul.f32 %v7812, %v7816
        %v7818 = vadd.f32 %v7817, 0.05243302
        %v7819 = vmul.f32 %v7812, %v7818
        %v7820 = vadd.f32 %v7819, 0.18741608
        %v7821 = vmul.f32 %v7812, %v7820
        %v7822 = vadd.f32 %v7821, 1.1283791
        %v7823 = vmul.f32 %v3393, %v7822
        %v7824 = vmul.f32 %v7812, 3.8918573e-05
        %v7825 = vadd.f32 %v7824, 0.001143296
        %v7826 = vmul.f32 %v7812, %v7825
        %v7827 = vadd.f32 %v7826, 0.014752088
        %v7828 = vmul.f32 %v7812, %v7827
        %v7829 = vadd.f32 %v7828, 0.112945676
        %v7830 = vmul.f32 %v7812, %v7829
        %v7831 = vadd.f32 %v7830, 0.4994258
        %v7832 = vmul.f32 %v7812, %v7831
        %v7833 = vadd.f32 %v7832, 1.0
        %v7834 = vrcp.pop %v7833
        %v7835 = vmul.f32 %v7833, %v7834
        %v7836 = vsub.f32 1.0, %v7835
        %v7837 = vmul.f32 %v7834, %v7836
        %v7838 = vadd.f32 %v7834, %v7837
        %vm7839 = vweird.f32 %v7833
        %vm7840 = vweird.f32 %v7834
        %vm7841 = vmor %vm7839, %vm7840
        %v7842 = vsel %vm7841, %v7834, %v7838
        %v7843 = vand.u32 2147483647, %v7833
        %vm7844 = vcmp.eq.f32.partialorder %v7843, 8.507059e+37
        %v7845 = vand.u32 %v7833, 2147483648
        %v7846 = vor.u32 1.1754944e-38, %v7845
        %v7847 = vsel %vm7844, %v7846, %v7842
        %v7848 = vmul.f32 %v7823, %v7847
        %v7849 = vmin.f32 %v7848, 1.0
        %v7850 = vmax.f32 %v7849, -1.0
        %v7851 = vmul.f32 %v3394, %v3394
        %v7852 = vmin.f32 16.0, %v7851
        %v7853 = vmul.f32 %v7852, 2.1237322e-06
        %v7854 = vadd.f32 %v7853, 0.00028619796
        %v7855 = vmul.f32 %v7852, %v7854
        %v7856 = vadd.f32 %v7855, 0.0036580483
        %v7857 = vmul.f32 %v7852, %v7856
        %v7858 = vadd.f32 %v7857, 0.05243302
        %v7859 = vmul.f32 %v7852, %v7858
        %v7860 = vadd.f32 %v7859, 0.18741608
        %v7861 = vmul.f32 %v7852, %v7860
        %v7862 = vadd.f32 %v7861, 1.1283791
        %v7863 = vmul.f32 %v3394, %v7862
        %v7864 = vmul.f32 %v7852, 3.8918573e-05
        %v7865 = vadd.f32 %v7864, 0.001143296
        %v7866 = vmul.f32 %v7852, %v7865
        %v7867 = vadd.f32 %v7866, 0.014752088
        %v7868 = vmul.f32 %v7852, %v7867
        %v7869 = vadd.f32 %v7868, 0.112945676
        %v7870 = vmul.f32 %v7852, %v7869
        %v7871 = vadd.f32 %v7870, 0.4994258
        %v7872 = vmul.f32 %v7852, %v7871
        %v7873 = vadd.f32 %v7872, 1.0
        %v7874 = vrcp.pop %v7873
        %v7875 = vmul.f32 %v7873, %v7874
        %v7876 = vsub.f32 1.0, %v7875
        %v7877 = vmul.f32 %v7874, %v7876
        %v7878 = vadd.f32 %v7874, %v7877
        %vm7879 = vweird.f32 %v7873
        %vm7880 = vweird.f32 %v7874
        %vm7881 = vmor %vm7879, %vm7880
        %v7882 = vsel %vm7881, %v7874, %v7878
        %v7883 = vand.u32 2147483647, %v7873
        %vm7884 = vcmp.eq.f32.partialorder %v7883, 8.507059e+37
        %v7885 = vand.u32 %v7873, 2147483648
        %v7886 = vor.u32 1.1754944e-38, %v7885
        %v7887 = vsel %vm7884, %v7886, %v7882
        %v7888 = vmul.f32 %v7863, %v7887
        %v7889 = vmin.f32 %v7888, 1.0
        %v7890 = vmax.f32 %v7889, -1.0
        %v7891 = vmul.f32 %v3395, %v3395
        %v7892 = vmin.f32 16.0, %v7891
        %v7893 = vmul.f32 %v7892, 2.1237322e-06
        %v7894 = vadd.f32 %v7893, 0.00028619796
        %v7895 = vmul.f32 %v7892, %v7894
        %v7896 = vadd.f32 %v7895, 0.0036580483
        %v7897 = vmul.f32 %v7892, %v7896
        %v7898 = vadd.f32 %v7897, 0.05243302
        %v7899 = vmul.f32 %v7892, %v7898
        %v7900 = vadd.f32 %v7899, 0.18741608
        %v7901 = vmul.f32 %v7892, %v7900
        %v7902 = vadd.f32 %v7901, 1.1283791
        %v7903 = vmul.f32 %v3395, %v7902
        %v7904 = vmul.f32 %v7892, 3.8918573e-05
        %v7905 = vadd.f32 %v7904, 0.001143296
        %v7906 = vmul.f32 %v7892, %v7905
        %v7907 = vadd.f32 %v7906, 0.014752088
        %v7908 = vmul.f32 %v7892, %v7907
        %v7909 = vadd.f32 %v7908, 0.112945676
        %v7910 = vmul.f32 %v7892, %v7909
        %v7911 = vadd.f32 %v7910, 0.4994258
        %v7912 = vmul.f32 %v7892, %v7911
        %v7913 = vadd.f32 %v7912, 1.0
        %v7914 = vrcp.pop %v7913
        %v7915 = vmul.f32 %v7913, %v7914
        %v7916 = vsub.f32 1.0, %v7915
        %v7917 = vmul.f32 %v7914, %v7916
        %v7918 = vadd.f32 %v7914, %v7917
        %vm7919 = vweird.f32 %v7913
        %vm7920 = vweird.f32 %v7914
        %vm7921 = vmor %vm7919, %vm7920
        %v7922 = vsel %vm7921, %v7914, %v7918
        %v7923 = vand.u32 2147483647, %v7913
        %vm7924 = vcmp.eq.f32.partialorder %v7923, 8.507059e+37
        %v7925 = vand.u32 %v7913, 2147483648
        %v7926 = vor.u32 1.1754944e-38, %v7925
        %v7927 = vsel %vm7924, %v7926, %v7922
        %v7928 = vmul.f32 %v7903, %v7927
        %v7929 = vmin.f32 %v7928, 1.0
        %v7930 = vmax.f32 %v7929, -1.0
        %v7931 = vmul.f32 %v3396, %v3396
        %v7932 = vmin.f32 16.0, %v7931
        %v7933 = vmul.f32 %v7932, 2.1237322e-06
        %v7934 = vadd.f32 %v7933, 0.00028619796
        %v7935 = vmul.f32 %v7932, %v7934
        %v7936 = vadd.f32 %v7935, 0.0036580483
        %v7937 = vmul.f32 %v7932, %v7936
        %v7938 = vadd.f32 %v7937, 0.05243302
        %v7939 = vmul.f32 %v7932, %v7938
        %v7940 = vadd.f32 %v7939, 0.18741608
        %v7941 = vmul.f32 %v7932, %v7940
        %v7942 = vadd.f32 %v7941, 1.1283791
        %v7943 = vmul.f32 %v3396, %v7942
        %v7944 = vmul.f32 %v7932, 3.8918573e-05
        %v7945 = vadd.f32 %v7944, 0.001143296
        %v7946 = vmul.f32 %v7932, %v7945
        %v7947 = vadd.f32 %v7946, 0.014752088
        %v7948 = vmul.f32 %v7932, %v7947
        %v7949 = vadd.f32 %v7948, 0.112945676
        %v7950 = vmul.f32 %v7932, %v7949
        %v7951 = vadd.f32 %v7950, 0.4994258
        %v7952 = vmul.f32 %v7932, %v7951
        %v7953 = vadd.f32 %v7952, 1.0
        %v7954 = vrcp.pop %v7953
        %v7955 = vmul.f32 %v7953, %v7954
        %v7956 = vsub.f32 1.0, %v7955
        %v7957 = vmul.f32 %v7954, %v7956
        %v7958 = vadd.f32 %v7954, %v7957
        %vm7959 = vweird.f32 %v7953
        %vm7960 = vweird.f32 %v7954
        %vm7961 = vmor %vm7959, %vm7960
        %v7962 = vsel %vm7961, %v7954, %v7958
        %v7963 = vand.u32 2147483647, %v7953
        %vm7964 = vcmp.eq.f32.partialorder %v7963, 8.507059e+37
        %v7965 = vand.u32 %v7953, 2147483648
        %v7966 = vor.u32 1.1754944e-38, %v7965
        %v7967 = vsel %vm7964, %v7966, %v7962
        %v7968 = vmul.f32 %v7943, %v7967
        %v7969 = vmin.f32 %v7968, 1.0
        %v7970 = vmax.f32 %v7969, -1.0
        %v7971 = vmul.f32 %v3397, %v3397
        %v7972 = vmin.f32 16.0, %v7971
        %v7973 = vmul.f32 %v7972, 2.1237322e-06
        %v7974 = vadd.f32 %v7973, 0.00028619796
        %v7975 = vmul.f32 %v7972, %v7974
        %v7976 = vadd.f32 %v7975, 0.0036580483
        %v7977 = vmul.f32 %v7972, %v7976
        %v7978 = vadd.f32 %v7977, 0.05243302
        %v7979 = vmul.f32 %v7972, %v7978
        %v7980 = vadd.f32 %v7979, 0.18741608
        %v7981 = vmul.f32 %v7972, %v7980
        %v7982 = vadd.f32 %v7981, 1.1283791
        %v7983 = vmul.f32 %v3397, %v7982
        %v7984 = vmul.f32 %v7972, 3.8918573e-05
        %v7985 = vadd.f32 %v7984, 0.001143296
        %v7986 = vmul.f32 %v7972, %v7985
        %v7987 = vadd.f32 %v7986, 0.014752088
        %v7988 = vmul.f32 %v7972, %v7987
        %v7989 = vadd.f32 %v7988, 0.112945676
        %v7990 = vmul.f32 %v7972, %v7989
        %v7991 = vadd.f32 %v7990, 0.4994258
        %v7992 = vmul.f32 %v7972, %v7991
        %v7993 = vadd.f32 %v7992, 1.0
        %v7994 = vrcp.pop %v7993
        %v7995 = vmul.f32 %v7993, %v7994
        %v7996 = vsub.f32 1.0, %v7995
        %v7997 = vmul.f32 %v7994, %v7996
        %v7998 = vadd.f32 %v7994, %v7997
        %vm7999 = vweird.f32 %v7993
        %vm8000 = vweird.f32 %v7994
        %vm8001 = vmor %vm7999, %vm8000
        %v8002 = vsel %vm8001, %v7994, %v7998
        %v8003 = vand.u32 2147483647, %v7993
        %vm8004 = vcmp.eq.f32.partialorder %v8003, 8.507059e+37
        %v8005 = vand.u32 %v7993, 2147483648
        %v8006 = vor.u32 1.1754944e-38, %v8005
        %v8007 = vsel %vm8004, %v8006, %v8002
        %v8008 = vmul.f32 %v7983, %v8007
        %v8009 = vmin.f32 %v8008, 1.0
        %v8010 = vmax.f32 %v8009, -1.0
        %v8011 = vmul.f32 %v3398, %v3398
        %v8012 = vmin.f32 16.0, %v8011
        %v8013 = vmul.f32 %v8012, 2.1237322e-06
        %v8014 = vadd.f32 %v8013, 0.00028619796
        %v8015 = vmul.f32 %v8012, %v8014
        %v8016 = vadd.f32 %v8015, 0.0036580483
        %v8017 = vmul.f32 %v8012, %v8016
        %v8018 = vadd.f32 %v8017, 0.05243302
        %v8019 = vmul.f32 %v8012, %v8018
        %v8020 = vadd.f32 %v8019, 0.18741608
        %v8021 = vmul.f32 %v8012, %v8020
        %v8022 = vadd.f32 %v8021, 1.1283791
        %v8023 = vmul.f32 %v3398, %v8022
        %v8024 = vmul.f32 %v8012, 3.8918573e-05
        %v8025 = vadd.f32 %v8024, 0.001143296
        %v8026 = vmul.f32 %v8012, %v8025
        %v8027 = vadd.f32 %v8026, 0.014752088
        %v8028 = vmul.f32 %v8012, %v8027
        %v8029 = vadd.f32 %v8028, 0.112945676
        %v8030 = vmul.f32 %v8012, %v8029
        %v8031 = vadd.f32 %v8030, 0.4994258
        %v8032 = vmul.f32 %v8012, %v8031
        %v8033 = vadd.f32 %v8032, 1.0
        %v8034 = vrcp.pop %v8033
        %v8035 = vmul.f32 %v8033, %v8034
        %v8036 = vsub.f32 1.0, %v8035
        %v8037 = vmul.f32 %v8034, %v8036
        %v8038 = vadd.f32 %v8034, %v8037
        %vm8039 = vweird.f32 %v8033
        %vm8040 = vweird.f32 %v8034
        %vm8041 = vmor %vm8039, %vm8040
        %v8042 = vsel %vm8041, %v8034, %v8038
        %v8043 = vand.u32 2147483647, %v8033
        %vm8044 = vcmp.eq.f32.partialorder %v8043, 8.507059e+37
        %v8045 = vand.u32 %v8033, 2147483648
        %v8046 = vor.u32 1.1754944e-38, %v8045
        %v8047 = vsel %vm8044, %v8046, %v8042
        %v8048 = vmul.f32 %v8023, %v8047
        %v8049 = vmin.f32 %v8048, 1.0
        %v8050 = vmax.f32 %v8049, -1.0
        %v8051 = vmul.f32 %v3399, %v3399
        %v8052 = vmin.f32 16.0, %v8051
        %v8053 = vmul.f32 %v8052, 2.1237322e-06
        %v8054 = vadd.f32 %v8053, 0.00028619796
        %v8055 = vmul.f32 %v8052, %v8054
        %v8056 = vadd.f32 %v8055, 0.0036580483
        %v8057 = vmul.f32 %v8052, %v8056
        %v8058 = vadd.f32 %v8057, 0.05243302
        %v8059 = vmul.f32 %v8052, %v8058
        %v8060 = vadd.f32 %v8059, 0.18741608
        %v8061 = vmul.f32 %v8052, %v8060
        %v8062 = vadd.f32 %v8061, 1.1283791
        %v8063 = vmul.f32 %v3399, %v8062
        %v8064 = vmul.f32 %v8052, 3.8918573e-05
        %v8065 = vadd.f32 %v8064, 0.001143296
        %v8066 = vmul.f32 %v8052, %v8065
        %v8067 = vadd.f32 %v8066, 0.014752088
        %v8068 = vmul.f32 %v8052, %v8067
        %v8069 = vadd.f32 %v8068, 0.112945676
        %v8070 = vmul.f32 %v8052, %v8069
        %v8071 = vadd.f32 %v8070, 0.4994258
        %v8072 = vmul.f32 %v8052, %v8071
        %v8073 = vadd.f32 %v8072, 1.0
        %v8074 = vrcp.pop %v8073
        %v8075 = vmul.f32 %v8073, %v8074
        %v8076 = vsub.f32 1.0, %v8075
        %v8077 = vmul.f32 %v8074, %v8076
        %v8078 = vadd.f32 %v8074, %v8077
        %vm8079 = vweird.f32 %v8073
        %vm8080 = vweird.f32 %v8074
        %vm8081 = vmor %vm8079, %vm8080
        %v8082 = vsel %vm8081, %v8074, %v8078
        %v8083 = vand.u32 2147483647, %v8073
        %vm8084 = vcmp.eq.f32.partialorder %v8083, 8.507059e+37
        %v8085 = vand.u32 %v8073, 2147483648
        %v8086 = vor.u32 1.1754944e-38, %v8085
        %v8087 = vsel %vm8084, %v8086, %v8082
        %v8088 = vmul.f32 %v8063, %v8087
        %v8089 = vmin.f32 %v8088, 1.0
        %v8090 = vmax.f32 %v8089, -1.0
        %v8091 = vmul.f32 %v3400, %v3400
        %v8092 = vmin.f32 16.0, %v8091
        %v8093 = vmul.f32 %v8092, 2.1237322e-06
        %v8094 = vadd.f32 %v8093, 0.00028619796
        %v8095 = vmul.f32 %v8092, %v8094
        %v8096 = vadd.f32 %v8095, 0.0036580483
        %v8097 = vmul.f32 %v8092, %v8096
        %v8098 = vadd.f32 %v8097, 0.05243302
        %v8099 = vmul.f32 %v8092, %v8098
        %v8100 = vadd.f32 %v8099, 0.18741608
        %v8101 = vmul.f32 %v8092, %v8100
        %v8102 = vadd.f32 %v8101, 1.1283791
        %v8103 = vmul.f32 %v3400, %v8102
        %v8104 = vmul.f32 %v8092, 3.8918573e-05
        %v8105 = vadd.f32 %v8104, 0.001143296
        %v8106 = vmul.f32 %v8092, %v8105
        %v8107 = vadd.f32 %v8106, 0.014752088
        %v8108 = vmul.f32 %v8092, %v8107
        %v8109 = vadd.f32 %v8108, 0.112945676
        %v8110 = vmul.f32 %v8092, %v8109
        %v8111 = vadd.f32 %v8110, 0.4994258
        %v8112 = vmul.f32 %v8092, %v8111
        %v8113 = vadd.f32 %v8112, 1.0
        %v8114 = vrcp.pop %v8113
        %v8115 = vmul.f32 %v8113, %v8114
        %v8116 = vsub.f32 1.0, %v8115
        %v8117 = vmul.f32 %v8114, %v8116
        %v8118 = vadd.f32 %v8114, %v8117
        %vm8119 = vweird.f32 %v8113
        %vm8120 = vweird.f32 %v8114
        %vm8121 = vmor %vm8119, %vm8120
        %v8122 = vsel %vm8121, %v8114, %v8118
        %v8123 = vand.u32 2147483647, %v8113
        %vm8124 = vcmp.eq.f32.partialorder %v8123, 8.507059e+37
        %v8125 = vand.u32 %v8113, 2147483648
        %v8126 = vor.u32 1.1754944e-38, %v8125
        %v8127 = vsel %vm8124, %v8126, %v8122
        %v8128 = vmul.f32 %v8103, %v8127
        %v8129 = vmin.f32 %v8128, 1.0
        %v8130 = vmax.f32 %v8129, -1.0
        %v8131 = vmul.f32 %v3401, %v3401
        %v8132 = vmin.f32 16.0, %v8131
        %v8133 = vmul.f32 %v8132, 2.1237322e-06
        %v8134 = vadd.f32 %v8133, 0.00028619796
        %v8135 = vmul.f32 %v8132, %v8134
        %v8136 = vadd.f32 %v8135, 0.0036580483
        %v8137 = vmul.f32 %v8132, %v8136
        %v8138 = vadd.f32 %v8137, 0.05243302
        %v8139 = vmul.f32 %v8132, %v8138
        %v8140 = vadd.f32 %v8139, 0.18741608
        %v8141 = vmul.f32 %v8132, %v8140
        %v8142 = vadd.f32 %v8141, 1.1283791
        %v8143 = vmul.f32 %v3401, %v8142
        %v8144 = vmul.f32 %v8132, 3.8918573e-05
        %v8145 = vadd.f32 %v8144, 0.001143296
        %v8146 = vmul.f32 %v8132, %v8145
        %v8147 = vadd.f32 %v8146, 0.014752088
        %v8148 = vmul.f32 %v8132, %v8147
        %v8149 = vadd.f32 %v8148, 0.112945676
        %v8150 = vmul.f32 %v8132, %v8149
        %v8151 = vadd.f32 %v8150, 0.4994258
        %v8152 = vmul.f32 %v8132, %v8151
        %v8153 = vadd.f32 %v8152, 1.0
        %v8154 = vrcp.pop %v8153
        %v8155 = vmul.f32 %v8153, %v8154
        %v8156 = vsub.f32 1.0, %v8155
        %v8157 = vmul.f32 %v8154, %v8156
        %v8158 = vadd.f32 %v8154, %v8157
        %vm8159 = vweird.f32 %v8153
        %vm8160 = vweird.f32 %v8154
        %vm8161 = vmor %vm8159, %vm8160
        %v8162 = vsel %vm8161, %v8154, %v8158
        %v8163 = vand.u32 2147483647, %v8153
        %vm8164 = vcmp.eq.f32.partialorder %v8163, 8.507059e+37
        %v8165 = vand.u32 %v8153, 2147483648
        %v8166 = vor.u32 1.1754944e-38, %v8165
        %v8167 = vsel %vm8164, %v8166, %v8162
        %v8168 = vmul.f32 %v8143, %v8167
        %v8169 = vmin.f32 %v8168, 1.0
        %v8170 = vmax.f32 %v8169, -1.0
        %v8171 = vmul.f32 %v3402, %v3402
        %v8172 = vmin.f32 16.0, %v8171
        %v8173 = vmul.f32 %v8172, 2.1237322e-06
        %v8174 = vadd.f32 %v8173, 0.00028619796
        %v8175 = vmul.f32 %v8172, %v8174
        %v8176 = vadd.f32 %v8175, 0.0036580483
        %v8177 = vmul.f32 %v8172, %v8176
        %v8178 = vadd.f32 %v8177, 0.05243302
        %v8179 = vmul.f32 %v8172, %v8178
        %v8180 = vadd.f32 %v8179, 0.18741608
        %v8181 = vmul.f32 %v8172, %v8180
        %v8182 = vadd.f32 %v8181, 1.1283791
        %v8183 = vmul.f32 %v3402, %v8182
        %v8184 = vmul.f32 %v8172, 3.8918573e-05
        %v8185 = vadd.f32 %v8184, 0.001143296
        %v8186 = vmul.f32 %v8172, %v8185
        %v8187 = vadd.f32 %v8186, 0.014752088
        %v8188 = vmul.f32 %v8172, %v8187
        %v8189 = vadd.f32 %v8188, 0.112945676
        %v8190 = vmul.f32 %v8172, %v8189
        %v8191 = vadd.f32 %v8190, 0.4994258
        %v8192 = vmul.f32 %v8172, %v8191
        %v8193 = vadd.f32 %v8192, 1.0
        %v8194 = vrcp.pop %v8193
        %v8195 = vmul.f32 %v8193, %v8194
        %v8196 = vsub.f32 1.0, %v8195
        %v8197 = vmul.f32 %v8194, %v8196
        %v8198 = vadd.f32 %v8194, %v8197
        %vm8199 = vweird.f32 %v8193
        %vm8200 = vweird.f32 %v8194
        %vm8201 = vmor %vm8199, %vm8200
        %v8202 = vsel %vm8201, %v8194, %v8198
        %v8203 = vand.u32 2147483647, %v8193
        %vm8204 = vcmp.eq.f32.partialorder %v8203, 8.507059e+37
        %v8205 = vand.u32 %v8193, 2147483648
        %v8206 = vor.u32 1.1754944e-38, %v8205
        %v8207 = vsel %vm8204, %v8206, %v8202
        %v8208 = vmul.f32 %v8183, %v8207
        %v8209 = vmin.f32 %v8208, 1.0
        %v8210 = vmax.f32 %v8209, -1.0
        %v8211 = vmul.f32 %v3403, %v3403
        %v8212 = vmin.f32 16.0, %v8211
        %v8213 = vmul.f32 %v8212, 2.1237322e-06
        %v8214 = vadd.f32 %v8213, 0.00028619796
        %v8215 = vmul.f32 %v8212, %v8214
        %v8216 = vadd.f32 %v8215, 0.0036580483
        %v8217 = vmul.f32 %v8212, %v8216
        %v8218 = vadd.f32 %v8217, 0.05243302
        %v8219 = vmul.f32 %v8212, %v8218
        %v8220 = vadd.f32 %v8219, 0.18741608
        %v8221 = vmul.f32 %v8212, %v8220
        %v8222 = vadd.f32 %v8221, 1.1283791
        %v8223 = vmul.f32 %v3403, %v8222
        %v8224 = vmul.f32 %v8212, 3.8918573e-05
        %v8225 = vadd.f32 %v8224, 0.001143296
        %v8226 = vmul.f32 %v8212, %v8225
        %v8227 = vadd.f32 %v8226, 0.014752088
        %v8228 = vmul.f32 %v8212, %v8227
        %v8229 = vadd.f32 %v8228, 0.112945676
        %v8230 = vmul.f32 %v8212, %v8229
        %v8231 = vadd.f32 %v8230, 0.4994258
        %v8232 = vmul.f32 %v8212, %v8231
        %v8233 = vadd.f32 %v8232, 1.0
        %v8234 = vrcp.pop %v8233
        %v8235 = vmul.f32 %v8233, %v8234
        %v8236 = vsub.f32 1.0, %v8235
        %v8237 = vmul.f32 %v8234, %v8236
        %v8238 = vadd.f32 %v8234, %v8237
        %vm8239 = vweird.f32 %v8233
        %vm8240 = vweird.f32 %v8234
        %vm8241 = vmor %vm8239, %vm8240
        %v8242 = vsel %vm8241, %v8234, %v8238
        %v8243 = vand.u32 2147483647, %v8233
        %vm8244 = vcmp.eq.f32.partialorder %v8243, 8.507059e+37
        %v8245 = vand.u32 %v8233, 2147483648
        %v8246 = vor.u32 1.1754944e-38, %v8245
        %v8247 = vsel %vm8244, %v8246, %v8242
        %v8248 = vmul.f32 %v8223, %v8247
        %v8249 = vmin.f32 %v8248, 1.0
        %v8250 = vmax.f32 %v8249, -1.0
        %v8251 = vmul.f32 %v3404, %v3404
        %v8252 = vmin.f32 16.0, %v8251
        %v8253 = vmul.f32 %v8252, 2.1237322e-06
        %v8254 = vadd.f32 %v8253, 0.00028619796
        %v8255 = vmul.f32 %v8252, %v8254
        %v8256 = vadd.f32 %v8255, 0.0036580483
        %v8257 = vmul.f32 %v8252, %v8256
        %v8258 = vadd.f32 %v8257, 0.05243302
        %v8259 = vmul.f32 %v8252, %v8258
        %v8260 = vadd.f32 %v8259, 0.18741608
        %v8261 = vmul.f32 %v8252, %v8260
        %v8262 = vadd.f32 %v8261, 1.1283791
        %v8263 = vmul.f32 %v3404, %v8262
        %v8264 = vmul.f32 %v8252, 3.8918573e-05
        %v8265 = vadd.f32 %v8264, 0.001143296
        %v8266 = vmul.f32 %v8252, %v8265
        %v8267 = vadd.f32 %v8266, 0.014752088
        %v8268 = vmul.f32 %v8252, %v8267
        %v8269 = vadd.f32 %v8268, 0.112945676
        %v8270 = vmul.f32 %v8252, %v8269
        %v8271 = vadd.f32 %v8270, 0.4994258
        %v8272 = vmul.f32 %v8252, %v8271
        %v8273 = vadd.f32 %v8272, 1.0
        %v8274 = vrcp.pop %v8273
        %v8275 = vmul.f32 %v8273, %v8274
        %v8276 = vsub.f32 1.0, %v8275
        %v8277 = vmul.f32 %v8274, %v8276
        %v8278 = vadd.f32 %v8274, %v8277
        %vm8279 = vweird.f32 %v8273
        %vm8280 = vweird.f32 %v8274
        %vm8281 = vmor %vm8279, %vm8280
        %v8282 = vsel %vm8281, %v8274, %v8278
        %v8283 = vand.u32 2147483647, %v8273
        %vm8284 = vcmp.eq.f32.partialorder %v8283, 8.507059e+37
        %v8285 = vand.u32 %v8273, 2147483648
        %v8286 = vor.u32 1.1754944e-38, %v8285
        %v8287 = vsel %vm8284, %v8286, %v8282
        %v8288 = vmul.f32 %v8263, %v8287
        %v8289 = vmin.f32 %v8288, 1.0
        %v8290 = vmax.f32 %v8289, -1.0
        %v8291 = vmul.f32 %v3405, %v3405
        %v8292 = vmin.f32 16.0, %v8291
        %v8293 = vmul.f32 %v8292, 2.1237322e-06
        %v8294 = vadd.f32 %v8293, 0.00028619796
        %v8295 = vmul.f32 %v8292, %v8294
        %v8296 = vadd.f32 %v8295, 0.0036580483
        %v8297 = vmul.f32 %v8292, %v8296
        %v8298 = vadd.f32 %v8297, 0.05243302
        %v8299 = vmul.f32 %v8292, %v8298
        %v8300 = vadd.f32 %v8299, 0.18741608
        %v8301 = vmul.f32 %v8292, %v8300
        %v8302 = vadd.f32 %v8301, 1.1283791
        %v8303 = vmul.f32 %v3405, %v8302
        %v8304 = vmul.f32 %v8292, 3.8918573e-05
        %v8305 = vadd.f32 %v8304, 0.001143296
        %v8306 = vmul.f32 %v8292, %v8305
        %v8307 = vadd.f32 %v8306, 0.014752088
        %v8308 = vmul.f32 %v8292, %v8307
        %v8309 = vadd.f32 %v8308, 0.112945676
        %v8310 = vmul.f32 %v8292, %v8309
        %v8311 = vadd.f32 %v8310, 0.4994258
        %v8312 = vmul.f32 %v8292, %v8311
        %v8313 = vadd.f32 %v8312, 1.0
        %v8314 = vrcp.pop %v8313
        %v8315 = vmul.f32 %v8313, %v8314
        %v8316 = vsub.f32 1.0, %v8315
        %v8317 = vmul.f32 %v8314, %v8316
        %v8318 = vadd.f32 %v8314, %v8317
        %vm8319 = vweird.f32 %v8313
        %vm8320 = vweird.f32 %v8314
        %vm8321 = vmor %vm8319, %vm8320
        %v8322 = vsel %vm8321, %v8314, %v8318
        %v8323 = vand.u32 2147483647, %v8313
        %vm8324 = vcmp.eq.f32.partialorder %v8323, 8.507059e+37
        %v8325 = vand.u32 %v8313, 2147483648
        %v8326 = vor.u32 1.1754944e-38, %v8325
        %v8327 = vsel %vm8324, %v8326, %v8322
        %v8328 = vmul.f32 %v8303, %v8327
        %v8329 = vmin.f32 %v8328, 1.0
        %v8330 = vmax.f32 %v8329, -1.0
        %v8331 = vmul.f32 %v3406, %v3406
        %v8332 = vmin.f32 16.0, %v8331
        %v8333 = vmul.f32 %v8332, 2.1237322e-06
        %v8334 = vadd.f32 %v8333, 0.00028619796
        %v8335 = vmul.f32 %v8332, %v8334
        %v8336 = vadd.f32 %v8335, 0.0036580483
        %v8337 = vmul.f32 %v8332, %v8336
        %v8338 = vadd.f32 %v8337, 0.05243302
        %v8339 = vmul.f32 %v8332, %v8338
        %v8340 = vadd.f32 %v8339, 0.18741608
        %v8341 = vmul.f32 %v8332, %v8340
        %v8342 = vadd.f32 %v8341, 1.1283791
        %v8343 = vmul.f32 %v3406, %v8342
        %v8344 = vmul.f32 %v8332, 3.8918573e-05
        %v8345 = vadd.f32 %v8344, 0.001143296
        %v8346 = vmul.f32 %v8332, %v8345
        %v8347 = vadd.f32 %v8346, 0.014752088
        %v8348 = vmul.f32 %v8332, %v8347
        %v8349 = vadd.f32 %v8348, 0.112945676
        %v8350 = vmul.f32 %v8332, %v8349
        %v8351 = vadd.f32 %v8350, 0.4994258
        %v8352 = vmul.f32 %v8332, %v8351
        %v8353 = vadd.f32 %v8352, 1.0
        %v8354 = vrcp.pop %v8353
        %v8355 = vmul.f32 %v8353, %v8354
        %v8356 = vsub.f32 1.0, %v8355
        %v8357 = vmul.f32 %v8354, %v8356
        %v8358 = vadd.f32 %v8354, %v8357
        %vm8359 = vweird.f32 %v8353
        %vm8360 = vweird.f32 %v8354
        %vm8361 = vmor %vm8359, %vm8360
        %v8362 = vsel %vm8361, %v8354, %v8358
        %v8363 = vand.u32 2147483647, %v8353
        %vm8364 = vcmp.eq.f32.partialorder %v8363, 8.507059e+37
        %v8365 = vand.u32 %v8353, 2147483648
        %v8366 = vor.u32 1.1754944e-38, %v8365
        %v8367 = vsel %vm8364, %v8366, %v8362
        %v8368 = vmul.f32 %v8343, %v8367
        %v8369 = vmin.f32 %v8368, 1.0
        %v8370 = vmax.f32 %v8369, -1.0
        %v8371 = vmul.f32 %v3407, %v3407
        %v8372 = vmin.f32 16.0, %v8371
        %v8373 = vmul.f32 %v8372, 2.1237322e-06
        %v8374 = vadd.f32 %v8373, 0.00028619796
        %v8375 = vmul.f32 %v8372, %v8374
        %v8376 = vadd.f32 %v8375, 0.0036580483
        %v8377 = vmul.f32 %v8372, %v8376
        %v8378 = vadd.f32 %v8377, 0.05243302
        %v8379 = vmul.f32 %v8372, %v8378
        %v8380 = vadd.f32 %v8379, 0.18741608
        %v8381 = vmul.f32 %v8372, %v8380
        %v8382 = vadd.f32 %v8381, 1.1283791
        %v8383 = vmul.f32 %v3407, %v8382
        %v8384 = vmul.f32 %v8372, 3.8918573e-05
        %v8385 = vadd.f32 %v8384, 0.001143296
        %v8386 = vmul.f32 %v8372, %v8385
        %v8387 = vadd.f32 %v8386, 0.014752088
        %v8388 = vmul.f32 %v8372, %v8387
        %v8389 = vadd.f32 %v8388, 0.112945676
        %v8390 = vmul.f32 %v8372, %v8389
        %v8391 = vadd.f32 %v8390, 0.4994258
        %v8392 = vmul.f32 %v8372, %v8391
        %v8393 = vadd.f32 %v8392, 1.0
        %v8394 = vrcp.pop %v8393
        %v8395 = vmul.f32 %v8393, %v8394
        %v8396 = vsub.f32 1.0, %v8395
        %v8397 = vmul.f32 %v8394, %v8396
        %v8398 = vadd.f32 %v8394, %v8397
        %vm8399 = vweird.f32 %v8393
        %vm8400 = vweird.f32 %v8394
        %vm8401 = vmor %vm8399, %vm8400
        %v8402 = vsel %vm8401, %v8394, %v8398
        %v8403 = vand.u32 2147483647, %v8393
        %vm8404 = vcmp.eq.f32.partialorder %v8403, 8.507059e+37
        %v8405 = vand.u32 %v8393, 2147483648
        %v8406 = vor.u32 1.1754944e-38, %v8405
        %v8407 = vsel %vm8404, %v8406, %v8402
        %v8408 = vmul.f32 %v8383, %v8407
        %v8409 = vmin.f32 %v8408, 1.0
        %v8410 = vmax.f32 %v8409, -1.0
        %v8411 = vmul.f32 %v3408, %v3408
        %v8412 = vmin.f32 16.0, %v8411
        %v8413 = vmul.f32 %v8412, 2.1237322e-06
        %v8414 = vadd.f32 %v8413, 0.00028619796
        %v8415 = vmul.f32 %v8412, %v8414
        %v8416 = vadd.f32 %v8415, 0.0036580483
        %v8417 = vmul.f32 %v8412, %v8416
        %v8418 = vadd.f32 %v8417, 0.05243302
        %v8419 = vmul.f32 %v8412, %v8418
        %v8420 = vadd.f32 %v8419, 0.18741608
        %v8421 = vmul.f32 %v8412, %v8420
        %v8422 = vadd.f32 %v8421, 1.1283791
        %v8423 = vmul.f32 %v3408, %v8422
        %v8424 = vmul.f32 %v8412, 3.8918573e-05
        %v8425 = vadd.f32 %v8424, 0.001143296
        %v8426 = vmul.f32 %v8412, %v8425
        %v8427 = vadd.f32 %v8426, 0.014752088
        %v8428 = vmul.f32 %v8412, %v8427
        %v8429 = vadd.f32 %v8428, 0.112945676
        %v8430 = vmul.f32 %v8412, %v8429
        %v8431 = vadd.f32 %v8430, 0.4994258
        %v8432 = vmul.f32 %v8412, %v8431
        %v8433 = vadd.f32 %v8432, 1.0
        %v8434 = vrcp.pop %v8433
        %v8435 = vmul.f32 %v8433, %v8434
        %v8436 = vsub.f32 1.0, %v8435
        %v8437 = vmul.f32 %v8434, %v8436
        %v8438 = vadd.f32 %v8434, %v8437
        %vm8439 = vweird.f32 %v8433
        %vm8440 = vweird.f32 %v8434
        %vm8441 = vmor %vm8439, %vm8440
        %v8442 = vsel %vm8441, %v8434, %v8438
        %v8443 = vand.u32 2147483647, %v8433
        %vm8444 = vcmp.eq.f32.partialorder %v8443, 8.507059e+37
        %v8445 = vand.u32 %v8433, 2147483648
        %v8446 = vor.u32 1.1754944e-38, %v8445
        %v8447 = vsel %vm8444, %v8446, %v8442
        %v8448 = vmul.f32 %v8423, %v8447
        %v8449 = vmin.f32 %v8448, 1.0
        %v8450 = vmax.f32 %v8449, -1.0
        %v8451 = vmul.f32 %v3409, %v3409
        %v8452 = vmin.f32 16.0, %v8451
        %v8453 = vmul.f32 %v8452, 2.1237322e-06
        %v8454 = vadd.f32 %v8453, 0.00028619796
        %v8455 = vmul.f32 %v8452, %v8454
        %v8456 = vadd.f32 %v8455, 0.0036580483
        %v8457 = vmul.f32 %v8452, %v8456
        %v8458 = vadd.f32 %v8457, 0.05243302
        %v8459 = vmul.f32 %v8452, %v8458
        %v8460 = vadd.f32 %v8459, 0.18741608
        %v8461 = vmul.f32 %v8452, %v8460
        %v8462 = vadd.f32 %v8461, 1.1283791
        %v8463 = vmul.f32 %v3409, %v8462
        %v8464 = vmul.f32 %v8452, 3.8918573e-05
        %v8465 = vadd.f32 %v8464, 0.001143296
        %v8466 = vmul.f32 %v8452, %v8465
        %v8467 = vadd.f32 %v8466, 0.014752088
        %v8468 = vmul.f32 %v8452, %v8467
        %v8469 = vadd.f32 %v8468, 0.112945676
        %v8470 = vmul.f32 %v8452, %v8469
        %v8471 = vadd.f32 %v8470, 0.4994258
        %v8472 = vmul.f32 %v8452, %v8471
        %v8473 = vadd.f32 %v8472, 1.0
        %v8474 = vrcp.pop %v8473
        %v8475 = vmul.f32 %v8473, %v8474
        %v8476 = vsub.f32 1.0, %v8475
        %v8477 = vmul.f32 %v8474, %v8476
        %v8478 = vadd.f32 %v8474, %v8477
        %vm8479 = vweird.f32 %v8473
        %vm8480 = vweird.f32 %v8474
        %vm8481 = vmor %vm8479, %vm8480
        %v8482 = vsel %vm8481, %v8474, %v8478
        %v8483 = vand.u32 2147483647, %v8473
        %vm8484 = vcmp.eq.f32.partialorder %v8483, 8.507059e+37
        %v8485 = vand.u32 %v8473, 2147483648
        %v8486 = vor.u32 1.1754944e-38, %v8485
        %v8487 = vsel %vm8484, %v8486, %v8482
        %v8488 = vmul.f32 %v8463, %v8487
        %v8489 = vmin.f32 %v8488, 1.0
        %v8490 = vmax.f32 %v8489, -1.0
        %v8491 = vmul.f32 %v3410, %v3410
        %v8492 = vmin.f32 16.0, %v8491
        %v8493 = vmul.f32 %v8492, 2.1237322e-06
        %v8494 = vadd.f32 %v8493, 0.00028619796
        %v8495 = vmul.f32 %v8492, %v8494
        %v8496 = vadd.f32 %v8495, 0.0036580483
        %v8497 = vmul.f32 %v8492, %v8496
        %v8498 = vadd.f32 %v8497, 0.05243302
        %v8499 = vmul.f32 %v8492, %v8498
        %v8500 = vadd.f32 %v8499, 0.18741608
        %v8501 = vmul.f32 %v8492, %v8500
        %v8502 = vadd.f32 %v8501, 1.1283791
        %v8503 = vmul.f32 %v3410, %v8502
        %v8504 = vmul.f32 %v8492, 3.8918573e-05
        %v8505 = vadd.f32 %v8504, 0.001143296
        %v8506 = vmul.f32 %v8492, %v8505
        %v8507 = vadd.f32 %v8506, 0.014752088
        %v8508 = vmul.f32 %v8492, %v8507
        %v8509 = vadd.f32 %v8508, 0.112945676
        %v8510 = vmul.f32 %v8492, %v8509
        %v8511 = vadd.f32 %v8510, 0.4994258
        %v8512 = vmul.f32 %v8492, %v8511
        %v8513 = vadd.f32 %v8512, 1.0
        %v8514 = vrcp.pop %v8513
        %v8515 = vmul.f32 %v8513, %v8514
        %v8516 = vsub.f32 1.0, %v8515
        %v8517 = vmul.f32 %v8514, %v8516
        %v8518 = vadd.f32 %v8514, %v8517
        %vm8519 = vweird.f32 %v8513
        %vm8520 = vweird.f32 %v8514
        %vm8521 = vmor %vm8519, %vm8520
        %v8522 = vsel %vm8521, %v8514, %v8518
        %v8523 = vand.u32 2147483647, %v8513
        %vm8524 = vcmp.eq.f32.partialorder %v8523, 8.507059e+37
        %v8525 = vand.u32 %v8513, 2147483648
        %v8526 = vor.u32 1.1754944e-38, %v8525
        %v8527 = vsel %vm8524, %v8526, %v8522
        %v8528 = vmul.f32 %v8503, %v8527
        %v8529 = vmin.f32 %v8528, 1.0
        %v8530 = vmax.f32 %v8529, -1.0
        %v8531 = vmul.f32 %v3450, 0.5
        %v8532 = vmul.f32 %v3490, 0.5
        %v8533 = vmul.f32 %v3530, 0.5
        %v8534 = vmul.f32 %v3570, 0.5
        %v8535 = vmul.f32 %v3610, 0.5
        %v8536 = vmul.f32 %v3650, 0.5
        %v8537 = vmul.f32 %v3690, 0.5
        %v8538 = vmul.f32 %v3730, 0.5
        %v8539 = vmul.f32 %v3770, 0.5
        %v8540 = vmul.f32 %v3810, 0.5
        %v8541 = vmul.f32 %v3850, 0.5
        %v8542 = vmul.f32 %v3890, 0.5
        %v8543 = vmul.f32 %v3930, 0.5
        %v8544 = vmul.f32 %v3970, 0.5
        %v8545 = vmul.f32 %v4010, 0.5
        %v8546 = vmul.f32 %v4050, 0.5
        %v8547 = vmul.f32 %v4090, 0.5
        %v8548 = vmul.f32 %v4130, 0.5
        %v8549 = vmul.f32 %v4170, 0.5
        %v8550 = vmul.f32 %v4210, 0.5
        %v8551 = vmul.f32 %v4250, 0.5
        %v8552 = vmul.f32 %v4290, 0.5
        %v8553 = vmul.f32 %v4330, 0.5
        %v8554 = vmul.f32 %v4370, 0.5
        %v8555 = vmul.f32 %v4410, 0.5
        %v8556 = vmul.f32 %v4450, 0.5
        %v8557 = vmul.f32 %v4490, 0.5
        %v8558 = vmul.f32 %v4530, 0.5
        %v8559 = vmul.f32 %v4570, 0.5
        %v8560 = vmul.f32 %v4610, 0.5
        %v8561 = vmul.f32 %v4650, 0.5
        %v8562 = vmul.f32 %v4690, 0.5
        %v8563 = vmul.f32 %v4730, 0.5
        %v8564 = vmul.f32 %v4770, 0.5
        %v8565 = vmul.f32 %v4810, 0.5
        %v8566 = vmul.f32 %v4850, 0.5
        %v8567 = vmul.f32 %v4890, 0.5
        %v8568 = vmul.f32 %v4930, 0.5
        %v8569 = vmul.f32 %v4970, 0.5
        %v8570 = vmul.f32 %v5010, 0.5
        %v8571 = vmul.f32 %v5050, 0.5
        %v8572 = vmul.f32 %v5090, 0.5
        %v8573 = vmul.f32 %v5130, 0.5
        %v8574 = vmul.f32 %v5170, 0.5
        %v8575 = vmul.f32 %v5210, 0.5
        %v8576 = vmul.f32 %v5250, 0.5
        %v8577 = vmul.f32 %v5290, 0.5
        %v8578 = vmul.f32 %v5330, 0.5
        %v8579 = vmul.f32 %v5370, 0.5
        %v8580 = vmul.f32 %v5410, 0.5
        %v8581 = vmul.f32 %v5450, 0.5
        %v8582 = vmul.f32 %v5490, 0.5
        %v8583 = vmul.f32 %v5530, 0.5
        %v8584 = vmul.f32 %v5570, 0.5
        %v8585 = vmul.f32 %v5610, 0.5
        %v8586 = vmul.f32 %v5650, 0.5
        %v8587 = vmul.f32 %v5690, 0.5
        %v8588 = vmul.f32 %v5730, 0.5
        %v8589 = vmul.f32 %v5770, 0.5
        %v8590 = vmul.f32 %v5810, 0.5
        %v8591 = vmul.f32 %v5850, 0.5
        %v8592 = vmul.f32 %v5890, 0.5
        %v8593 = vmul.f32 %v5930, 0.5
        %v8594 = vmul.f32 %v5970, 0.5
        %v8595 = vmul.f32 %v6010, 0.5
        %v8596 = vmul.f32 %v6050, 0.5
        %v8597 = vmul.f32 %v6090, 0.5
        %v8598 = vmul.f32 %v6130, 0.5
        %v8599 = vmul.f32 %v6170, 0.5
        %v8600 = vmul.f32 %v6210, 0.5
        %v8601 = vmul.f32 %v6250, 0.5
        %v8602 = vmul.f32 %v6290, 0.5
        %v8603 = vmul.f32 %v6330, 0.5
        %v8604 = vmul.f32 %v6370, 0.5
        %v8605 = vmul.f32 %v6410, 0.5
        %v8606 = vmul.f32 %v6450, 0.5
        %v8607 = vmul.f32 %v6490, 0.5
        %v8608 = vmul.f32 %v6530, 0.5
        %v8609 = vmul.f32 %v6570, 0.5
        %v8610 = vmul.f32 %v6610, 0.5
        %v8611 = vmul.f32 %v6650, 0.5
        %v8612 = vmul.f32 %v6690, 0.5
        %v8613 = vmul.f32 %v6730, 0.5
        %v8614 = vmul.f32 %v6770, 0.5
        %v8615 = vmul.f32 %v6810, 0.5
        %v8616 = vmul.f32 %v6850, 0.5
        %v8617 = vmul.f32 %v6890, 0.5
        %v8618 = vmul.f32 %v6930, 0.5
        %v8619 = vmul.f32 %v6970, 0.5
        %v8620 = vmul.f32 %v7010, 0.5
        %v8621 = vmul.f32 %v7050, 0.5
        %v8622 = vmul.f32 %v7090, 0.5
        %v8623 = vmul.f32 %v7130, 0.5
        %v8624 = vmul.f32 %v7170, 0.5
        %v8625 = vmul.f32 %v7210, 0.5
        %v8626 = vmul.f32 %v7250, 0.5
        %v8627 = vmul.f32 %v7290, 0.5
        %v8628 = vmul.f32 %v7330, 0.5
        %v8629 = vmul.f32 %v7370, 0.5
        %v8630 = vmul.f32 %v7410, 0.5
        %v8631 = vmul.f32 %v7450, 0.5
        %v8632 = vmul.f32 %v7490, 0.5
        %v8633 = vmul.f32 %v7530, 0.5
        %v8634 = vmul.f32 %v7570, 0.5
        %v8635 = vmul.f32 %v7610, 0.5
        %v8636 = vmul.f32 %v7650, 0.5
        %v8637 = vmul.f32 %v7690, 0.5
        %v8638 = vmul.f32 %v7730, 0.5
        %v8639 = vmul.f32 %v7770, 0.5
        %v8640 = vmul.f32 %v7810, 0.5
        %v8641 = vmul.f32 %v7850, 0.5
        %v8642 = vmul.f32 %v7890, 0.5
        %v8643 = vmul.f32 %v7930, 0.5
        %v8644 = vmul.f32 %v7970, 0.5
        %v8645 = vmul.f32 %v8010, 0.5
        %v8646 = vmul.f32 %v8050, 0.5
        %v8647 = vmul.f32 %v8090, 0.5
        %v8648 = vmul.f32 %v8130, 0.5
        %v8649 = vmul.f32 %v8170, 0.5
        %v8650 = vmul.f32 %v8210, 0.5
        %v8651 = vmul.f32 %v8250, 0.5
        %v8652 = vmul.f32 %v8290, 0.5
        %v8653 = vmul.f32 %v8330, 0.5
        %v8654 = vmul.f32 %v8370, 0.5
        %v8655 = vmul.f32 %v8410, 0.5
        %v8656 = vmul.f32 %v8450, 0.5
        %v8657 = vmul.f32 %v8490, 0.5
        %v8658 = vmul.f32 %v8530, 0.5
        %v8659 = vadd.f32 %v8531, 0.5
        %v8660 = vadd.f32 %v8532, 0.5
        %v8661 = vadd.f32 %v8533, 0.5
        %v8662 = vadd.f32 %v8534, 0.5
        %v8663 = vadd.f32 %v8535, 0.5
        %v8664 = vadd.f32 %v8536, 0.5
        %v8665 = vadd.f32 %v8537, 0.5
        %v8666 = vadd.f32 %v8538, 0.5
        %v8667 = vadd.f32 %v8539, 0.5
        %v8668 = vadd.f32 %v8540, 0.5
        %v8669 = vadd.f32 %v8541, 0.5
        %v8670 = vadd.f32 %v8542, 0.5
        %v8671 = vadd.f32 %v8543, 0.5
        %v8672 = vadd.f32 %v8544, 0.5
        %v8673 = vadd.f32 %v8545, 0.5
        %v8674 = vadd.f32 %v8546, 0.5
        %v8675 = vadd.f32 %v8547, 0.5
        %v8676 = vadd.f32 %v8548, 0.5
        %v8677 = vadd.f32 %v8549, 0.5
        %v8678 = vadd.f32 %v8550, 0.5
        %v8679 = vadd.f32 %v8551, 0.5
        %v8680 = vadd.f32 %v8552, 0.5
        %v8681 = vadd.f32 %v8553, 0.5
        %v8682 = vadd.f32 %v8554, 0.5
        %v8683 = vadd.f32 %v8555, 0.5
        %v8684 = vadd.f32 %v8556, 0.5
        %v8685 = vadd.f32 %v8557, 0.5
        %v8686 = vadd.f32 %v8558, 0.5
        %v8687 = vadd.f32 %v8559, 0.5
        %v8688 = vadd.f32 %v8560, 0.5
        %v8689 = vadd.f32 %v8561, 0.5
        %v8690 = vadd.f32 %v8562, 0.5
        %v8691 = vadd.f32 %v8563, 0.5
        %v8692 = vadd.f32 %v8564, 0.5
        %v8693 = vadd.f32 %v8565, 0.5
        %v8694 = vadd.f32 %v8566, 0.5
        %v8695 = vadd.f32 %v8567, 0.5
        %v8696 = vadd.f32 %v8568, 0.5
        %v8697 = vadd.f32 %v8569, 0.5
        %v8698 = vadd.f32 %v8570, 0.5
        %v8699 = vadd.f32 %v8571, 0.5
        %v8700 = vadd.f32 %v8572, 0.5
        %v8701 = vadd.f32 %v8573, 0.5
        %v8702 = vadd.f32 %v8574, 0.5
        %v8703 = vadd.f32 %v8575, 0.5
        %v8704 = vadd.f32 %v8576, 0.5
        %v8705 = vadd.f32 %v8577, 0.5
        %v8706 = vadd.f32 %v8578, 0.5
        %v8707 = vadd.f32 %v8579, 0.5
        %v8708 = vadd.f32 %v8580, 0.5
        %v8709 = vadd.f32 %v8581, 0.5
        %v8710 = vadd.f32 %v8582, 0.5
        %v8711 = vadd.f32 %v8583, 0.5
        %v8712 = vadd.f32 %v8584, 0.5
        %v8713 = vadd.f32 %v8585, 0.5
        %v8714 = vadd.f32 %v8586, 0.5
        %v8715 = vadd.f32 %v8587, 0.5
        %v8716 = vadd.f32 %v8588, 0.5
        %v8717 = vadd.f32 %v8589, 0.5
        %v8718 = vadd.f32 %v8590, 0.5
        %v8719 = vadd.f32 %v8591, 0.5
        %v8720 = vadd.f32 %v8592, 0.5
        %v8721 = vadd.f32 %v8593, 0.5
        %v8722 = vadd.f32 %v8594, 0.5
        %v8723 = vadd.f32 %v8595, 0.5
        %v8724 = vadd.f32 %v8596, 0.5
        %v8725 = vadd.f32 %v8597, 0.5
        %v8726 = vadd.f32 %v8598, 0.5
        %v8727 = vadd.f32 %v8599, 0.5
        %v8728 = vadd.f32 %v8600, 0.5
        %v8729 = vadd.f32 %v8601, 0.5
        %v8730 = vadd.f32 %v8602, 0.5
        %v8731 = vadd.f32 %v8603, 0.5
        %v8732 = vadd.f32 %v8604, 0.5
        %v8733 = vadd.f32 %v8605, 0.5
        %v8734 = vadd.f32 %v8606, 0.5
        %v8735 = vadd.f32 %v8607, 0.5
        %v8736 = vadd.f32 %v8608, 0.5
        %v8737 = vadd.f32 %v8609, 0.5
        %v8738 = vadd.f32 %v8610, 0.5
        %v8739 = vadd.f32 %v8611, 0.5
        %v8740 = vadd.f32 %v8612, 0.5
        %v8741 = vadd.f32 %v8613, 0.5
        %v8742 = vadd.f32 %v8614, 0.5
        %v8743 = vadd.f32 %v8615, 0.5
        %v8744 = vadd.f32 %v8616, 0.5
        %v8745 = vadd.f32 %v8617, 0.5
        %v8746 = vadd.f32 %v8618, 0.5
        %v8747 = vadd.f32 %v8619, 0.5
        %v8748 = vadd.f32 %v8620, 0.5
        %v8749 = vadd.f32 %v8621, 0.5
        %v8750 = vadd.f32 %v8622, 0.5
        %v8751 = vadd.f32 %v8623, 0.5
        %v8752 = vadd.f32 %v8624, 0.5
        %v8753 = vadd.f32 %v8625, 0.5
        %v8754 = vadd.f32 %v8626, 0.5
        %v8755 = vadd.f32 %v8627, 0.5
        %v8756 = vadd.f32 %v8628, 0.5
        %v8757 = vadd.f32 %v8629, 0.5
        %v8758 = vadd.f32 %v8630, 0.5
        %v8759 = vadd.f32 %v8631, 0.5
        %v8760 = vadd.f32 %v8632, 0.5
        %v8761 = vadd.f32 %v8633, 0.5
        %v8762 = vadd.f32 %v8634, 0.5
        %v8763 = vadd.f32 %v8635, 0.5
        %v8764 = vadd.f32 %v8636, 0.5
        %v8765 = vadd.f32 %v8637, 0.5
        %v8766 = vadd.f32 %v8638, 0.5
        %v8767 = vadd.f32 %v8639, 0.5
        %v8768 = vadd.f32 %v8640, 0.5
        %v8769 = vadd.f32 %v8641, 0.5
        %v8770 = vadd.f32 %v8642, 0.5
        %v8771 = vadd.f32 %v8643, 0.5
        %v8772 = vadd.f32 %v8644, 0.5
        %v8773 = vadd.f32 %v8645, 0.5
        %v8774 = vadd.f32 %v8646, 0.5
        %v8775 = vadd.f32 %v8647, 0.5
        %v8776 = vadd.f32 %v8648, 0.5
        %v8777 = vadd.f32 %v8649, 0.5
        %v8778 = vadd.f32 %v8650, 0.5
        %v8779 = vadd.f32 %v8651, 0.5
        %v8780 = vadd.f32 %v8652, 0.5
        %v8781 = vadd.f32 %v8653, 0.5
        %v8782 = vadd.f32 %v8654, 0.5
        %v8783 = vadd.f32 %v8655, 0.5
        %v8784 = vadd.f32 %v8656, 0.5
        %v8785 = vadd.f32 %v8657, 0.5
        %v8786 = vadd.f32 %v8658, 0.5
        %v8787 = vmul.f32 %v2849, %v8659
        %v8788 = vmul.f32 %v2962, %v8660
        %v8789 = vmul.f32 %v3075, %v8661
        %v8790 = vmul.f32 %v3188, %v8662
        %v8791 = vmul.f32 %v2852, %v8663
        %v8792 = vmul.f32 %v2965, %v8664
        %v8793 = vmul.f32 %v3078, %v8665
        %v8794 = vmul.f32 %v3191, %v8666
        %v8795 = vmul.f32 %v2855, %v8667
        %v8796 = vmul.f32 %v2968, %v8668
        %v8797 = vmul.f32 %v3081, %v8669
        %v8798 = vmul.f32 %v3194, %v8670
        %v8799 = vmul.f32 %v2858, %v8671
        %v8800 = vmul.f32 %v2971, %v8672
        %v8801 = vmul.f32 %v3084, %v8673
        %v8802 = vmul.f32 %v3197, %v8674
        %v8803 = vmul.f32 %v2861, %v8675
        %v8804 = vmul.f32 %v2974, %v8676
        %v8805 = vmul.f32 %v3087, %v8677
        %v8806 = vmul.f32 %v3200, %v8678
        %v8807 = vmul.f32 %v2864, %v8679
        %v8808 = vmul.f32 %v2977, %v8680
        %v8809 = vmul.f32 %v3090, %v8681
        %v8810 = vmul.f32 %v3203, %v8682
        %v8811 = vmul.f32 %v2867, %v8683
        %v8812 = vmul.f32 %v2980, %v8684
        %v8813 = vmul.f32 %v3093, %v8685
        %v8814 = vmul.f32 %v3206, %v8686
        %v8815 = vmul.f32 %v2870, %v8687
        %v8816 = vmul.f32 %v2983, %v8688
        %v8817 = vmul.f32 %v3096, %v8689
        %v8818 = vmul.f32 %v3209, %v8690
        %v8819 = vmul.f32 %v2873, %v8691
        %v8820 = vmul.f32 %v2986, %v8692
        %v8821 = vmul.f32 %v3099, %v8693
        %v8822 = vmul.f32 %v3212, %v8694
        %v8823 = vmul.f32 %v2876, %v8695
        %v8824 = vmul.f32 %v2989, %v8696
        %v8825 = vmul.f32 %v3102, %v8697
        %v8826 = vmul.f32 %v3215, %v8698
        %v8827 = vmul.f32 %v2879, %v8699
        %v8828 = vmul.f32 %v2992, %v8700
        %v8829 = vmul.f32 %v3105, %v8701
        %v8830 = vmul.f32 %v3218, %v8702
        %v8831 = vmul.f32 %v2882, %v8703
        %v8832 = vmul.f32 %v2995, %v8704
        %v8833 = vmul.f32 %v3108, %v8705
        %v8834 = vmul.f32 %v3221, %v8706
        %v8835 = vmul.f32 %v2885, %v8707
        %v8836 = vmul.f32 %v2998, %v8708
        %v8837 = vmul.f32 %v3111, %v8709
        %v8838 = vmul.f32 %v3224, %v8710
        %v8839 = vmul.f32 %v2888, %v8711
        %v8840 = vmul.f32 %v3001, %v8712
        %v8841 = vmul.f32 %v3114, %v8713
        %v8842 = vmul.f32 %v3227, %v8714
        %v8843 = vmul.f32 %v2891, %v8715
        %v8844 = vmul.f32 %v3004, %v8716
        %v8845 = vmul.f32 %v3117, %v8717
        %v8846 = vmul.f32 %v3230, %v8718
        %v8847 = vmul.f32 %v2894, %v8719
        %v8848 = vmul.f32 %v3007, %v8720
        %v8849 = vmul.f32 %v3120, %v8721
        %v8850 = vmul.f32 %v3233, %v8722
        %v8851 = vmul.f32 %v2897, %v8723
        %v8852 = vmul.f32 %v3010, %v8724
        %v8853 = vmul.f32 %v3123, %v8725
        %v8854 = vmul.f32 %v3236, %v8726
        %v8855 = vmul.f32 %v2900, %v8727
        %v8856 = vmul.f32 %v3013, %v8728
        %v8857 = vmul.f32 %v3126, %v8729
        %v8858 = vmul.f32 %v3239, %v8730
        %v8859 = vmul.f32 %v2903, %v8731
        %v8860 = vmul.f32 %v3016, %v8732
        %v8861 = vmul.f32 %v3129, %v8733
        %v8862 = vmul.f32 %v3242, %v8734
        %v8863 = vmul.f32 %v2906, %v8735
        %v8864 = vmul.f32 %v3019, %v8736
        %v8865 = vmul.f32 %v3132, %v8737
        %v8866 = vmul.f32 %v3245, %v8738
        %v8867 = vmul.f32 %v2909, %v8739
        %v8868 = vmul.f32 %v3022, %v8740
        %v8869 = vmul.f32 %v3135, %v8741
        %v8870 = vmul.f32 %v3248, %v8742
        %v8871 = vmul.f32 %v2912, %v8743
        %v8872 = vmul.f32 %v3025, %v8744
        %v8873 = vmul.f32 %v3138, %v8745
        %v8874 = vmul.f32 %v3251, %v8746
        %v8875 = vmul.f32 %v2915, %v8747
        %v8876 = vmul.f32 %v3028, %v8748
        %v8877 = vmul.f32 %v3141, %v8749
        %v8878 = vmul.f32 %v3254, %v8750
        %v8879 = vmul.f32 %v2918, %v8751
        %v8880 = vmul.f32 %v3031, %v8752
        %v8881 = vmul.f32 %v3144, %v8753
        %v8882 = vmul.f32 %v3257, %v8754
        %v8883 = vmul.f32 %v2921, %v8755
        %v8884 = vmul.f32 %v3034, %v8756
        %v8885 = vmul.f32 %v3147, %v8757
        %v8886 = vmul.f32 %v3260, %v8758
        %v8887 = vmul.f32 %v2924, %v8759
        %v8888 = vmul.f32 %v3037, %v8760
        %v8889 = vmul.f32 %v3150, %v8761
        %v8890 = vmul.f32 %v3263, %v8762
        %v8891 = vmul.f32 %v2927, %v8763
        %v8892 = vmul.f32 %v3040, %v8764
        %v8893 = vmul.f32 %v3153, %v8765
        %v8894 = vmul.f32 %v3266, %v8766
        %v8895 = vmul.f32 %v2930, %v8767
        %v8896 = vmul.f32 %v3043, %v8768
        %v8897 = vmul.f32 %v3156, %v8769
        %v8898 = vmul.f32 %v3269, %v8770
        %v8899 = vmul.f32 %v2933, %v8771
        %v8900 = vmul.f32 %v3046, %v8772
        %v8901 = vmul.f32 %v3159, %v8773
        %v8902 = vmul.f32 %v3272, %v8774
        %v8903 = vmul.f32 %v2936, %v8775
        %v8904 = vmul.f32 %v3049, %v8776
        %v8905 = vmul.f32 %v3162, %v8777
        %v8906 = vmul.f32 %v3275, %v8778
        %v8907 = vmul.f32 %v2939, %v8779
        %v8908 = vmul.f32 %v3052, %v8780
        %v8909 = vmul.f32 %v3165, %v8781
        %v8910 = vmul.f32 %v3278, %v8782
        %v8911 = vmul.f32 %v2942, %v8783
        %v8912 = vmul.f32 %v3055, %v8784
        %v8913 = vmul.f32 %v3168, %v8785
        %v8914 = vmul.f32 %v3281, %v8786
        %v8915 = vld [vmem:[#allocation4] sm:$0xff]
        %v8916 = vld [vmem:[#allocation4 + $0x8] sm:$0xff]
        %v8917 = vld [vmem:[#allocation4 + $0x10] sm:$0xff]
        %v8918 = vld [vmem:[#allocation4 + $0x18] sm:$0xff]
        %v8919 = vld [vmem:[#allocation4 + $0x20] sm:$0xff]
        %v8920 = vld [vmem:[#allocation4 + $0x28] sm:$0xff]
        %v8921 = vld [vmem:[#allocation4 + $0x30] sm:$0xff]
        %v8922 = vld [vmem:[#allocation4 + $0x38] sm:$0xff]
        %v8923 = vld [vmem:[#allocation4 + $0x40] sm:$0xff]
        %v8924 = vld [vmem:[#allocation4 + $0x48] sm:$0xff]
        %v8925 = vld [vmem:[#allocation4 + $0x50] sm:$0xff]
        %v8926 = vld [vmem:[#allocation4 + $0x58] sm:$0xff]
        %v8927 = vld [vmem:[#allocation4 + $0x60] sm:$0xff]
        %v8928 = vld [vmem:[#allocation4 + $0x68] sm:$0xff]
        %v8929 = vld [vmem:[#allocation4 + $0x70] sm:$0xff]
        %v8930 = vld [vmem:[#allocation4 + $0x78] sm:$0xff]
        %v8931 = vld [vmem:[#allocation4 + $0x80] sm:$0xff]
        %v8932 = vld [vmem:[#allocation4 + $0x88] sm:$0xff]
        %v8933 = vld [vmem:[#allocation4 + $0x90] sm:$0xff]
        %v8934 = vld [vmem:[#allocation4 + $0x98] sm:$0xff]
        %v8935 = vld [vmem:[#allocation4 + $0xa0] sm:$0xff]
        %v8936 = vld [vmem:[#allocation4 + $0xa8] sm:$0xff]
        %v8937 = vld [vmem:[#allocation4 + $0xb0] sm:$0xff]
        %v8938 = vld [vmem:[#allocation4 + $0xb8] sm:$0xff]
        %v8939 = vld [vmem:[#allocation4 + $0xc0] sm:$0xff]
        %v8940 = vld [vmem:[#allocation4 + $0xc8] sm:$0xff]
        %v8941 = vld [vmem:[#allocation4 + $0xd0] sm:$0xff]
        %v8942 = vld [vmem:[#allocation4 + $0xd8] sm:$0xff]
        %v8943 = vld [vmem:[#allocation4 + $0xe0] sm:$0xff]
        %v8944 = vld [vmem:[#allocation4 + $0xe8] sm:$0xff]
        %v8945 = vld [vmem:[#allocation4 + $0xf0] sm:$0xff]
        %v8946 = vld [vmem:[#allocation4 + $0xf8] sm:$0xff]
        %v8947 = vld [vmem:[#allocation16] sm:$0xff]
        %v8948 = vld [vmem:[#allocation16 + $0x8] sm:$0xff]
        %v8949 = vld [vmem:[#allocation16 + $0x10] sm:$0xff]
        %v8950 = vld [vmem:[#allocation16 + $0x18] sm:$0xff]
        %v8951 = vld [vmem:[#allocation16 + $0x20] sm:$0xff]
        %v8952 = vld [vmem:[#allocation16 + $0x28] sm:$0xff]
        %v8953 = vld [vmem:[#allocation16 + $0x30] sm:$0xff]
        %v8954 = vld [vmem:[#allocation16 + $0x38] sm:$0xff]
        %v8955 = vld [vmem:[#allocation16 + $0x40] sm:$0xff]
        %v8956 = vld [vmem:[#allocation16 + $0x48] sm:$0xff]
        %v8957 = vld [vmem:[#allocation16 + $0x50] sm:$0xff]
        %v8958 = vld [vmem:[#allocation16 + $0x58] sm:$0xff]
        %v8959 = vld [vmem:[#allocation16 + $0x60] sm:$0xff]
        %v8960 = vld [vmem:[#allocation16 + $0x68] sm:$0xff]
        %v8961 = vld [vmem:[#allocation16 + $0x70] sm:$0xff]
        %v8962 = vld [vmem:[#allocation16 + $0x78] sm:$0xff]
        %v8963 = vld [vmem:[#allocation16 + $0x80] sm:$0xff]
        %v8964 = vld [vmem:[#allocation16 + $0x88] sm:$0xff]
        %v8965 = vld [vmem:[#allocation16 + $0x90] sm:$0xff]
        %v8966 = vld [vmem:[#allocation16 + $0x98] sm:$0xff]
        %v8967 = vld [vmem:[#allocation16 + $0xa0] sm:$0xff]
        %v8968 = vld [vmem:[#allocation16 + $0xa8] sm:$0xff]
        %v8969 = vld [vmem:[#allocation16 + $0xb0] sm:$0xff]
        %v8970 = vld [vmem:[#allocation16 + $0xb8] sm:$0xff]
        %v8971 = vld [vmem:[#allocation16 + $0xc0] sm:$0xff]
        %v8972 = vld [vmem:[#allocation16 + $0xc8] sm:$0xff]
        %v8973 = vld [vmem:[#allocation16 + $0xd0] sm:$0xff]
        %v8974 = vld [vmem:[#allocation16 + $0xd8] sm:$0xff]
        %v8975 = vld [vmem:[#allocation16 + $0xe0] sm:$0xff]
        %v8976 = vld [vmem:[#allocation16 + $0xe8] sm:$0xff]
        %v8977 = vld [vmem:[#allocation16 + $0xf0] sm:$0xff]
        %v8978 = vld [vmem:[#allocation16 + $0xf8] sm:$0xff]
        %v8979 = vld [vmem:[#allocation16 + $0x100] sm:$0xff]
        %v8980 = vld [vmem:[#allocation16 + $0x108] sm:$0xff]
        %v8981 = vld [vmem:[#allocation16 + $0x110] sm:$0xff]
        %v8982 = vld [vmem:[#allocation16 + $0x118] sm:$0xff]
        %v8983 = vld [vmem:[#allocation16 + $0x120] sm:$0xff]
        %v8984 = vld [vmem:[#allocation16 + $0x128] sm:$0xff]
        %v8985 = vld [vmem:[#allocation16 + $0x130] sm:$0xff]
        %v8986 = vld [vmem:[#allocation16 + $0x138] sm:$0xff]
        %v8987 = vld [vmem:[#allocation16 + $0x140] sm:$0xff]
        %v8988 = vld [vmem:[#allocation16 + $0x148] sm:$0xff]
        %v8989 = vld [vmem:[#allocation16 + $0x150] sm:$0xff]
        %v8990 = vld [vmem:[#allocation16 + $0x158] sm:$0xff]
        %v8991 = vld [vmem:[#allocation16 + $0x160] sm:$0xff]
        %v8992 = vld [vmem:[#allocation16 + $0x168] sm:$0xff]
        %v8993 = vld [vmem:[#allocation16 + $0x170] sm:$0xff]
        %v8994 = vld [vmem:[#allocation16 + $0x178] sm:$0xff]
        %v8995 = vld [vmem:[#allocation16 + $0x180] sm:$0xff]
        %v8996 = vld [vmem:[#allocation16 + $0x188] sm:$0xff]
        %v8997 = vld [vmem:[#allocation16 + $0x190] sm:$0xff]
        %v8998 = vld [vmem:[#allocation16 + $0x198] sm:$0xff]
        %v8999 = vld [vmem:[#allocation16 + $0x1a0] sm:$0xff]
        %v9000 = vld [vmem:[#allocation16 + $0x1a8] sm:$0xff]
        %v9001 = vld [vmem:[#allocation16 + $0x1b0] sm:$0xff]
        %v9002 = vld [vmem:[#allocation16 + $0x1b8] sm:$0xff]
        %v9003 = vld [vmem:[#allocation16 + $0x1c0] sm:$0xff]
        %v9004 = vld [vmem:[#allocation16 + $0x1c8] sm:$0xff]
        %v9005 = vld [vmem:[#allocation16 + $0x1d0] sm:$0xff]
        %v9006 = vld [vmem:[#allocation16 + $0x1d8] sm:$0xff]
        %v9007 = vld [vmem:[#allocation16 + $0x1e0] sm:$0xff]
        %v9008 = vld [vmem:[#allocation16 + $0x1e8] sm:$0xff]
        %v9009 = vld [vmem:[#allocation16 + $0x1f0] sm:$0xff]
        %v9010 = vld [vmem:[#allocation16 + $0x1f8] sm:$0xff]
        %9011 = vmatpush.msra.mxu0 %v8962
        %9012 = vmatpush.msra.mxu0 %v8961
        %9013 = vmatpush.msra.mxu0 %v8960
        %9014 = vmatpush.msra.mxu0 %v8959
        %9015 = vmatpush.msra.mxu0 %v8958
        %9016 = vmatpush.msra.mxu0 %v8957
        %9017 = vmatpush.msra.mxu0 %v8956
        %9018 = vmatpush.msra.mxu0 %v8955
        %9019 = vmatpush.msra.mxu0 %v8954
        %9020 = vmatpush.msra.mxu0 %v8953
        %9021 = vmatpush.msra.mxu0 %v8952
        %9022 = vmatpush.msra.mxu0 %v8951
        %9023 = vmatpush.msra.mxu0 %v8950
        %9024 = vmatpush.msra.mxu0 %v8949
        %9025 = vmatpush.msra.mxu0 %v8948
        %9026 = vmatpush.msra.mxu0 %v8947
        %9027 = vmatmul.f32.gmra.mxu0 %v8787
        %v9028 = vpop.f32.mrf.mxu0
        %v9029 = vadd.f32 0.0, %v9028
        %9030 = vmatmul.f32.gmra.mxu0 %v8791
        %v9031 = vpop.f32.mrf.mxu0
        %v9032 = vadd.f32 0.0, %v9031
        %9033 = vmatmul.f32.gmra.mxu0 %v8795
        %v9034 = vpop.f32.mrf.mxu0
        %v9035 = vadd.f32 0.0, %v9034
        %9036 = vmatmul.f32.gmra.mxu0 %v8799
        %v9037 = vpop.f32.mrf.mxu0
        %v9038 = vadd.f32 0.0, %v9037
        %9039 = vmatmul.f32.gmra.mxu0 %v8803
        %v9040 = vpop.f32.mrf.mxu0
        %v9041 = vadd.f32 0.0, %v9040
        %9042 = vmatmul.f32.gmra.mxu0 %v8807
        %v9043 = vpop.f32.mrf.mxu0
        %v9044 = vadd.f32 0.0, %v9043
        %9045 = vmatmul.f32.gmra.mxu0 %v8811
        %v9046 = vpop.f32.mrf.mxu0
        %v9047 = vadd.f32 0.0, %v9046
        %9048 = vmatmul.f32.gmra.mxu0 %v8815
        %v9049 = vpop.f32.mrf.mxu0
        %v9050 = vadd.f32 0.0, %v9049
        %9051 = vmatmul.f32.gmra.mxu0 %v8819
        %v9052 = vpop.f32.mrf.mxu0
        %v9053 = vadd.f32 0.0, %v9052
        %9054 = vmatmul.f32.gmra.mxu0 %v8823
        %v9055 = vpop.f32.mrf.mxu0
        %v9056 = vadd.f32 0.0, %v9055
        %9057 = vmatmul.f32.gmra.mxu0 %v8827
        %v9058 = vpop.f32.mrf.mxu0
        %v9059 = vadd.f32 0.0, %v9058
        %9060 = vmatmul.f32.gmra.mxu0 %v8831
        %v9061 = vpop.f32.mrf.mxu0
        %v9062 = vadd.f32 0.0, %v9061
        %9063 = vmatmul.f32.gmra.mxu0 %v8835
        %v9064 = vpop.f32.mrf.mxu0
        %v9065 = vadd.f32 0.0, %v9064
        %9066 = vmatmul.f32.gmra.mxu0 %v8839
        %v9067 = vpop.f32.mrf.mxu0
        %v9068 = vadd.f32 0.0, %v9067
        %9069 = vmatmul.f32.gmra.mxu0 %v8843
        %v9070 = vpop.f32.mrf.mxu0
        %v9071 = vadd.f32 0.0, %v9070
        %9072 = vmatmul.f32.gmra.mxu0 %v8847
        %v9073 = vpop.f32.mrf.mxu0
        %v9074 = vadd.f32 0.0, %v9073
        %9075 = vmatmul.f32.gmra.mxu0 %v8851
        %v9076 = vpop.f32.mrf.mxu0
        %v9077 = vadd.f32 0.0, %v9076
        %9078 = vmatmul.f32.gmra.mxu0 %v8855
        %v9079 = vpop.f32.mrf.mxu0
        %v9080 = vadd.f32 0.0, %v9079
        %9081 = vmatmul.f32.gmra.mxu0 %v8859
        %v9082 = vpop.f32.mrf.mxu0
        %v9083 = vadd.f32 0.0, %v9082
        %9084 = vmatmul.f32.gmra.mxu0 %v8863
        %v9085 = vpop.f32.mrf.mxu0
        %v9086 = vadd.f32 0.0, %v9085
        %9087 = vmatmul.f32.gmra.mxu0 %v8867
        %v9088 = vpop.f32.mrf.mxu0
        %v9089 = vadd.f32 0.0, %v9088
        %9090 = vmatmul.f32.gmra.mxu0 %v8871
        %v9091 = vpop.f32.mrf.mxu0
        %v9092 = vadd.f32 0.0, %v9091
        %9093 = vmatmul.f32.gmra.mxu0 %v8875
        %v9094 = vpop.f32.mrf.mxu0
        %v9095 = vadd.f32 0.0, %v9094
        %9096 = vmatmul.f32.gmra.mxu0 %v8879
        %v9097 = vpop.f32.mrf.mxu0
        %v9098 = vadd.f32 0.0, %v9097
        %9099 = vmatmul.f32.gmra.mxu0 %v8883
        %v9100 = vpop.f32.mrf.mxu0
        %v9101 = vadd.f32 0.0, %v9100
        %9102 = vmatmul.f32.gmra.mxu0 %v8887
        %v9103 = vpop.f32.mrf.mxu0
        %v9104 = vadd.f32 0.0, %v9103
        %9105 = vmatmul.f32.gmra.mxu0 %v8891
        %v9106 = vpop.f32.mrf.mxu0
        %v9107 = vadd.f32 0.0, %v9106
        %9108 = vmatmul.f32.gmra.mxu0 %v8895
        %v9109 = vpop.f32.mrf.mxu0
        %v9110 = vadd.f32 0.0, %v9109
        %9111 = vmatmul.f32.gmra.mxu0 %v8899
        %v9112 = vpop.f32.mrf.mxu0
        %v9113 = vadd.f32 0.0, %v9112
        %9114 = vmatmul.f32.gmra.mxu0 %v8903
        %v9115 = vpop.f32.mrf.mxu0
        %v9116 = vadd.f32 0.0, %v9115
        %9117 = vmatmul.f32.gmra.mxu0 %v8907
        %v9118 = vpop.f32.mrf.mxu0
        %v9119 = vadd.f32 0.0, %v9118
        %9120 = vmatmul.f32.gmra.mxu0 %v8911
        %v9121 = vpop.f32.mrf.mxu0
        %v9122 = vadd.f32 0.0, %v9121
        %9123 = vdwg.mxu0
        %9124 = vmatpush.msra.mxu0 %v8978
        %9125 = vmatpush.msra.mxu0 %v8977
        %9126 = vmatpush.msra.mxu0 %v8976
        %9127 = vmatpush.msra.mxu0 %v8975
        %9128 = vmatpush.msra.mxu0 %v8974
        %9129 = vmatpush.msra.mxu0 %v8973
        %9130 = vmatpush.msra.mxu0 %v8972
        %9131 = vmatpush.msra.mxu0 %v8971
        %9132 = vmatpush.msra.mxu0 %v8970
        %9133 = vmatpush.msra.mxu0 %v8969
        %9134 = vmatpush.msra.mxu0 %v8968
        %9135 = vmatpush.msra.mxu0 %v8967
        %9136 = vmatpush.msra.mxu0 %v8966
        %9137 = vmatpush.msra.mxu0 %v8965
        %9138 = vmatpush.msra.mxu0 %v8964
        %9139 = vmatpush.msra.mxu0 %v8963
        %9140 = vmatmul.f32.gmra.mxu0 %v8788
        %v9141 = vpop.f32.mrf.mxu0
        %v9142 = vadd.f32 %v9029, %v9141
        %9143 = vmatmul.f32.gmra.mxu0 %v8792
        %v9144 = vpop.f32.mrf.mxu0
        %v9145 = vadd.f32 %v9032, %v9144
        %9146 = vmatmul.f32.gmra.mxu0 %v8796
        %v9147 = vpop.f32.mrf.mxu0
        %v9148 = vadd.f32 %v9035, %v9147
        %9149 = vmatmul.f32.gmra.mxu0 %v8800
        %v9150 = vpop.f32.mrf.mxu0
        %v9151 = vadd.f32 %v9038, %v9150
        %9152 = vmatmul.f32.gmra.mxu0 %v8804
        %v9153 = vpop.f32.mrf.mxu0
        %v9154 = vadd.f32 %v9041, %v9153
        %9155 = vmatmul.f32.gmra.mxu0 %v8808
        %v9156 = vpop.f32.mrf.mxu0
        %v9157 = vadd.f32 %v9044, %v9156
        %9158 = vmatmul.f32.gmra.mxu0 %v8812
        %v9159 = vpop.f32.mrf.mxu0
        %v9160 = vadd.f32 %v9047, %v9159
        %9161 = vmatmul.f32.gmra.mxu0 %v8816
        %v9162 = vpop.f32.mrf.mxu0
        %v9163 = vadd.f32 %v9050, %v9162
        %9164 = vmatmul.f32.gmra.mxu0 %v8820
        %v9165 = vpop.f32.mrf.mxu0
        %v9166 = vadd.f32 %v9053, %v9165
        %9167 = vmatmul.f32.gmra.mxu0 %v8824
        %v9168 = vpop.f32.mrf.mxu0
        %v9169 = vadd.f32 %v9056, %v9168
        %9170 = vmatmul.f32.gmra.mxu0 %v8828
        %v9171 = vpop.f32.mrf.mxu0
        %v9172 = vadd.f32 %v9059, %v9171
        %9173 = vmatmul.f32.gmra.mxu0 %v8832
        %v9174 = vpop.f32.mrf.mxu0
        %v9175 = vadd.f32 %v9062, %v9174
        %9176 = vmatmul.f32.gmra.mxu0 %v8836
        %v9177 = vpop.f32.mrf.mxu0
        %v9178 = vadd.f32 %v9065, %v9177
        %9179 = vmatmul.f32.gmra.mxu0 %v8840
        %v9180 = vpop.f32.mrf.mxu0
        %v9181 = vadd.f32 %v9068, %v9180
        %9182 = vmatmul.f32.gmra.mxu0 %v8844
        %v9183 = vpop.f32.mrf.mxu0
        %v9184 = vadd.f32 %v9071, %v9183
        %9185 = vmatmul.f32.gmra.mxu0 %v8848
        %v9186 = vpop.f32.mrf.mxu0
        %v9187 = vadd.f32 %v9074, %v9186
        %9188 = vmatmul.f32.gmra.mxu0 %v8852
        %v9189 = vpop.f32.mrf.mxu0
        %v9190 = vadd.f32 %v9077, %v9189
        %9191 = vmatmul.f32.gmra.mxu0 %v8856
        %v9192 = vpop.f32.mrf.mxu0
        %v9193 = vadd.f32 %v9080, %v9192
        %9194 = vmatmul.f32.gmra.mxu0 %v8860
        %v9195 = vpop.f32.mrf.mxu0
        %v9196 = vadd.f32 %v9083, %v9195
        %9197 = vmatmul.f32.gmra.mxu0 %v8864
        %v9198 = vpop.f32.mrf.mxu0
        %v9199 = vadd.f32 %v9086, %v9198
        %9200 = vmatmul.f32.gmra.mxu0 %v8868
        %v9201 = vpop.f32.mrf.mxu0
        %v9202 = vadd.f32 %v9089, %v9201
        %9203 = vmatmul.f32.gmra.mxu0 %v8872
        %v9204 = vpop.f32.mrf.mxu0
        %v9205 = vadd.f32 %v9092, %v9204
        %9206 = vmatmul.f32.gmra.mxu0 %v8876
        %v9207 = vpop.f32.mrf.mxu0
        %v9208 = vadd.f32 %v9095, %v9207
        %9209 = vmatmul.f32.gmra.mxu0 %v8880
        %v9210 = vpop.f32.mrf.mxu0
        %v9211 = vadd.f32 %v9098, %v9210
        %9212 = vmatmul.f32.gmra.mxu0 %v8884
        %v9213 = vpop.f32.mrf.mxu0
        %v9214 = vadd.f32 %v9101, %v9213
        %9215 = vmatmul.f32.gmra.mxu0 %v8888
        %v9216 = vpop.f32.mrf.mxu0
        %v9217 = vadd.f32 %v9104, %v9216
        %9218 = vmatmul.f32.gmra.mxu0 %v8892
        %v9219 = vpop.f32.mrf.mxu0
        %v9220 = vadd.f32 %v9107, %v9219
        %9221 = vmatmul.f32.gmra.mxu0 %v8896
        %v9222 = vpop.f32.mrf.mxu0
        %v9223 = vadd.f32 %v9110, %v9222
        %9224 = vmatmul.f32.gmra.mxu0 %v8900
        %v9225 = vpop.f32.mrf.mxu0
        %v9226 = vadd.f32 %v9113, %v9225
        %9227 = vmatmul.f32.gmra.mxu0 %v8904
        %v9228 = vpop.f32.mrf.mxu0
        %v9229 = vadd.f32 %v9116, %v9228
        %9230 = vmatmul.f32.gmra.mxu0 %v8908
        %v9231 = vpop.f32.mrf.mxu0
        %v9232 = vadd.f32 %v9119, %v9231
        %9233 = vmatmul.f32.gmra.mxu0 %v8912
        %v9234 = vpop.f32.mrf.mxu0
        %v9235 = vadd.f32 %v9122, %v9234
        %9236 = vdwg.mxu0
        %9237 = vmatpush.msra.mxu0 %v8994
        %9238 = vmatpush.msra.mxu0 %v8993
        %9239 = vmatpush.msra.mxu0 %v8992
        %9240 = vmatpush.msra.mxu0 %v8991
        %9241 = vmatpush.msra.mxu0 %v8990
        %9242 = vmatpush.msra.mxu0 %v8989
        %9243 = vmatpush.msra.mxu0 %v8988
        %9244 = vmatpush.msra.mxu0 %v8987
        %9245 = vmatpush.msra.mxu0 %v8986
        %9246 = vmatpush.msra.mxu0 %v8985
        %9247 = vmatpush.msra.mxu0 %v8984
        %9248 = vmatpush.msra.mxu0 %v8983
        %9249 = vmatpush.msra.mxu0 %v8982
        %9250 = vmatpush.msra.mxu0 %v8981
        %9251 = vmatpush.msra.mxu0 %v8980
        %9252 = vmatpush.msra.mxu0 %v8979
        %9253 = vmatmul.f32.gmra.mxu0 %v8789
        %v9254 = vpop.f32.mrf.mxu0
        %v9255 = vadd.f32 %v9142, %v9254
        %9256 = vmatmul.f32.gmra.mxu0 %v8793
        %v9257 = vpop.f32.mrf.mxu0
        %v9258 = vadd.f32 %v9145, %v9257
        %9259 = vmatmul.f32.gmra.mxu0 %v8797
        %v9260 = vpop.f32.mrf.mxu0
        %v9261 = vadd.f32 %v9148, %v9260
        %9262 = vmatmul.f32.gmra.mxu0 %v8801
        %v9263 = vpop.f32.mrf.mxu0
        %v9264 = vadd.f32 %v9151, %v9263
        %9265 = vmatmul.f32.gmra.mxu0 %v8805
        %v9266 = vpop.f32.mrf.mxu0
        %v9267 = vadd.f32 %v9154, %v9266
        %9268 = vmatmul.f32.gmra.mxu0 %v8809
        %v9269 = vpop.f32.mrf.mxu0
        %v9270 = vadd.f32 %v9157, %v9269
        %9271 = vmatmul.f32.gmra.mxu0 %v8813
        %v9272 = vpop.f32.mrf.mxu0
        %v9273 = vadd.f32 %v9160, %v9272
        %9274 = vmatmul.f32.gmra.mxu0 %v8817
        %v9275 = vpop.f32.mrf.mxu0
        %v9276 = vadd.f32 %v9163, %v9275
        %9277 = vmatmul.f32.gmra.mxu0 %v8821
        %v9278 = vpop.f32.mrf.mxu0
        %v9279 = vadd.f32 %v9166, %v9278
        %9280 = vmatmul.f32.gmra.mxu0 %v8825
        %v9281 = vpop.f32.mrf.mxu0
        %v9282 = vadd.f32 %v9169, %v9281
        %9283 = vmatmul.f32.gmra.mxu0 %v8829
        %v9284 = vpop.f32.mrf.mxu0
        %v9285 = vadd.f32 %v9172, %v9284
        %9286 = vmatmul.f32.gmra.mxu0 %v8833
        %v9287 = vpop.f32.mrf.mxu0
        %v9288 = vadd.f32 %v9175, %v9287
        %9289 = vmatmul.f32.gmra.mxu0 %v8837
        %v9290 = vpop.f32.mrf.mxu0
        %v9291 = vadd.f32 %v9178, %v9290
        %9292 = vmatmul.f32.gmra.mxu0 %v8841
        %v9293 = vpop.f32.mrf.mxu0
        %v9294 = vadd.f32 %v9181, %v9293
        %9295 = vmatmul.f32.gmra.mxu0 %v8845
        %v9296 = vpop.f32.mrf.mxu0
        %v9297 = vadd.f32 %v9184, %v9296
        %9298 = vmatmul.f32.gmra.mxu0 %v8849
        %v9299 = vpop.f32.mrf.mxu0
        %v9300 = vadd.f32 %v9187, %v9299
        %9301 = vmatmul.f32.gmra.mxu0 %v8853
        %v9302 = vpop.f32.mrf.mxu0
        %v9303 = vadd.f32 %v9190, %v9302
        %9304 = vmatmul.f32.gmra.mxu0 %v8857
        %v9305 = vpop.f32.mrf.mxu0
        %v9306 = vadd.f32 %v9193, %v9305
        %9307 = vmatmul.f32.gmra.mxu0 %v8861
        %v9308 = vpop.f32.mrf.mxu0
        %v9309 = vadd.f32 %v9196, %v9308
        %9310 = vmatmul.f32.gmra.mxu0 %v8865
        %v9311 = vpop.f32.mrf.mxu0
        %v9312 = vadd.f32 %v9199, %v9311
        %9313 = vmatmul.f32.gmra.mxu0 %v8869
        %v9314 = vpop.f32.mrf.mxu0
        %v9315 = vadd.f32 %v9202, %v9314
        %9316 = vmatmul.f32.gmra.mxu0 %v8873
        %v9317 = vpop.f32.mrf.mxu0
        %v9318 = vadd.f32 %v9205, %v9317
        %9319 = vmatmul.f32.gmra.mxu0 %v8877
        %v9320 = vpop.f32.mrf.mxu0
        %v9321 = vadd.f32 %v9208, %v9320
        %9322 = vmatmul.f32.gmra.mxu0 %v8881
        %v9323 = vpop.f32.mrf.mxu0
        %v9324 = vadd.f32 %v9211, %v9323
        %9325 = vmatmul.f32.gmra.mxu0 %v8885
        %v9326 = vpop.f32.mrf.mxu0
        %v9327 = vadd.f32 %v9214, %v9326
        %9328 = vmatmul.f32.gmra.mxu0 %v8889
        %v9329 = vpop.f32.mrf.mxu0
        %v9330 = vadd.f32 %v9217, %v9329
        %9331 = vmatmul.f32.gmra.mxu0 %v8893
        %v9332 = vpop.f32.mrf.mxu0
        %v9333 = vadd.f32 %v9220, %v9332
        %9334 = vmatmul.f32.gmra.mxu0 %v8897
        %v9335 = vpop.f32.mrf.mxu0
        %v9336 = vadd.f32 %v9223, %v9335
        %9337 = vmatmul.f32.gmra.mxu0 %v8901
        %v9338 = vpop.f32.mrf.mxu0
        %v9339 = vadd.f32 %v9226, %v9338
        %9340 = vmatmul.f32.gmra.mxu0 %v8905
        %v9341 = vpop.f32.mrf.mxu0
        %v9342 = vadd.f32 %v9229, %v9341
        %9343 = vmatmul.f32.gmra.mxu0 %v8909
        %v9344 = vpop.f32.mrf.mxu0
        %v9345 = vadd.f32 %v9232, %v9344
        %9346 = vmatmul.f32.gmra.mxu0 %v8913
        %v9347 = vpop.f32.mrf.mxu0
        %v9348 = vadd.f32 %v9235, %v9347
        %9349 = vdwg.mxu0
        %9350 = vmatpush.msra.mxu0 %v9010
        %9351 = vmatpush.msra.mxu0 %v9009
        %9352 = vmatpush.msra.mxu0 %v9008
        %9353 = vmatpush.msra.mxu0 %v9007
        %9354 = vmatpush.msra.mxu0 %v9006
        %9355 = vmatpush.msra.mxu0 %v9005
        %9356 = vmatpush.msra.mxu0 %v9004
        %9357 = vmatpush.msra.mxu0 %v9003
        %9358 = vmatpush.msra.mxu0 %v9002
        %9359 = vmatpush.msra.mxu0 %v9001
        %9360 = vmatpush.msra.mxu0 %v9000
        %9361 = vmatpush.msra.mxu0 %v8999
        %9362 = vmatpush.msra.mxu0 %v8998
        %9363 = vmatpush.msra.mxu0 %v8997
        %9364 = vmatpush.msra.mxu0 %v8996
        %9365 = vmatpush.msra.mxu0 %v8995
        %9366 = vmatmul.f32.gmra.mxu0 %v8790
        %v9367 = vpop.f32.mrf.mxu0
        %v9368 = vadd.f32 %v9255, %v9367
        %9369 = vmatmul.f32.gmra.mxu0 %v8794
        %v9370 = vpop.f32.mrf.mxu0
        %v9371 = vadd.f32 %v9258, %v9370
        %9372 = vmatmul.f32.gmra.mxu0 %v8798
        %v9373 = vpop.f32.mrf.mxu0
        %v9374 = vadd.f32 %v9261, %v9373
        %9375 = vmatmul.f32.gmra.mxu0 %v8802
        %v9376 = vpop.f32.mrf.mxu0
        %v9377 = vadd.f32 %v9264, %v9376
        %9378 = vmatmul.f32.gmra.mxu0 %v8806
        %v9379 = vpop.f32.mrf.mxu0
        %v9380 = vadd.f32 %v9267, %v9379
        %9381 = vmatmul.f32.gmra.mxu0 %v8810
        %v9382 = vpop.f32.mrf.mxu0
        %v9383 = vadd.f32 %v9270, %v9382
        %9384 = vmatmul.f32.gmra.mxu0 %v8814
        %v9385 = vpop.f32.mrf.mxu0
        %v9386 = vadd.f32 %v9273, %v9385
        %9387 = vmatmul.f32.gmra.mxu0 %v8818
        %v9388 = vpop.f32.mrf.mxu0
        %v9389 = vadd.f32 %v9276, %v9388
        %9390 = vmatmul.f32.gmra.mxu0 %v8822
        %v9391 = vpop.f32.mrf.mxu0
        %v9392 = vadd.f32 %v9279, %v9391
        %9393 = vmatmul.f32.gmra.mxu0 %v8826
        %v9394 = vpop.f32.mrf.mxu0
        %v9395 = vadd.f32 %v9282, %v9394
        %9396 = vmatmul.f32.gmra.mxu0 %v8830
        %v9397 = vpop.f32.mrf.mxu0
        %v9398 = vadd.f32 %v9285, %v9397
        %9399 = vmatmul.f32.gmra.mxu0 %v8834
        %v9400 = vpop.f32.mrf.mxu0
        %v9401 = vadd.f32 %v9288, %v9400
        %9402 = vmatmul.f32.gmra.mxu0 %v8838
        %v9403 = vpop.f32.mrf.mxu0
        %v9404 = vadd.f32 %v9291, %v9403
        %9405 = vmatmul.f32.gmra.mxu0 %v8842
        %v9406 = vpop.f32.mrf.mxu0
        %v9407 = vadd.f32 %v9294, %v9406
        %9408 = vmatmul.f32.gmra.mxu0 %v8846
        %v9409 = vpop.f32.mrf.mxu0
        %v9410 = vadd.f32 %v9297, %v9409
        %9411 = vmatmul.f32.gmra.mxu0 %v8850
        %v9412 = vpop.f32.mrf.mxu0
        %v9413 = vadd.f32 %v9300, %v9412
        %9414 = vmatmul.f32.gmra.mxu0 %v8854
        %v9415 = vpop.f32.mrf.mxu0
        %v9416 = vadd.f32 %v9303, %v9415
        %9417 = vmatmul.f32.gmra.mxu0 %v8858
        %v9418 = vpop.f32.mrf.mxu0
        %v9419 = vadd.f32 %v9306, %v9418
        %9420 = vmatmul.f32.gmra.mxu0 %v8862
        %v9421 = vpop.f32.mrf.mxu0
        %v9422 = vadd.f32 %v9309, %v9421
        %9423 = vmatmul.f32.gmra.mxu0 %v8866
        %v9424 = vpop.f32.mrf.mxu0
        %v9425 = vadd.f32 %v9312, %v9424
        %9426 = vmatmul.f32.gmra.mxu0 %v8870
        %v9427 = vpop.f32.mrf.mxu0
        %v9428 = vadd.f32 %v9315, %v9427
        %9429 = vmatmul.f32.gmra.mxu0 %v8874
        %v9430 = vpop.f32.mrf.mxu0
        %v9431 = vadd.f32 %v9318, %v9430
        %9432 = vmatmul.f32.gmra.mxu0 %v8878
        %v9433 = vpop.f32.mrf.mxu0
        %v9434 = vadd.f32 %v9321, %v9433
        %9435 = vmatmul.f32.gmra.mxu0 %v8882
        %v9436 = vpop.f32.mrf.mxu0
        %v9437 = vadd.f32 %v9324, %v9436
        %9438 = vmatmul.f32.gmra.mxu0 %v8886
        %v9439 = vpop.f32.mrf.mxu0
        %v9440 = vadd.f32 %v9327, %v9439
        %9441 = vmatmul.f32.gmra.mxu0 %v8890
        %v9442 = vpop.f32.mrf.mxu0
        %v9443 = vadd.f32 %v9330, %v9442
        %9444 = vmatmul.f32.gmra.mxu0 %v8894
        %v9445 = vpop.f32.mrf.mxu0
        %v9446 = vadd.f32 %v9333, %v9445
        %9447 = vmatmul.f32.gmra.mxu0 %v8898
        %v9448 = vpop.f32.mrf.mxu0
        %v9449 = vadd.f32 %v9336, %v9448
        %9450 = vmatmul.f32.gmra.mxu0 %v8902
        %v9451 = vpop.f32.mrf.mxu0
        %v9452 = vadd.f32 %v9339, %v9451
        %9453 = vmatmul.f32.gmra.mxu0 %v8906
        %v9454 = vpop.f32.mrf.mxu0
        %v9455 = vadd.f32 %v9342, %v9454
        %9456 = vmatmul.f32.gmra.mxu0 %v8910
        %v9457 = vpop.f32.mrf.mxu0
        %v9458 = vadd.f32 %v9345, %v9457
        %9459 = vmatmul.f32.gmra.mxu0 %v8914
        %v9460 = vpop.f32.mrf.mxu0
        %v9461 = vadd.f32 %v9348, %v9460
        %9462 = vdwg.mxu0
        %v9463 = vadd.f32 %v8915, %v9368
        %v9464 = vadd.f32 %v8916, %v9371
        %v9465 = vadd.f32 %v8917, %v9374
        %v9466 = vadd.f32 %v8918, %v9377
        %v9467 = vadd.f32 %v8919, %v9380
        %v9468 = vadd.f32 %v8920, %v9383
        %v9469 = vadd.f32 %v8921, %v9386
        %v9470 = vadd.f32 %v8922, %v9389
        %v9471 = vadd.f32 %v8923, %v9392
        %v9472 = vadd.f32 %v8924, %v9395
        %v9473 = vadd.f32 %v8925, %v9398
        %v9474 = vadd.f32 %v8926, %v9401
        %v9475 = vadd.f32 %v8927, %v9404
        %v9476 = vadd.f32 %v8928, %v9407
        %v9477 = vadd.f32 %v8929, %v9410
        %v9478 = vadd.f32 %v8930, %v9413
        %v9479 = vadd.f32 %v8931, %v9416
        %v9480 = vadd.f32 %v8932, %v9419
        %v9481 = vadd.f32 %v8933, %v9422
        %v9482 = vadd.f32 %v8934, %v9425
        %v9483 = vadd.f32 %v8935, %v9428
        %v9484 = vadd.f32 %v8936, %v9431
        %v9485 = vadd.f32 %v8937, %v9434
        %v9486 = vadd.f32 %v8938, %v9437
        %v9487 = vadd.f32 %v8939, %v9440
        %v9488 = vadd.f32 %v8940, %v9443
        %v9489 = vadd.f32 %v8941, %v9446
        %v9490 = vadd.f32 %v8942, %v9449
        %v9491 = vadd.f32 %v8943, %v9452
        %v9492 = vadd.f32 %v8944, %v9455
        %v9493 = vadd.f32 %v8945, %v9458
        %v9494 = vadd.f32 %v8946, %v9461
        %9495 = vst [vmem:[#allocation4] sm:$0xff] %v9463
        %9496 = vst [vmem:[#allocation4 + $0x8] sm:$0xff] %v9464
        %9497 = vst [vmem:[#allocation4 + $0x10] sm:$0xff] %v9465
        %9498 = vst [vmem:[#allocation4 + $0x18] sm:$0xff] %v9466
        %9499 = vst [vmem:[#allocation4 + $0x20] sm:$0xff] %v9467
        %9500 = vst [vmem:[#allocation4 + $0x28] sm:$0xff] %v9468
        %9501 = vst [vmem:[#allocation4 + $0x30] sm:$0xff] %v9469
        %9502 = vst [vmem:[#allocation4 + $0x38] sm:$0xff] %v9470
        %9503 = vst [vmem:[#allocation4 + $0x40] sm:$0xff] %v9471
        %9504 = vst [vmem:[#allocation4 + $0x48] sm:$0xff] %v9472
        %9505 = vst [vmem:[#allocation4 + $0x50] sm:$0xff] %v9473
        %9506 = vst [vmem:[#allocation4 + $0x58] sm:$0xff] %v9474
        %9507 = vst [vmem:[#allocation4 + $0x60] sm:$0xff] %v9475
        %9508 = vst [vmem:[#allocation4 + $0x68] sm:$0xff] %v9476
        %9509 = vst [vmem:[#allocation4 + $0x70] sm:$0xff] %v9477
        %9510 = vst [vmem:[#allocation4 + $0x78] sm:$0xff] %v9478
        %9511 = vst [vmem:[#allocation4 + $0x80] sm:$0xff] %v9479
        %9512 = vst [vmem:[#allocation4 + $0x88] sm:$0xff] %v9480
        %9513 = vst [vmem:[#allocation4 + $0x90] sm:$0xff] %v9481
        %9514 = vst [vmem:[#allocation4 + $0x98] sm:$0xff] %v9482
        %9515 = vst [vmem:[#allocation4 + $0xa0] sm:$0xff] %v9483
        %9516 = vst [vmem:[#allocation4 + $0xa8] sm:$0xff] %v9484
        %9517 = vst [vmem:[#allocation4 + $0xb0] sm:$0xff] %v9485
        %9518 = vst [vmem:[#allocation4 + $0xb8] sm:$0xff] %v9486
        %9519 = vst [vmem:[#allocation4 + $0xc0] sm:$0xff] %v9487
        %9520 = vst [vmem:[#allocation4 + $0xc8] sm:$0xff] %v9488
        %9521 = vst [vmem:[#allocation4 + $0xd0] sm:$0xff] %v9489
        %9522 = vst [vmem:[#allocation4 + $0xd8] sm:$0xff] %v9490
        %9523 = vst [vmem:[#allocation4 + $0xe0] sm:$0xff] %v9491
        %9524 = vst [vmem:[#allocation4 + $0xe8] sm:$0xff] %v9492
        %9525 = vst [vmem:[#allocation4 + $0xf0] sm:$0xff] %v9493
        %9526 = vst [vmem:[#allocation4 + $0xf8] sm:$0xff] %v9494
        // Predicated region
        $region101: #{tpu_custom_call.1} parent=67 // pred_check
          %p9527 = pneg %p583
        $region102: #{tpu_custom_call.1} parent=67 // pred_check_branch
          %9529 = sbr.rel (%p9527) target = $region104
        $region103: #{tpu_custom_call.1} parent=67 // pred_region
          %v9530 = vld [vmem:[#allocation4] sm:$0xff]
          %v9531 = vld [vmem:[#allocation4 + $0x8] sm:$0xff]
          %v9532 = vld [vmem:[#allocation4 + $0x10] sm:$0xff]
          %v9533 = vld [vmem:[#allocation4 + $0x18] sm:$0xff]
          %v9534 = vld [vmem:[#allocation4 + $0x20] sm:$0xff]
          %v9535 = vld [vmem:[#allocation4 + $0x28] sm:$0xff]
          %v9536 = vld [vmem:[#allocation4 + $0x30] sm:$0xff]
          %v9537 = vld [vmem:[#allocation4 + $0x38] sm:$0xff]
          %v9538 = vld [vmem:[#allocation4 + $0x40] sm:$0xff]
          %v9539 = vld [vmem:[#allocation4 + $0x48] sm:$0xff]
          %v9540 = vld [vmem:[#allocation4 + $0x50] sm:$0xff]
          %v9541 = vld [vmem:[#allocation4 + $0x58] sm:$0xff]
          %v9542 = vld [vmem:[#allocation4 + $0x60] sm:$0xff]
          %v9543 = vld [vmem:[#allocation4 + $0x68] sm:$0xff]
          %v9544 = vld [vmem:[#allocation4 + $0x70] sm:$0xff]
          %v9545 = vld [vmem:[#allocation4 + $0x78] sm:$0xff]
          %v9546 = vld [vmem:[#allocation4 + $0x80] sm:$0xff]
          %v9547 = vld [vmem:[#allocation4 + $0x88] sm:$0xff]
          %v9548 = vld [vmem:[#allocation4 + $0x90] sm:$0xff]
          %v9549 = vld [vmem:[#allocation4 + $0x98] sm:$0xff]
          %v9550 = vld [vmem:[#allocation4 + $0xa0] sm:$0xff]
          %v9551 = vld [vmem:[#allocation4 + $0xa8] sm:$0xff]
          %v9552 = vld [vmem:[#allocation4 + $0xb0] sm:$0xff]
          %v9553 = vld [vmem:[#allocation4 + $0xb8] sm:$0xff]
          %v9554 = vld [vmem:[#allocation4 + $0xc0] sm:$0xff]
          %v9555 = vld [vmem:[#allocation4 + $0xc8] sm:$0xff]
          %v9556 = vld [vmem:[#allocation4 + $0xd0] sm:$0xff]
          %v9557 = vld [vmem:[#allocation4 + $0xd8] sm:$0xff]
          %v9558 = vld [vmem:[#allocation4 + $0xe0] sm:$0xff]
          %v9559 = vld [vmem:[#allocation4 + $0xe8] sm:$0xff]
          %v9560 = vld [vmem:[#allocation4 + $0xf0] sm:$0xff]
          %v9561 = vld [vmem:[#allocation4 + $0xf8] sm:$0xff]
          %v9562 = vld [vmem:[%s11] sm:$0x1]
          %v9564 = vperm.slane %v9562, 0
          %v9566 = vadd.f32 %v9530, %v9564
          %v9567 = vadd.f32 %v9531, %v9564
          %v9568 = vadd.f32 %v9532, %v9564
          %v9569 = vadd.f32 %v9533, %v9564
          %v9570 = vadd.f32 %v9534, %v9564
          %v9571 = vadd.f32 %v9535, %v9564
          %v9572 = vadd.f32 %v9536, %v9564
          %v9573 = vadd.f32 %v9537, %v9564
          %v9574 = vadd.f32 %v9538, %v9564
          %v9575 = vadd.f32 %v9539, %v9564
          %v9576 = vadd.f32 %v9540, %v9564
          %v9577 = vadd.f32 %v9541, %v9564
          %v9578 = vadd.f32 %v9542, %v9564
          %v9579 = vadd.f32 %v9543, %v9564
          %v9580 = vadd.f32 %v9544, %v9564
          %v9581 = vadd.f32 %v9545, %v9564
          %v9582 = vadd.f32 %v9546, %v9564
          %v9583 = vadd.f32 %v9547, %v9564
          %v9584 = vadd.f32 %v9548, %v9564
          %v9585 = vadd.f32 %v9549, %v9564
          %v9586 = vadd.f32 %v9550, %v9564
          %v9587 = vadd.f32 %v9551, %v9564
          %v9588 = vadd.f32 %v9552, %v9564
          %v9589 = vadd.f32 %v9553, %v9564
          %v9590 = vadd.f32 %v9554, %v9564
          %v9591 = vadd.f32 %v9555, %v9564
          %v9592 = vadd.f32 %v9556, %v9564
          %v9593 = vadd.f32 %v9557, %v9564
          %v9594 = vadd.f32 %v9558, %v9564
          %v9595 = vadd.f32 %v9559, %v9564
          %v9596 = vadd.f32 %v9560, %v9564
          %v9597 = vadd.f32 %v9561, %v9564
          %v9598 = vld [vmem:[#allocation2] sm:$0xff]
          %v9599 = vld [vmem:[#allocation2 + $0x8] sm:$0xff]
          %v9600 = vld [vmem:[#allocation2 + $0x10] sm:$0xff]
          %v9601 = vld [vmem:[#allocation2 + $0x18] sm:$0xff]
          %v9602 = vld [vmem:[#allocation2 + $0x20] sm:$0xff]
          %v9603 = vld [vmem:[#allocation2 + $0x28] sm:$0xff]
          %v9604 = vld [vmem:[#allocation2 + $0x30] sm:$0xff]
          %v9605 = vld [vmem:[#allocation2 + $0x38] sm:$0xff]
          %v9606 = vld [vmem:[#allocation2 + $0x40] sm:$0xff]
          %v9607 = vld [vmem:[#allocation2 + $0x48] sm:$0xff]
          %v9608 = vld [vmem:[#allocation2 + $0x50] sm:$0xff]
          %v9609 = vld [vmem:[#allocation2 + $0x58] sm:$0xff]
          %v9610 = vld [vmem:[#allocation2 + $0x60] sm:$0xff]
          %v9611 = vld [vmem:[#allocation2 + $0x68] sm:$0xff]
          %v9612 = vld [vmem:[#allocation2 + $0x70] sm:$0xff]
          %v9613 = vld [vmem:[#allocation2 + $0x78] sm:$0xff]
          %v9614 = vld [vmem:[#allocation2 + $0x80] sm:$0xff]
          %v9615 = vld [vmem:[#allocation2 + $0x88] sm:$0xff]
          %v9616 = vld [vmem:[#allocation2 + $0x90] sm:$0xff]
          %v9617 = vld [vmem:[#allocation2 + $0x98] sm:$0xff]
          %v9618 = vld [vmem:[#allocation2 + $0xa0] sm:$0xff]
          %v9619 = vld [vmem:[#allocation2 + $0xa8] sm:$0xff]
          %v9620 = vld [vmem:[#allocation2 + $0xb0] sm:$0xff]
          %v9621 = vld [vmem:[#allocation2 + $0xb8] sm:$0xff]
          %v9622 = vld [vmem:[#allocation2 + $0xc0] sm:$0xff]
          %v9623 = vld [vmem:[#allocation2 + $0xc8] sm:$0xff]
          %v9624 = vld [vmem:[#allocation2 + $0xd0] sm:$0xff]
          %v9625 = vld [vmem:[#allocation2 + $0xd8] sm:$0xff]
          %v9626 = vld [vmem:[#allocation2 + $0xe0] sm:$0xff]
          %v9627 = vld [vmem:[#allocation2 + $0xe8] sm:$0xff]
          %v9628 = vld [vmem:[#allocation2 + $0xf0] sm:$0xff]
          %v9629 = vld [vmem:[#allocation2 + $0xf8] sm:$0xff]
          %v9630 = vadd.f32 %v9566, %v9598
          %v9631 = vadd.f32 %v9567, %v9599
          %v9632 = vadd.f32 %v9568, %v9600
          %v9633 = vadd.f32 %v9569, %v9601
          %v9634 = vadd.f32 %v9570, %v9602
          %v9635 = vadd.f32 %v9571, %v9603
          %v9636 = vadd.f32 %v9572, %v9604
          %v9637 = vadd.f32 %v9573, %v9605
          %v9638 = vadd.f32 %v9574, %v9606
          %v9639 = vadd.f32 %v9575, %v9607
          %v9640 = vadd.f32 %v9576, %v9608
          %v9641 = vadd.f32 %v9577, %v9609
          %v9642 = vadd.f32 %v9578, %v9610
          %v9643 = vadd.f32 %v9579, %v9611
          %v9644 = vadd.f32 %v9580, %v9612
          %v9645 = vadd.f32 %v9581, %v9613
          %v9646 = vadd.f32 %v9582, %v9614
          %v9647 = vadd.f32 %v9583, %v9615
          %v9648 = vadd.f32 %v9584, %v9616
          %v9649 = vadd.f32 %v9585, %v9617
          %v9650 = vadd.f32 %v9586, %v9618
          %v9651 = vadd.f32 %v9587, %v9619
          %v9652 = vadd.f32 %v9588, %v9620
          %v9653 = vadd.f32 %v9589, %v9621
          %v9654 = vadd.f32 %v9590, %v9622
          %v9655 = vadd.f32 %v9591, %v9623
          %v9656 = vadd.f32 %v9592, %v9624
          %v9657 = vadd.f32 %v9593, %v9625
          %v9658 = vadd.f32 %v9594, %v9626
          %v9659 = vadd.f32 %v9595, %v9627
          %v9660 = vadd.f32 %v9596, %v9628
          %v9661 = vadd.f32 %v9597, %v9629
          %9662 = vst [vmem:[%s573] sm:$0xff] %v9630
          %9663 = vst [vmem:[%s573 + $0x8] sm:$0xff] %v9631
          %9664 = vst [vmem:[%s573 + $0x10] sm:$0xff] %v9632
          %9665 = vst [vmem:[%s573 + $0x18] sm:$0xff] %v9633
          %9666 = vst [vmem:[%s573 + $0x20] sm:$0xff] %v9634
          %9667 = vst [vmem:[%s573 + $0x28] sm:$0xff] %v9635
          %9668 = vst [vmem:[%s573 + $0x30] sm:$0xff] %v9636
          %9669 = vst [vmem:[%s573 + $0x38] sm:$0xff] %v9637
          %9670 = vst [vmem:[%s573 + $0x40] sm:$0xff] %v9638
          %9671 = vst [vmem:[%s573 + $0x48] sm:$0xff] %v9639
          %9672 = vst [vmem:[%s573 + $0x50] sm:$0xff] %v9640
          %9673 = vst [vmem:[%s573 + $0x58] sm:$0xff] %v9641
          %9674 = vst [vmem:[%s573 + $0x60] sm:$0xff] %v9642
          %9675 = vst [vmem:[%s573 + $0x68] sm:$0xff] %v9643
          %9676 = vst [vmem:[%s573 + $0x70] sm:$0xff] %v9644
          %9677 = vst [vmem:[%s573 + $0x78] sm:$0xff] %v9645
          %9678 = vst [vmem:[%s573 + $0x80] sm:$0xff] %v9646
          %9679 = vst [vmem:[%s573 + $0x88] sm:$0xff] %v9647
          %9680 = vst [vmem:[%s573 + $0x90] sm:$0xff] %v9648
          %9681 = vst [vmem:[%s573 + $0x98] sm:$0xff] %v9649
          %9682 = vst [vmem:[%s573 + $0xa0] sm:$0xff] %v9650
          %9683 = vst [vmem:[%s573 + $0xa8] sm:$0xff] %v9651
          %9684 = vst [vmem:[%s573 + $0xb0] sm:$0xff] %v9652
          %9685 = vst [vmem:[%s573 + $0xb8] sm:$0xff] %v9653
          %9686 = vst [vmem:[%s573 + $0xc0] sm:$0xff] %v9654
          %9687 = vst [vmem:[%s573 + $0xc8] sm:$0xff] %v9655
          %9688 = vst [vmem:[%s573 + $0xd0] sm:$0xff] %v9656
          %9689 = vst [vmem:[%s573 + $0xd8] sm:$0xff] %v9657
          %9690 = vst [vmem:[%s573 + $0xe0] sm:$0xff] %v9658
          %9691 = vst [vmem:[%s573 + $0xe8] sm:$0xff] %v9659
          %9692 = vst [vmem:[%s573 + $0xf0] sm:$0xff] %v9660
          %9693 = vst [vmem:[%s573 + $0xf8] sm:$0xff] %v9661
        $region104: #{tpu_custom_call.1} parent=67 // pred_fallthru
          _
        %s9694 = sand.u32 %s324, 1
        %s9695 = scalar_lea.sflag [#allocation7], %s9694
        %s9696 = sand.u32 %s324, 1
        %s9697 = smul.addr %s9696, 256
        %s9698 = scalar_lea.vmem [#allocation17], %s9697
        // Predicated region
        $region105: #{tpu_custom_call.1} parent=67 // pred_check
          %p9699 = pneg %p334
        $region106: #{tpu_custom_call.1} parent=67 // pred_check_branch
          %9701 = sbr.rel (%p9699) target = $region108
        $region107: #{tpu_custom_call.1} parent=67 // pred_region
          %s9702 = smul.u32 16, %s36
          %9704 = vsyncadd %s9695, 0
          %s9705 = smul.addr %s9702, 2
          %s9706 = smul.addr %s9705, 8
          %s9707 = scalar_lea.hbm %s12, %s9706
          %s9708 = sshll.u32 %s9698, 4
          %s9709 = int_to_ptr.vmem [resolvable:$true] %s9708
          %s9710 = sshll.u32 %s9707, 4
          %s9711 = int_to_ptr.hbm [resolvable:$true] %s9710
          %9716 = dma.vmem_to_hbm [thread:$0]  %s9709, 4096, %s9711, %s9695, 128, 128, 8
        $region108: #{tpu_custom_call.1} parent=67 // pred_fallthru
          _
      $region68: #{tpu_custom_call.1} parent=5 // pred_fallthru
        _
      %p9717 = scmp.le.s32.totalorder 2, %s27
      // Predicated region
      $region109: #{tpu_custom_call.1} parent=5 // pred_check
        %p9718 = pneg %p9717
      $region110: #{tpu_custom_call.1} parent=5 // pred_check_branch
        %9720 = sbr.rel (%p9718) target = $region112
      $region111: #{tpu_custom_call.1} parent=5 // pred_region
        %s9721 = ssub.s32 %s27, 2
        // Predicated region
        $region113: #{tpu_custom_call.1} parent=111 // pred_check
          %p9722 = pneg %p340
        $region114: #{tpu_custom_call.1} parent=111 // pred_check_branch
          %9724 = sbr.rel (%p9722) target = $region116
        $region115: #{tpu_custom_call.1} parent=111 // pred_region
          %s9725 = sand.u32 %s325, 1
          %s9726 = scalar_lea.sflag [#allocation7], %s9725
          %s9727 = sand.u32 %s325, 1
          %s9728 = smul.addr %s9727, 256
          %s9729 = scalar_lea.vmem [#allocation17], %s9728
          %9731 = dma.done %s9726, 4096
        $region116: #{tpu_custom_call.1} parent=111 // pred_fallthru
          _
      $region112: #{tpu_custom_call.1} parent=5 // pred_fallthru
        _
    $region6: #{tpu_custom_call.1} parent=1 // loop_footer
      %s31 = sadd.s32 1, %s27
    $region7: #{tpu_custom_call.1} parent=1 // loop_footer_branch
      %26 = sbr.rel target = $region3
    $region8: #{tpu_custom_call.1} parent=1 // loop_exit
      _
    %9732 = vsyncpa [#allocation6], 1
    %s9733 = scalar_lea.sflag [#allocation6], 1
    %9734 = vsyncpa %s9733, 1
    %9735 = vsyncpa [#allocation9], 1
    %9736 = vsyncpa [#allocation12], 1
    %9737 = vsyncpa [#allocation15], 1
    %9738 = vsyncpa [#allocation7], 1
    %s9739 = scalar_lea.sflag [#allocation7], 1
    %9740 = vsyncpa %s9739, 1

</llo_original>
